<compile_context>
chip_gen: v7x
topology: tpu7x:2x2x1
jax: 0.10.0
libtpu: 0.0.40
codegen_flags: <defaults>
</compile_context>

<pallas_src>
import math
from functools import partial

import jax
import jax.numpy as jnp
from jax.experimental import pallas as pl
from jax.experimental.pallas import tpu as pltpu

# ----------------------------- configuration ---------------------------------
D_MODEL = 256          # fixed by the module (hard-coded 256 / 128 inside forward)
NHEAD = 8
HEAD_DIM = D_MODEL // NHEAD
N_LEVELS = 4
N_POINTS = 4
NUM_ENC_LAYERS = 2
NUM_DEC_LAYERS = 2
D_FFN = 256
NUM_QUERIES = 16
NEG_INF = -1e30        # exp() underflows to exactly 0 in fp32, same effect as -inf
LN_EPS = 1e-5


def _round_up(x, m):
    return -(-x // m) * m


# ----------------------------- Pallas kernels --------------------------------
def _linear_kernel(x_ref, w_ref, b_ref, o_ref, *, activation):
    acc = jnp.dot(x_ref[...].astype(w_ref.dtype), w_ref[...],
                  preferred_element_type=jnp.float32)
    acc = acc + b_ref[...]
    if activation == "relu":
        acc = jnp.maximum(acc, 0.0)
    o_ref[...] = acc


def pallas_linear(x, wt, b, activation="none"):
    """y = x @ wt + b with weights pre-transposed to [in, out] (bf16) at param-prep time.

    Hot-path shapes (K=256/384, N in {128,256,384,512,768}, M multiple of 8) hit the no-copy
    fast path; anything else is padded once.  Rows are tiled when M is large (v7x VMEM)."""
    orig = x.shape
    K = orig[-1]
    N = wt.shape[1]
    x2 = x.reshape(-1, K)
    M = x2.shape[0]
    Mp, Kp, Np = _round_up(M, 8), _round_up(K, 128), _round_up(N, 128)
    if Mp <= 512:
        TM = Mp
    else:
        TM = 256
        Mp = _round_up(Mp, TM)
    if x2.shape != (Mp, Kp):
        x2 = jnp.zeros((Mp, Kp), x2.dtype).at[:M, :K].set(x2)
    if wt.shape != (Kp, Np):
        wt = jnp.zeros((Kp, Np), wt.dtype).at[:K, :N].set(wt)
    if b.shape != (1, Np):
        b = jnp.zeros((1, Np), b.dtype).at[:, :N].set(b)
    out = pl.pallas_call(
        partial(_linear_kernel, activation=activation),
        out_shape=jax.ShapeDtypeStruct((Mp, Np), jnp.float32),
        grid=(Mp // TM,),
        in_specs=[pl.BlockSpec((TM, Kp), lambda i: (i, 0)),
                  pl.BlockSpec((Kp, Np), lambda i: (0, 0)),
                  pl.BlockSpec((1, Np), lambda i: (0, 0))],
        out_specs=pl.BlockSpec((TM, Np), lambda i: (i, 0)),
        compiler_params=pltpu.CompilerParams(dimension_semantics=("parallel",)),
    )(x2, wt, b)
    return out[:M, :N].reshape(orig[:-1] + (N,))


def _add_ln_kernel(x_ref, y_ref, g_ref, b_ref, o_ref, *, eps):
    z = x_ref[...] + y_ref[...]
    mean = jnp.mean(z, axis=-1, keepdims=True)
    var = jnp.mean((z - mean) ** 2, axis=-1, keepdims=True)
    o_ref[...] = (z - mean) * jax.lax.rsqrt(var + eps) * g_ref[...] + b_ref[...]


def pallas_add_layernorm(x, y, gamma, beta, eps=LN_EPS):
    """Fused residual + LayerNorm: LN(x + y).  gamma/beta pre-shaped [1, D]."""
    orig = x.shape
    D = orig[-1]
    x2 = x.reshape(-1, D)
    y2 = y.reshape(-1, D)
    M = x2.shape[0]
    Mp = _round_up(M, 8)
    if Mp != M:
        x2 = jnp.zeros((Mp, D), x2.dtype).at[:M].set(x2)
        y2 = jnp.zeros((Mp, D), y2.dtype).at[:M].set(y2)
    out = pl.pallas_call(
        partial(_add_ln_kernel, eps=eps),
        out_shape=jax.ShapeDtypeStruct((Mp, D), jnp.float32),
        grid=(1,),
        in_specs=[pl.BlockSpec((Mp, D), lambda i: (0, 0)),
                  pl.BlockSpec((Mp, D), lambda i: (0, 0)),
                  pl.BlockSpec((1, D), lambda i: (0, 0)),
                  pl.BlockSpec((1, D), lambda i: (0, 0))],
        out_specs=pl.BlockSpec((Mp, D), lambda i: (0, 0)),
    )(x2, y2, gamma, beta)
    return out[:M].reshape(orig)


def _ffn_ln_kernel(x_ref, w1_ref, b1_ref, w2_ref, b2_ref, g_ref, bt_ref, o_ref, *, eps):
    x = x_ref[...]
    h = jnp.dot(x.astype(w1_ref.dtype), w1_ref[...],
                preferred_element_type=jnp.float32) + b1_ref[...]
    h = jnp.maximum(h, 0.0)
    y = jnp.dot(h.astype(w2_ref.dtype), w2_ref[...],
                preferred_element_type=jnp.float32) + b2_ref[...]
    z = x + y
    mean = jnp.mean(z, axis=-1, keepdims=True)
    var = jnp.mean((z - mean) ** 2, axis=-1, keepdims=True)
    o_ref[...] = (z - mean) * jax.lax.rsqrt(var + eps) * g_ref[...] + bt_ref[...]


def pallas_ffn_ln(x, w1t, b1, w2t, b2, gamma, beta, eps=LN_EPS):
    """Fused transformer FFN block: LN(x + linear2(relu(linear1(x)))), dropout = identity."""
    orig = x.shape
    D = orig[-1]
    Dff = w1t.shape[1]
    x2 = x.reshape(-1, D)
    M = x2.shape[0]
    Mp = _round_up(M, 8)
    if Mp != M:
        x2 = jnp.zeros((Mp, D), x2.dtype).at[:M].set(x2)
    out = pl.pallas_call(
        partial(_ffn_ln_kernel, eps=eps),
        out_shape=jax.ShapeDtypeStruct((Mp, D), jnp.float32),
        grid=(1,),
        in_specs=[pl.BlockSpec((Mp, D), lambda i: (0, 0)),
                  pl.BlockSpec((D, Dff), lambda i: (0, 0)),
                  pl.BlockSpec((1, Dff), lambda i: (0, 0)),
                  pl.BlockSpec((Dff, D), lambda i: (0, 0)),
                  pl.BlockSpec((1, D), lambda i: (0, 0)),
                  pl.BlockSpec((1, D), lambda i: (0, 0)),
                  pl.BlockSpec((1, D), lambda i: (0, 0))],
        out_specs=pl.BlockSpec((Mp, D), lambda i: (0, 0)),
    )(x2, w1t, b1, w2t, b2, gamma, beta)
    return out[:M].reshape(orig)


def _mha_kernel(*refs, scale, nheads, use_mask):
    if use_mask:
        q_ref, k_ref, v_ref, mask_ref, o_ref = refs
        bias = mask_ref[0] * NEG_INF           # [1, Lk]; mask is 1.0 on padded keys
    else:
        q_ref, k_ref, v_ref, o_ref = refs
        bias = None
    dh = q_ref.shape[-1] // nheads
    for h in range(nheads):                    # static unroll over heads, lane-dense I/O
        lo = h * dh
        qh = (q_ref[0, :, pl.ds(lo, dh)] * scale).astype(jnp.bfloat16)
        kh = k_ref[0, :, pl.ds(lo, dh)].astype(jnp.bfloat16)
        vh = v_ref[0, :, pl.ds(lo, dh)].astype(jnp.bfloat16)
        s = jax.lax.dot_general(qh, kh, (((1,), (1,)), ((), ())),
                                preferred_element_type=jnp.float32)       # [Lq, Lk]
        if use_mask:
            s = s + bias
        m = jnp.max(s, axis=-1, keepdims=True)
        p = jnp.exp(s - m)
        denom = jnp.sum(p, axis=-1, keepdims=True)
        p = p * pl.reciprocal(denom, approx=True)
        oh = jnp.dot(p.astype(jnp.bfloat16), vh, preferred_element_type=jnp.float32)
        o_ref[0, :, pl.ds(lo, dh)] = oh


def pallas_mha(q, k, v, mask_b1l, scale):
    """q/k/v: [B, L, 256] (all heads packed in lanes); optional key-padding mask [B, 1, Lk]."""
    B, Lq, E = q.shape
    Lk = k.shape[1]
    args = [q, k, v]
    in_specs = [pl.BlockSpec((1, Lq, E), lambda i: (i, 0, 0)),
                pl.BlockSpec((1, Lk, E), lambda i: (i, 0, 0)),
                pl.BlockSpec((1, Lk, E), lambda i: (i, 0, 0))]
    use_mask = mask_b1l is not None
    if use_mask:
        args.append(mask_b1l)
        in_specs.append(pl.BlockSpec((1, 1, Lk), lambda i: (i, 0, 0)))
    return pl.pallas_call(
        partial(_mha_kernel, scale=scale, nheads=NHEAD, use_mask=use_mask),
        out_shape=jax.ShapeDtypeStruct((B, Lq, E), jnp.float32),
        grid=(B,),
        in_specs=in_specs,
        out_specs=pl.BlockSpec((1, Lq, E), lambda i: (i, 0, 0)),
        compiler_params=pltpu.CompilerParams(dimension_semantics=("parallel",)),
    )(*args)


# ----------------------------- small math helpers -----------------------------
def inverse_sigmoid(x, eps=1e-5):
    x = jnp.clip(x, 0.0, 1.0)
    x1 = jnp.clip(x, eps, None)
    x2 = jnp.clip(1.0 - x, eps, None)
    return jnp.log(x1 / x2)


def gen_sineembed_for_position(pos):
    # pos: [bs, Q, 3] -> [bs, Q, 384]
    scale = 2.0 * math.pi
    dim_t = jnp.arange(128, dtype=jnp.float32)
    dim_t = 20.0 ** (2.0 * jnp.floor(dim_t / 2.0) / 128.0)

    def embed(v):
        p = v[:, :, None] / dim_t
        e = jnp.stack((jnp.sin(p[:, :, 0::2]), jnp.cos(p[:, :, 1::2])), axis=3)
        return e.reshape(p.shape[0], p.shape[1], -1)

    pos_x = embed(pos[:, :, 0] * scale)
    pos_y = embed(pos[:, :, 1] * scale)
    pos_d = embed(pos[:, :, 2])
    return jnp.concatenate((pos_y, pos_x, pos_d), axis=2)


def bilinear_sample_zeros(value_flat, H, W, x, y):
    """value_flat: [B, H*W, C]; x, y: [B, Q, P] pixel coords; zeros padding.

    Small feature maps (the case here, H*W <= 64) use a weighted one-hot matmul so the gather
    runs on the MXU; large maps fall back to explicit take_along_axis gathers."""
    HW = H * W
    C = value_flat.shape[-1]
    x0 = jnp.floor(x)
    y0 = jnp.floor(y)
    x1 = x0 + 1.0
    y1 = y0 + 1.0
    wx1 = x - x0
    wx0 = 1.0 - wx1
    wy1 = y - y0
    wy0 = 1.0 - wy1
    corners = [(x0, y0, wx0 * wy0), (x1, y0, wx1 * wy0),
               (x0, y1, wx0 * wy1), (x1, y1, wx1 * wy1)]

    def corner_idx_valid(xi, yi):
        valid = ((xi >= 0) & (xi <= W - 1) & (yi >= 0) & (yi <= H - 1)).astype(jnp.float32)
        xi_c = jnp.clip(xi, 0, W - 1).astype(jnp.int32)
        yi_c = jnp.clip(yi, 0, H - 1).astype(jnp.int32)
        return yi_c * W + xi_c, valid

    if HW <= 4096:
        iota = jnp.arange(HW, dtype=jnp.int32)
        wmat = 0.0
        for xi, yi, w in corners:
            idx, valid = corner_idx_valid(xi, yi)
            onehot = (idx[..., None] == iota).astype(jnp.float32)
            wmat = wmat + onehot * (w * valid)[..., None]
        return jnp.einsum('bqph,bhc->bqpc', wmat, value_flat)

    out = 0.0
    for xi, yi, w in corners:
        idx, valid = corner_idx_valid(xi, yi)
        B, Q, P = idx.shape
        idx_f = jnp.broadcast_to(idx.reshape(B, Q * P, 1), (B, Q * P, C))
        g = jnp.take_along_axis(value_flat, idx_f, axis=1).reshape(B, Q, P, C)
        out = out + g * (w * valid)[..., None]
    return out


def grid_sample_depth(weighted_depth, xy):
    """F.grid_sample(depth[:,None], xy[:,:,None], bilinear, align_corners=True).squeeze(1)."""
    bs, H, W = weighted_depth.shape
    x = (xy[..., 0] + 1.0) / 2.0 * (W - 1)
    y = (xy[..., 1] + 1.0) / 2.0 * (H - 1)
    vflat = weighted_depth.reshape(bs, H * W, 1).astype(jnp.float32)
    samp = bilinear_sample_zeros(vflat, H, W, x[..., None], y[..., None])  # [bs,Q,1,1]
    return samp[..., 0, :]  # [bs, Q, 1]


# ----------------------------- attention modules ------------------------------
def multihead_attention(query, key, value, mask_b1l, p):
    """torch nn.MultiheadAttention semantics (eval, no dropout), batch-first [B, L, E].
    Projections are fused (K+V or Q+K in one matmul) when the corresponding inputs alias."""
    if key is value:
        q = pallas_linear(query, p["q_wt"], p["q_b"])
        kv = pallas_linear(key, p["kv_wt"], p["kv_b"])
        k, v = kv[..., :D_MODEL], kv[..., D_MODEL:]
    elif query is key:
        qk = pallas_linear(query, p["qk_wt"], p["qk_b"])
        q, k = qk[..., :D_MODEL], qk[..., D_MODEL:]
        v = pallas_linear(value, p["v_wt"], p["v_b"])
    else:
        q = pallas_linear(query, p["q_wt"], p["q_b"])
        k = pallas_linear(key, p["k_wt"], p["k_b"])
        v = pallas_linear(value, p["v_wt"], p["v_b"])
    o = pallas_mha(q, k, v, mask_b1l, 1.0 / math.sqrt(HEAD_DIM))
    return pallas_linear(o, p["out_wt"], p["out_b"])


def ms_deform_attn_core(value, spatial_shapes, sampling_locations, attention_weights):
    """value: [N,Lin,M,dh]; loc: [N,Lq,M,L,P,2] in [0,1]; attw: [N,Lq,M,L,P]."""
    N, Lin, M, dh = value.shape
    Lq = sampling_locations.shape[1]
    outputs = []
    start = 0
    for lvl, (H, W) in enumerate(spatial_shapes):
        v_l = value[:, start:start + H * W]                        # [N, HW, M, dh]
        v_l = v_l.transpose(0, 2, 1, 3).reshape(N * M, H * W, dh)  # [NM, HW, dh]
        loc_l = sampling_locations[:, :, :, lvl]                   # [N, Lq, M, P, 2]
        grid = 2.0 * loc_l - 1.0
        grid = grid.transpose(0, 2, 1, 3, 4).reshape(N * M, Lq, N_POINTS, 2)
        # align_corners=False pixel mapping (torch grid_sample default)
        x = ((grid[..., 0] + 1.0) * W - 1.0) / 2.0
        y = ((grid[..., 1] + 1.0) * H - 1.0) / 2.0
        outputs.append(bilinear_sample_zeros(v_l, H, W, x, y))     # [NM, Lq, P, dh]
        start += H * W
    samp_all = jnp.stack(outputs, axis=2)                          # [NM, Lq, L, P, dh]
    attw = attention_weights.transpose(0, 2, 1, 3, 4).reshape(
        N * M, Lq, len(spatial_shapes), N_POINTS)
    out = jnp.sum(samp_all * attw[..., None], axis=(2, 3))         # [NM, Lq, dh]
    return out.reshape(N, M, Lq, dh).transpose(0, 2, 1, 3).reshape(N, Lq, M * dh)


def ms_deform_attn(p, query, reference_points, input_flatten, spatial_shapes, padding_mask):
    N, Lq, _ = query.shape
    Lin = input_flatten.shape[1]
    nop2 = NHEAD * N_LEVELS * N_POINTS * 2
    value = pallas_linear(input_flatten, p["value_wt"], p["value_b"])
    if padding_mask is not None:
        value = jnp.where(padding_mask[..., None], 0.0, value)
    value = value.reshape(N, Lin, NHEAD, HEAD_DIM)
    # fused sampling_offsets + attention_weights projection (one matmul, split after)
    ow = pallas_linear(query, p["offw_wt"], p["offw_b"])           # [N, Lq, 384]
    offs = ow[..., :nop2].reshape(N, Lq, NHEAD, N_LEVELS, N_POINTS, 2)
    attw = jax.nn.softmax(ow[..., nop2:].reshape(N, Lq, NHEAD, N_LEVELS * N_POINTS), axis=-1)
    attw = attw.reshape(N, Lq, NHEAD, N_LEVELS, N_POINTS)
    if reference_points.shape[-1] == 2:
        normalizer = jnp.array([[w, h] for (h, w) in spatial_shapes], jnp.float32)  # [L,2]
        loc = (reference_points[:, :, None, :, None, :]
               + offs / normalizer[None, None, None, :, None, :])
    else:
        # TODO(synk): MSDeformAttn source not provided; for 6-dim (x,y,l,r,t,b) reference
        # points we use w=l+r, h=t+b, matching the deformable-DETR 4-dim box convention.
        wh = reference_points[..., 2::2] + reference_points[..., 3::2]   # [N,Lq,L,2]
        loc = (reference_points[:, :, None, :, None, :2]
               + offs / N_POINTS * wh[:, :, None, :, None, :] * 0.5)
    out = ms_deform_attn_core(value, spatial_shapes, loc, attw)
    return pallas_linear(out, p["out_wt"], p["out_b"])


# ----------------------------- encoder / decoder ------------------------------
def mlp_plain(layers, x):
    """Tiny decoder heads stay as plain jnp.dot (weights pre-transposed to [in,out], f32)."""
    n = len(layers)
    for i, (wt, b) in enumerate(layers):
        x = jnp.dot(x, wt) + b
        if i < n - 1:
            x = jax.nn.relu(x)
    return x


def encoder_layer_forward(lp, src, pos, reference_points, spatial_shapes, padding_mask):
    src2 = ms_deform_attn(lp["self_attn"], src + pos, reference_points, src,
                          spatial_shapes, padding_mask)
    src = pallas_add_layernorm(src, src2, lp["norm1_g"], lp["norm1_b"])
    return pallas_ffn_ln(src, lp["ffn_w1t"], lp["ffn_b1"], lp["ffn_w2t"], lp["ffn_b2"],
                         lp["norm2_g"], lp["norm2_b"])


def decoder_layer_forward(lp, tgt, query_pos, reference_points, src, spatial_shapes,
                          src_padding_mask, depth_pos_embed, mask_depth_f, query_sine_embed):
    # cross attention to depth features
    q = tgt + query_pos
    tgt2 = multihead_attention(q, depth_pos_embed, depth_pos_embed, mask_depth_f,
                               lp["cross_attn_depth"])
    tgt = pallas_add_layernorm(tgt, tgt2, lp["norm_depth_g"], lp["norm_depth_b"])
    # self attention
    qk = tgt + query_pos
    tgt2 = multihead_attention(qk, qk, tgt, None, lp["self_attn"])
    tgt = pallas_add_layernorm(tgt, tgt2, lp["norm2_g"], lp["norm2_b"])
    # deformable cross attention
    tgt2 = ms_deform_attn(lp["cross_attn"], tgt + query_sine_embed, reference_points,
                          src, spatial_shapes, src_padding_mask)
    tgt = pallas_add_layernorm(tgt, tgt2, lp["norm1_g"], lp["norm1_b"])
    # FFN (fused with residual + norm3)
    return pallas_ffn_ln(tgt, lp["ffn_w1t"], lp["ffn_b1"], lp["ffn_w2t"], lp["ffn_b2"],
                         lp["norm3_g"], lp["norm3_b"])


def decoder_forward(dp, tgt, src, spatial_shapes, src_valid_ratios, anchor_unit,
                    src_padding_mask, depth_pos_embed, mask_depth_f, weighted_depth):
    output = tgt
    bs = src.shape[0]
    # the reference applies sigmoid both in DepthAwareTransformer.forward and again here
    anchor = jax.nn.sigmoid(jnp.broadcast_to(anchor_unit[None], (bs,) + anchor_unit.shape))
    intermediate, inter_ref, inter_dim, d_regs = [], [], [], []
    for lid, lp in enumerate(dp["layers"]):
        if anchor.shape[-1] == 7:
            reference_points = anchor[..., :6]
            anchor = jnp.concatenate([anchor[..., :2], anchor[..., 6:7]], axis=-1)
            vr = jnp.concatenate([src_valid_ratios] * 3, axis=-1)
            reference_points_input = reference_points[:, :, None] * vr[:, None]
        else:
            reference_points = anchor[..., :2]
            reference_points_input = reference_points[:, :, None] * src_valid_ratios[:, None]
        query_sine_embed = gen_sineembed_for_position(anchor)              # [bs,Q,384]
        query_pos = mlp_plain(dp["ref_point_head"], query_sine_embed)      # [bs,Q,256]
        if lid == 0:
            pos_transformation = 1.0
        else:
            pos_transformation = mlp_plain(dp["query_scale"], output)
        qse = query_sine_embed[..., :D_MODEL] * pos_transformation
        refD = grid_sample_depth(weighted_depth, jax.lax.stop_gradient(anchor[..., 0:2]))
        qse_d = qse * (refD[..., 0] / anchor[..., 2])[..., None]
        output = decoder_layer_forward(lp, output, query_pos, reference_points_input, src,
                                       spatial_shapes, src_padding_mask, depth_pos_embed,
                                       mask_depth_f, qse_d)
        # bbox / depth / dim heads (return_intermediate path)
        tmp = mlp_plain(dp["bbox_embed"][lid], output)                      # [bs,Q,6]
        d_ref = mlp_plain(dp["d_refnet"][lid], output)                      # [bs,Q,2]
        new = tmp.at[..., :2].set(tmp[..., :2] + inverse_sigmoid(anchor[..., :2]))
        d_ref = d_ref.at[..., :1].set(d_ref[..., :1] + inverse_sigmoid(anchor[..., 2:3]))
        new = jnp.concatenate([jax.nn.sigmoid(new), jax.nn.sigmoid(d_ref[..., :1])], axis=2)
        anchor = jax.lax.stop_gradient(new)                                 # [bs,Q,7]
        reference_dims = mlp_plain(dp["dim_embed"][lid], output)            # [bs,Q,3]
        intermediate.append(output)
        inter_ref.append(anchor)
        inter_dim.append(reference_dims)
        d_regs.append(d_ref)
    return (jnp.stack(intermediate), jnp.stack(inter_ref),
            jnp.stack(inter_dim), jnp.stack(d_regs))


def get_valid_ratio(mask):
    _, H, W = mask.shape
    valid_H = jnp.sum(~mask[:, :, 0], axis=1).astype(jnp.float32)
    valid_W = jnp.sum(~mask[:, 0, :], axis=1).astype(jnp.float32)
    return jnp.stack([valid_W / W, valid_H / H], axis=-1)


def get_reference_points(spatial_shapes, valid_ratios):
    ref_list = []
    for lvl, (H, W) in enumerate(spatial_shapes):
        ref_y, ref_x = jnp.meshgrid(jnp.linspace(0.5, H - 0.5, H, dtype=jnp.float32),
                                    jnp.linspace(0.5, W - 0.5, W, dtype=jnp.float32),
                                    indexing="ij")
        ref_y = ref_y.reshape(-1)[None] / (valid_ratios[:, None, lvl, 1] * H)
        ref_x = ref_x.reshape(-1)[None] / (valid_ratios[:, None, lvl, 0] * W)
        ref_list.append(jnp.stack((ref_x, ref_y), -1))
    rp = jnp.concatenate(ref_list, axis=1)
    return rp[:, :, None] * valid_ratios[:, None]


def depth_aware_transformer_forward(params, srcs, masks, pos_embeds, query_embed,
                                    depth_pos_embed, weighted_depth):
    spatial_shapes = [(int(s.shape[2]), int(s.shape[3])) for s in srcs]
    src_flat, pos_flat, mask_flat = [], [], []
    for lvl, (src, mask, pos) in enumerate(zip(srcs, masks, pos_embeds)):
        bs, c, h, w = src.shape
        src_flat.append(src.reshape(bs, c, h * w).transpose(0, 2, 1))
        pos_flat.append(pos.reshape(bs, c, h * w).transpose(0, 2, 1)
                        + params["level_embed"][lvl][None, None, :])
        mask_flat.append(mask.reshape(bs, h * w))
    src_flatten = jnp.concatenate(src_flat, axis=1)
    lvl_pos = jnp.concatenate(pos_flat, axis=1)
    mask_flatten = jnp.concatenate(mask_flat, axis=1)
    valid_ratios = jnp.stack([get_valid_ratio(m) for m in masks], axis=1)   # [bs,L,2]

    # ---- encoder ----
    reference_points = get_reference_points(spatial_shapes, valid_ratios)
    output = src_flatten
    for lp in params["encoder"]:
        output = encoder_layer_forward(lp, output, lvl_pos, reference_points,
                                       spatial_shapes, mask_flatten)
    memory = output
    bs = memory.shape[0]

    # ---- query preparation (not two-stage) ----
    anchor_unit = jax.nn.sigmoid(query_embed[:, :3])       # decoder applies sigmoid again
    tgt = jax.nn.sigmoid(jnp.broadcast_to(query_embed[None, :, 3:3 + D_MODEL],
                                          (bs, query_embed.shape[0], D_MODEL)))
    bsd, cd = depth_pos_embed.shape[0], depth_pos_embed.shape[1]
    depth_pe = depth_pos_embed.reshape(bsd, cd, -1).transpose(0, 2, 1)      # [bs,S_d,256]
    # key-padding mask as f32 [bs, 1, S_d]; expanded to -inf bias inside the MHA kernel
    mask_depth_f = masks[1].reshape(bs, -1).astype(jnp.float32)[:, None, :]

    hs, inter_ref, inter_dim, d_reg = decoder_forward(
        params["decoder"], tgt, memory, spatial_shapes, valid_ratios, anchor_unit,
        mask_flatten, depth_pe, mask_depth_f, weighted_depth)
    return hs, inter_ref, inter_dim, d_reg, None, None


# ----------------------------- parameter construction -------------------------
class ParamGen:
    def __init__(self, seed=1):
        self._key = jax.random.PRNGKey(seed)
        self._i = 0

    def take(self, shape, scale=0.05):
        k = jax.random.fold_in(self._key, self._i)
        self._i += 1
        return scale * jax.random.normal(k, shape, dtype=jnp.float32)


def _prep_linear(pg, out_dim, in_dim, wscale=0.05, bscale=0.01):
    """Generate a torch-layout [out,in] weight and return it kernel-ready: [in,out] bf16."""
    w = pg.take((out_dim, in_dim), wscale)
    b = pg.take((out_dim,), bscale)
    return w.T.astype(jnp.bfloat16), b[None, :]


def make_mlp_plain(pg, dims):
    return [(pg.take((dims[i + 1], dims[i])).T, pg.take((dims[i + 1],), 0.01))
            for i in range(len(dims) - 1)]


def make_mha(pg):
    in_w = pg.take((3 * D_MODEL, D_MODEL))
    in_b = pg.take((3 * D_MODEL,), 0.01)
    wt = in_w.T                                 # [256, 768]
    bt = in_b[None, :]
    out_wt, out_b = _prep_linear(pg, D_MODEL, D_MODEL)
    E = D_MODEL
    return {"q_wt": wt[:, :E].astype(jnp.bfloat16), "q_b": bt[:, :E],
            "k_wt": wt[:, E:2 * E].astype(jnp.bfloat16), "k_b": bt[:, E:2 * E],
            "v_wt": wt[:, 2 * E:].astype(jnp.bfloat16), "v_b": bt[:, 2 * E:],
            "qk_wt": wt[:, :2 * E].astype(jnp.bfloat16), "qk_b": bt[:, :2 * E],
            "kv_wt": wt[:, E:].astype(jnp.bfloat16), "kv_b": bt[:, E:],
            "out_wt": out_wt, "out_b": out_b}


def make_msda(pg):
    nop = NHEAD * N_LEVELS * N_POINTS
    so_w = pg.take((nop * 2, D_MODEL))
    so_b = pg.take((nop * 2,), 0.01)
    aw_w = pg.take((nop, D_MODEL))
    aw_b = pg.take((nop,), 0.01)
    value_wt, value_b = _prep_linear(pg, D_MODEL, D_MODEL)
    out_wt, out_b = _prep_linear(pg, D_MODEL, D_MODEL)
    return {"offw_wt": jnp.concatenate([so_w.T, aw_w.T], axis=1).astype(jnp.bfloat16),
            "offw_b": jnp.concatenate([so_b, aw_b])[None, :],
            "value_wt": value_wt, "value_b": value_b,
            "out_wt": out_wt, "out_b": out_b}


def _ln():
    return jnp.ones((1, D_MODEL), jnp.float32), jnp.zeros((1, D_MODEL), jnp.float32)


def make_encoder_layer(pg):
    n1g, n1b = _ln()
    n2g, n2b = _ln()
    w1t, b1 = _prep_linear(pg, D_FFN, D_MODEL)
    w2t, b2 = _prep_linear(pg, D_MODEL, D_FFN)
    return {"self_attn": make_msda(pg),
            "norm1_g": n1g, "norm1_b": n1b,
            "ffn_w1t": w1t, "ffn_b1": b1, "ffn_w2t": w2t, "ffn_b2": b2,
            "norm2_g": n2g, "norm2_b": n2b}


def make_decoder_layer(pg):
    n1g, n1b = _ln()
    ndg, ndb = _ln()
    n2g, n2b = _ln()
    n3g, n3b = _ln()
    w1t, b1 = _prep_linear(pg, D_FFN, D_MODEL)
    w2t, b2 = _prep_linear(pg, D_MODEL, D_FFN)
    return {"cross_attn": make_msda(pg), "norm1_g": n1g, "norm1_b": n1b,
            "cross_attn_depth": make_mha(pg), "norm_depth_g": ndg, "norm_depth_b": ndb,
            "self_attn": make_mha(pg), "norm2_g": n2g, "norm2_b": n2b,
            "ffn_w1t": w1t, "ffn_b1": b1, "ffn_w2t": w2t, "ffn_b2": b2,
            "norm3_g": n3g, "norm3_b": n3b}


def build_params(seed=1):
    pg = ParamGen(seed)
    enc = [make_encoder_layer(pg) for _ in range(NUM_ENC_LAYERS)]
    dec_layers = [make_decoder_layer(pg) for _ in range(NUM_DEC_LAYERS)]
    decoder = {"layers": dec_layers,
               "ref_point_head": make_mlp_plain(pg, [3 * 128, 256, 256]),
               "query_scale": make_mlp_plain(pg, [256, 256, 256]),
               # TODO(synk): bbox_embed / dim_embed are attached to the decoder externally in
               # MonoDETR; modeled here as per-layer heads matching the return_intermediate path.
               "bbox_embed": [make_mlp_plain(pg, [256, 256, 256, 6])
                              for _ in range(NUM_DEC_LAYERS)],
               "dim_embed": [make_mlp_plain(pg, [256, 256, 3]) for _ in range(NUM_DEC_LAYERS)],
               "d_refnet": [make_mlp_plain(pg, [256, 256, 2]) for _ in range(3)]}
    return {"level_embed": pg.take((N_LEVELS, D_MODEL), 1.0),
            "encoder": enc,
            "decoder": decoder}


# ----------------------------------- main --------------------------------------
if __name__ == "__main__":
    key = jax.random.PRNGKey(0)
    keys = jax.random.split(key, 16)
    spatial = [(8, 8), (4, 4), (2, 2), (2, 2)]
    bs = 2

    srcs = [jax.random.normal(keys[i], (bs, D_MODEL, h, w), jnp.float32)
            for i, (h, w) in enumerate(spatial)]
    pos_embeds = [jax.random.normal(keys[4 + i], (bs, D_MODEL, h, w), jnp.float32)
                  for i, (h, w) in enumerate(spatial)]
    masks = []
    for (h, w) in spatial:
        m1 = (jnp.arange(h)[:, None] >= h - 1) | (jnp.arange(w)[None, :] >= w - 1)
        masks.append(jnp.stack([jnp.zeros((h, w), bool), m1], axis=0))   # batch1 has padding
    query_embed = jax.random.normal(keys[8], (NUM_QUERIES, 259), jnp.float32)
    h1, w1 = spatial[1]
    depth_pos_embed = jax.random.normal(keys[9], (bs, D_MODEL, h1, w1), jnp.float32)
    weighted_depth = jax.random.uniform(keys[10], (bs, h1, w1), jnp.float32, 1.0, 60.0)

    params = build_params(seed=1)
    fwd = jax.jit(depth_aware_transformer_forward)
    hs, inter_ref, inter_dim, d_reg, _, _ = fwd(params, srcs, masks, pos_embeds,
                                                query_embed, depth_pos_embed, weighted_depth)
    jax.block_until_ready((hs, inter_ref, inter_dim, d_reg))

    assert hs.shape == (NUM_DEC_LAYERS, bs, NUM_QUERIES, D_MODEL)
    assert inter_ref.shape == (NUM_DEC_LAYERS, bs, NUM_QUERIES, 7)
    assert inter_dim.shape == (NUM_DEC_LAYERS, bs, NUM_QUERIES, 3)
    assert d_reg.shape == (NUM_DEC_LAYERS, bs, NUM_QUERIES, 2)
    assert bool(jnp.all(jnp.isfinite(hs)))
    print("KERNEL_OK")
</pallas_src>

<mosaic_0001>
module attributes {stable_mosaic.version = 11 : i64} {
  func.func @_linear_kernel(%arg0: i32, %arg1: memref<176x256xf32, #tpu.memory_space<vmem>>, %arg2: memref<256x384xbf16, #tpu.memory_space<vmem>>, %arg3: memref<1x384xf32, #tpu.memory_space<vmem>>, %arg4: memref<176x384xf32, #tpu.memory_space<vmem>>) attributes {dimension_semantics = [#tpu.dimension_semantics<parallel>], iteration_bounds = array<i64: 1>, scalar_prefetch = 0 : i64, scratch_operands = 0 : i64, tpu.core_type = #tpu.core_type<tc>, window_params = [{transform_indices = @transform_0, window_bounds = array<i64: 176, 256>}, {pipeline_mode = #tpu.pipeline_mode<synchronous>, transform_indices = @transform_1, window_bounds = array<i64: 256, 384>}, {pipeline_mode = #tpu.pipeline_mode<synchronous>, transform_indices = @transform_2, window_bounds = array<i64: 1, 384>}, {transform_indices = @transform_3, window_bounds = array<i64: 176, 384>}]} {
    %c0 = arith.constant 0 : index
    %c0_0 = arith.constant 0 : index
    %0 = vector.load %arg1[%c0, %c0_0] : memref<176x256xf32, #tpu.memory_space<vmem>>, vector<176x256xf32>
    %1 = arith.truncf %0 : vector<176x256xf32> to vector<176x256xbf16>
    %c0_1 = arith.constant 0 : index
    %c0_2 = arith.constant 0 : index
    %2 = vector.load %arg2[%c0_1, %c0_2] : memref<256x384xbf16, #tpu.memory_space<vmem>>, vector<256x384xbf16>
    %cst = arith.constant dense<0.000000e+00> : vector<176x384xf32>
    %3 = tpu.matmul %1, %2, %cst {dimension_numbers = #tpu.dot_dimension_numbers<[1], [0], [0], [1], [0, 0, 1, 1], [], []>} : vector<176x256xbf16>, vector<256x384xbf16>, vector<176x384xf32> -> vector<176x384xf32>
    %c0_3 = arith.constant 0 : index
    %c0_4 = arith.constant 0 : index
    %4 = vector.load %arg3[%c0_3, %c0_4] : memref<1x384xf32, #tpu.memory_space<vmem>>, vector<1x384xf32>
    %5 = vector.broadcast %4 : vector<1x384xf32> to vector<176x384xf32>
    %6 = arith.addf %3, %5 : vector<176x384xf32>
    %c0_5 = arith.constant 0 : index
    %c0_6 = arith.constant 0 : index
    %7 = vector.load %arg4[%c0_5, %c0_6] : memref<176x384xf32, #tpu.memory_space<vmem>>, vector<176x384xf32>
    tpu.vector_store %arg4[%c0_5, %c0_6], %6 {strides = array<i32>} : memref<176x384xf32, #tpu.memory_space<vmem>>, vector<176x384xf32>,
    return
  }
  func.func @transform_0(%arg0: i32) -> (i32, i32) {
    %c0_i32 = arith.constant 0 : i32
    %c0_i32_0 = arith.constant 0 : i32
    return %arg0, %c0_i32 : i32, i32
  }
  func.func @transform_1(%arg0: i32) -> (i32, i32) {
    %c0_i32 = arith.constant 0 : i32
    %c0_i32_0 = arith.constant 0 : i32
    %c0_i32_1 = arith.constant 0 : i32
    return %c0_i32, %c0_i32_0 : i32, i32
  }
  func.func @transform_2(%arg0: i32) -> (i32, i32) {
    %c0_i32 = arith.constant 0 : i32
    %c0_i32_0 = arith.constant 0 : i32
    %c0_i32_1 = arith.constant 0 : i32
    return %c0_i32, %c0_i32_0 : i32, i32
  }
  func.func @transform_3(%arg0: i32) -> (i32, i32) {
    %c0_i32 = arith.constant 0 : i32
    %c0_i32_0 = arith.constant 0 : i32
    return %arg0, %c0_i32 : i32, i32
  }
}

module attributes {stable_mosaic.version = 11 : i64} {
  func.func @_linear_kernel(%arg0: i32, %arg1: memref<176x256xf32, #tpu.memory_space<vmem>>, %arg2: memref<256x256xbf16, #tpu.memory_space<vmem>>, %arg3: memref<1x256xf32, #tpu.memory_space<vmem>>, %arg4: memref<176x256xf32, #tpu.memory_space<vmem>>) attributes {dimension_semantics = [#tpu.dimension_semantics<parallel>], iteration_bounds = array<i64: 1>, scalar_prefetch = 0 : i64, scratch_operands = 0 : i64, tpu.core_type = #tpu.core_type<tc>, window_params = [{transform_indices = @transform_0, window_bounds = array<i64: 176, 256>}, {pipeline_mode = #tpu.pipeline_mode<synchronous>, transform_indices = @transform_1, window_bounds = array<i64: 256, 256>}, {pipeline_mode = #tpu.pipeline_mode<synchronous>, transform_indices = @transform_2, window_bounds = array<i64: 1, 256>}, {transform_indices = @transform_3, window_bounds = array<i64: 176, 256>}]} {
    %c0 = arith.constant 0 : index
    %c0_0 = arith.constant 0 : index
    %0 = vector.load %arg1[%c0, %c0_0] : memref<176x256xf32, #tpu.memory_space<vmem>>, vector<176x256xf32>
    %1 = arith.truncf %0 : vector<176x256xf32> to vector<176x256xbf16>
    %c0_1 = arith.constant 0 : index
    %c0_2 = arith.constant 0 : index
    %2 = vector.load %arg2[%c0_1, %c0_2] : memref<256x256xbf16, #tpu.memory_space<vmem>>, vector<256x256xbf16>
    %cst = arith.constant dense<0.000000e+00> : vector<176x256xf32>
    %3 = tpu.matmul %1, %2, %cst {dimension_numbers = #tpu.dot_dimension_numbers<[1], [0], [0], [1], [0, 0, 1, 1], [], []>} : vector<176x256xbf16>, vector<256x256xbf16>, vector<176x256xf32> -> vector<176x256xf32>
    %c0_3 = arith.constant 0 : index
    %c0_4 = arith.constant 0 : index
    %4 = vector.load %arg3[%c0_3, %c0_4] : memref<1x256xf32, #tpu.memory_space<vmem>>, vector<1x256xf32>
    %5 = vector.broadcast %4 : vector<1x256xf32> to vector<176x256xf32>
    %6 = arith.addf %3, %5 : vector<176x256xf32>
    %c0_5 = arith.constant 0 : index
    %c0_6 = arith.constant 0 : index
    %7 = vector.load %arg4[%c0_5, %c0_6] : memref<176x256xf32, #tpu.memory_space<vmem>>, vector<176x256xf32>
    tpu.vector_store %arg4[%c0_5, %c0_6], %6 {strides = array<i32>} : memref<176x256xf32, #tpu.memory_space<vmem>>, vector<176x256xf32>,
    return
  }
  func.func @transform_0(%arg0: i32) -> (i32, i32) {
    %c0_i32 = arith.constant 0 : i32
    %c0_i32_0 = arith.constant 0 : i32
    return %arg0, %c0_i32 : i32, i32
  }
  func.func @transform_1(%arg0: i32) -> (i32, i32) {
    %c0_i32 = arith.constant 0 : i32
    %c0_i32_0 = arith.constant 0 : i32
    %c0_i32_1 = arith.constant 0 : i32
    return %c0_i32, %c0_i32_0 : i32, i32
  }
  func.func @transform_2(%arg0: i32) -> (i32, i32) {
    %c0_i32 = arith.constant 0 : i32
    %c0_i32_0 = arith.constant 0 : i32
    %c0_i32_1 = arith.constant 0 : i32
    return %c0_i32, %c0_i32_0 : i32, i32
  }
  func.func @transform_3(%arg0: i32) -> (i32, i32) {
    %c0_i32 = arith.constant 0 : i32
    %c0_i32_0 = arith.constant 0 : i32
    return %arg0, %c0_i32 : i32, i32
  }
}

module attributes {stable_mosaic.version = 11 : i64} {
  func.func @_add_ln_kernel(%arg0: i32, %arg1: memref<176x256xf32, #tpu.memory_space<vmem>>, %arg2: memref<176x256xf32, #tpu.memory_space<vmem>>, %arg3: memref<1x256xf32, #tpu.memory_space<vmem>>, %arg4: memref<1x256xf32, #tpu.memory_space<vmem>>, %arg5: memref<176x256xf32, #tpu.memory_space<vmem>>) attributes {dimension_semantics = [#tpu.dimension_semantics<arbitrary>], iteration_bounds = array<i64: 1>, scalar_prefetch = 0 : i64, scratch_operands = 0 : i64, tpu.core_type = #tpu.core_type<tc>, window_params = [{pipeline_mode = #tpu.pipeline_mode<synchronous>, transform_indices = @transform_0, window_bounds = array<i64: 176, 256>}, {pipeline_mode = #tpu.pipeline_mode<synchronous>, transform_indices = @transform_1, window_bounds = array<i64: 176, 256>}, {pipeline_mode = #tpu.pipeline_mode<synchronous>, transform_indices = @transform_2, window_bounds = array<i64: 1, 256>}, {pipeline_mode = #tpu.pipeline_mode<synchronous>, transform_indices = @transform_3, window_bounds = array<i64: 1, 256>}, {pipeline_mode = #tpu.pipeline_mode<synchronous>, transform_indices = @transform_4, window_bounds = array<i64: 176, 256>}]} {
    %c0 = arith.constant 0 : index
    %c0_0 = arith.constant 0 : index
    %0 = vector.load %arg1[%c0, %c0_0] : memref<176x256xf32, #tpu.memory_space<vmem>>, vector<176x256xf32>
    %c0_1 = arith.constant 0 : index
    %c0_2 = arith.constant 0 : index
    %1 = vector.load %arg2[%c0_1, %c0_2] : memref<176x256xf32, #tpu.memory_space<vmem>>, vector<176x256xf32>
    %2 = arith.addf %0, %1 : vector<176x256xf32>
    %cst = arith.constant dense<0.000000e+00> : vector<176xf32>
    %3 = vector.multi_reduction <add>, %2, %cst [1] : vector<176x256xf32> to vector<176xf32>
    %4 = vector.shape_cast %3 : vector<176xf32> to vector<176x1xf32>
    %cst_3 = arith.constant 2.560000e+02 : f32
    %5 = vector.broadcast %cst_3 : f32 to vector<176x1xf32>
    %6 = arith.divf %4, %5 : vector<176x1xf32>
    %7 = vector.broadcast %6 : vector<176x1xf32> to vector<176x256xf32>
    %8 = arith.subf %2, %7 : vector<176x256xf32>
    %9 = arith.mulf %8, %8 : vector<176x256xf32>
    %cst_4 = arith.constant dense<0.000000e+00> : vector<176xf32>
    %10 = vector.multi_reduction <add>, %9, %cst_4 [1] : vector<176x256xf32> to vector<176xf32>
    %11 = vector.shape_cast %10 : vector<176xf32> to vector<176x1xf32>
    %cst_5 = arith.constant 2.560000e+02 : f32
    %12 = vector.broadcast %cst_5 : f32 to vector<176x1xf32>
    %13 = arith.divf %11, %12 : vector<176x1xf32>
    %14 = vector.broadcast %6 : vector<176x1xf32> to vector<176x256xf32>
    %15 = arith.subf %2, %14 : vector<176x256xf32>
    %cst_6 = arith.constant 9.99999974E-6 : f32
    %16 = vector.broadcast %cst_6 : f32 to vector<176x1xf32>
    %17 = arith.addf %13, %16 : vector<176x1xf32>
    %18 = math.rsqrt %17 : vector<176x1xf32>
    %19 = vector.broadcast %18 : vector<176x1xf32> to vector<176x256xf32>
    %20 = arith.mulf %15, %19 : vector<176x256xf32>
    %c0_7 = arith.constant 0 : index
    %c0_8 = arith.constant 0 : index
    %21 = vector.load %arg3[%c0_7, %c0_8] : memref<1x256xf32, #tpu.memory_space<vmem>>, vector<1x256xf32>
    %22 = vector.broadcast %21 : vector<1x256xf32> to vector<176x256xf32>
    %23 = arith.mulf %20, %22 : vector<176x256xf32>
    %c0_9 = arith.constant 0 : index
    %c0_10 = arith.constant 0 : index
    %24 = vector.load %arg4[%c0_9, %c0_10] : memref<1x256xf32, #tpu.memory_space<vmem>>, vector<1x256xf32>
    %25 = vector.broadcast %24 : vector<1x256xf32> to vector<176x256xf32>
    %26 = arith.addf %23, %25 : vector<176x256xf32>
    %c0_11 = arith.constant 0 : index
    %c0_12 = arith.constant 0 : index
    %27 = vector.load %arg5[%c0_11, %c0_12] : memref<176x256xf32, #tpu.memory_space<vmem>>, vector<176x256xf32>
    tpu.vector_store %arg5[%c0_11, %c0_12], %26 {strides = array<i32>} : memref<176x256xf32, #tpu.memory_space<vmem>>, vector<176x256xf32>,
    return
  }
  func.func @transform_0(%arg0: i32) -> (i32, i32) {
    %c0_i32 = arith.constant 0 : i32
    %c0_i32_0 = arith.constant 0 : i32
    %c0_i32_1 = arith.constant 0 : i32
    return %c0_i32, %c0_i32_0 : i32, i32
  }
  func.func @transform_1(%arg0: i32) -> (i32, i32) {
    %c0_i32 = arith.constant 0 : i32
    %c0_i32_0 = arith.constant 0 : i32
    %c0_i32_1 = arith.constant 0 : i32
    return %c0_i32, %c0_i32_0 : i32, i32
  }
  func.func @transform_2(%arg0: i32) -> (i32, i32) {
    %c0_i32 = arith.constant 0 : i32
    %c0_i32_0 = arith.constant 0 : i32
    %c0_i32_1 = arith.constant 0 : i32
    return %c0_i32, %c0_i32_0 : i32, i32
  }
  func.func @transform_3(%arg0: i32) -> (i32, i32) {
    %c0_i32 = arith.constant 0 : i32
    %c0_i32_0 = arith.constant 0 : i32
    %c0_i32_1 = arith.constant 0 : i32
    return %c0_i32, %c0_i32_0 : i32, i32
  }
  func.func @transform_4(%arg0: i32) -> (i32, i32) {
    %c0_i32 = arith.constant 0 : i32
    %c0_i32_0 = arith.constant 0 : i32
    %c0_i32_1 = arith.constant 0 : i32
    return %c0_i32, %c0_i32_0 : i32, i32
  }
}

module attributes {stable_mosaic.version = 11 : i64} {
  func.func @_ffn_ln_kernel(%arg0: i32, %arg1: memref<176x256xf32, #tpu.memory_space<vmem>>, %arg2: memref<256x256xbf16, #tpu.memory_space<vmem>>, %arg3: memref<1x256xf32, #tpu.memory_space<vmem>>, %arg4: memref<256x256xbf16, #tpu.memory_space<vmem>>, %arg5: memref<1x256xf32, #tpu.memory_space<vmem>>, %arg6: memref<1x256xf32, #tpu.memory_space<vmem>>, %arg7: memref<1x256xf32, #tpu.memory_space<vmem>>, %arg8: memref<176x256xf32, #tpu.memory_space<vmem>>) attributes {dimension_semantics = [#tpu.dimension_semantics<arbitrary>], iteration_bounds = array<i64: 1>, scalar_prefetch = 0 : i64, scratch_operands = 0 : i64, tpu.core_type = #tpu.core_type<tc>, window_params = [{pipeline_mode = #tpu.pipeline_mode<synchronous>, transform_indices = @transform_0, window_bounds = array<i64: 176, 256>}, {pipeline_mode = #tpu.pipeline_mode<synchronous>, transform_indices = @transform_1, window_bounds = array<i64: 256, 256>}, {pipeline_mode = #tpu.pipeline_mode<synchronous>, transform_indices = @transform_2, window_bounds = array<i64: 1, 256>}, {pipeline_mode = #tpu.pipeline_mode<synchronous>, transform_indices = @transform_3, window_bounds = array<i64: 256, 256>}, {pipeline_mode = #tpu.pipeline_mode<synchronous>, transform_indices = @transform_4, window_bounds = array<i64: 1, 256>}, {pipeline_mode = #tpu.pipeline_mode<synchronous>, transform_indices = @transform_5, window_bounds = array<i64: 1, 256>}, {pipeline_mode = #tpu.pipeline_mode<synchronous>, transform_indices = @transform_6, window_bounds = array<i64: 1, 256>}, {pipeline_mode = #tpu.pipeline_mode<synchronous>, transform_indices = @transform_7, window_bounds = array<i64: 176, 256>}]} {
    %c0 = arith.constant 0 : index
    %c0_0 = arith.constant 0 : index
    %0 = vector.load %arg1[%c0, %c0_0] : memref<176x256xf32, #tpu.memory_space<vmem>>, vector<176x256xf32>
    %1 = arith.truncf %0 : vector<176x256xf32> to vector<176x256xbf16>
    %c0_1 = arith.constant 0 : index
    %c0_2 = arith.constant 0 : index
    %2 = vector.load %arg2[%c0_1, %c0_2] : memref<256x256xbf16, #tpu.memory_space<vmem>>, vector<256x256xbf16>
    %cst = arith.constant dense<0.000000e+00> : vector<176x256xf32>
    %3 = tpu.matmul %1, %2, %cst {dimension_numbers = #tpu.dot_dimension_numbers<[1], [0], [0], [1], [0, 0, 1, 1], [], []>} : vector<176x256xbf16>, vector<256x256xbf16>, vector<176x256xf32> -> vector<176x256xf32>
    %c0_3 = arith.constant 0 : index
    %c0_4 = arith.constant 0 : index
    %4 = vector.load %arg3[%c0_3, %c0_4] : memref<1x256xf32, #tpu.memory_space<vmem>>, vector<1x256xf32>
    %5 = vector.broadcast %4 : vector<1x256xf32> to vector<176x256xf32>
    %6 = arith.addf %3, %5 : vector<176x256xf32>
    %cst_5 = arith.constant 0.000000e+00 : f32
    %7 = vector.broadcast %cst_5 : f32 to vector<176x256xf32>
    %8 = arith.maximumf %6, %7 : vector<176x256xf32>
    %9 = arith.truncf %8 : vector<176x256xf32> to vector<176x256xbf16>
    %c0_6 = arith.constant 0 : index
    %c0_7 = arith.constant 0 : index
    %10 = vector.load %arg4[%c0_6, %c0_7] : memref<256x256xbf16, #tpu.memory_space<vmem>>, vector<256x256xbf16>
    %cst_8 = arith.constant dense<0.000000e+00> : vector<176x256xf32>
    %11 = tpu.matmul %9, %10, %cst_8 {dimension_numbers = #tpu.dot_dimension_numbers<[1], [0], [0], [1], [0, 0, 1, 1], [], []>} : vector<176x256xbf16>, vector<256x256xbf16>, vector<176x256xf32> -> vector<176x256xf32>
    %c0_9 = arith.constant 0 : index
    %c0_10 = arith.constant 0 : index
    %12 = vector.load %arg5[%c0_9, %c0_10] : memref<1x256xf32, #tpu.memory_space<vmem>>, vector<1x256xf32>
    %13 = vector.broadcast %12 : vector<1x256xf32> to vector<176x256xf32>
    %14 = arith.addf %11, %13 : vector<176x256xf32>
    %15 = arith.addf %0, %14 : vector<176x256xf32>
    %cst_11 = arith.constant dense<0.000000e+00> : vector<176xf32>
    %16 = vector.multi_reduction <add>, %15, %cst_11 [1] : vector<176x256xf32> to vector<176xf32>
    %17 = vector.shape_cast %16 : vector<176xf32> to vector<176x1xf32>
    %cst_12 = arith.constant 2.560000e+02 : f32
    %18 = vector.broadcast %cst_12 : f32 to vector<176x1xf32>
    %19 = arith.divf %17, %18 : vector<176x1xf32>
    %20 = vector.broadcast %19 : vector<176x1xf32> to vector<176x256xf32>
    %21 = arith.subf %15, %20 : vector<176x256xf32>
    %22 = arith.mulf %21, %21 : vector<176x256xf32>
    %cst_13 = arith.constant dense<0.000000e+00> : vector<176xf32>
    %23 = vector.multi_reduction <add>, %22, %cst_13 [1] : vector<176x256xf32> to vector<176xf32>
    %24 = vector.shape_cast %23 : vector<176xf32> to vector<176x1xf32>
    %cst_14 = arith.constant 2.560000e+02 : f32
    %25 = vector.broadcast %cst_14 : f32 to vector<176x1xf32>
    %26 = arith.divf %24, %25 : vector<176x1xf32>
    %27 = vector.broadcast %19 : vector<176x1xf32> to vector<176x256xf32>
    %28 = arith.subf %15, %27 : vector<176x256xf32>
    %cst_15 = arith.constant 9.99999974E-6 : f32
    %29 = vector.broadcast %cst_15 : f32 to vector<176x1xf32>
    %30 = arith.addf %26, %29 : vector<176x1xf32>
    %31 = math.rsqrt %30 : vector<176x1xf32>
    %32 = vector.broadcast %31 : vector<176x1xf32> to vector<176x256xf32>
    %33 = arith.mulf %28, %32 : vector<176x256xf32>
    %c0_16 = arith.constant 0 : index
    %c0_17 = arith.constant 0 : index
    %34 = vector.load %arg6[%c0_16, %c0_17] : memref<1x256xf32, #tpu.memory_space<vmem>>, vector<1x256xf32>
    %35 = vector.broadcast %34 : vector<1x256xf32> to vector<176x256xf32>
    %36 = arith.mulf %33, %35 : vector<176x256xf32>
    %c0_18 = arith.constant 0 : index
    %c0_19 = arith.constant 0 : index
    %37 = vector.load %arg7[%c0_18, %c0_19] : memref<1x256xf32, #tpu.memory_space<vmem>>, vector<1x256xf32>
    %38 = vector.broadcast %37 : vector<1x256xf32> to vector<176x256xf32>
    %39 = arith.addf %36, %38 : vector<176x256xf32>
    %c0_20 = arith.constant 0 : index
    %c0_21 = arith.constant 0 : index
    %40 = vector.load %arg8[%c0_20, %c0_21] : memref<176x256xf32, #tpu.memory_space<vmem>>, vector<176x256xf32>
    tpu.vector_store %arg8[%c0_20, %c0_21], %39 {strides = array<i32>} : memref<176x256xf32, #tpu.memory_space<vmem>>, vector<176x256xf32>,
    return
  }
  func.func @transform_0(%arg0: i32) -> (i32, i32) {
    %c0_i32 = arith.constant 0 : i32
    %c0_i32_0 = arith.constant 0 : i32
    %c0_i32_1 = arith.constant 0 : i32
    return %c0_i32, %c0_i32_0 : i32, i32
  }
  func.func @transform_1(%arg0: i32) -> (i32, i32) {
    %c0_i32 = arith.constant 0 : i32
    %c0_i32_0 = arith.constant 0 : i32
    %c0_i32_1 = arith.constant 0 : i32
    return %c0_i32, %c0_i32_0 : i32, i32
  }
  func.func @transform_2(%arg0: i32) -> (i32, i32) {
    %c0_i32 = arith.constant 0 : i32
    %c0_i32_0 = arith.constant 0 : i32
    %c0_i32_1 = arith.constant 0 : i32
    return %c0_i32, %c0_i32_0 : i32, i32
  }
  func.func @transform_3(%arg0: i32) -> (i32, i32) {
    %c0_i32 = arith.constant 0 : i32
    %c0_i32_0 = arith.constant 0 : i32
    %c0_i32_1 = arith.constant 0 : i32
    return %c0_i32, %c0_i32_0 : i32, i32
  }
  func.func @transform_4(%arg0: i32) -> (i32, i32) {
    %c0_i32 = arith.constant 0 : i32
    %c0_i32_0 = arith.constant 0 : i32
    %c0_i32_1 = arith.constant 0 : i32
    return %c0_i32, %c0_i32_0 : i32, i32
  }
  func.func @transform_5(%arg0: i32) -> (i32, i32) {
    %c0_i32 = arith.constant 0 : i32
    %c0_i32_0 = arith.constant 0 : i32
    %c0_i32_1 = arith.constant 0 : i32
    return %c0_i32, %c0_i32_0 : i32, i32
  }
  func.func @transform_6(%arg0: i32) -> (i32, i32) {
    %c0_i32 = arith.constant 0 : i32
    %c0_i32_0 = arith.constant 0 : i32
    %c0_i32_1 = arith.constant 0 : i32
    return %c0_i32, %c0_i32_0 : i32, i32
  }
  func.func @transform_7(%arg0: i32) -> (i32, i32) {
    %c0_i32 = arith.constant 0 : i32
    %c0_i32_0 = arith.constant 0 : i32
    %c0_i32_1 = arith.constant 0 : i32
    return %c0_i32, %c0_i32_0 : i32, i32
  }
}

module attributes {stable_mosaic.version = 11 : i64} {
  func.func @_linear_kernel(%arg0: i32, %arg1: memref<32x256xf32, #tpu.memory_space<vmem>>, %arg2: memref<256x256xbf16, #tpu.memory_space<vmem>>, %arg3: memref<1x256xf32, #tpu.memory_space<vmem>>, %arg4: memref<32x256xf32, #tpu.memory_space<vmem>>) attributes {dimension_semantics = [#tpu.dimension_semantics<parallel>], iteration_bounds = array<i64: 1>, scalar_prefetch = 0 : i64, scratch_operands = 0 : i64, tpu.core_type = #tpu.core_type<tc>, window_params = [{transform_indices = @transform_0, window_bounds = array<i64: 32, 256>}, {pipeline_mode = #tpu.pipeline_mode<synchronous>, transform_indices = @transform_1, window_bounds = array<i64: 256, 256>}, {pipeline_mode = #tpu.pipeline_mode<synchronous>, transform_indices = @transform_2, window_bounds = array<i64: 1, 256>}, {transform_indices = @transform_3, window_bounds = array<i64: 32, 256>}]} {
    %c0 = arith.constant 0 : index
    %c0_0 = arith.constant 0 : index
    %0 = vector.load %arg1[%c0, %c0_0] : memref<32x256xf32, #tpu.memory_space<vmem>>, vector<32x256xf32>
    %1 = arith.truncf %0 : vector<32x256xf32> to vector<32x256xbf16>
    %c0_1 = arith.constant 0 : index
    %c0_2 = arith.constant 0 : index
    %2 = vector.load %arg2[%c0_1, %c0_2] : memref<256x256xbf16, #tpu.memory_space<vmem>>, vector<256x256xbf16>
    %cst = arith.constant dense<0.000000e+00> : vector<32x256xf32>
    %3 = tpu.matmul %1, %2, %cst {dimension_numbers = #tpu.dot_dimension_numbers<[1], [0], [0], [1], [0, 0, 1, 1], [], []>} : vector<32x256xbf16>, vector<256x256xbf16>, vector<32x256xf32> -> vector<32x256xf32>
    %c0_3 = arith.constant 0 : index
    %c0_4 = arith.constant 0 : index
    %4 = vector.load %arg3[%c0_3, %c0_4] : memref<1x256xf32, #tpu.memory_space<vmem>>, vector<1x256xf32>
    %5 = vector.broadcast %4 : vector<1x256xf32> to vector<32x256xf32>
    %6 = arith.addf %3, %5 : vector<32x256xf32>
    %c0_5 = arith.constant 0 : index
    %c0_6 = arith.constant 0 : index
    %7 = vector.load %arg4[%c0_5, %c0_6] : memref<32x256xf32, #tpu.memory_space<vmem>>, vector<32x256xf32>
    tpu.vector_store %arg4[%c0_5, %c0_6], %6 {strides = array<i32>} : memref<32x256xf32, #tpu.memory_space<vmem>>, vector<32x256xf32>,
    return
  }
  func.func @transform_0(%arg0: i32) -> (i32, i32) {
    %c0_i32 = arith.constant 0 : i32
    %c0_i32_0 = arith.constant 0 : i32
    return %arg0, %c0_i32 : i32, i32
  }
  func.func @transform_1(%arg0: i32) -> (i32, i32) {
    %c0_i32 = arith.constant 0 : i32
    %c0_i32_0 = arith.constant 0 : i32
    %c0_i32_1 = arith.constant 0 : i32
    return %c0_i32, %c0_i32_0 : i32, i32
  }
  func.func @transform_2(%arg0: i32) -> (i32, i32) {
    %c0_i32 = arith.constant 0 : i32
    %c0_i32_0 = arith.constant 0 : i32
    %c0_i32_1 = arith.constant 0 : i32
    return %c0_i32, %c0_i32_0 : i32, i32
  }
  func.func @transform_3(%arg0: i32) -> (i32, i32) {
    %c0_i32 = arith.constant 0 : i32
    %c0_i32_0 = arith.constant 0 : i32
    return %arg0, %c0_i32 : i32, i32
  }
}

module attributes {stable_mosaic.version = 11 : i64} {
  func.func @_linear_kernel(%arg0: i32, %arg1: memref<32x256xf32, #tpu.memory_space<vmem>>, %arg2: memref<256x512xbf16, #tpu.memory_space<vmem>>, %arg3: memref<1x512xf32, #tpu.memory_space<vmem>>, %arg4: memref<32x512xf32, #tpu.memory_space<vmem>>) attributes {dimension_semantics = [#tpu.dimension_semantics<parallel>], iteration_bounds = array<i64: 1>, scalar_prefetch = 0 : i64, scratch_operands = 0 : i64, tpu.core_type = #tpu.core_type<tc>, window_params = [{transform_indices = @transform_0, window_bounds = array<i64: 32, 256>}, {pipeline_mode = #tpu.pipeline_mode<synchronous>, transform_indices = @transform_1, window_bounds = array<i64: 256, 512>}, {pipeline_mode = #tpu.pipeline_mode<synchronous>, transform_indices = @transform_2, window_bounds = array<i64: 1, 512>}, {transform_indices = @transform_3, window_bounds = array<i64: 32, 512>}]} {
    %c0 = arith.constant 0 : index
    %c0_0 = arith.constant 0 : index
    %0 = vector.load %arg1[%c0, %c0_0] : memref<32x256xf32, #tpu.memory_space<vmem>>, vector<32x256xf32>
    %1 = arith.truncf %0 : vector<32x256xf32> to vector<32x256xbf16>
    %c0_1 = arith.constant 0 : index
    %c0_2 = arith.constant 0 : index
    %2 = vector.load %arg2[%c0_1, %c0_2] : memref<256x512xbf16, #tpu.memory_space<vmem>>, vector<256x512xbf16>
    %cst = arith.constant dense<0.000000e+00> : vector<32x512xf32>
    %3 = tpu.matmul %1, %2, %cst {dimension_numbers = #tpu.dot_dimension_numbers<[1], [0], [0], [1], [0, 0, 1, 1], [], []>} : vector<32x256xbf16>, vector<256x512xbf16>, vector<32x512xf32> -> vector<32x512xf32>
    %c0_3 = arith.constant 0 : index
    %c0_4 = arith.constant 0 : index
    %4 = vector.load %arg3[%c0_3, %c0_4] : memref<1x512xf32, #tpu.memory_space<vmem>>, vector<1x512xf32>
    %5 = vector.broadcast %4 : vector<1x512xf32> to vector<32x512xf32>
    %6 = arith.addf %3, %5 : vector<32x512xf32>
    %c0_5 = arith.constant 0 : index
    %c0_6 = arith.constant 0 : index
    %7 = vector.load %arg4[%c0_5, %c0_6] : memref<32x512xf32, #tpu.memory_space<vmem>>, vector<32x512xf32>
    tpu.vector_store %arg4[%c0_5, %c0_6], %6 {strides = array<i32>} : memref<32x512xf32, #tpu.memory_space<vmem>>, vector<32x512xf32>,
    return
  }
  func.func @transform_0(%arg0: i32) -> (i32, i32) {
    %c0_i32 = arith.constant 0 : i32
    %c0_i32_0 = arith.constant 0 : i32
    return %arg0, %c0_i32 : i32, i32
  }
  func.func @transform_1(%arg0: i32) -> (i32, i32) {
    %c0_i32 = arith.constant 0 : i32
    %c0_i32_0 = arith.constant 0 : i32
    %c0_i32_1 = arith.constant 0 : i32
    return %c0_i32, %c0_i32_0 : i32, i32
  }
  func.func @transform_2(%arg0: i32) -> (i32, i32) {
    %c0_i32 = arith.constant 0 : i32
    %c0_i32_0 = arith.constant 0 : i32
    %c0_i32_1 = arith.constant 0 : i32
    return %c0_i32, %c0_i32_0 : i32, i32
  }
  func.func @transform_3(%arg0: i32) -> (i32, i32) {
    %c0_i32 = arith.constant 0 : i32
    %c0_i32_0 = arith.constant 0 : i32
    return %arg0, %c0_i32 : i32, i32
  }
}

module attributes {stable_mosaic.version = 11 : i64} {
  func.func @_add_ln_kernel(%arg0: i32, %arg1: memref<32x256xf32, #tpu.memory_space<vmem>>, %arg2: memref<32x256xf32, #tpu.memory_space<vmem>>, %arg3: memref<1x256xf32, #tpu.memory_space<vmem>>, %arg4: memref<1x256xf32, #tpu.memory_space<vmem>>, %arg5: memref<32x256xf32, #tpu.memory_space<vmem>>) attributes {dimension_semantics = [#tpu.dimension_semantics<arbitrary>], iteration_bounds = array<i64: 1>, scalar_prefetch = 0 : i64, scratch_operands = 0 : i64, tpu.core_type = #tpu.core_type<tc>, window_params = [{pipeline_mode = #tpu.pipeline_mode<synchronous>, transform_indices = @transform_0, window_bounds = array<i64: 32, 256>}, {pipeline_mode = #tpu.pipeline_mode<synchronous>, transform_indices = @transform_1, window_bounds = array<i64: 32, 256>}, {pipeline_mode = #tpu.pipeline_mode<synchronous>, transform_indices = @transform_2, window_bounds = array<i64: 1, 256>}, {pipeline_mode = #tpu.pipeline_mode<synchronous>, transform_indices = @transform_3, window_bounds = array<i64: 1, 256>}, {pipeline_mode = #tpu.pipeline_mode<synchronous>, transform_indices = @transform_4, window_bounds = array<i64: 32, 256>}]} {
    %c0 = arith.constant 0 : index
    %c0_0 = arith.constant 0 : index
    %0 = vector.load %arg1[%c0, %c0_0] : memref<32x256xf32, #tpu.memory_space<vmem>>, vector<32x256xf32>
    %c0_1 = arith.constant 0 : index
    %c0_2 = arith.constant 0 : index
    %1 = vector.load %arg2[%c0_1, %c0_2] : memref<32x256xf32, #tpu.memory_space<vmem>>, vector<32x256xf32>
    %2 = arith.addf %0, %1 : vector<32x256xf32>
    %cst = arith.constant dense<0.000000e+00> : vector<32xf32>
    %3 = vector.multi_reduction <add>, %2, %cst [1] : vector<32x256xf32> to vector<32xf32>
    %4 = vector.shape_cast %3 : vector<32xf32> to vector<32x1xf32>
    %cst_3 = arith.constant 2.560000e+02 : f32
    %5 = vector.broadcast %cst_3 : f32 to vector<32x1xf32>
    %6 = arith.divf %4, %5 : vector<32x1xf32>
    %7 = vector.broadcast %6 : vector<32x1xf32> to vector<32x256xf32>
    %8 = arith.subf %2, %7 : vector<32x256xf32>
    %9 = arith.mulf %8, %8 : vector<32x256xf32>
    %cst_4 = arith.constant dense<0.000000e+00> : vector<32xf32>
    %10 = vector.multi_reduction <add>, %9, %cst_4 [1] : vector<32x256xf32> to vector<32xf32>
    %11 = vector.shape_cast %10 : vector<32xf32> to vector<32x1xf32>
    %cst_5 = arith.constant 2.560000e+02 : f32
    %12 = vector.broadcast %cst_5 : f32 to vector<32x1xf32>
    %13 = arith.divf %11, %12 : vector<32x1xf32>
    %14 = vector.broadcast %6 : vector<32x1xf32> to vector<32x256xf32>
    %15 = arith.subf %2, %14 : vector<32x256xf32>
    %cst_6 = arith.constant 9.99999974E-6 : f32
    %16 = vector.broadcast %cst_6 : f32 to vector<32x1xf32>
    %17 = arith.addf %13, %16 : vector<32x1xf32>
    %18 = math.rsqrt %17 : vector<32x1xf32>
    %19 = vector.broadcast %18 : vector<32x1xf32> to vector<32x256xf32>
    %20 = arith.mulf %15, %19 : vector<32x256xf32>
    %c0_7 = arith.constant 0 : index
    %c0_8 = arith.constant 0 : index
    %21 = vector.load %arg3[%c0_7, %c0_8] : memref<1x256xf32, #tpu.memory_space<vmem>>, vector<1x256xf32>
    %22 = vector.broadcast %21 : vector<1x256xf32> to vector<32x256xf32>
    %23 = arith.mulf %20, %22 : vector<32x256xf32>
    %c0_9 = arith.constant 0 : index
    %c0_10 = arith.constant 0 : index
    %24 = vector.load %arg4[%c0_9, %c0_10] : memref<1x256xf32, #tpu.memory_space<vmem>>, vector<1x256xf32>
    %25 = vector.broadcast %24 : vector<1x256xf32> to vector<32x256xf32>
    %26 = arith.addf %23, %25 : vector<32x256xf32>
    %c0_11 = arith.constant 0 : index
    %c0_12 = arith.constant 0 : index
    %27 = vector.load %arg5[%c0_11, %c0_12] : memref<32x256xf32, #tpu.memory_space<vmem>>, vector<32x256xf32>
    tpu.vector_store %arg5[%c0_11, %c0_12], %26 {strides = array<i32>} : memref<32x256xf32, #tpu.memory_space<vmem>>, vector<32x256xf32>,
    return
  }
  func.func @transform_0(%arg0: i32) -> (i32, i32) {
    %c0_i32 = arith.constant 0 : i32
    %c0_i32_0 = arith.constant 0 : i32
    %c0_i32_1 = arith.constant 0 : i32
    return %c0_i32, %c0_i32_0 : i32, i32
  }
  func.func @transform_1(%arg0: i32) -> (i32, i32) {
    %c0_i32 = arith.constant 0 : i32
    %c0_i32_0 = arith.constant 0 : i32
    %c0_i32_1 = arith.constant 0 : i32
    return %c0_i32, %c0_i32_0 : i32, i32
  }
  func.func @transform_2(%arg0: i32) -> (i32, i32) {
    %c0_i32 = arith.constant 0 : i32
    %c0_i32_0 = arith.constant 0 : i32
    %c0_i32_1 = arith.constant 0 : i32
    return %c0_i32, %c0_i32_0 : i32, i32
  }
  func.func @transform_3(%arg0: i32) -> (i32, i32) {
    %c0_i32 = arith.constant 0 : i32
    %c0_i32_0 = arith.constant 0 : i32
    %c0_i32_1 = arith.constant 0 : i32
    return %c0_i32, %c0_i32_0 : i32, i32
  }
  func.func @transform_4(%arg0: i32) -> (i32, i32) {
    %c0_i32 = arith.constant 0 : i32
    %c0_i32_0 = arith.constant 0 : i32
    %c0_i32_1 = arith.constant 0 : i32
    return %c0_i32, %c0_i32_0 : i32, i32
  }
}

module attributes {stable_mosaic.version = 11 : i64} {
  func.func @_mha_kernel(%arg0: i32, %arg1: memref<1x16x256xf32, #tpu.memory_space<vmem>>, %arg2: memref<1x16x256xf32, #tpu.memory_space<vmem>>, %arg3: memref<1x16x256xf32, #tpu.memory_space<vmem>>, %arg4: memref<1x1x16xf32, #tpu.memory_space<vmem>>, %arg5: memref<1x16x256xf32, #tpu.memory_space<vmem>>) attributes {dimension_semantics = [#tpu.dimension_semantics<parallel>], iteration_bounds = array<i64: 2>, scalar_prefetch = 0 : i64, scratch_operands = 0 : i64, tpu.core_type = #tpu.core_type<tc>, window_params = [{transform_indices = @transform_0, window_bounds = array<i64: 1, 16, 256>}, {transform_indices = @transform_1, window_bounds = array<i64: 1, 16, 256>}, {transform_indices = @transform_2, window_bounds = array<i64: 1, 16, 256>}, {transform_indices = @transform_3, window_bounds = array<i64: 1, 1, 16>}, {transform_indices = @transform_4, window_bounds = array<i64: 1, 16, 256>}]} {
    %c0 = arith.constant 0 : index
    %c0_0 = arith.constant 0 : index
    %c0_1 = arith.constant 0 : index
    %0 = vector.load %arg4[%c0, %c0_0, %c0_1] : memref<1x1x16xf32, #tpu.memory_space<vmem>>, vector<1x1x16xf32>
    %1 = vector.shape_cast %0 : vector<1x1x16xf32> to vector<1x16xf32>
    %cst = arith.constant -1.000000e+30 : f32
    %2 = vector.broadcast %cst : f32 to vector<1x16xf32>
    %3 = arith.mulf %1, %2 : vector<1x16xf32>
    %c0_2 = arith.constant 0 : index
    %c0_3 = arith.constant 0 : index
    %c0_4 = arith.constant 0 : index
    %4 = vector.load %arg1[%c0_2, %c0_3, %c0_4] : memref<1x16x256xf32, #tpu.memory_space<vmem>>, vector<1x16x32xf32>
    %5 = vector.shape_cast %4 : vector<1x16x32xf32> to vector<16x32xf32>
    %cst_5 = arith.constant 0.176776692 : f32
    %6 = vector.broadcast %cst_5 : f32 to vector<16x32xf32>
    %7 = arith.mulf %5, %6 : vector<16x32xf32>
    %8 = arith.truncf %7 : vector<16x32xf32> to vector<16x32xbf16>
    %c0_6 = arith.constant 0 : index
    %c0_7 = arith.constant 0 : index
    %c0_8 = arith.constant 0 : index
    %9 = vector.load %arg2[%c0_6, %c0_7, %c0_8] : memref<1x16x256xf32, #tpu.memory_space<vmem>>, vector<1x16x32xf32>
    %10 = vector.shape_cast %9 : vector<1x16x32xf32> to vector<16x32xf32>
    %11 = arith.truncf %10 : vector<16x32xf32> to vector<16x32xbf16>
    %c0_9 = arith.constant 0 : index
    %c0_10 = arith.constant 0 : index
    %c0_11 = arith.constant 0 : index
    %12 = vector.load %arg3[%c0_9, %c0_10, %c0_11] : memref<1x16x256xf32, #tpu.memory_space<vmem>>, vector<1x16x32xf32>
    %13 = vector.shape_cast %12 : vector<1x16x32xf32> to vector<16x32xf32>
    %14 = arith.truncf %13 : vector<16x32xf32> to vector<16x32xbf16>
    %cst_12 = arith.constant dense<0.000000e+00> : vector<16x16xf32>
    %15 = tpu.matmul %8, %11, %cst_12 {dimension_numbers = #tpu.dot_dimension_numbers<[1], [1], [0], [0], [0, 0, 1, 0], [], []>} : vector<16x32xbf16>, vector<16x32xbf16>, vector<16x16xf32> -> vector<16x16xf32>
    %16 = vector.broadcast %3 : vector<1x16xf32> to vector<16x16xf32>
    %17 = arith.addf %15, %16 : vector<16x16xf32>
    %cst_13 = arith.constant dense<0xFF800000> : vector<16xf32>
    %18 = vector.multi_reduction <maximumf>, %17, %cst_13 [1] : vector<16x16xf32> to vector<16xf32>
    %19 = vector.shape_cast %18 : vector<16xf32> to vector<16x1xf32>
    %20 = vector.broadcast %19 : vector<16x1xf32> to vector<16x16xf32>
    %21 = arith.subf %17, %20 : vector<16x16xf32>
    %22 = math.exp %21 : vector<16x16xf32>
    %cst_14 = arith.constant dense<0.000000e+00> : vector<16xf32>
    %23 = vector.multi_reduction <add>, %22, %cst_14 [1] : vector<16x16xf32> to vector<16xf32>
    %24 = vector.shape_cast %23 : vector<16xf32> to vector<16x1xf32>
    %25 = tpu.reciprocal %24 {approx = true} : vector<16x1xf32> -> vector<16x1xf32>
    %26 = vector.broadcast %25 : vector<16x1xf32> to vector<16x16xf32>
    %27 = arith.mulf %22, %26 : vector<16x16xf32>
    %28 = arith.truncf %27 : vector<16x16xf32> to vector<16x16xbf16>
    %cst_15 = arith.constant dense<0.000000e+00> : vector<16x32xf32>
    %29 = tpu.matmul %28, %14, %cst_15 {dimension_numbers = #tpu.dot_dimension_numbers<[1], [0], [0], [1], [0, 0, 1, 1], [], []>} : vector<16x16xbf16>, vector<16x32xbf16>, vector<16x32xf32> -> vector<16x32xf32>
    %c0_16 = arith.constant 0 : index
    %c0_17 = arith.constant 0 : index
    %c0_18 = arith.constant 0 : index
    %30 = vector.load %arg5[%c0_16, %c0_17, %c0_18] : memref<1x16x256xf32, #tpu.memory_space<vmem>>, vector<1x16x32xf32>
    %31 = vector.shape_cast %30 : vector<1x16x32xf32> to vector<16x32xf32>
    %32 = vector.shape_cast %29 : vector<16x32xf32> to vector<1x16x32xf32>
    tpu.vector_store %arg5[%c0_16, %c0_17, %c0_18], %32 {strides = array<i32>} : memref<1x16x256xf32, #tpu.memory_space<vmem>>, vector<1x16x32xf32>,
    %c0_19 = arith.constant 0 : index
    %c0_20 = arith.constant 0 : index
    %c32 = arith.constant 32 : index
    %33 = vector.load %arg1[%c0_19, %c0_20, %c32] : memref<1x16x256xf32, #tpu.memory_space<vmem>>, vector<1x16x32xf32>
    %34 = vector.shape_cast %33 : vector<1x16x32xf32> to vector<16x32xf32>
    %cst_21 = arith.constant 0.176776692 : f32
    %35 = vector.broadcast %cst_21 : f32 to vector<16x32xf32>
    %36 = arith.mulf %34, %35 : vector<16x32xf32>
    %37 = arith.truncf %36 : vector<16x32xf32> to vector<16x32xbf16>
    %c0_22 = arith.constant 0 : index
    %c0_23 = arith.constant 0 : index
    %c32_24 = arith.constant 32 : index
    %38 = vector.load %arg2[%c0_22, %c0_23, %c32_24] : memref<1x16x256xf32, #tpu.memory_space<vmem>>, vector<1x16x32xf32>
    %39 = vector.shape_cast %38 : vector<1x16x32xf32> to vector<16x32xf32>
    %40 = arith.truncf %39 : vector<16x32xf32> to vector<16x32xbf16>
    %c0_25 = arith.constant 0 : index
    %c0_26 = arith.constant 0 : index
    %c32_27 = arith.constant 32 : index
    %41 = vector.load %arg3[%c0_25, %c0_26, %c32_27] : memref<1x16x256xf32, #tpu.memory_space<vmem>>, vector<1x16x32xf32>
    %42 = vector.shape_cast %41 : vector<1x16x32xf32> to vector<16x32xf32>
    %43 = arith.truncf %42 : vector<16x32xf32> to vector<16x32xbf16>
    %cst_28 = arith.constant dense<0.000000e+00> : vector<16x16xf32>
    %44 = tpu.matmul %37, %40, %cst_28 {dimension_numbers = #tpu.dot_dimension_numbers<[1], [1], [0], [0], [0, 0, 1, 0], [], []>} : vector<16x32xbf16>, vector<16x32xbf16>, vector<16x16xf32> -> vector<16x16xf32>
    %45 = vector.broadcast %3 : vector<1x16xf32> to vector<16x16xf32>
    %46 = arith.addf %44, %45 : vector<16x16xf32>
    %cst_29 = arith.constant dense<0xFF800000> : vector<16xf32>
    %47 = vector.multi_reduction <maximumf>, %46, %cst_29 [1] : vector<16x16xf32> to vector<16xf32>
    %48 = vector.shape_cast %47 : vector<16xf32> to vector<16x1xf32>
    %49 = vector.broadcast %48 : vector<16x1xf32> to vector<16x16xf32>
    %50 = arith.subf %46, %49 : vector<16x16xf32>
    %51 = math.exp %50 : vector<16x16xf32>
    %cst_30 = arith.constant dense<0.000000e+00> : vector<16xf32>
    %52 = vector.multi_reduction <add>, %51, %cst_30 [1] : vector<16x16xf32> to vector<16xf32>
    %53 = vector.shape_cast %52 : vector<16xf32> to vector<16x1xf32>
    %54 = tpu.reciprocal %53 {approx = true} : vector<16x1xf32> -> vector<16x1xf32>
    %55 = vector.broadcast %54 : vector<16x1xf32> to vector<16x16xf32>
    %56 = arith.mulf %51, %55 : vector<16x16xf32>
    %57 = arith.truncf %56 : vector<16x16xf32> to vector<16x16xbf16>
    %cst_31 = arith.constant dense<0.000000e+00> : vector<16x32xf32>
    %58 = tpu.matmul %57, %43, %cst_31 {dimension_numbers = #tpu.dot_dimension_numbers<[1], [0], [0], [1], [0, 0, 1, 1], [], []>} : vector<16x16xbf16>, vector<16x32xbf16>, vector<16x32xf32> -> vector<16x32xf32>
    %c0_32 = arith.constant 0 : index
    %c0_33 = arith.constant 0 : index
    %c32_34 = arith.constant 32 : index
    %59 = vector.load %arg5[%c0_32, %c0_33, %c32_34] : memref<1x16x256xf32, #tpu.memory_space<vmem>>, vector<1x16x32xf32>
    %60 = vector.shape_cast %59 : vector<1x16x32xf32> to vector<16x32xf32>
    %61 = vector.shape_cast %58 : vector<16x32xf32> to vector<1x16x32xf32>
    tpu.vector_store %arg5[%c0_32, %c0_33, %c32_34], %61 {strides = array<i32>} : memref<1x16x256xf32, #tpu.memory_space<vmem>>, vector<1x16x32xf32>,
    %c0_35 = arith.constant 0 : index
    %c0_36 = arith.constant 0 : index
    %c64 = arith.constant 64 : index
    %62 = vector.load %arg1[%c0_35, %c0_36, %c64] : memref<1x16x256xf32, #tpu.memory_space<vmem>>, vector<1x16x32xf32>
    %63 = vector.shape_cast %62 : vector<1x16x32xf32> to vector<16x32xf32>
    %cst_37 = arith.constant 0.176776692 : f32
    %64 = vector.broadcast %cst_37 : f32 to vector<16x32xf32>
    %65 = arith.mulf %63, %64 : vector<16x32xf32>
    %66 = arith.truncf %65 : vector<16x32xf32> to vector<16x32xbf16>
    %c0_38 = arith.constant 0 : index
    %c0_39 = arith.constant 0 : index
    %c64_40 = arith.constant 64 : index
    %67 = vector.load %arg2[%c0_38, %c0_39, %c64_40] : memref<1x16x256xf32, #tpu.memory_space<vmem>>, vector<1x16x32xf32>
    %68 = vector.shape_cast %67 : vector<1x16x32xf32> to vector<16x32xf32>
    %69 = arith.truncf %68 : vector<16x32xf32> to vector<16x32xbf16>
    %c0_41 = arith.constant 0 : index
    %c0_42 = arith.constant 0 : index
    %c64_43 = arith.constant 64 : index
    %70 = vector.load %arg3[%c0_41, %c0_42, %c64_43] : memref<1x16x256xf32, #tpu.memory_space<vmem>>, vector<1x16x32xf32>
    %71 = vector.shape_cast %70 : vector<1x16x32xf32> to vector<16x32xf32>
    %72 = arith.truncf %71 : vector<16x32xf32> to vector<16x32xbf16>
    %cst_44 = arith.constant dense<0.000000e+00> : vector<16x16xf32>
    %73 = tpu.matmul %66, %69, %cst_44 {dimension_numbers = #tpu.dot_dimension_numbers<[1], [1], [0], [0], [0, 0, 1, 0], [], []>} : vector<16x32xbf16>, vector<16x32xbf16>, vector<16x16xf32> -> vector<16x16xf32>
    %74 = vector.broadcast %3 : vector<1x16xf32> to vector<16x16xf32>
    %75 = arith.addf %73, %74 : vector<16x16xf32>
    %cst_45 = arith.constant dense<0xFF800000> : vector<16xf32>
    %76 = vector.multi_reduction <maximumf>, %75, %cst_45 [1] : vector<16x16xf32> to vector<16xf32>
    %77 = vector.shape_cast %76 : vector<16xf32> to vector<16x1xf32>
    %78 = vector.broadcast %77 : vector<16x1xf32> to vector<16x16xf32>
    %79 = arith.subf %75, %78 : vector<16x16xf32>
    %80 = math.exp %79 : vector<16x16xf32>
    %cst_46 = arith.constant dense<0.000000e+00> : vector<16xf32>
    %81 = vector.multi_reduction <add>, %80, %cst_46 [1] : vector<16x16xf32> to vector<16xf32>
    %82 = vector.shape_cast %81 : vector<16xf32> to vector<16x1xf32>
    %83 = tpu.reciprocal %82 {approx = true} : vector<16x1xf32> -> vector<16x1xf32>
    %84 = vector.broadcast %83 : vector<16x1xf32> to vector<16x16xf32>
    %85 = arith.mulf %80, %84 : vector<16x16xf32>
    %86 = arith.truncf %85 : vector<16x16xf32> to vector<16x16xbf16>
    %cst_47 = arith.constant dense<0.000000e+00> : vector<16x32xf32>
    %87 = tpu.matmul %86, %72, %cst_47 {dimension_numbers = #tpu.dot_dimension_numbers<[1], [0], [0], [1], [0, 0, 1, 1], [], []>} : vector<16x16xbf16>, vector<16x32xbf16>, vector<16x32xf32> -> vector<16x32xf32>
    %c0_48 = arith.constant 0 : index
    %c0_49 = arith.constant 0 : index
    %c64_50 = arith.constant 64 : index
    %88 = vector.load %arg5[%c0_48, %c0_49, %c64_50] : memref<1x16x256xf32, #tpu.memory_space<vmem>>, vector<1x16x32xf32>
    %89 = vector.shape_cast %88 : vector<1x16x32xf32> to vector<16x32xf32>
    %90 = vector.shape_cast %87 : vector<16x32xf32> to vector<1x16x32xf32>
    tpu.vector_store %arg5[%c0_48, %c0_49, %c64_50], %90 {strides = array<i32>} : memref<1x16x256xf32, #tpu.memory_space<vmem>>, vector<1x16x32xf32>,
    %c0_51 = arith.constant 0 : index
    %c0_52 = arith.constant 0 : index
    %c96 = arith.constant 96 : index
    %91 = vector.load %arg1[%c0_51, %c0_52, %c96] : memref<1x16x256xf32, #tpu.memory_space<vmem>>, vector<1x16x32xf32>
    %92 = vector.shape_cast %91 : vector<1x16x32xf32> to vector<16x32xf32>
    %cst_53 = arith.constant 0.176776692 : f32
    %93 = vector.broadcast %cst_53 : f32 to vector<16x32xf32>
    %94 = arith.mulf %92, %93 : vector<16x32xf32>
    %95 = arith.truncf %94 : vector<16x32xf32> to vector<16x32xbf16>
    %c0_54 = arith.constant 0 : index
    %c0_55 = arith.constant 0 : index
    %c96_56 = arith.constant 96 : index
    %96 = vector.load %arg2[%c0_54, %c0_55, %c96_56] : memref<1x16x256xf32, #tpu.memory_space<vmem>>, vector<1x16x32xf32>
    %97 = vector.shape_cast %96 : vector<1x16x32xf32> to vector<16x32xf32>
    %98 = arith.truncf %97 : vector<16x32xf32> to vector<16x32xbf16>
    %c0_57 = arith.constant 0 : index
    %c0_58 = arith.constant 0 : index
    %c96_59 = arith.constant 96 : index
    %99 = vector.load %arg3[%c0_57, %c0_58, %c96_59] : memref<1x16x256xf32, #tpu.memory_space<vmem>>, vector<1x16x32xf32>
    %100 = vector.shape_cast %99 : vector<1x16x32xf32> to vector<16x32xf32>
    %101 = arith.truncf %100 : vector<16x32xf32> to vector<16x32xbf16>
    %cst_60 = arith.constant dense<0.000000e+00> : vector<16x16xf32>
    %102 = tpu.matmul %95, %98, %cst_60 {dimension_numbers = #tpu.dot_dimension_numbers<[1], [1], [0], [0], [0, 0, 1, 0], [], []>} : vector<16x32xbf16>, vector<16x32xbf16>, vector<16x16xf32> -> vector<16x16xf32>
    %103 = vector.broadcast %3 : vector<1x16xf32> to vector<16x16xf32>
    %104 = arith.addf %102, %103 : vector<16x16xf32>
    %cst_61 = arith.constant dense<0xFF800000> : vector<16xf32>
    %105 = vector.multi_reduction <maximumf>, %104, %cst_61 [1] : vector<16x16xf32> to vector<16xf32>
    %106 = vector.shape_cast %105 : vector<16xf32> to vector<16x1xf32>
    %107 = vector.broadcast %106 : vector<16x1xf32> to vector<16x16xf32>
    %108 = arith.subf %104, %107 : vector<16x16xf32>
    %109 = math.exp %108 : vector<16x16xf32>
    %cst_62 = arith.constant dense<0.000000e+00> : vector<16xf32>
    %110 = vector.multi_reduction <add>, %109, %cst_62 [1] : vector<16x16xf32> to vector<16xf32>
    %111 = vector.shape_cast %110 : vector<16xf32> to vector<16x1xf32>
    %112 = tpu.reciprocal %111 {approx = true} : vector<16x1xf32> -> vector<16x1xf32>
    %113 = vector.broadcast %112 : vector<16x1xf32> to vector<16x16xf32>
    %114 = arith.mulf %109, %113 : vector<16x16xf32>
    %115 = arith.truncf %114 : vector<16x16xf32> to vector<16x16xbf16>
    %cst_63 = arith.constant dense<0.000000e+00> : vector<16x32xf32>
    %116 = tpu.matmul %115, %101, %cst_63 {dimension_numbers = #tpu.dot_dimension_numbers<[1], [0], [0], [1], [0, 0, 1, 1], [], []>} : vector<16x16xbf16>, vector<16x32xbf16>, vector<16x32xf32> -> vector<16x32xf32>
    %c0_64 = arith.constant 0 : index
    %c0_65 = arith.constant 0 : index
    %c96_66 = arith.constant 96 : index
    %117 = vector.load %arg5[%c0_64, %c0_65, %c96_66] : memref<1x16x256xf32, #tpu.memory_space<vmem>>, vector<1x16x32xf32>
    %118 = vector.shape_cast %117 : vector<1x16x32xf32> to vector<16x32xf32>
    %119 = vector.shape_cast %116 : vector<16x32xf32> to vector<1x16x32xf32>
    tpu.vector_store %arg5[%c0_64, %c0_65, %c96_66], %119 {strides = array<i32>} : memref<1x16x256xf32, #tpu.memory_space<vmem>>, vector<1x16x32xf32>,
    %c0_67 = arith.constant 0 : index
    %c0_68 = arith.constant 0 : index
    %c128 = arith.constant 128 : index
    %120 = vector.load %arg1[%c0_67, %c0_68, %c128] : memref<1x16x256xf32, #tpu.memory_space<vmem>>, vector<1x16x32xf32>
    %121 = vector.shape_cast %120 : vector<1x16x32xf32> to vector<16x32xf32>
    %cst_69 = arith.constant 0.176776692 : f32
    %122 = vector.broadcast %cst_69 : f32 to vector<16x32xf32>
    %123 = arith.mulf %121, %122 : vector<16x32xf32>
    %124 = arith.truncf %123 : vector<16x32xf32> to vector<16x32xbf16>
    %c0_70 = arith.constant 0 : index
    %c0_71 = arith.constant 0 : index
    %c128_72 = arith.constant 128 : index
    %125 = vector.load %arg2[%c0_70, %c0_71, %c128_72] : memref<1x16x256xf32, #tpu.memory_space<vmem>>, vector<1x16x32xf32>
    %126 = vector.shape_cast %125 : vector<1x16x32xf32> to vector<16x32xf32>
    %127 = arith.truncf %126 : vector<16x32xf32> to vector<16x32xbf16>
    %c0_73 = arith.constant 0 : index
    %c0_74 = arith.constant 0 : index
    %c128_75 = arith.constant 128 : index
    %128 = vector.load %arg3[%c0_73, %c0_74, %c128_75] : memref<1x16x256xf32, #tpu.memory_space<vmem>>, vector<1x16x32xf32>
    %129 = vector.shape_cast %128 : vector<1x16x32xf32> to vector<16x32xf32>
    %130 = arith.truncf %129 : vector<16x32xf32> to vector<16x32xbf16>
    %cst_76 = arith.constant dense<0.000000e+00> : vector<16x16xf32>
    %131 = tpu.matmul %124, %127, %cst_76 {dimension_numbers = #tpu.dot_dimension_numbers<[1], [1], [0], [0], [0, 0, 1, 0], [], []>} : vector<16x32xbf16>, vector<16x32xbf16>, vector<16x16xf32> -> vector<16x16xf32>
    %132 = vector.broadcast %3 : vector<1x16xf32> to vector<16x16xf32>
    %133 = arith.addf %131, %132 : vector<16x16xf32>
    %cst_77 = arith.constant dense<0xFF800000> : vector<16xf32>
    %134 = vector.multi_reduction <maximumf>, %133, %cst_77 [1] : vector<16x16xf32> to vector<16xf32>
    %135 = vector.shape_cast %134 : vector<16xf32> to vector<16x1xf32>
    %136 = vector.broadcast %135 : vector<16x1xf32> to vector<16x16xf32>
    %137 = arith.subf %133, %136 : vector<16x16xf32>
    %138 = math.exp %137 : vector<16x16xf32>
    %cst_78 = arith.constant dense<0.000000e+00> : vector<16xf32>
    %139 = vector.multi_reduction <add>, %138, %cst_78 [1] : vector<16x16xf32> to vector<16xf32>
    %140 = vector.shape_cast %139 : vector<16xf32> to vector<16x1xf32>
    %141 = tpu.reciprocal %140 {approx = true} : vector<16x1xf32> -> vector<16x1xf32>
    %142 = vector.broadcast %141 : vector<16x1xf32> to vector<16x16xf32>
    %143 = arith.mulf %138, %142 : vector<16x16xf32>
    %144 = arith.truncf %143 : vector<16x16xf32> to vector<16x16xbf16>
    %cst_79 = arith.constant dense<0.000000e+00> : vector<16x32xf32>
    %145 = tpu.matmul %144, %130, %cst_79 {dimension_numbers = #tpu.dot_dimension_numbers<[1], [0], [0], [1], [0, 0, 1, 1], [], []>} : vector<16x16xbf16>, vector<16x32xbf16>, vector<16x32xf32> -> vector<16x32xf32>
    %c0_80 = arith.constant 0 : index
    %c0_81 = arith.constant 0 : index
    %c128_82 = arith.constant 128 : index
    %146 = vector.load %arg5[%c0_80, %c0_81, %c128_82] : memref<1x16x256xf32, #tpu.memory_space<vmem>>, vector<1x16x32xf32>
    %147 = vector.shape_cast %146 : vector<1x16x32xf32> to vector<16x32xf32>
    %148 = vector.shape_cast %145 : vector<16x32xf32> to vector<1x16x32xf32>
    tpu.vector_store %arg5[%c0_80, %c0_81, %c128_82], %148 {strides = array<i32>} : memref<1x16x256xf32, #tpu.memory_space<vmem>>, vector<1x16x32xf32>,
    %c0_83 = arith.constant 0 : index
    %c0_84 = arith.constant 0 : index
    %c160 = arith.constant 160 : index
    %149 = vector.load %arg1[%c0_83, %c0_84, %c160] : memref<1x16x256xf32, #tpu.memory_space<vmem>>, vector<1x16x32xf32>
    %150 = vector.shape_cast %149 : vector<1x16x32xf32> to vector<16x32xf32>
    %cst_85 = arith.constant 0.176776692 : f32
    %151 = vector.broadcast %cst_85 : f32 to vector<16x32xf32>
    %152 = arith.mulf %150, %151 : vector<16x32xf32>
    %153 = arith.truncf %152 : vector<16x32xf32> to vector<16x32xbf16>
    %c0_86 = arith.constant 0 : index
    %c0_87 = arith.constant 0 : index
    %c160_88 = arith.constant 160 : index
    %154 = vector.load %arg2[%c0_86, %c0_87, %c160_88] : memref<1x16x256xf32, #tpu.memory_space<vmem>>, vector<1x16x32xf32>
    %155 = vector.shape_cast %154 : vector<1x16x32xf32> to vector<16x32xf32>
    %156 = arith.truncf %155 : vector<16x32xf32> to vector<16x32xbf16>
    %c0_89 = arith.constant 0 : index
    %c0_90 = arith.constant 0 : index
    %c160_91 = arith.constant 160 : index
    %157 = vector.load %arg3[%c0_89, %c0_90, %c160_91] : memref<1x16x256xf32, #tpu.memory_space<vmem>>, vector<1x16x32xf32>
    %158 = vector.shape_cast %157 : vector<1x16x32xf32> to vector<16x32xf32>
    %159 = arith.truncf %158 : vector<16x32xf32> to vector<16x32xbf16>
    %cst_92 = arith.constant dense<0.000000e+00> : vector<16x16xf32>
    %160 = tpu.matmul %153, %156, %cst_92 {dimension_numbers = #tpu.dot_dimension_numbers<[1], [1], [0], [0], [0, 0, 1, 0], [], []>} : vector<16x32xbf16>, vector<16x32xbf16>, vector<16x16xf32> -> vector<16x16xf32>
    %161 = vector.broadcast %3 : vector<1x16xf32> to vector<16x16xf32>
    %162 = arith.addf %160, %161 : vector<16x16xf32>
    %cst_93 = arith.constant dense<0xFF800000> : vector<16xf32>
    %163 = vector.multi_reduction <maximumf>, %162, %cst_93 [1] : vector<16x16xf32> to vector<16xf32>
    %164 = vector.shape_cast %163 : vector<16xf32> to vector<16x1xf32>
    %165 = vector.broadcast %164 : vector<16x1xf32> to vector<16x16xf32>
    %166 = arith.subf %162, %165 : vector<16x16xf32>
    %167 = math.exp %166 : vector<16x16xf32>
    %cst_94 = arith.constant dense<0.000000e+00> : vector<16xf32>
    %168 = vector.multi_reduction <add>, %167, %cst_94 [1] : vector<16x16xf32> to vector<16xf32>
    %169 = vector.shape_cast %168 : vector<16xf32> to vector<16x1xf32>
    %170 = tpu.reciprocal %169 {approx = true} : vector<16x1xf32> -> vector<16x1xf32>
    %171 = vector.broadcast %170 : vector<16x1xf32> to vector<16x16xf32>
    %172 = arith.mulf %167, %171 : vector<16x16xf32>
    %173 = arith.truncf %172 : vector<16x16xf32> to vector<16x16xbf16>
    %cst_95 = arith.constant dense<0.000000e+00> : vector<16x32xf32>
    %174 = tpu.matmul %173, %159, %cst_95 {dimension_numbers = #tpu.dot_dimension_numbers<[1], [0], [0], [1], [0, 0, 1, 1], [], []>} : vector<16x16xbf16>, vector<16x32xbf16>, vector<16x32xf32> -> vector<16x32xf32>
    %c0_96 = arith.constant 0 : index
    %c0_97 = arith.constant 0 : index
    %c160_98 = arith.constant 160 : index
    %175 = vector.load %arg5[%c0_96, %c0_97, %c160_98] : memref<1x16x256xf32, #tpu.memory_space<vmem>>, vector<1x16x32xf32>
    %176 = vector.shape_cast %175 : vector<1x16x32xf32> to vector<16x32xf32>
    %177 = vector.shape_cast %174 : vector<16x32xf32> to vector<1x16x32xf32>
    tpu.vector_store %arg5[%c0_96, %c0_97, %c160_98], %177 {strides = array<i32>} : memref<1x16x256xf32, #tpu.memory_space<vmem>>, vector<1x16x32xf32>,
    %c0_99 = arith.constant 0 : index
    %c0_100 = arith.constant 0 : index
    %c192 = arith.constant 192 : index
    %178 = vector.load %arg1[%c0_99, %c0_100, %c192] : memref<1x16x256xf32, #tpu.memory_space<vmem>>, vector<1x16x32xf32>
    %179 = vector.shape_cast %178 : vector<1x16x32xf32> to vector<16x32xf32>
    %cst_101 = arith.constant 0.176776692 : f32
    %180 = vector.broadcast %cst_101 : f32 to vector<16x32xf32>
    %181 = arith.mulf %179, %180 : vector<16x32xf32>
    %182 = arith.truncf %181 : vector<16x32xf32> to vector<16x32xbf16>
    %c0_102 = arith.constant 0 : index
    %c0_103 = arith.constant 0 : index
    %c192_104 = arith.constant 192 : index
    %183 = vector.load %arg2[%c0_102, %c0_103, %c192_104] : memref<1x16x256xf32, #tpu.memory_space<vmem>>, vector<1x16x32xf32>
    %184 = vector.shape_cast %183 : vector<1x16x32xf32> to vector<16x32xf32>
    %185 = arith.truncf %184 : vector<16x32xf32> to vector<16x32xbf16>
    %c0_105 = arith.constant 0 : index
    %c0_106 = arith.constant 0 : index
    %c192_107 = arith.constant 192 : index
    %186 = vector.load %arg3[%c0_105, %c0_106, %c192_107] : memref<1x16x256xf32, #tpu.memory_space<vmem>>, vector<1x16x32xf32>
    %187 = vector.shape_cast %186 : vector<1x16x32xf32> to vector<16x32xf32>
    %188 = arith.truncf %187 : vector<16x32xf32> to vector<16x32xbf16>
    %cst_108 = arith.constant dense<0.000000e+00> : vector<16x16xf32>
    %189 = tpu.matmul %182, %185, %cst_108 {dimension_numbers = #tpu.dot_dimension_numbers<[1], [1], [0], [0], [0, 0, 1, 0], [], []>} : vector<16x32xbf16>, vector<16x32xbf16>, vector<16x16xf32> -> vector<16x16xf32>
    %190 = vector.broadcast %3 : vector<1x16xf32> to vector<16x16xf32>
    %191 = arith.addf %189, %190 : vector<16x16xf32>
    %cst_109 = arith.constant dense<0xFF800000> : vector<16xf32>
    %192 = vector.multi_reduction <maximumf>, %191, %cst_109 [1] : vector<16x16xf32> to vector<16xf32>
    %193 = vector.shape_cast %192 : vector<16xf32> to vector<16x1xf32>
    %194 = vector.broadcast %193 : vector<16x1xf32> to vector<16x16xf32>
    %195 = arith.subf %191, %194 : vector<16x16xf32>
    %196 = math.exp %195 : vector<16x16xf32>
    %cst_110 = arith.constant dense<0.000000e+00> : vector<16xf32>
    %197 = vector.multi_reduction <add>, %196, %cst_110 [1] : vector<16x16xf32> to vector<16xf32>
    %198 = vector.shape_cast %197 : vector<16xf32> to vector<16x1xf32>
    %199 = tpu.reciprocal %198 {approx = true} : vector<16x1xf32> -> vector<16x1xf32>
    %200 = vector.broadcast %199 : vector<16x1xf32> to vector<16x16xf32>
    %201 = arith.mulf %196, %200 : vector<16x16xf32>
    %202 = arith.truncf %201 : vector<16x16xf32> to vector<16x16xbf16>
    %cst_111 = arith.constant dense<0.000000e+00> : vector<16x32xf32>
    %203 = tpu.matmul %202, %188, %cst_111 {dimension_numbers = #tpu.dot_dimension_numbers<[1], [0], [0], [1], [0, 0, 1, 1], [], []>} : vector<16x16xbf16>, vector<16x32xbf16>, vector<16x32xf32> -> vector<16x32xf32>
    %c0_112 = arith.constant 0 : index
    %c0_113 = arith.constant 0 : index
    %c192_114 = arith.constant 192 : index
    %204 = vector.load %arg5[%c0_112, %c0_113, %c192_114] : memref<1x16x256xf32, #tpu.memory_space<vmem>>, vector<1x16x32xf32>
    %205 = vector.shape_cast %204 : vector<1x16x32xf32> to vector<16x32xf32>
    %206 = vector.shape_cast %203 : vector<16x32xf32> to vector<1x16x32xf32>
    tpu.vector_store %arg5[%c0_112, %c0_113, %c192_114], %206 {strides = array<i32>} : memref<1x16x256xf32, #tpu.memory_space<vmem>>, vector<1x16x32xf32>,
    %c0_115 = arith.constant 0 : index
    %c0_116 = arith.constant 0 : index
    %c224 = arith.constant 224 : index
    %207 = vector.load %arg1[%c0_115, %c0_116, %c224] : memref<1x16x256xf32, #tpu.memory_space<vmem>>, vector<1x16x32xf32>
    %208 = vector.shape_cast %207 : vector<1x16x32xf32> to vector<16x32xf32>
    %cst_117 = arith.constant 0.176776692 : f32
    %209 = vector.broadcast %cst_117 : f32 to vector<16x32xf32>
    %210 = arith.mulf %208, %209 : vector<16x32xf32>
    %211 = arith.truncf %210 : vector<16x32xf32> to vector<16x32xbf16>
    %c0_118 = arith.constant 0 : index
    %c0_119 = arith.constant 0 : index
    %c224_120 = arith.constant 224 : index
    %212 = vector.load %arg2[%c0_118, %c0_119, %c224_120] : memref<1x16x256xf32, #tpu.memory_space<vmem>>, vector<1x16x32xf32>
    %213 = vector.shape_cast %212 : vector<1x16x32xf32> to vector<16x32xf32>
    %214 = arith.truncf %213 : vector<16x32xf32> to vector<16x32xbf16>
    %c0_121 = arith.constant 0 : index
    %c0_122 = arith.constant 0 : index
    %c224_123 = arith.constant 224 : index
    %215 = vector.load %arg3[%c0_121, %c0_122, %c224_123] : memref<1x16x256xf32, #tpu.memory_space<vmem>>, vector<1x16x32xf32>
    %216 = vector.shape_cast %215 : vector<1x16x32xf32> to vector<16x32xf32>
    %217 = arith.truncf %216 : vector<16x32xf32> to vector<16x32xbf16>
    %cst_124 = arith.constant dense<0.000000e+00> : vector<16x16xf32>
    %218 = tpu.matmul %211, %214, %cst_124 {dimension_numbers = #tpu.dot_dimension_numbers<[1], [1], [0], [0], [0, 0, 1, 0], [], []>} : vector<16x32xbf16>, vector<16x32xbf16>, vector<16x16xf32> -> vector<16x16xf32>
    %219 = vector.broadcast %3 : vector<1x16xf32> to vector<16x16xf32>
    %220 = arith.addf %218, %219 : vector<16x16xf32>
    %cst_125 = arith.constant dense<0xFF800000> : vector<16xf32>
    %221 = vector.multi_reduction <maximumf>, %220, %cst_125 [1] : vector<16x16xf32> to vector<16xf32>
    %222 = vector.shape_cast %221 : vector<16xf32> to vector<16x1xf32>
    %223 = vector.broadcast %222 : vector<16x1xf32> to vector<16x16xf32>
    %224 = arith.subf %220, %223 : vector<16x16xf32>
    %225 = math.exp %224 : vector<16x16xf32>
    %cst_126 = arith.constant dense<0.000000e+00> : vector<16xf32>
    %226 = vector.multi_reduction <add>, %225, %cst_126 [1] : vector<16x16xf32> to vector<16xf32>
    %227 = vector.shape_cast %226 : vector<16xf32> to vector<16x1xf32>
    %228 = tpu.reciprocal %227 {approx = true} : vector<16x1xf32> -> vector<16x1xf32>
    %229 = vector.broadcast %228 : vector<16x1xf32> to vector<16x16xf32>
    %230 = arith.mulf %225, %229 : vector<16x16xf32>
    %231 = arith.truncf %230 : vector<16x16xf32> to vector<16x16xbf16>
    %cst_127 = arith.constant dense<0.000000e+00> : vector<16x32xf32>
    %232 = tpu.matmul %231, %217, %cst_127 {dimension_numbers = #tpu.dot_dimension_numbers<[1], [0], [0], [1], [0, 0, 1, 1], [], []>} : vector<16x16xbf16>, vector<16x32xbf16>, vector<16x32xf32> -> vector<16x32xf32>
    %c0_128 = arith.constant 0 : index
    %c0_129 = arith.constant 0 : index
    %c224_130 = arith.constant 224 : index
    %233 = vector.load %arg5[%c0_128, %c0_129, %c224_130] : memref<1x16x256xf32, #tpu.memory_space<vmem>>, vector<1x16x32xf32>
    %234 = vector.shape_cast %233 : vector<1x16x32xf32> to vector<16x32xf32>
    %235 = vector.shape_cast %232 : vector<16x32xf32> to vector<1x16x32xf32>
    tpu.vector_store %arg5[%c0_128, %c0_129, %c224_130], %235 {strides = array<i32>} : memref<1x16x256xf32, #tpu.memory_space<vmem>>, vector<1x16x32xf32>,
    return
  }
  func.func @transform_0(%arg0: i32) -> (i32, i32, i32) {
    %c0_i32 = arith.constant 0 : i32
    %c0_i32_0 = arith.constant 0 : i32
    %c0_i32_1 = arith.constant 0 : i32
    return %arg0, %c0_i32, %c0_i32_0 : i32, i32, i32
  }
  func.func @transform_1(%arg0: i32) -> (i32, i32, i32) {
    %c0_i32 = arith.constant 0 : i32
    %c0_i32_0 = arith.constant 0 : i32
    %c0_i32_1 = arith.constant 0 : i32
    return %arg0, %c0_i32, %c0_i32_0 : i32, i32, i32
  }
  func.func @transform_2(%arg0: i32) -> (i32, i32, i32) {
    %c0_i32 = arith.constant 0 : i32
    %c0_i32_0 = arith.constant 0 : i32
    %c0_i32_1 = arith.constant 0 : i32
    return %arg0, %c0_i32, %c0_i32_0 : i32, i32, i32
  }
  func.func @transform_3(%arg0: i32) -> (i32, i32, i32) {
    %c0_i32 = arith.constant 0 : i32
    %c0_i32_0 = arith.constant 0 : i32
    %c0_i32_1 = arith.constant 0 : i32
    return %arg0, %c0_i32, %c0_i32_0 : i32, i32, i32
  }
  func.func @transform_4(%arg0: i32) -> (i32, i32, i32) {
    %c0_i32 = arith.constant 0 : i32
    %c0_i32_0 = arith.constant 0 : i32
    %c0_i32_1 = arith.constant 0 : i32
    return %arg0, %c0_i32, %c0_i32_0 : i32, i32, i32
  }
}

module attributes {stable_mosaic.version = 11 : i64} {
  func.func @_mha_kernel(%arg0: i32, %arg1: memref<1x16x256xf32, #tpu.memory_space<vmem>>, %arg2: memref<1x16x256xf32, #tpu.memory_space<vmem>>, %arg3: memref<1x16x256xf32, #tpu.memory_space<vmem>>, %arg4: memref<1x16x256xf32, #tpu.memory_space<vmem>>) attributes {dimension_semantics = [#tpu.dimension_semantics<parallel>], iteration_bounds = array<i64: 2>, scalar_prefetch = 0 : i64, scratch_operands = 0 : i64, tpu.core_type = #tpu.core_type<tc>, window_params = [{transform_indices = @transform_0, window_bounds = array<i64: 1, 16, 256>}, {transform_indices = @transform_1, window_bounds = array<i64: 1, 16, 256>}, {transform_indices = @transform_2, window_bounds = array<i64: 1, 16, 256>}, {transform_indices = @transform_3, window_bounds = array<i64: 1, 16, 256>}]} {
    %c0 = arith.constant 0 : index
    %c0_0 = arith.constant 0 : index
    %c0_1 = arith.constant 0 : index
    %0 = vector.load %arg1[%c0, %c0_0, %c0_1] : memref<1x16x256xf32, #tpu.memory_space<vmem>>, vector<1x16x32xf32>
    %1 = vector.shape_cast %0 : vector<1x16x32xf32> to vector<16x32xf32>
    %cst = arith.constant 0.176776692 : f32
    %2 = vector.broadcast %cst : f32 to vector<16x32xf32>
    %3 = arith.mulf %1, %2 : vector<16x32xf32>
    %4 = arith.truncf %3 : vector<16x32xf32> to vector<16x32xbf16>
    %c0_2 = arith.constant 0 : index
    %c0_3 = arith.constant 0 : index
    %c0_4 = arith.constant 0 : index
    %5 = vector.load %arg2[%c0_2, %c0_3, %c0_4] : memref<1x16x256xf32, #tpu.memory_space<vmem>>, vector<1x16x32xf32>
    %6 = vector.shape_cast %5 : vector<1x16x32xf32> to vector<16x32xf32>
    %7 = arith.truncf %6 : vector<16x32xf32> to vector<16x32xbf16>
    %c0_5 = arith.constant 0 : index
    %c0_6 = arith.constant 0 : index
    %c0_7 = arith.constant 0 : index
    %8 = vector.load %arg3[%c0_5, %c0_6, %c0_7] : memref<1x16x256xf32, #tpu.memory_space<vmem>>, vector<1x16x32xf32>
    %9 = vector.shape_cast %8 : vector<1x16x32xf32> to vector<16x32xf32>
    %10 = arith.truncf %9 : vector<16x32xf32> to vector<16x32xbf16>
    %cst_8 = arith.constant dense<0.000000e+00> : vector<16x16xf32>
    %11 = tpu.matmul %4, %7, %cst_8 {dimension_numbers = #tpu.dot_dimension_numbers<[1], [1], [0], [0], [0, 0, 1, 0], [], []>} : vector<16x32xbf16>, vector<16x32xbf16>, vector<16x16xf32> -> vector<16x16xf32>
    %cst_9 = arith.constant dense<0xFF800000> : vector<16xf32>
    %12 = vector.multi_reduction <maximumf>, %11, %cst_9 [1] : vector<16x16xf32> to vector<16xf32>
    %13 = vector.shape_cast %12 : vector<16xf32> to vector<16x1xf32>
    %14 = vector.broadcast %13 : vector<16x1xf32> to vector<16x16xf32>
    %15 = arith.subf %11, %14 : vector<16x16xf32>
    %16 = math.exp %15 : vector<16x16xf32>
    %cst_10 = arith.constant dense<0.000000e+00> : vector<16xf32>
    %17 = vector.multi_reduction <add>, %16, %cst_10 [1] : vector<16x16xf32> to vector<16xf32>
    %18 = vector.shape_cast %17 : vector<16xf32> to vector<16x1xf32>
    %19 = tpu.reciprocal %18 {approx = true} : vector<16x1xf32> -> vector<16x1xf32>
    %20 = vector.broadcast %19 : vector<16x1xf32> to vector<16x16xf32>
    %21 = arith.mulf %16, %20 : vector<16x16xf32>
    %22 = arith.truncf %21 : vector<16x16xf32> to vector<16x16xbf16>
    %cst_11 = arith.constant dense<0.000000e+00> : vector<16x32xf32>
    %23 = tpu.matmul %22, %10, %cst_11 {dimension_numbers = #tpu.dot_dimension_numbers<[1], [0], [0], [1], [0, 0, 1, 1], [], []>} : vector<16x16xbf16>, vector<16x32xbf16>, vector<16x32xf32> -> vector<16x32xf32>
    %c0_12 = arith.constant 0 : index
    %c0_13 = arith.constant 0 : index
    %c0_14 = arith.constant 0 : index
    %24 = vector.load %arg4[%c0_12, %c0_13, %c0_14] : memref<1x16x256xf32, #tpu.memory_space<vmem>>, vector<1x16x32xf32>
    %25 = vector.shape_cast %24 : vector<1x16x32xf32> to vector<16x32xf32>
    %26 = vector.shape_cast %23 : vector<16x32xf32> to vector<1x16x32xf32>
    tpu.vector_store %arg4[%c0_12, %c0_13, %c0_14], %26 {strides = array<i32>} : memref<1x16x256xf32, #tpu.memory_space<vmem>>, vector<1x16x32xf32>,
    %c0_15 = arith.constant 0 : index
    %c0_16 = arith.constant 0 : index
    %c32 = arith.constant 32 : index
    %27 = vector.load %arg1[%c0_15, %c0_16, %c32] : memref<1x16x256xf32, #tpu.memory_space<vmem>>, vector<1x16x32xf32>
    %28 = vector.shape_cast %27 : vector<1x16x32xf32> to vector<16x32xf32>
    %cst_17 = arith.constant 0.176776692 : f32
    %29 = vector.broadcast %cst_17 : f32 to vector<16x32xf32>
    %30 = arith.mulf %28, %29 : vector<16x32xf32>
    %31 = arith.truncf %30 : vector<16x32xf32> to vector<16x32xbf16>
    %c0_18 = arith.constant 0 : index
    %c0_19 = arith.constant 0 : index
    %c32_20 = arith.constant 32 : index
    %32 = vector.load %arg2[%c0_18, %c0_19, %c32_20] : memref<1x16x256xf32, #tpu.memory_space<vmem>>, vector<1x16x32xf32>
    %33 = vector.shape_cast %32 : vector<1x16x32xf32> to vector<16x32xf32>
    %34 = arith.truncf %33 : vector<16x32xf32> to vector<16x32xbf16>
    %c0_21 = arith.constant 0 : index
    %c0_22 = arith.constant 0 : index
    %c32_23 = arith.constant 32 : index
    %35 = vector.load %arg3[%c0_21, %c0_22, %c32_23] : memref<1x16x256xf32, #tpu.memory_space<vmem>>, vector<1x16x32xf32>
    %36 = vector.shape_cast %35 : vector<1x16x32xf32> to vector<16x32xf32>
    %37 = arith.truncf %36 : vector<16x32xf32> to vector<16x32xbf16>
    %cst_24 = arith.constant dense<0.000000e+00> : vector<16x16xf32>
    %38 = tpu.matmul %31, %34, %cst_24 {dimension_numbers = #tpu.dot_dimension_numbers<[1], [1], [0], [0], [0, 0, 1, 0], [], []>} : vector<16x32xbf16>, vector<16x32xbf16>, vector<16x16xf32> -> vector<16x16xf32>
    %cst_25 = arith.constant dense<0xFF800000> : vector<16xf32>
    %39 = vector.multi_reduction <maximumf>, %38, %cst_25 [1] : vector<16x16xf32> to vector<16xf32>
    %40 = vector.shape_cast %39 : vector<16xf32> to vector<16x1xf32>
    %41 = vector.broadcast %40 : vector<16x1xf32> to vector<16x16xf32>
    %42 = arith.subf %38, %41 : vector<16x16xf32>
    %43 = math.exp %42 : vector<16x16xf32>
    %cst_26 = arith.constant dense<0.000000e+00> : vector<16xf32>
    %44 = vector.multi_reduction <add>, %43, %cst_26 [1] : vector<16x16xf32> to vector<16xf32>
    %45 = vector.shape_cast %44 : vector<16xf32> to vector<16x1xf32>
    %46 = tpu.reciprocal %45 {approx = true} : vector<16x1xf32> -> vector<16x1xf32>
    %47 = vector.broadcast %46 : vector<16x1xf32> to vector<16x16xf32>
    %48 = arith.mulf %43, %47 : vector<16x16xf32>
    %49 = arith.truncf %48 : vector<16x16xf32> to vector<16x16xbf16>
    %cst_27 = arith.constant dense<0.000000e+00> : vector<16x32xf32>
    %50 = tpu.matmul %49, %37, %cst_27 {dimension_numbers = #tpu.dot_dimension_numbers<[1], [0], [0], [1], [0, 0, 1, 1], [], []>} : vector<16x16xbf16>, vector<16x32xbf16>, vector<16x32xf32> -> vector<16x32xf32>
    %c0_28 = arith.constant 0 : index
    %c0_29 = arith.constant 0 : index
    %c32_30 = arith.constant 32 : index
    %51 = vector.load %arg4[%c0_28, %c0_29, %c32_30] : memref<1x16x256xf32, #tpu.memory_space<vmem>>, vector<1x16x32xf32>
    %52 = vector.shape_cast %51 : vector<1x16x32xf32> to vector<16x32xf32>
    %53 = vector.shape_cast %50 : vector<16x32xf32> to vector<1x16x32xf32>
    tpu.vector_store %arg4[%c0_28, %c0_29, %c32_30], %53 {strides = array<i32>} : memref<1x16x256xf32, #tpu.memory_space<vmem>>, vector<1x16x32xf32>,
    %c0_31 = arith.constant 0 : index
    %c0_32 = arith.constant 0 : index
    %c64 = arith.constant 64 : index
    %54 = vector.load %arg1[%c0_31, %c0_32, %c64] : memref<1x16x256xf32, #tpu.memory_space<vmem>>, vector<1x16x32xf32>
    %55 = vector.shape_cast %54 : vector<1x16x32xf32> to vector<16x32xf32>
    %cst_33 = arith.constant 0.176776692 : f32
    %56 = vector.broadcast %cst_33 : f32 to vector<16x32xf32>
    %57 = arith.mulf %55, %56 : vector<16x32xf32>
    %58 = arith.truncf %57 : vector<16x32xf32> to vector<16x32xbf16>
    %c0_34 = arith.constant 0 : index
    %c0_35 = arith.constant 0 : index
    %c64_36 = arith.constant 64 : index
    %59 = vector.load %arg2[%c0_34, %c0_35, %c64_36] : memref<1x16x256xf32, #tpu.memory_space<vmem>>, vector<1x16x32xf32>
    %60 = vector.shape_cast %59 : vector<1x16x32xf32> to vector<16x32xf32>
    %61 = arith.truncf %60 : vector<16x32xf32> to vector<16x32xbf16>
    %c0_37 = arith.constant 0 : index
    %c0_38 = arith.constant 0 : index
    %c64_39 = arith.constant 64 : index
    %62 = vector.load %arg3[%c0_37, %c0_38, %c64_39] : memref<1x16x256xf32, #tpu.memory_space<vmem>>, vector<1x16x32xf32>
    %63 = vector.shape_cast %62 : vector<1x16x32xf32> to vector<16x32xf32>
    %64 = arith.truncf %63 : vector<16x32xf32> to vector<16x32xbf16>
    %cst_40 = arith.constant dense<0.000000e+00> : vector<16x16xf32>
    %65 = tpu.matmul %58, %61, %cst_40 {dimension_numbers = #tpu.dot_dimension_numbers<[1], [1], [0], [0], [0, 0, 1, 0], [], []>} : vector<16x32xbf16>, vector<16x32xbf16>, vector<16x16xf32> -> vector<16x16xf32>
    %cst_41 = arith.constant dense<0xFF800000> : vector<16xf32>
    %66 = vector.multi_reduction <maximumf>, %65, %cst_41 [1] : vector<16x16xf32> to vector<16xf32>
    %67 = vector.shape_cast %66 : vector<16xf32> to vector<16x1xf32>
    %68 = vector.broadcast %67 : vector<16x1xf32> to vector<16x16xf32>
    %69 = arith.subf %65, %68 : vector<16x16xf32>
    %70 = math.exp %69 : vector<16x16xf32>
    %cst_42 = arith.constant dense<0.000000e+00> : vector<16xf32>
    %71 = vector.multi_reduction <add>, %70, %cst_42 [1] : vector<16x16xf32> to vector<16xf32>
    %72 = vector.shape_cast %71 : vector<16xf32> to vector<16x1xf32>
    %73 = tpu.reciprocal %72 {approx = true} : vector<16x1xf32> -> vector<16x1xf32>
    %74 = vector.broadcast %73 : vector<16x1xf32> to vector<16x16xf32>
    %75 = arith.mulf %70, %74 : vector<16x16xf32>
    %76 = arith.truncf %75 : vector<16x16xf32> to vector<16x16xbf16>
    %cst_43 = arith.constant dense<0.000000e+00> : vector<16x32xf32>
    %77 = tpu.matmul %76, %64, %cst_43 {dimension_numbers = #tpu.dot_dimension_numbers<[1], [0], [0], [1], [0, 0, 1, 1], [], []>} : vector<16x16xbf16>, vector<16x32xbf16>, vector<16x32xf32> -> vector<16x32xf32>
    %c0_44 = arith.constant 0 : index
    %c0_45 = arith.constant 0 : index
    %c64_46 = arith.constant 64 : index
    %78 = vector.load %arg4[%c0_44, %c0_45, %c64_46] : memref<1x16x256xf32, #tpu.memory_space<vmem>>, vector<1x16x32xf32>
    %79 = vector.shape_cast %78 : vector<1x16x32xf32> to vector<16x32xf32>
    %80 = vector.shape_cast %77 : vector<16x32xf32> to vector<1x16x32xf32>
    tpu.vector_store %arg4[%c0_44, %c0_45, %c64_46], %80 {strides = array<i32>} : memref<1x16x256xf32, #tpu.memory_space<vmem>>, vector<1x16x32xf32>,
    %c0_47 = arith.constant 0 : index
    %c0_48 = arith.constant 0 : index
    %c96 = arith.constant 96 : index
    %81 = vector.load %arg1[%c0_47, %c0_48, %c96] : memref<1x16x256xf32, #tpu.memory_space<vmem>>, vector<1x16x32xf32>
    %82 = vector.shape_cast %81 : vector<1x16x32xf32> to vector<16x32xf32>
    %cst_49 = arith.constant 0.176776692 : f32
    %83 = vector.broadcast %cst_49 : f32 to vector<16x32xf32>
    %84 = arith.mulf %82, %83 : vector<16x32xf32>
    %85 = arith.truncf %84 : vector<16x32xf32> to vector<16x32xbf16>
    %c0_50 = arith.constant 0 : index
    %c0_51 = arith.constant 0 : index
    %c96_52 = arith.constant 96 : index
    %86 = vector.load %arg2[%c0_50, %c0_51, %c96_52] : memref<1x16x256xf32, #tpu.memory_space<vmem>>, vector<1x16x32xf32>
    %87 = vector.shape_cast %86 : vector<1x16x32xf32> to vector<16x32xf32>
    %88 = arith.truncf %87 : vector<16x32xf32> to vector<16x32xbf16>
    %c0_53 = arith.constant 0 : index
    %c0_54 = arith.constant 0 : index
    %c96_55 = arith.constant 96 : index
    %89 = vector.load %arg3[%c0_53, %c0_54, %c96_55] : memref<1x16x256xf32, #tpu.memory_space<vmem>>, vector<1x16x32xf32>
    %90 = vector.shape_cast %89 : vector<1x16x32xf32> to vector<16x32xf32>
    %91 = arith.truncf %90 : vector<16x32xf32> to vector<16x32xbf16>
    %cst_56 = arith.constant dense<0.000000e+00> : vector<16x16xf32>
    %92 = tpu.matmul %85, %88, %cst_56 {dimension_numbers = #tpu.dot_dimension_numbers<[1], [1], [0], [0], [0, 0, 1, 0], [], []>} : vector<16x32xbf16>, vector<16x32xbf16>, vector<16x16xf32> -> vector<16x16xf32>
    %cst_57 = arith.constant dense<0xFF800000> : vector<16xf32>
    %93 = vector.multi_reduction <maximumf>, %92, %cst_57 [1] : vector<16x16xf32> to vector<16xf32>
    %94 = vector.shape_cast %93 : vector<16xf32> to vector<16x1xf32>
    %95 = vector.broadcast %94 : vector<16x1xf32> to vector<16x16xf32>
    %96 = arith.subf %92, %95 : vector<16x16xf32>
    %97 = math.exp %96 : vector<16x16xf32>
    %cst_58 = arith.constant dense<0.000000e+00> : vector<16xf32>
    %98 = vector.multi_reduction <add>, %97, %cst_58 [1] : vector<16x16xf32> to vector<16xf32>
    %99 = vector.shape_cast %98 : vector<16xf32> to vector<16x1xf32>
    %100 = tpu.reciprocal %99 {approx = true} : vector<16x1xf32> -> vector<16x1xf32>
    %101 = vector.broadcast %100 : vector<16x1xf32> to vector<16x16xf32>
    %102 = arith.mulf %97, %101 : vector<16x16xf32>
    %103 = arith.truncf %102 : vector<16x16xf32> to vector<16x16xbf16>
    %cst_59 = arith.constant dense<0.000000e+00> : vector<16x32xf32>
    %104 = tpu.matmul %103, %91, %cst_59 {dimension_numbers = #tpu.dot_dimension_numbers<[1], [0], [0], [1], [0, 0, 1, 1], [], []>} : vector<16x16xbf16>, vector<16x32xbf16>, vector<16x32xf32> -> vector<16x32xf32>
    %c0_60 = arith.constant 0 : index
    %c0_61 = arith.constant 0 : index
    %c96_62 = arith.constant 96 : index
    %105 = vector.load %arg4[%c0_60, %c0_61, %c96_62] : memref<1x16x256xf32, #tpu.memory_space<vmem>>, vector<1x16x32xf32>
    %106 = vector.shape_cast %105 : vector<1x16x32xf32> to vector<16x32xf32>
    %107 = vector.shape_cast %104 : vector<16x32xf32> to vector<1x16x32xf32>
    tpu.vector_store %arg4[%c0_60, %c0_61, %c96_62], %107 {strides = array<i32>} : memref<1x16x256xf32, #tpu.memory_space<vmem>>, vector<1x16x32xf32>,
    %c0_63 = arith.constant 0 : index
    %c0_64 = arith.constant 0 : index
    %c128 = arith.constant 128 : index
    %108 = vector.load %arg1[%c0_63, %c0_64, %c128] : memref<1x16x256xf32, #tpu.memory_space<vmem>>, vector<1x16x32xf32>
    %109 = vector.shape_cast %108 : vector<1x16x32xf32> to vector<16x32xf32>
    %cst_65 = arith.constant 0.176776692 : f32
    %110 = vector.broadcast %cst_65 : f32 to vector<16x32xf32>
    %111 = arith.mulf %109, %110 : vector<16x32xf32>
    %112 = arith.truncf %111 : vector<16x32xf32> to vector<16x32xbf16>
    %c0_66 = arith.constant 0 : index
    %c0_67 = arith.constant 0 : index
    %c128_68 = arith.constant 128 : index
    %113 = vector.load %arg2[%c0_66, %c0_67, %c128_68] : memref<1x16x256xf32, #tpu.memory_space<vmem>>, vector<1x16x32xf32>
    %114 = vector.shape_cast %113 : vector<1x16x32xf32> to vector<16x32xf32>
    %115 = arith.truncf %114 : vector<16x32xf32> to vector<16x32xbf16>
    %c0_69 = arith.constant 0 : index
    %c0_70 = arith.constant 0 : index
    %c128_71 = arith.constant 128 : index
    %116 = vector.load %arg3[%c0_69, %c0_70, %c128_71] : memref<1x16x256xf32, #tpu.memory_space<vmem>>, vector<1x16x32xf32>
    %117 = vector.shape_cast %116 : vector<1x16x32xf32> to vector<16x32xf32>
    %118 = arith.truncf %117 : vector<16x32xf32> to vector<16x32xbf16>
    %cst_72 = arith.constant dense<0.000000e+00> : vector<16x16xf32>
    %119 = tpu.matmul %112, %115, %cst_72 {dimension_numbers = #tpu.dot_dimension_numbers<[1], [1], [0], [0], [0, 0, 1, 0], [], []>} : vector<16x32xbf16>, vector<16x32xbf16>, vector<16x16xf32> -> vector<16x16xf32>
    %cst_73 = arith.constant dense<0xFF800000> : vector<16xf32>
    %120 = vector.multi_reduction <maximumf>, %119, %cst_73 [1] : vector<16x16xf32> to vector<16xf32>
    %121 = vector.shape_cast %120 : vector<16xf32> to vector<16x1xf32>
    %122 = vector.broadcast %121 : vector<16x1xf32> to vector<16x16xf32>
    %123 = arith.subf %119, %122 : vector<16x16xf32>
    %124 = math.exp %123 : vector<16x16xf32>
    %cst_74 = arith.constant dense<0.000000e+00> : vector<16xf32>
    %125 = vector.multi_reduction <add>, %124, %cst_74 [1] : vector<16x16xf32> to vector<16xf32>
    %126 = vector.shape_cast %125 : vector<16xf32> to vector<16x1xf32>
    %127 = tpu.reciprocal %126 {approx = true} : vector<16x1xf32> -> vector<16x1xf32>
    %128 = vector.broadcast %127 : vector<16x1xf32> to vector<16x16xf32>
    %129 = arith.mulf %124, %128 : vector<16x16xf32>
    %130 = arith.truncf %129 : vector<16x16xf32> to vector<16x16xbf16>
    %cst_75 = arith.constant dense<0.000000e+00> : vector<16x32xf32>
    %131 = tpu.matmul %130, %118, %cst_75 {dimension_numbers = #tpu.dot_dimension_numbers<[1], [0], [0], [1], [0, 0, 1, 1], [], []>} : vector<16x16xbf16>, vector<16x32xbf16>, vector<16x32xf32> -> vector<16x32xf32>
    %c0_76 = arith.constant 0 : index
    %c0_77 = arith.constant 0 : index
    %c128_78 = arith.constant 128 : index
    %132 = vector.load %arg4[%c0_76, %c0_77, %c128_78] : memref<1x16x256xf32, #tpu.memory_space<vmem>>, vector<1x16x32xf32>
    %133 = vector.shape_cast %132 : vector<1x16x32xf32> to vector<16x32xf32>
    %134 = vector.shape_cast %131 : vector<16x32xf32> to vector<1x16x32xf32>
    tpu.vector_store %arg4[%c0_76, %c0_77, %c128_78], %134 {strides = array<i32>} : memref<1x16x256xf32, #tpu.memory_space<vmem>>, vector<1x16x32xf32>,
    %c0_79 = arith.constant 0 : index
    %c0_80 = arith.constant 0 : index
    %c160 = arith.constant 160 : index
    %135 = vector.load %arg1[%c0_79, %c0_80, %c160] : memref<1x16x256xf32, #tpu.memory_space<vmem>>, vector<1x16x32xf32>
    %136 = vector.shape_cast %135 : vector<1x16x32xf32> to vector<16x32xf32>
    %cst_81 = arith.constant 0.176776692 : f32
    %137 = vector.broadcast %cst_81 : f32 to vector<16x32xf32>
    %138 = arith.mulf %136, %137 : vector<16x32xf32>
    %139 = arith.truncf %138 : vector<16x32xf32> to vector<16x32xbf16>
    %c0_82 = arith.constant 0 : index
    %c0_83 = arith.constant 0 : index
    %c160_84 = arith.constant 160 : index
    %140 = vector.load %arg2[%c0_82, %c0_83, %c160_84] : memref<1x16x256xf32, #tpu.memory_space<vmem>>, vector<1x16x32xf32>
    %141 = vector.shape_cast %140 : vector<1x16x32xf32> to vector<16x32xf32>
    %142 = arith.truncf %141 : vector<16x32xf32> to vector<16x32xbf16>
    %c0_85 = arith.constant 0 : index
    %c0_86 = arith.constant 0 : index
    %c160_87 = arith.constant 160 : index
    %143 = vector.load %arg3[%c0_85, %c0_86, %c160_87] : memref<1x16x256xf32, #tpu.memory_space<vmem>>, vector<1x16x32xf32>
    %144 = vector.shape_cast %143 : vector<1x16x32xf32> to vector<16x32xf32>
    %145 = arith.truncf %144 : vector<16x32xf32> to vector<16x32xbf16>
    %cst_88 = arith.constant dense<0.000000e+00> : vector<16x16xf32>
    %146 = tpu.matmul %139, %142, %cst_88 {dimension_numbers = #tpu.dot_dimension_numbers<[1], [1], [0], [0], [0, 0, 1, 0], [], []>} : vector<16x32xbf16>, vector<16x32xbf16>, vector<16x16xf32> -> vector<16x16xf32>
    %cst_89 = arith.constant dense<0xFF800000> : vector<16xf32>
    %147 = vector.multi_reduction <maximumf>, %146, %cst_89 [1] : vector<16x16xf32> to vector<16xf32>
    %148 = vector.shape_cast %147 : vector<16xf32> to vector<16x1xf32>
    %149 = vector.broadcast %148 : vector<16x1xf32> to vector<16x16xf32>
    %150 = arith.subf %146, %149 : vector<16x16xf32>
    %151 = math.exp %150 : vector<16x16xf32>
    %cst_90 = arith.constant dense<0.000000e+00> : vector<16xf32>
    %152 = vector.multi_reduction <add>, %151, %cst_90 [1] : vector<16x16xf32> to vector<16xf32>
    %153 = vector.shape_cast %152 : vector<16xf32> to vector<16x1xf32>
    %154 = tpu.reciprocal %153 {approx = true} : vector<16x1xf32> -> vector<16x1xf32>
    %155 = vector.broadcast %154 : vector<16x1xf32> to vector<16x16xf32>
    %156 = arith.mulf %151, %155 : vector<16x16xf32>
    %157 = arith.truncf %156 : vector<16x16xf32> to vector<16x16xbf16>
    %cst_91 = arith.constant dense<0.000000e+00> : vector<16x32xf32>
    %158 = tpu.matmul %157, %145, %cst_91 {dimension_numbers = #tpu.dot_dimension_numbers<[1], [0], [0], [1], [0, 0, 1, 1], [], []>} : vector<16x16xbf16>, vector<16x32xbf16>, vector<16x32xf32> -> vector<16x32xf32>
    %c0_92 = arith.constant 0 : index
    %c0_93 = arith.constant 0 : index
    %c160_94 = arith.constant 160 : index
    %159 = vector.load %arg4[%c0_92, %c0_93, %c160_94] : memref<1x16x256xf32, #tpu.memory_space<vmem>>, vector<1x16x32xf32>
    %160 = vector.shape_cast %159 : vector<1x16x32xf32> to vector<16x32xf32>
    %161 = vector.shape_cast %158 : vector<16x32xf32> to vector<1x16x32xf32>
    tpu.vector_store %arg4[%c0_92, %c0_93, %c160_94], %161 {strides = array<i32>} : memref<1x16x256xf32, #tpu.memory_space<vmem>>, vector<1x16x32xf32>,
    %c0_95 = arith.constant 0 : index
    %c0_96 = arith.constant 0 : index
    %c192 = arith.constant 192 : index
    %162 = vector.load %arg1[%c0_95, %c0_96, %c192] : memref<1x16x256xf32, #tpu.memory_space<vmem>>, vector<1x16x32xf32>
    %163 = vector.shape_cast %162 : vector<1x16x32xf32> to vector<16x32xf32>
    %cst_97 = arith.constant 0.176776692 : f32
    %164 = vector.broadcast %cst_97 : f32 to vector<16x32xf32>
    %165 = arith.mulf %163, %164 : vector<16x32xf32>
    %166 = arith.truncf %165 : vector<16x32xf32> to vector<16x32xbf16>
    %c0_98 = arith.constant 0 : index
    %c0_99 = arith.constant 0 : index
    %c192_100 = arith.constant 192 : index
    %167 = vector.load %arg2[%c0_98, %c0_99, %c192_100] : memref<1x16x256xf32, #tpu.memory_space<vmem>>, vector<1x16x32xf32>
    %168 = vector.shape_cast %167 : vector<1x16x32xf32> to vector<16x32xf32>
    %169 = arith.truncf %168 : vector<16x32xf32> to vector<16x32xbf16>
    %c0_101 = arith.constant 0 : index
    %c0_102 = arith.constant 0 : index
    %c192_103 = arith.constant 192 : index
    %170 = vector.load %arg3[%c0_101, %c0_102, %c192_103] : memref<1x16x256xf32, #tpu.memory_space<vmem>>, vector<1x16x32xf32>
    %171 = vector.shape_cast %170 : vector<1x16x32xf32> to vector<16x32xf32>
    %172 = arith.truncf %171 : vector<16x32xf32> to vector<16x32xbf16>
    %cst_104 = arith.constant dense<0.000000e+00> : vector<16x16xf32>
    %173 = tpu.matmul %166, %169, %cst_104 {dimension_numbers = #tpu.dot_dimension_numbers<[1], [1], [0], [0], [0, 0, 1, 0], [], []>} : vector<16x32xbf16>, vector<16x32xbf16>, vector<16x16xf32> -> vector<16x16xf32>
    %cst_105 = arith.constant dense<0xFF800000> : vector<16xf32>
    %174 = vector.multi_reduction <maximumf>, %173, %cst_105 [1] : vector<16x16xf32> to vector<16xf32>
    %175 = vector.shape_cast %174 : vector<16xf32> to vector<16x1xf32>
    %176 = vector.broadcast %175 : vector<16x1xf32> to vector<16x16xf32>
    %177 = arith.subf %173, %176 : vector<16x16xf32>
    %178 = math.exp %177 : vector<16x16xf32>
    %cst_106 = arith.constant dense<0.000000e+00> : vector<16xf32>
    %179 = vector.multi_reduction <add>, %178, %cst_106 [1] : vector<16x16xf32> to vector<16xf32>
    %180 = vector.shape_cast %179 : vector<16xf32> to vector<16x1xf32>
    %181 = tpu.reciprocal %180 {approx = true} : vector<16x1xf32> -> vector<16x1xf32>
    %182 = vector.broadcast %181 : vector<16x1xf32> to vector<16x16xf32>
    %183 = arith.mulf %178, %182 : vector<16x16xf32>
    %184 = arith.truncf %183 : vector<16x16xf32> to vector<16x16xbf16>
    %cst_107 = arith.constant dense<0.000000e+00> : vector<16x32xf32>
    %185 = tpu.matmul %184, %172, %cst_107 {dimension_numbers = #tpu.dot_dimension_numbers<[1], [0], [0], [1], [0, 0, 1, 1], [], []>} : vector<16x16xbf16>, vector<16x32xbf16>, vector<16x32xf32> -> vector<16x32xf32>
    %c0_108 = arith.constant 0 : index
    %c0_109 = arith.constant 0 : index
    %c192_110 = arith.constant 192 : index
    %186 = vector.load %arg4[%c0_108, %c0_109, %c192_110] : memref<1x16x256xf32, #tpu.memory_space<vmem>>, vector<1x16x32xf32>
    %187 = vector.shape_cast %186 : vector<1x16x32xf32> to vector<16x32xf32>
    %188 = vector.shape_cast %185 : vector<16x32xf32> to vector<1x16x32xf32>
    tpu.vector_store %arg4[%c0_108, %c0_109, %c192_110], %188 {strides = array<i32>} : memref<1x16x256xf32, #tpu.memory_space<vmem>>, vector<1x16x32xf32>,
    %c0_111 = arith.constant 0 : index
    %c0_112 = arith.constant 0 : index
    %c224 = arith.constant 224 : index
    %189 = vector.load %arg1[%c0_111, %c0_112, %c224] : memref<1x16x256xf32, #tpu.memory_space<vmem>>, vector<1x16x32xf32>
    %190 = vector.shape_cast %189 : vector<1x16x32xf32> to vector<16x32xf32>
    %cst_113 = arith.constant 0.176776692 : f32
    %191 = vector.broadcast %cst_113 : f32 to vector<16x32xf32>
    %192 = arith.mulf %190, %191 : vector<16x32xf32>
    %193 = arith.truncf %192 : vector<16x32xf32> to vector<16x32xbf16>
    %c0_114 = arith.constant 0 : index
    %c0_115 = arith.constant 0 : index
    %c224_116 = arith.constant 224 : index
    %194 = vector.load %arg2[%c0_114, %c0_115, %c224_116] : memref<1x16x256xf32, #tpu.memory_space<vmem>>, vector<1x16x32xf32>
    %195 = vector.shape_cast %194 : vector<1x16x32xf32> to vector<16x32xf32>
    %196 = arith.truncf %195 : vector<16x32xf32> to vector<16x32xbf16>
    %c0_117 = arith.constant 0 : index
    %c0_118 = arith.constant 0 : index
    %c224_119 = arith.constant 224 : index
    %197 = vector.load %arg3[%c0_117, %c0_118, %c224_119] : memref<1x16x256xf32, #tpu.memory_space<vmem>>, vector<1x16x32xf32>
    %198 = vector.shape_cast %197 : vector<1x16x32xf32> to vector<16x32xf32>
    %199 = arith.truncf %198 : vector<16x32xf32> to vector<16x32xbf16>
    %cst_120 = arith.constant dense<0.000000e+00> : vector<16x16xf32>
    %200 = tpu.matmul %193, %196, %cst_120 {dimension_numbers = #tpu.dot_dimension_numbers<[1], [1], [0], [0], [0, 0, 1, 0], [], []>} : vector<16x32xbf16>, vector<16x32xbf16>, vector<16x16xf32> -> vector<16x16xf32>
    %cst_121 = arith.constant dense<0xFF800000> : vector<16xf32>
    %201 = vector.multi_reduction <maximumf>, %200, %cst_121 [1] : vector<16x16xf32> to vector<16xf32>
    %202 = vector.shape_cast %201 : vector<16xf32> to vector<16x1xf32>
    %203 = vector.broadcast %202 : vector<16x1xf32> to vector<16x16xf32>
    %204 = arith.subf %200, %203 : vector<16x16xf32>
    %205 = math.exp %204 : vector<16x16xf32>
    %cst_122 = arith.constant dense<0.000000e+00> : vector<16xf32>
    %206 = vector.multi_reduction <add>, %205, %cst_122 [1] : vector<16x16xf32> to vector<16xf32>
    %207 = vector.shape_cast %206 : vector<16xf32> to vector<16x1xf32>
    %208 = tpu.reciprocal %207 {approx = true} : vector<16x1xf32> -> vector<16x1xf32>
    %209 = vector.broadcast %208 : vector<16x1xf32> to vector<16x16xf32>
    %210 = arith.mulf %205, %209 : vector<16x16xf32>
    %211 = arith.truncf %210 : vector<16x16xf32> to vector<16x16xbf16>
    %cst_123 = arith.constant dense<0.000000e+00> : vector<16x32xf32>
    %212 = tpu.matmul %211, %199, %cst_123 {dimension_numbers = #tpu.dot_dimension_numbers<[1], [0], [0], [1], [0, 0, 1, 1], [], []>} : vector<16x16xbf16>, vector<16x32xbf16>, vector<16x32xf32> -> vector<16x32xf32>
    %c0_124 = arith.constant 0 : index
    %c0_125 = arith.constant 0 : index
    %c224_126 = arith.constant 224 : index
    %213 = vector.load %arg4[%c0_124, %c0_125, %c224_126] : memref<1x16x256xf32, #tpu.memory_space<vmem>>, vector<1x16x32xf32>
    %214 = vector.shape_cast %213 : vector<1x16x32xf32> to vector<16x32xf32>
    %215 = vector.shape_cast %212 : vector<16x32xf32> to vector<1x16x32xf32>
    tpu.vector_store %arg4[%c0_124, %c0_125, %c224_126], %215 {strides = array<i32>} : memref<1x16x256xf32, #tpu.memory_space<vmem>>, vector<1x16x32xf32>,
    return
  }
  func.func @transform_0(%arg0: i32) -> (i32, i32, i32) {
    %c0_i32 = arith.constant 0 : i32
    %c0_i32_0 = arith.constant 0 : i32
    %c0_i32_1 = arith.constant 0 : i32
    return %arg0, %c0_i32, %c0_i32_0 : i32, i32, i32
  }
  func.func @transform_1(%arg0: i32) -> (i32, i32, i32) {
    %c0_i32 = arith.constant 0 : i32
    %c0_i32_0 = arith.constant 0 : i32
    %c0_i32_1 = arith.constant 0 : i32
    return %arg0, %c0_i32, %c0_i32_0 : i32, i32, i32
  }
  func.func @transform_2(%arg0: i32) -> (i32, i32, i32) {
    %c0_i32 = arith.constant 0 : i32
    %c0_i32_0 = arith.constant 0 : i32
    %c0_i32_1 = arith.constant 0 : i32
    return %arg0, %c0_i32, %c0_i32_0 : i32, i32, i32
  }
  func.func @transform_3(%arg0: i32) -> (i32, i32, i32) {
    %c0_i32 = arith.constant 0 : i32
    %c0_i32_0 = arith.constant 0 : i32
    %c0_i32_1 = arith.constant 0 : i32
    return %arg0, %c0_i32, %c0_i32_0 : i32, i32, i32
  }
}

module attributes {stable_mosaic.version = 11 : i64} {
  func.func @_linear_kernel(%arg0: i32, %arg1: memref<32x256xf32, #tpu.memory_space<vmem>>, %arg2: memref<256x384xbf16, #tpu.memory_space<vmem>>, %arg3: memref<1x384xf32, #tpu.memory_space<vmem>>, %arg4: memref<32x384xf32, #tpu.memory_space<vmem>>) attributes {dimension_semantics = [#tpu.dimension_semantics<parallel>], iteration_bounds = array<i64: 1>, scalar_prefetch = 0 : i64, scratch_operands = 0 : i64, tpu.core_type = #tpu.core_type<tc>, window_params = [{transform_indices = @transform_0, window_bounds = array<i64: 32, 256>}, {pipeline_mode = #tpu.pipeline_mode<synchronous>, transform_indices = @transform_1, window_bounds = array<i64: 256, 384>}, {pipeline_mode = #tpu.pipeline_mode<synchronous>, transform_indices = @transform_2, window_bounds = array<i64: 1, 384>}, {transform_indices = @transform_3, window_bounds = array<i64: 32, 384>}]} {
    %c0 = arith.constant 0 : index
    %c0_0 = arith.constant 0 : index
    %0 = vector.load %arg1[%c0, %c0_0] : memref<32x256xf32, #tpu.memory_space<vmem>>, vector<32x256xf32>
    %1 = arith.truncf %0 : vector<32x256xf32> to vector<32x256xbf16>
    %c0_1 = arith.constant 0 : index
    %c0_2 = arith.constant 0 : index
    %2 = vector.load %arg2[%c0_1, %c0_2] : memref<256x384xbf16, #tpu.memory_space<vmem>>, vector<256x384xbf16>
    %cst = arith.constant dense<0.000000e+00> : vector<32x384xf32>
    %3 = tpu.matmul %1, %2, %cst {dimension_numbers = #tpu.dot_dimension_numbers<[1], [0], [0], [1], [0, 0, 1, 1], [], []>} : vector<32x256xbf16>, vector<256x384xbf16>, vector<32x384xf32> -> vector<32x384xf32>
    %c0_3 = arith.constant 0 : index
    %c0_4 = arith.constant 0 : index
    %4 = vector.load %arg3[%c0_3, %c0_4] : memref<1x384xf32, #tpu.memory_space<vmem>>, vector<1x384xf32>
    %5 = vector.broadcast %4 : vector<1x384xf32> to vector<32x384xf32>
    %6 = arith.addf %3, %5 : vector<32x384xf32>
    %c0_5 = arith.constant 0 : index
    %c0_6 = arith.constant 0 : index
    %7 = vector.load %arg4[%c0_5, %c0_6] : memref<32x384xf32, #tpu.memory_space<vmem>>, vector<32x384xf32>
    tpu.vector_store %arg4[%c0_5, %c0_6], %6 {strides = array<i32>} : memref<32x384xf32, #tpu.memory_space<vmem>>, vector<32x384xf32>,
    return
  }
  func.func @transform_0(%arg0: i32) -> (i32, i32) {
    %c0_i32 = arith.constant 0 : i32
    %c0_i32_0 = arith.constant 0 : i32
    return %arg0, %c0_i32 : i32, i32
  }
  func.func @transform_1(%arg0: i32) -> (i32, i32) {
    %c0_i32 = arith.constant 0 : i32
    %c0_i32_0 = arith.constant 0 : i32
    %c0_i32_1 = arith.constant 0 : i32
    return %c0_i32, %c0_i32_0 : i32, i32
  }
  func.func @transform_2(%arg0: i32) -> (i32, i32) {
    %c0_i32 = arith.constant 0 : i32
    %c0_i32_0 = arith.constant 0 : i32
    %c0_i32_1 = arith.constant 0 : i32
    return %c0_i32, %c0_i32_0 : i32, i32
  }
  func.func @transform_3(%arg0: i32) -> (i32, i32) {
    %c0_i32 = arith.constant 0 : i32
    %c0_i32_0 = arith.constant 0 : i32
    return %arg0, %c0_i32 : i32, i32
  }
}

module attributes {stable_mosaic.version = 11 : i64} {
  func.func @_ffn_ln_kernel(%arg0: i32, %arg1: memref<32x256xf32, #tpu.memory_space<vmem>>, %arg2: memref<256x256xbf16, #tpu.memory_space<vmem>>, %arg3: memref<1x256xf32, #tpu.memory_space<vmem>>, %arg4: memref<256x256xbf16, #tpu.memory_space<vmem>>, %arg5: memref<1x256xf32, #tpu.memory_space<vmem>>, %arg6: memref<1x256xf32, #tpu.memory_space<vmem>>, %arg7: memref<1x256xf32, #tpu.memory_space<vmem>>, %arg8: memref<32x256xf32, #tpu.memory_space<vmem>>) attributes {dimension_semantics = [#tpu.dimension_semantics<arbitrary>], iteration_bounds = array<i64: 1>, scalar_prefetch = 0 : i64, scratch_operands = 0 : i64, tpu.core_type = #tpu.core_type<tc>, window_params = [{pipeline_mode = #tpu.pipeline_mode<synchronous>, transform_indices = @transform_0, window_bounds = array<i64: 32, 256>}, {pipeline_mode = #tpu.pipeline_mode<synchronous>, transform_indices = @transform_1, window_bounds = array<i64: 256, 256>}, {pipeline_mode = #tpu.pipeline_mode<synchronous>, transform_indices = @transform_2, window_bounds = array<i64: 1, 256>}, {pipeline_mode = #tpu.pipeline_mode<synchronous>, transform_indices = @transform_3, window_bounds = array<i64: 256, 256>}, {pipeline_mode = #tpu.pipeline_mode<synchronous>, transform_indices = @transform_4, window_bounds = array<i64: 1, 256>}, {pipeline_mode = #tpu.pipeline_mode<synchronous>, transform_indices = @transform_5, window_bounds = array<i64: 1, 256>}, {pipeline_mode = #tpu.pipeline_mode<synchronous>, transform_indices = @transform_6, window_bounds = array<i64: 1, 256>}, {pipeline_mode = #tpu.pipeline_mode<synchronous>, transform_indices = @transform_7, window_bounds = array<i64: 32, 256>}]} {
    %c0 = arith.constant 0 : index
    %c0_0 = arith.constant 0 : index
    %0 = vector.load %arg1[%c0, %c0_0] : memref<32x256xf32, #tpu.memory_space<vmem>>, vector<32x256xf32>
    %1 = arith.truncf %0 : vector<32x256xf32> to vector<32x256xbf16>
    %c0_1 = arith.constant 0 : index
    %c0_2 = arith.constant 0 : index
    %2 = vector.load %arg2[%c0_1, %c0_2] : memref<256x256xbf16, #tpu.memory_space<vmem>>, vector<256x256xbf16>
    %cst = arith.constant dense<0.000000e+00> : vector<32x256xf32>
    %3 = tpu.matmul %1, %2, %cst {dimension_numbers = #tpu.dot_dimension_numbers<[1], [0], [0], [1], [0, 0, 1, 1], [], []>} : vector<32x256xbf16>, vector<256x256xbf16>, vector<32x256xf32> -> vector<32x256xf32>
    %c0_3 = arith.constant 0 : index
    %c0_4 = arith.constant 0 : index
    %4 = vector.load %arg3[%c0_3, %c0_4] : memref<1x256xf32, #tpu.memory_space<vmem>>, vector<1x256xf32>
    %5 = vector.broadcast %4 : vector<1x256xf32> to vector<32x256xf32>
    %6 = arith.addf %3, %5 : vector<32x256xf32>
    %cst_5 = arith.constant 0.000000e+00 : f32
    %7 = vector.broadcast %cst_5 : f32 to vector<32x256xf32>
    %8 = arith.maximumf %6, %7 : vector<32x256xf32>
    %9 = arith.truncf %8 : vector<32x256xf32> to vector<32x256xbf16>
    %c0_6 = arith.constant 0 : index
    %c0_7 = arith.constant 0 : index
    %10 = vector.load %arg4[%c0_6, %c0_7] : memref<256x256xbf16, #tpu.memory_space<vmem>>, vector<256x256xbf16>
    %cst_8 = arith.constant dense<0.000000e+00> : vector<32x256xf32>
    %11 = tpu.matmul %9, %10, %cst_8 {dimension_numbers = #tpu.dot_dimension_numbers<[1], [0], [0], [1], [0, 0, 1, 1], [], []>} : vector<32x256xbf16>, vector<256x256xbf16>, vector<32x256xf32> -> vector<32x256xf32>
    %c0_9 = arith.constant 0 : index
    %c0_10 = arith.constant 0 : index
    %12 = vector.load %arg5[%c0_9, %c0_10] : memref<1x256xf32, #tpu.memory_space<vmem>>, vector<1x256xf32>
    %13 = vector.broadcast %12 : vector<1x256xf32> to vector<32x256xf32>
    %14 = arith.addf %11, %13 : vector<32x256xf32>
    %15 = arith.addf %0, %14 : vector<32x256xf32>
    %cst_11 = arith.constant dense<0.000000e+00> : vector<32xf32>
    %16 = vector.multi_reduction <add>, %15, %cst_11 [1] : vector<32x256xf32> to vector<32xf32>
    %17 = vector.shape_cast %16 : vector<32xf32> to vector<32x1xf32>
    %cst_12 = arith.constant 2.560000e+02 : f32
    %18 = vector.broadcast %cst_12 : f32 to vector<32x1xf32>
    %19 = arith.divf %17, %18 : vector<32x1xf32>
    %20 = vector.broadcast %19 : vector<32x1xf32> to vector<32x256xf32>
    %21 = arith.subf %15, %20 : vector<32x256xf32>
    %22 = arith.mulf %21, %21 : vector<32x256xf32>
    %cst_13 = arith.constant dense<0.000000e+00> : vector<32xf32>
    %23 = vector.multi_reduction <add>, %22, %cst_13 [1] : vector<32x256xf32> to vector<32xf32>
    %24 = vector.shape_cast %23 : vector<32xf32> to vector<32x1xf32>
    %cst_14 = arith.constant 2.560000e+02 : f32
    %25 = vector.broadcast %cst_14 : f32 to vector<32x1xf32>
    %26 = arith.divf %24, %25 : vector<32x1xf32>
    %27 = vector.broadcast %19 : vector<32x1xf32> to vector<32x256xf32>
    %28 = arith.subf %15, %27 : vector<32x256xf32>
    %cst_15 = arith.constant 9.99999974E-6 : f32
    %29 = vector.broadcast %cst_15 : f32 to vector<32x1xf32>
    %30 = arith.addf %26, %29 : vector<32x1xf32>
    %31 = math.rsqrt %30 : vector<32x1xf32>
    %32 = vector.broadcast %31 : vector<32x1xf32> to vector<32x256xf32>
    %33 = arith.mulf %28, %32 : vector<32x256xf32>
    %c0_16 = arith.constant 0 : index
    %c0_17 = arith.constant 0 : index
    %34 = vector.load %arg6[%c0_16, %c0_17] : memref<1x256xf32, #tpu.memory_space<vmem>>, vector<1x256xf32>
    %35 = vector.broadcast %34 : vector<1x256xf32> to vector<32x256xf32>
    %36 = arith.mulf %33, %35 : vector<32x256xf32>
    %c0_18 = arith.constant 0 : index
    %c0_19 = arith.constant 0 : index
    %37 = vector.load %arg7[%c0_18, %c0_19] : memref<1x256xf32, #tpu.memory_space<vmem>>, vector<1x256xf32>
    %38 = vector.broadcast %37 : vector<1x256xf32> to vector<32x256xf32>
    %39 = arith.addf %36, %38 : vector<32x256xf32>
    %c0_20 = arith.constant 0 : index
    %c0_21 = arith.constant 0 : index
    %40 = vector.load %arg8[%c0_20, %c0_21] : memref<32x256xf32, #tpu.memory_space<vmem>>, vector<32x256xf32>
    tpu.vector_store %arg8[%c0_20, %c0_21], %39 {strides = array<i32>} : memref<32x256xf32, #tpu.memory_space<vmem>>, vector<32x256xf32>,
    return
  }
  func.func @transform_0(%arg0: i32) -> (i32, i32) {
    %c0_i32 = arith.constant 0 : i32
    %c0_i32_0 = arith.constant 0 : i32
    %c0_i32_1 = arith.constant 0 : i32
    return %c0_i32, %c0_i32_0 : i32, i32
  }
  func.func @transform_1(%arg0: i32) -> (i32, i32) {
    %c0_i32 = arith.constant 0 : i32
    %c0_i32_0 = arith.constant 0 : i32
    %c0_i32_1 = arith.constant 0 : i32
    return %c0_i32, %c0_i32_0 : i32, i32
  }
  func.func @transform_2(%arg0: i32) -> (i32, i32) {
    %c0_i32 = arith.constant 0 : i32
    %c0_i32_0 = arith.constant 0 : i32
    %c0_i32_1 = arith.constant 0 : i32
    return %c0_i32, %c0_i32_0 : i32, i32
  }
  func.func @transform_3(%arg0: i32) -> (i32, i32) {
    %c0_i32 = arith.constant 0 : i32
    %c0_i32_0 = arith.constant 0 : i32
    %c0_i32_1 = arith.constant 0 : i32
    return %c0_i32, %c0_i32_0 : i32, i32
  }
  func.func @transform_4(%arg0: i32) -> (i32, i32) {
    %c0_i32 = arith.constant 0 : i32
    %c0_i32_0 = arith.constant 0 : i32
    %c0_i32_1 = arith.constant 0 : i32
    return %c0_i32, %c0_i32_0 : i32, i32
  }
  func.func @transform_5(%arg0: i32) -> (i32, i32) {
    %c0_i32 = arith.constant 0 : i32
    %c0_i32_0 = arith.constant 0 : i32
    %c0_i32_1 = arith.constant 0 : i32
    return %c0_i32, %c0_i32_0 : i32, i32
  }
  func.func @transform_6(%arg0: i32) -> (i32, i32) {
    %c0_i32 = arith.constant 0 : i32
    %c0_i32_0 = arith.constant 0 : i32
    %c0_i32_1 = arith.constant 0 : i32
    return %c0_i32, %c0_i32_0 : i32, i32
  }
  func.func @transform_7(%arg0: i32) -> (i32, i32) {
    %c0_i32 = arith.constant 0 : i32
    %c0_i32_0 = arith.constant 0 : i32
    %c0_i32_1 = arith.constant 0 : i32
    return %c0_i32, %c0_i32_0 : i32, i32
  }
}

</mosaic_0001>

<llo_original>
// kernel: depth_aware_transformer_forward.41
$region0: #{depth_aware_transformer_forward.41}
  #allocation0 [shape = 'u32[]', space=smem, size = 0x4, offset = 0x4, fixed_abs, tag = 'smem constant byte address 0x4 - core index']
  #allocation1 [shape = 'u32[144,128]{1,0:T(1,128)}', space=vmem, size = 0x12000, scoped, tag = 'internal scratch']
  %s0 = inlined_call_operand.vmem [shape: f32[176,256], index: 0, kind: input, shape index: {}]
  %s1 = inlined_call_operand.vmem [shape: bf16[256,384], index: 1, kind: input, shape index: {}]
  %s2 = inlined_call_operand.vmem [shape: f32[1,384], index: 2, kind: input, shape index: {}]
  %s3 = inlined_call_operand.vmem [shape: f32[176,384], index: 3, kind: output, shape index: {}]
  %s4 = sld [smem:[#allocation0]]
  $region22: #{depth_aware_transformer_forward.41} parent=0
    _
  %s6 = ssub.s32 1, %s4
  %s7 = scalar_select 0, %s6, %s4
  // Predicated region
  $region2: #{depth_aware_transformer_forward.41} parent=0 // pred_check
    _
  $region3: #{depth_aware_transformer_forward.41} parent=0 // pred_check_branch
    %9 = sbr.rel (0) target = $region5
  $region4: #{depth_aware_transformer_forward.41} parent=0 // pred_region
    _
  $region5: #{depth_aware_transformer_forward.41} parent=0 // pred_fallthru
    _
  // Predicated region
  $region6: #{depth_aware_transformer_forward.41} parent=0 // pred_check
    _
  $region7: #{depth_aware_transformer_forward.41} parent=0 // pred_check_branch
    %11 = sbr.rel (0) target = $region9
  $region8: #{depth_aware_transformer_forward.41} parent=0 // pred_region
    _
  $region9: #{depth_aware_transformer_forward.41} parent=0 // pred_fallthru
    _
  // Predicated region
  $region10: #{depth_aware_transformer_forward.41} parent=0 // pred_check
    _
  $region11: #{depth_aware_transformer_forward.41} parent=0 // pred_check_branch
    %13 = sbr.rel (0) target = $region13
  $region12: #{depth_aware_transformer_forward.41} parent=0 // pred_region
    _
  $region13: #{depth_aware_transformer_forward.41} parent=0 // pred_fallthru
    _
  %v15 = vld [vmem:[%s0] sm:$0xff]
  %v16 = vld [vmem:[%s0 + $0x8] sm:$0xff]
  %v17 = vld [vmem:[%s0 + $0x10] sm:$0xff]
  %v18 = vld [vmem:[%s0 + $0x18] sm:$0xff]
  %v19 = vld [vmem:[%s0 + $0x20] sm:$0xff]
  %v20 = vld [vmem:[%s0 + $0x28] sm:$0xff]
  %v21 = vld [vmem:[%s0 + $0x30] sm:$0xff]
  %v22 = vld [vmem:[%s0 + $0x38] sm:$0xff]
  %v23 = vld [vmem:[%s0 + $0x40] sm:$0xff]
  %v24 = vld [vmem:[%s0 + $0x48] sm:$0xff]
  %v25 = vld [vmem:[%s0 + $0x50] sm:$0xff]
  %v26 = vld [vmem:[%s0 + $0x58] sm:$0xff]
  %v27 = vld [vmem:[%s0 + $0x60] sm:$0xff]
  %v28 = vld [vmem:[%s0 + $0x68] sm:$0xff]
  %v29 = vld [vmem:[%s0 + $0x70] sm:$0xff]
  %v30 = vld [vmem:[%s0 + $0x78] sm:$0xff]
  %v31 = vld [vmem:[%s0 + $0x80] sm:$0xff]
  %v32 = vld [vmem:[%s0 + $0x88] sm:$0xff]
  %v33 = vld [vmem:[%s0 + $0x90] sm:$0xff]
  %v34 = vld [vmem:[%s0 + $0x98] sm:$0xff]
  %v35 = vld [vmem:[%s0 + $0xa0] sm:$0xff]
  %v36 = vld [vmem:[%s0 + $0xa8] sm:$0xff]
  %v37 = vld [vmem:[%s0 + $0xb0] sm:$0xff]
  %v38 = vld [vmem:[%s0 + $0xb8] sm:$0xff]
  %v39 = vld [vmem:[%s0 + $0xc0] sm:$0xff]
  %v40 = vld [vmem:[%s0 + $0xc8] sm:$0xff]
  %v41 = vld [vmem:[%s0 + $0xd0] sm:$0xff]
  %v42 = vld [vmem:[%s0 + $0xd8] sm:$0xff]
  %v43 = vld [vmem:[%s0 + $0xe0] sm:$0xff]
  %v44 = vld [vmem:[%s0 + $0xe8] sm:$0xff]
  %v45 = vld [vmem:[%s0 + $0xf0] sm:$0xff]
  %v46 = vld [vmem:[%s0 + $0xf8] sm:$0xff]
  %v47 = vld [vmem:[%s0 + $0x100] sm:$0xff]
  %v48 = vld [vmem:[%s0 + $0x108] sm:$0xff]
  %v49 = vld [vmem:[%s0 + $0x110] sm:$0xff]
  %v50 = vld [vmem:[%s0 + $0x118] sm:$0xff]
  %v51 = vld [vmem:[%s0 + $0x120] sm:$0xff]
  %v52 = vld [vmem:[%s0 + $0x128] sm:$0xff]
  %v53 = vld [vmem:[%s0 + $0x130] sm:$0xff]
  %v54 = vld [vmem:[%s0 + $0x138] sm:$0xff]
  %v55 = vld [vmem:[%s0 + $0x140] sm:$0xff]
  %v56 = vld [vmem:[%s0 + $0x148] sm:$0xff]
  %v57 = vld [vmem:[%s0 + $0x150] sm:$0xff]
  %v58 = vld [vmem:[%s0 + $0x158] sm:$0xff]
  %v59 = vpack.c.bf16 %v17, %v15
  %v60 = vpack.c.bf16 %v18, %v16
  %v61 = vpack.c.bf16 %v21, %v19
  %v62 = vpack.c.bf16 %v22, %v20
  %v63 = vpack.c.bf16 %v25, %v23
  %v64 = vpack.c.bf16 %v26, %v24
  %v65 = vpack.c.bf16 %v29, %v27
  %v66 = vpack.c.bf16 %v30, %v28
  %v67 = vpack.c.bf16 %v33, %v31
  %v68 = vpack.c.bf16 %v34, %v32
  %v69 = vpack.c.bf16 %v37, %v35
  %v70 = vpack.c.bf16 %v38, %v36
  %v71 = vpack.c.bf16 %v41, %v39
  %v72 = vpack.c.bf16 %v42, %v40
  %v73 = vpack.c.bf16 %v45, %v43
  %v74 = vpack.c.bf16 %v46, %v44
  %v75 = vpack.c.bf16 %v49, %v47
  %v76 = vpack.c.bf16 %v50, %v48
  %v77 = vpack.c.bf16 %v53, %v51
  %v78 = vpack.c.bf16 %v54, %v52
  %v79 = vpack.c.bf16 %v57, %v55
  %v80 = vpack.c.bf16 %v58, %v56
  %v81 = vld [vmem:[%s1] sm:$0xff]
  %v82 = vld [vmem:[%s1 + $0x8] sm:$0xf]
  %v83 = vld [vmem:[%s1 + $0xc] sm:$0xff]
  %v84 = vld [vmem:[%s1 + $0x14] sm:$0xf]
  %v85 = vld [vmem:[%s1 + $0x18] sm:$0xff]
  %v86 = vld [vmem:[%s1 + $0x20] sm:$0xf]
  %v87 = vld [vmem:[%s1 + $0x24] sm:$0xff]
  %v88 = vld [vmem:[%s1 + $0x2c] sm:$0xf]
  %v89 = vld [vmem:[%s1 + $0x30] sm:$0xff]
  %v90 = vld [vmem:[%s1 + $0x38] sm:$0xf]
  %v91 = vld [vmem:[%s1 + $0x3c] sm:$0xff]
  %v92 = vld [vmem:[%s1 + $0x44] sm:$0xf]
  %v93 = vld [vmem:[%s1 + $0x48] sm:$0xff]
  %v94 = vld [vmem:[%s1 + $0x50] sm:$0xf]
  %v95 = vld [vmem:[%s1 + $0x54] sm:$0xff]
  %v96 = vld [vmem:[%s1 + $0x5c] sm:$0xf]
  %v97 = vld [vmem:[%s1 + $0x60] sm:$0xff]
  %v98 = vld [vmem:[%s1 + $0x68] sm:$0xf]
  %v99 = vld [vmem:[%s1 + $0x6c] sm:$0xff]
  %v100 = vld [vmem:[%s1 + $0x74] sm:$0xf]
  %v101 = vld [vmem:[%s1 + $0x78] sm:$0xff]
  %v102 = vld [vmem:[%s1 + $0x80] sm:$0xf]
  %v103 = vld [vmem:[%s1 + $0x84] sm:$0xff]
  %v104 = vld [vmem:[%s1 + $0x8c] sm:$0xf]
  %v105 = vld [vmem:[%s1 + $0x90] sm:$0xff]
  %v106 = vld [vmem:[%s1 + $0x98] sm:$0xf]
  %v107 = vld [vmem:[%s1 + $0x9c] sm:$0xff]
  %v108 = vld [vmem:[%s1 + $0xa4] sm:$0xf]
  %v109 = vld [vmem:[%s1 + $0xa8] sm:$0xff]
  %v110 = vld [vmem:[%s1 + $0xb0] sm:$0xf]
  %v111 = vld [vmem:[%s1 + $0xb4] sm:$0xff]
  %v112 = vld [vmem:[%s1 + $0xbc] sm:$0xf]
  %v113 = vld [vmem:[%s1 + $0xc0] sm:$0xff]
  %v114 = vld [vmem:[%s1 + $0xc8] sm:$0xf]
  %v115 = vld [vmem:[%s1 + $0xcc] sm:$0xff]
  %v116 = vld [vmem:[%s1 + $0xd4] sm:$0xf]
  %v117 = vld [vmem:[%s1 + $0xd8] sm:$0xff]
  %v118 = vld [vmem:[%s1 + $0xe0] sm:$0xf]
  %v119 = vld [vmem:[%s1 + $0xe4] sm:$0xff]
  %v120 = vld [vmem:[%s1 + $0xec] sm:$0xf]
  %v121 = vld [vmem:[%s1 + $0xf0] sm:$0xff]
  %v122 = vld [vmem:[%s1 + $0xf8] sm:$0xf]
  %v123 = vld [vmem:[%s1 + $0xfc] sm:$0xff]
  %v124 = vld [vmem:[%s1 + $0x104] sm:$0xf]
  %v125 = vld [vmem:[%s1 + $0x108] sm:$0xff]
  %v126 = vld [vmem:[%s1 + $0x110] sm:$0xf]
  %v127 = vld [vmem:[%s1 + $0x114] sm:$0xff]
  %v128 = vld [vmem:[%s1 + $0x11c] sm:$0xf]
  %v129 = vld [vmem:[%s1 + $0x120] sm:$0xff]
  %v130 = vld [vmem:[%s1 + $0x128] sm:$0xf]
  %v131 = vld [vmem:[%s1 + $0x12c] sm:$0xff]
  %v132 = vld [vmem:[%s1 + $0x134] sm:$0xf]
  %v133 = vld [vmem:[%s1 + $0x138] sm:$0xff]
  %v134 = vld [vmem:[%s1 + $0x140] sm:$0xf]
  %v135 = vld [vmem:[%s1 + $0x144] sm:$0xff]
  %v136 = vld [vmem:[%s1 + $0x14c] sm:$0xf]
  %v137 = vld [vmem:[%s1 + $0x150] sm:$0xff]
  %v138 = vld [vmem:[%s1 + $0x158] sm:$0xf]
  %v139 = vld [vmem:[%s1 + $0x15c] sm:$0xff]
  %v140 = vld [vmem:[%s1 + $0x164] sm:$0xf]
  %v141 = vld [vmem:[%s1 + $0x168] sm:$0xff]
  %v142 = vld [vmem:[%s1 + $0x170] sm:$0xf]
  %v143 = vld [vmem:[%s1 + $0x174] sm:$0xff]
  %v144 = vld [vmem:[%s1 + $0x17c] sm:$0xf]
  %v145 = vld [vmem:[%s2] sm:$0x7]
  %v147 = vlaneseq
  %v148 = vshrl.u32 %v147, 7
  %v149 = vsub.s32 0, %v148
  %v150 = vrot.slane %v145, %v149
  %v151 = vlaneseq
  %v152 = vshrl.u32 %v151, 7
  %v153 = vsub.s32 1, %v152
  %v154 = vrot.slane %v145, %v153
  %v155 = vlaneseq
  %v156 = vshrl.u32 %v155, 7
  %v157 = vsub.s32 2, %v156
  %v158 = vrot.slane %v145, %v157
  %v226 = vunpack.c.l.b16 %v81
  %v227 = vunpack.c.h.b16 %v81
  %v228 = vunpack.c.l.b16 %v82
  %v229 = vunpack.c.l.b16 %v83
  %v230 = vunpack.c.h.b16 %v83
  %v231 = vunpack.c.l.b16 %v84
  %v232 = vunpack.c.l.b16 %v85
  %v233 = vunpack.c.h.b16 %v85
  %v234 = vunpack.c.l.b16 %v86
  %v235 = vunpack.c.l.b16 %v87
  %v236 = vunpack.c.h.b16 %v87
  %v237 = vunpack.c.l.b16 %v88
  %v238 = vunpack.c.l.b16 %v89
  %v239 = vunpack.c.h.b16 %v89
  %v240 = vunpack.c.l.b16 %v90
  %v241 = vunpack.c.l.b16 %v91
  %v242 = vunpack.c.h.b16 %v91
  %v243 = vunpack.c.l.b16 %v92
  %v244 = vunpack.c.l.b16 %v93
  %v245 = vunpack.c.h.b16 %v93
  %v246 = vunpack.c.l.b16 %v94
  %v247 = vunpack.c.l.b16 %v95
  %v248 = vunpack.c.h.b16 %v95
  %v249 = vunpack.c.l.b16 %v96
  %v250 = vunpack.c.l.b16 %v97
  %v251 = vunpack.c.h.b16 %v97
  %v252 = vunpack.c.l.b16 %v98
  %v253 = vunpack.c.l.b16 %v99
  %v254 = vunpack.c.h.b16 %v99
  %v255 = vunpack.c.l.b16 %v100
  %v256 = vunpack.c.l.b16 %v101
  %v257 = vunpack.c.h.b16 %v101
  %v258 = vunpack.c.l.b16 %v102
  %v259 = vunpack.c.l.b16 %v103
  %v260 = vunpack.c.h.b16 %v103
  %v261 = vunpack.c.l.b16 %v104
  %v262 = vunpack.c.l.b16 %v105
  %v263 = vunpack.c.h.b16 %v105
  %v264 = vunpack.c.l.b16 %v106
  %v265 = vunpack.c.l.b16 %v107
  %v266 = vunpack.c.h.b16 %v107
  %v267 = vunpack.c.l.b16 %v108
  %v268 = vunpack.c.l.b16 %v109
  %v269 = vunpack.c.h.b16 %v109
  %v270 = vunpack.c.l.b16 %v110
  %v271 = vunpack.c.l.b16 %v111
  %v272 = vunpack.c.h.b16 %v111
  %v273 = vunpack.c.l.b16 %v112
  %v274 = vunpack.c.l.b16 %v113
  %v275 = vunpack.c.h.b16 %v113
  %v276 = vunpack.c.l.b16 %v114
  %v277 = vunpack.c.l.b16 %v115
  %v278 = vunpack.c.h.b16 %v115
  %v279 = vunpack.c.l.b16 %v116
  %v280 = vunpack.c.l.b16 %v117
  %v281 = vunpack.c.h.b16 %v117
  %v282 = vunpack.c.l.b16 %v118
  %v283 = vunpack.c.l.b16 %v119
  %v284 = vunpack.c.h.b16 %v119
  %v285 = vunpack.c.l.b16 %v120
  %v286 = vunpack.c.l.b16 %v121
  %v287 = vunpack.c.h.b16 %v121
  %v288 = vunpack.c.l.b16 %v122
  %v289 = vunpack.c.l.b16 %v123
  %v290 = vunpack.c.h.b16 %v123
  %v291 = vunpack.c.l.b16 %v124
  %v292 = vunpack.c.l.b16 %v125
  %v293 = vunpack.c.h.b16 %v125
  %v294 = vunpack.c.l.b16 %v126
  %v295 = vunpack.c.l.b16 %v127
  %v296 = vunpack.c.h.b16 %v127
  %v297 = vunpack.c.l.b16 %v128
  %v298 = vunpack.c.l.b16 %v129
  %v299 = vunpack.c.h.b16 %v129
  %v300 = vunpack.c.l.b16 %v130
  %v301 = vunpack.c.l.b16 %v131
  %v302 = vunpack.c.h.b16 %v131
  %v303 = vunpack.c.l.b16 %v132
  %v304 = vunpack.c.l.b16 %v133
  %v305 = vunpack.c.h.b16 %v133
  %v306 = vunpack.c.l.b16 %v134
  %v307 = vunpack.c.l.b16 %v135
  %v308 = vunpack.c.h.b16 %v135
  %v309 = vunpack.c.l.b16 %v136
  %v310 = vunpack.c.l.b16 %v137
  %v311 = vunpack.c.h.b16 %v137
  %v312 = vunpack.c.l.b16 %v138
  %v313 = vunpack.c.l.b16 %v139
  %v314 = vunpack.c.h.b16 %v139
  %v315 = vunpack.c.l.b16 %v140
  %v316 = vunpack.c.l.b16 %v141
  %v317 = vunpack.c.h.b16 %v141
  %v318 = vunpack.c.l.b16 %v142
  %v319 = vunpack.c.l.b16 %v143
  %v320 = vunpack.c.h.b16 %v143
  %v321 = vunpack.c.l.b16 %v144
  %v322 = vpack.c.b16 %v229, %v226
  %v323 = vpack.c.b16 %v230, %v227
  %v324 = vpack.c.b16 %v231, %v228
  %v325 = vpack.c.b16 %v235, %v232
  %v326 = vpack.c.b16 %v236, %v233
  %v327 = vpack.c.b16 %v237, %v234
  %v328 = vpack.c.b16 %v241, %v238
  %v329 = vpack.c.b16 %v242, %v239
  %v330 = vpack.c.b16 %v243, %v240
  %v331 = vpack.c.b16 %v247, %v244
  %v332 = vpack.c.b16 %v248, %v245
  %v333 = vpack.c.b16 %v249, %v246
  %v334 = vpack.c.b16 %v253, %v250
  %v335 = vpack.c.b16 %v254, %v251
  %v336 = vpack.c.b16 %v255, %v252
  %v337 = vpack.c.b16 %v259, %v256
  %v338 = vpack.c.b16 %v260, %v257
  %v339 = vpack.c.b16 %v261, %v258
  %v340 = vpack.c.b16 %v265, %v262
  %v341 = vpack.c.b16 %v266, %v263
  %v342 = vpack.c.b16 %v267, %v264
  %v343 = vpack.c.b16 %v271, %v268
  %v344 = vpack.c.b16 %v272, %v269
  %v345 = vpack.c.b16 %v273, %v270
  %v346 = vpack.c.b16 %v277, %v274
  %v347 = vpack.c.b16 %v278, %v275
  %v348 = vpack.c.b16 %v279, %v276
  %v349 = vpack.c.b16 %v283, %v280
  %v350 = vpack.c.b16 %v284, %v281
  %v351 = vpack.c.b16 %v285, %v282
  %v352 = vpack.c.b16 %v289, %v286
  %v353 = vpack.c.b16 %v290, %v287
  %v354 = vpack.c.b16 %v291, %v288
  %v355 = vpack.c.b16 %v295, %v292
  %v356 = vpack.c.b16 %v296, %v293
  %v357 = vpack.c.b16 %v297, %v294
  %v358 = vpack.c.b16 %v301, %v298
  %v359 = vpack.c.b16 %v302, %v299
  %v360 = vpack.c.b16 %v303, %v300
  %v361 = vpack.c.b16 %v307, %v304
  %v362 = vpack.c.b16 %v308, %v305
  %v363 = vpack.c.b16 %v309, %v306
  %v364 = vpack.c.b16 %v313, %v310
  %v365 = vpack.c.b16 %v314, %v311
  %v366 = vpack.c.b16 %v315, %v312
  %v367 = vpack.c.b16 %v319, %v316
  %v368 = vpack.c.b16 %v320, %v317
  %v369 = vpack.c.b16 %v321, %v318
  %418 = vmatprep.subr.bf16.mxu0 %v323
  %419 = vmatpush1.bf16.msra.mxu0 %v322
  %420 = vmatprep.subr.bf16.mxu0 %v326
  %421 = vmatpush1.bf16.msra.mxu0 %v325
  %422 = vmatprep.subr.bf16.mxu0 %v329
  %423 = vmatpush1.bf16.msra.mxu0 %v328
  %424 = vmatprep.subr.bf16.mxu0 %v332
  %425 = vmatpush1.bf16.msra.mxu0 %v331
  %426 = vmatprep.subr.bf16.mxu0 %v335
  %427 = vmatpush1.bf16.msra.mxu0 %v334
  %428 = vmatprep.subr.bf16.mxu0 %v338
  %429 = vmatpush1.bf16.msra.mxu0 %v337
  %430 = vmatprep.subr.bf16.mxu0 %v341
  %431 = vmatpush1.bf16.msra.mxu0 %v340
  %432 = vmatprep.subr.bf16.mxu0 %v344
  %433 = vmatpush1.bf16.msra.mxu0 %v343
  %434 = vmatprep.subr.bf16.mxu0 %v347
  %435 = vmatpush1.bf16.msra.mxu0 %v346
  %436 = vmatprep.subr.bf16.mxu0 %v350
  %437 = vmatpush1.bf16.msra.mxu0 %v349
  %438 = vmatprep.subr.bf16.mxu0 %v353
  %439 = vmatpush1.bf16.msra.mxu0 %v352
  %440 = vmatprep.subr.bf16.mxu0 %v356
  %441 = vmatpush1.bf16.msra.mxu0 %v355
  %442 = vmatprep.subr.bf16.mxu0 %v359
  %443 = vmatpush1.bf16.msra.mxu0 %v358
  %444 = vmatprep.subr.bf16.mxu0 %v362
  %445 = vmatpush1.bf16.msra.mxu0 %v361
  %446 = vmatprep.subr.bf16.mxu0 %v365
  %447 = vmatpush1.bf16.msra.mxu0 %v364
  %448 = vmatprep.subr.bf16.mxu0 %v368
  %449 = vmatpush1.bf16.msra.mxu0 %v367
  %450 = vmatprep.mubr.bf16.mxu0 %v60
  %451 = vmatmul.mubr.bf16.gmra.mrb[0].mxu0 %v59
  %v452 = vpop.f32.mrb[0].mxu0
  %v453 = vadd.f32 %v150, %v452
  %v454 = vpop.f32.mrb[0].mxu0
  %v455 = vadd.f32 %v154, %v454
  %v456 = vpop.f32.mrb[0].mxu0
  %v457 = vadd.f32 %v150, %v456
  %v458 = vpop.f32.mrb[0].mxu0
  %v459 = vadd.f32 %v154, %v458
  %460 = vmatprep.mubr.bf16.mxu0 %v62
  %461 = vmatmul.mubr.bf16.gmra.mrb[0].mxu0 %v61
  %v462 = vpop.f32.mrb[0].mxu0
  %v463 = vadd.f32 %v150, %v462
  %v464 = vpop.f32.mrb[0].mxu0
  %v465 = vadd.f32 %v154, %v464
  %v466 = vpop.f32.mrb[0].mxu0
  %v467 = vadd.f32 %v150, %v466
  %v468 = vpop.f32.mrb[0].mxu0
  %v469 = vadd.f32 %v154, %v468
  %470 = vmatprep.mubr.bf16.mxu0 %v64
  %471 = vmatmul.mubr.bf16.gmra.mrb[0].mxu0 %v63
  %v472 = vpop.f32.mrb[0].mxu0
  %v473 = vadd.f32 %v150, %v472
  %v474 = vpop.f32.mrb[0].mxu0
  %v475 = vadd.f32 %v154, %v474
  %v476 = vpop.f32.mrb[0].mxu0
  %v477 = vadd.f32 %v150, %v476
  %v478 = vpop.f32.mrb[0].mxu0
  %v479 = vadd.f32 %v154, %v478
  %480 = vmatprep.mubr.bf16.mxu0 %v66
  %481 = vmatmul.mubr.bf16.gmra.mrb[0].mxu0 %v65
  %v482 = vpop.f32.mrb[0].mxu0
  %v483 = vadd.f32 %v150, %v482
  %v484 = vpop.f32.mrb[0].mxu0
  %v485 = vadd.f32 %v154, %v484
  %v486 = vpop.f32.mrb[0].mxu0
  %v487 = vadd.f32 %v150, %v486
  %v488 = vpop.f32.mrb[0].mxu0
  %v489 = vadd.f32 %v154, %v488
  %490 = vmatprep.mubr.bf16.mxu0 %v68
  %491 = vmatmul.mubr.bf16.gmra.mrb[0].mxu0 %v67
  %v492 = vpop.f32.mrb[0].mxu0
  %v493 = vadd.f32 %v150, %v492
  %v494 = vpop.f32.mrb[0].mxu0
  %v495 = vadd.f32 %v154, %v494
  %v496 = vpop.f32.mrb[0].mxu0
  %v497 = vadd.f32 %v150, %v496
  %v498 = vpop.f32.mrb[0].mxu0
  %v499 = vadd.f32 %v154, %v498
  %500 = vmatprep.mubr.bf16.mxu0 %v70
  %501 = vmatmul.mubr.bf16.gmra.mrb[0].mxu0 %v69
  %v502 = vpop.f32.mrb[0].mxu0
  %v503 = vadd.f32 %v150, %v502
  %v504 = vpop.f32.mrb[0].mxu0
  %v505 = vadd.f32 %v154, %v504
  %v506 = vpop.f32.mrb[0].mxu0
  %v507 = vadd.f32 %v150, %v506
  %v508 = vpop.f32.mrb[0].mxu0
  %v509 = vadd.f32 %v154, %v508
  %510 = vmatprep.mubr.bf16.mxu0 %v72
  %511 = vmatmul.mubr.bf16.gmra.mrb[0].mxu0 %v71
  %v512 = vpop.f32.mrb[0].mxu0
  %v513 = vadd.f32 %v150, %v512
  %v514 = vpop.f32.mrb[0].mxu0
  %v515 = vadd.f32 %v154, %v514
  %v516 = vpop.f32.mrb[0].mxu0
  %v517 = vadd.f32 %v150, %v516
  %v518 = vpop.f32.mrb[0].mxu0
  %v519 = vadd.f32 %v154, %v518
  %520 = vmatprep.mubr.bf16.mxu0 %v74
  %521 = vmatmul.mubr.bf16.gmra.mrb[0].mxu0 %v73
  %v522 = vpop.f32.mrb[0].mxu0
  %v523 = vadd.f32 %v150, %v522
  %v524 = vpop.f32.mrb[0].mxu0
  %v525 = vadd.f32 %v154, %v524
  %v526 = vpop.f32.mrb[0].mxu0
  %v527 = vadd.f32 %v150, %v526
  %v528 = vpop.f32.mrb[0].mxu0
  %v529 = vadd.f32 %v154, %v528
  %530 = vmatprep.mubr.bf16.mxu0 %v76
  %531 = vmatmul.mubr.bf16.gmra.mrb[0].mxu0 %v75
  %v532 = vpop.f32.mrb[0].mxu0
  %v533 = vadd.f32 %v150, %v532
  %v534 = vpop.f32.mrb[0].mxu0
  %v535 = vadd.f32 %v154, %v534
  %v536 = vpop.f32.mrb[0].mxu0
  %v537 = vadd.f32 %v150, %v536
  %v538 = vpop.f32.mrb[0].mxu0
  %v539 = vadd.f32 %v154, %v538
  %540 = vmatprep.mubr.bf16.mxu0 %v78
  %541 = vmatmul.mubr.bf16.gmra.mrb[0].mxu0 %v77
  %v542 = vpop.f32.mrb[0].mxu0
  %v543 = vadd.f32 %v150, %v542
  %v544 = vpop.f32.mrb[0].mxu0
  %v545 = vadd.f32 %v154, %v544
  %v546 = vpop.f32.mrb[0].mxu0
  %v547 = vadd.f32 %v150, %v546
  %v548 = vpop.f32.mrb[0].mxu0
  %v549 = vadd.f32 %v154, %v548
  %550 = vmatprep.mubr.bf16.mxu0 %v80
  %551 = vmatmul.mubr.bf16.gmra.mrb[0].mxu0 %v79
  %v552 = vpop.f32.mrb[0].mxu0
  %v553 = vadd.f32 %v150, %v552
  %v554 = vpop.f32.mrb[0].mxu0
  %v555 = vadd.f32 %v154, %v554
  %v556 = vpop.f32.mrb[0].mxu0
  %v557 = vadd.f32 %v150, %v556
  %v558 = vpop.f32.mrb[0].mxu0
  %v559 = vadd.f32 %v154, %v558
  %560 = vdwg.mxu0
  %561 = vmatprep.subr.bf16.mxu0 0
  %562 = vmatpush1.bf16.msra.mxu0 %v324
  %563 = vmatprep.subr.bf16.mxu0 0
  %564 = vmatpush1.bf16.msra.mxu0 %v327
  %565 = vmatprep.subr.bf16.mxu0 0
  %566 = vmatpush1.bf16.msra.mxu0 %v330
  %567 = vmatprep.subr.bf16.mxu0 0
  %568 = vmatpush1.bf16.msra.mxu0 %v333
  %569 = vmatprep.subr.bf16.mxu0 0
  %570 = vmatpush1.bf16.msra.mxu0 %v336
  %571 = vmatprep.subr.bf16.mxu0 0
  %572 = vmatpush1.bf16.msra.mxu0 %v339
  %573 = vmatprep.subr.bf16.mxu0 0
  %574 = vmatpush1.bf16.msra.mxu0 %v342
  %575 = vmatprep.subr.bf16.mxu0 0
  %576 = vmatpush1.bf16.msra.mxu0 %v345
  %577 = vmatprep.subr.bf16.mxu0 0
  %578 = vmatpush1.bf16.msra.mxu0 %v348
  %579 = vmatprep.subr.bf16.mxu0 0
  %580 = vmatpush1.bf16.msra.mxu0 %v351
  %581 = vmatprep.subr.bf16.mxu0 0
  %582 = vmatpush1.bf16.msra.mxu0 %v354
  %583 = vmatprep.subr.bf16.mxu0 0
  %584 = vmatpush1.bf16.msra.mxu0 %v357
  %585 = vmatprep.subr.bf16.mxu0 0
  %586 = vmatpush1.bf16.msra.mxu0 %v360
  %587 = vmatprep.subr.bf16.mxu0 0
  %588 = vmatpush1.bf16.msra.mxu0 %v363
  %589 = vmatprep.subr.bf16.mxu0 0
  %590 = vmatpush1.bf16.msra.mxu0 %v366
  %591 = vmatprep.subr.bf16.mxu0 0
  %592 = vmatpush1.bf16.msra.mxu0 %v369
  %593 = vmatprep.mubr.bf16.mxu0 %v60
  %594 = vmatmul.mubr.bf16.gmra.mrb[0].mxu0 %v59
  %v595 = vpop.f32.mrb[0].mxu0
  %v596 = vadd.f32 %v158, %v595
  %v597 = vpop.f32.mrb[0].mxu0
  %v598 = vpop.f32.mrb[0].mxu0
  %v599 = vadd.f32 %v158, %v598
  %v600 = vpop.f32.mrb[0].mxu0
  %601 = vmatprep.mubr.bf16.mxu0 %v62
  %602 = vmatmul.mubr.bf16.gmra.mrb[0].mxu0 %v61
  %v603 = vpop.f32.mrb[0].mxu0
  %v604 = vadd.f32 %v158, %v603
  %v605 = vpop.f32.mrb[0].mxu0
  %v606 = vpop.f32.mrb[0].mxu0
  %v607 = vadd.f32 %v158, %v606
  %v608 = vpop.f32.mrb[0].mxu0
  %609 = vmatprep.mubr.bf16.mxu0 %v64
  %610 = vmatmul.mubr.bf16.gmra.mrb[0].mxu0 %v63
  %v611 = vpop.f32.mrb[0].mxu0
  %v612 = vadd.f32 %v158, %v611
  %v613 = vpop.f32.mrb[0].mxu0
  %v614 = vpop.f32.mrb[0].mxu0
  %v615 = vadd.f32 %v158, %v614
  %v616 = vpop.f32.mrb[0].mxu0
  %617 = vmatprep.mubr.bf16.mxu0 %v66
  %618 = vmatmul.mubr.bf16.gmra.mrb[0].mxu0 %v65
  %v619 = vpop.f32.mrb[0].mxu0
  %v620 = vadd.f32 %v158, %v619
  %v621 = vpop.f32.mrb[0].mxu0
  %v622 = vpop.f32.mrb[0].mxu0
  %v623 = vadd.f32 %v158, %v622
  %v624 = vpop.f32.mrb[0].mxu0
  %625 = vmatprep.mubr.bf16.mxu0 %v68
  %626 = vmatmul.mubr.bf16.gmra.mrb[0].mxu0 %v67
  %v627 = vpop.f32.mrb[0].mxu0
  %v628 = vadd.f32 %v158, %v627
  %v629 = vpop.f32.mrb[0].mxu0
  %v630 = vpop.f32.mrb[0].mxu0
  %v631 = vadd.f32 %v158, %v630
  %v632 = vpop.f32.mrb[0].mxu0
  %633 = vmatprep.mubr.bf16.mxu0 %v70
  %634 = vmatmul.mubr.bf16.gmra.mrb[0].mxu0 %v69
  %v635 = vpop.f32.mrb[0].mxu0
  %v636 = vadd.f32 %v158, %v635
  %v637 = vpop.f32.mrb[0].mxu0
  %v638 = vpop.f32.mrb[0].mxu0
  %v639 = vadd.f32 %v158, %v638
  %v640 = vpop.f32.mrb[0].mxu0
  %641 = vmatprep.mubr.bf16.mxu0 %v72
  %642 = vmatmul.mubr.bf16.gmra.mrb[0].mxu0 %v71
  %v643 = vpop.f32.mrb[0].mxu0
  %v644 = vadd.f32 %v158, %v643
  %v645 = vpop.f32.mrb[0].mxu0
  %v646 = vpop.f32.mrb[0].mxu0
  %v647 = vadd.f32 %v158, %v646
  %v648 = vpop.f32.mrb[0].mxu0
  %649 = vmatprep.mubr.bf16.mxu0 %v74
  %650 = vmatmul.mubr.bf16.gmra.mrb[0].mxu0 %v73
  %v651 = vpop.f32.mrb[0].mxu0
  %v652 = vadd.f32 %v158, %v651
  %v653 = vpop.f32.mrb[0].mxu0
  %v654 = vpop.f32.mrb[0].mxu0
  %v655 = vadd.f32 %v158, %v654
  %v656 = vpop.f32.mrb[0].mxu0
  %657 = vmatprep.mubr.bf16.mxu0 %v76
  %658 = vmatmul.mubr.bf16.gmra.mrb[0].mxu0 %v75
  %v659 = vpop.f32.mrb[0].mxu0
  %v660 = vadd.f32 %v158, %v659
  %v661 = vpop.f32.mrb[0].mxu0
  %v662 = vpop.f32.mrb[0].mxu0
  %v663 = vadd.f32 %v158, %v662
  %v664 = vpop.f32.mrb[0].mxu0
  %665 = vmatprep.mubr.bf16.mxu0 %v78
  %666 = vmatmul.mubr.bf16.gmra.mrb[0].mxu0 %v77
  %v667 = vpop.f32.mrb[0].mxu0
  %v668 = vadd.f32 %v158, %v667
  %v669 = vpop.f32.mrb[0].mxu0
  %v670 = vpop.f32.mrb[0].mxu0
  %v671 = vadd.f32 %v158, %v670
  %v672 = vpop.f32.mrb[0].mxu0
  %673 = vmatprep.mubr.bf16.mxu0 %v80
  %674 = vmatmul.mubr.bf16.gmra.mrb[0].mxu0 %v79
  %v675 = vpop.f32.mrb[0].mxu0
  %v676 = vadd.f32 %v158, %v675
  %v677 = vpop.f32.mrb[0].mxu0
  %v678 = vpop.f32.mrb[0].mxu0
  %v679 = vadd.f32 %v158, %v678
  %v680 = vpop.f32.mrb[0].mxu0
  %681 = vdwg.mxu0
  %682 = vst [vmem:[%s3] sm:$0xff] %v453
  %683 = vst [vmem:[%s3 + $0x8] sm:$0xff] %v455
  %684 = vst [vmem:[%s3 + $0x10] sm:$0xff] %v596
  %685 = vst [vmem:[%s3 + $0x18] sm:$0xff] %v457
  %686 = vst [vmem:[%s3 + $0x20] sm:$0xff] %v459
  %687 = vst [vmem:[%s3 + $0x28] sm:$0xff] %v599
  %688 = vst [vmem:[%s3 + $0x30] sm:$0xff] %v463
  %689 = vst [vmem:[%s3 + $0x38] sm:$0xff] %v465
  %690 = vst [vmem:[%s3 + $0x40] sm:$0xff] %v604
  %691 = vst [vmem:[%s3 + $0x48] sm:$0xff] %v467
  %692 = vst [vmem:[%s3 + $0x50] sm:$0xff] %v469
  %693 = vst [vmem:[%s3 + $0x58] sm:$0xff] %v607
  %694 = vst [vmem:[%s3 + $0x60] sm:$0xff] %v473
  %695 = vst [vmem:[%s3 + $0x68] sm:$0xff] %v475
  %696 = vst [vmem:[%s3 + $0x70] sm:$0xff] %v612
  %697 = vst [vmem:[%s3 + $0x78] sm:$0xff] %v477
  %698 = vst [vmem:[%s3 + $0x80] sm:$0xff] %v479
  %699 = vst [vmem:[%s3 + $0x88] sm:$0xff] %v615
  %700 = vst [vmem:[%s3 + $0x90] sm:$0xff] %v483
  %701 = vst [vmem:[%s3 + $0x98] sm:$0xff] %v485
  %702 = vst [vmem:[%s3 + $0xa0] sm:$0xff] %v620
  %703 = vst [vmem:[%s3 + $0xa8] sm:$0xff] %v487
  %704 = vst [vmem:[%s3 + $0xb0] sm:$0xff] %v489
  %705 = vst [vmem:[%s3 + $0xb8] sm:$0xff] %v623
  %706 = vst [vmem:[%s3 + $0xc0] sm:$0xff] %v493
  %707 = vst [vmem:[%s3 + $0xc8] sm:$0xff] %v495
  %708 = vst [vmem:[%s3 + $0xd0] sm:$0xff] %v628
  %709 = vst [vmem:[%s3 + $0xd8] sm:$0xff] %v497
  %710 = vst [vmem:[%s3 + $0xe0] sm:$0xff] %v499
  %711 = vst [vmem:[%s3 + $0xe8] sm:$0xff] %v631
  %712 = vst [vmem:[%s3 + $0xf0] sm:$0xff] %v503
  %713 = vst [vmem:[%s3 + $0xf8] sm:$0xff] %v505
  %714 = vst [vmem:[%s3 + $0x100] sm:$0xff] %v636
  %715 = vst [vmem:[%s3 + $0x108] sm:$0xff] %v507
  %716 = vst [vmem:[%s3 + $0x110] sm:$0xff] %v509
  %717 = vst [vmem:[%s3 + $0x118] sm:$0xff] %v639
  %718 = vst [vmem:[%s3 + $0x120] sm:$0xff] %v513
  %719 = vst [vmem:[%s3 + $0x128] sm:$0xff] %v515
  %720 = vst [vmem:[%s3 + $0x130] sm:$0xff] %v644
  %721 = vst [vmem:[%s3 + $0x138] sm:$0xff] %v517
  %722 = vst [vmem:[%s3 + $0x140] sm:$0xff] %v519
  %723 = vst [vmem:[%s3 + $0x148] sm:$0xff] %v647
  %724 = vst [vmem:[%s3 + $0x150] sm:$0xff] %v523
  %725 = vst [vmem:[%s3 + $0x158] sm:$0xff] %v525
  %726 = vst [vmem:[%s3 + $0x160] sm:$0xff] %v652
  %727 = vst [vmem:[%s3 + $0x168] sm:$0xff] %v527
  %728 = vst [vmem:[%s3 + $0x170] sm:$0xff] %v529
  %729 = vst [vmem:[%s3 + $0x178] sm:$0xff] %v655
  %730 = vst [vmem:[%s3 + $0x180] sm:$0xff] %v533
  %731 = vst [vmem:[%s3 + $0x188] sm:$0xff] %v535
  %732 = vst [vmem:[%s3 + $0x190] sm:$0xff] %v660
  %733 = vst [vmem:[%s3 + $0x198] sm:$0xff] %v537
  %734 = vst [vmem:[%s3 + $0x1a0] sm:$0xff] %v539
  %735 = vst [vmem:[%s3 + $0x1a8] sm:$0xff] %v663
  %736 = vst [vmem:[%s3 + $0x1b0] sm:$0xff] %v543
  %737 = vst [vmem:[%s3 + $0x1b8] sm:$0xff] %v545
  %738 = vst [vmem:[%s3 + $0x1c0] sm:$0xff] %v668
  %739 = vst [vmem:[%s3 + $0x1c8] sm:$0xff] %v547
  %740 = vst [vmem:[%s3 + $0x1d0] sm:$0xff] %v549
  %741 = vst [vmem:[%s3 + $0x1d8] sm:$0xff] %v671
  %742 = vst [vmem:[%s3 + $0x1e0] sm:$0xff] %v553
  %743 = vst [vmem:[%s3 + $0x1e8] sm:$0xff] %v555
  %744 = vst [vmem:[%s3 + $0x1f0] sm:$0xff] %v676
  %745 = vst [vmem:[%s3 + $0x1f8] sm:$0xff] %v557
  %746 = vst [vmem:[%s3 + $0x200] sm:$0xff] %v559
  %747 = vst [vmem:[%s3 + $0x208] sm:$0xff] %v679
  // Predicated region
  $region14: #{depth_aware_transformer_forward.41} parent=0 // pred_check
    _
  $region15: #{depth_aware_transformer_forward.41} parent=0 // pred_check_branch
    %749 = sbr.rel (0) target = $region17
  $region16: #{depth_aware_transformer_forward.41} parent=0 // pred_region
    _
  $region17: #{depth_aware_transformer_forward.41} parent=0 // pred_fallthru
    _
  // Predicated region
  $region18: #{depth_aware_transformer_forward.41} parent=0 // pred_check
    _
  $region19: #{depth_aware_transformer_forward.41} parent=0 // pred_check_branch
    %751 = sbr.rel (0) target = $region21
  $region20: #{depth_aware_transformer_forward.41} parent=0 // pred_region
    _
  $region21: #{depth_aware_transformer_forward.41} parent=0 // pred_fallthru
    _

// kernel: depth_aware_transformer_forward.40
$region0: #{depth_aware_transformer_forward.40}
  #allocation0 [shape = 'u32[]', space=smem, size = 0x4, offset = 0x4, fixed_abs, tag = 'smem constant byte address 0x4 - core index']
  #allocation1 [shape = 'u32[144,128]{1,0:T(1,128)}', space=vmem, size = 0x12000, scoped, tag = 'internal scratch']
  %s0 = inlined_call_operand.vmem [shape: f32[176,256], index: 0, kind: input, shape index: {}]
  %s1 = inlined_call_operand.vmem [shape: bf16[256,256], index: 1, kind: input, shape index: {}]
  %s2 = inlined_call_operand.vmem [shape: f32[1,256], index: 2, kind: input, shape index: {}]
  %s3 = inlined_call_operand.vmem [shape: f32[176,256], index: 3, kind: output, shape index: {}]
  %s4 = sld [smem:[#allocation0]]
  $region22: #{depth_aware_transformer_forward.40} parent=0
    _
  %s6 = ssub.s32 1, %s4
  %s7 = scalar_select 0, %s6, %s4
  // Predicated region
  $region2: #{depth_aware_transformer_forward.40} parent=0 // pred_check
    _
  $region3: #{depth_aware_transformer_forward.40} parent=0 // pred_check_branch
    %9 = sbr.rel (0) target = $region5
  $region4: #{depth_aware_transformer_forward.40} parent=0 // pred_region
    _
  $region5: #{depth_aware_transformer_forward.40} parent=0 // pred_fallthru
    _
  // Predicated region
  $region6: #{depth_aware_transformer_forward.40} parent=0 // pred_check
    _
  $region7: #{depth_aware_transformer_forward.40} parent=0 // pred_check_branch
    %11 = sbr.rel (0) target = $region9
  $region8: #{depth_aware_transformer_forward.40} parent=0 // pred_region
    _
  $region9: #{depth_aware_transformer_forward.40} parent=0 // pred_fallthru
    _
  // Predicated region
  $region10: #{depth_aware_transformer_forward.40} parent=0 // pred_check
    _
  $region11: #{depth_aware_transformer_forward.40} parent=0 // pred_check_branch
    %13 = sbr.rel (0) target = $region13
  $region12: #{depth_aware_transformer_forward.40} parent=0 // pred_region
    _
  $region13: #{depth_aware_transformer_forward.40} parent=0 // pred_fallthru
    _
  %v14 = vld [vmem:[%s0] sm:$0xff]
  %v15 = vld [vmem:[%s0 + $0x8] sm:$0xff]
  %v16 = vld [vmem:[%s0 + $0x10] sm:$0xff]
  %v17 = vld [vmem:[%s0 + $0x18] sm:$0xff]
  %v18 = vld [vmem:[%s0 + $0x20] sm:$0xff]
  %v19 = vld [vmem:[%s0 + $0x28] sm:$0xff]
  %v20 = vld [vmem:[%s0 + $0x30] sm:$0xff]
  %v21 = vld [vmem:[%s0 + $0x38] sm:$0xff]
  %v22 = vld [vmem:[%s0 + $0x40] sm:$0xff]
  %v23 = vld [vmem:[%s0 + $0x48] sm:$0xff]
  %v24 = vld [vmem:[%s0 + $0x50] sm:$0xff]
  %v25 = vld [vmem:[%s0 + $0x58] sm:$0xff]
  %v26 = vld [vmem:[%s0 + $0x60] sm:$0xff]
  %v27 = vld [vmem:[%s0 + $0x68] sm:$0xff]
  %v28 = vld [vmem:[%s0 + $0x70] sm:$0xff]
  %v29 = vld [vmem:[%s0 + $0x78] sm:$0xff]
  %v30 = vld [vmem:[%s0 + $0x80] sm:$0xff]
  %v31 = vld [vmem:[%s0 + $0x88] sm:$0xff]
  %v32 = vld [vmem:[%s0 + $0x90] sm:$0xff]
  %v33 = vld [vmem:[%s0 + $0x98] sm:$0xff]
  %v34 = vld [vmem:[%s0 + $0xa0] sm:$0xff]
  %v35 = vld [vmem:[%s0 + $0xa8] sm:$0xff]
  %v36 = vld [vmem:[%s0 + $0xb0] sm:$0xff]
  %v37 = vld [vmem:[%s0 + $0xb8] sm:$0xff]
  %v38 = vld [vmem:[%s0 + $0xc0] sm:$0xff]
  %v39 = vld [vmem:[%s0 + $0xc8] sm:$0xff]
  %v40 = vld [vmem:[%s0 + $0xd0] sm:$0xff]
  %v41 = vld [vmem:[%s0 + $0xd8] sm:$0xff]
  %v42 = vld [vmem:[%s0 + $0xe0] sm:$0xff]
  %v43 = vld [vmem:[%s0 + $0xe8] sm:$0xff]
  %v44 = vld [vmem:[%s0 + $0xf0] sm:$0xff]
  %v45 = vld [vmem:[%s0 + $0xf8] sm:$0xff]
  %v46 = vld [vmem:[%s0 + $0x100] sm:$0xff]
  %v47 = vld [vmem:[%s0 + $0x108] sm:$0xff]
  %v48 = vld [vmem:[%s0 + $0x110] sm:$0xff]
  %v49 = vld [vmem:[%s0 + $0x118] sm:$0xff]
  %v50 = vld [vmem:[%s0 + $0x120] sm:$0xff]
  %v51 = vld [vmem:[%s0 + $0x128] sm:$0xff]
  %v52 = vld [vmem:[%s0 + $0x130] sm:$0xff]
  %v53 = vld [vmem:[%s0 + $0x138] sm:$0xff]
  %v54 = vld [vmem:[%s0 + $0x140] sm:$0xff]
  %v55 = vld [vmem:[%s0 + $0x148] sm:$0xff]
  %v56 = vld [vmem:[%s0 + $0x150] sm:$0xff]
  %v57 = vld [vmem:[%s0 + $0x158] sm:$0xff]
  %v58 = vpack.c.bf16 %v16, %v14
  %v59 = vpack.c.bf16 %v17, %v15
  %v60 = vpack.c.bf16 %v20, %v18
  %v61 = vpack.c.bf16 %v21, %v19
  %v62 = vpack.c.bf16 %v24, %v22
  %v63 = vpack.c.bf16 %v25, %v23
  %v64 = vpack.c.bf16 %v28, %v26
  %v65 = vpack.c.bf16 %v29, %v27
  %v66 = vpack.c.bf16 %v32, %v30
  %v67 = vpack.c.bf16 %v33, %v31
  %v68 = vpack.c.bf16 %v36, %v34
  %v69 = vpack.c.bf16 %v37, %v35
  %v70 = vpack.c.bf16 %v40, %v38
  %v71 = vpack.c.bf16 %v41, %v39
  %v72 = vpack.c.bf16 %v44, %v42
  %v73 = vpack.c.bf16 %v45, %v43
  %v74 = vpack.c.bf16 %v48, %v46
  %v75 = vpack.c.bf16 %v49, %v47
  %v76 = vpack.c.bf16 %v52, %v50
  %v77 = vpack.c.bf16 %v53, %v51
  %v78 = vpack.c.bf16 %v56, %v54
  %v79 = vpack.c.bf16 %v57, %v55
  %v80 = vld [vmem:[%s1] sm:$0xff]
  %v81 = vld [vmem:[%s1 + $0x8] sm:$0xff]
  %v82 = vld [vmem:[%s1 + $0x10] sm:$0xff]
  %v83 = vld [vmem:[%s1 + $0x18] sm:$0xff]
  %v84 = vld [vmem:[%s1 + $0x20] sm:$0xff]
  %v85 = vld [vmem:[%s1 + $0x28] sm:$0xff]
  %v86 = vld [vmem:[%s1 + $0x30] sm:$0xff]
  %v87 = vld [vmem:[%s1 + $0x38] sm:$0xff]
  %v88 = vld [vmem:[%s1 + $0x40] sm:$0xff]
  %v89 = vld [vmem:[%s1 + $0x48] sm:$0xff]
  %v90 = vld [vmem:[%s1 + $0x50] sm:$0xff]
  %v91 = vld [vmem:[%s1 + $0x58] sm:$0xff]
  %v92 = vld [vmem:[%s1 + $0x60] sm:$0xff]
  %v93 = vld [vmem:[%s1 + $0x68] sm:$0xff]
  %v94 = vld [vmem:[%s1 + $0x70] sm:$0xff]
  %v95 = vld [vmem:[%s1 + $0x78] sm:$0xff]
  %v96 = vld [vmem:[%s1 + $0x80] sm:$0xff]
  %v97 = vld [vmem:[%s1 + $0x88] sm:$0xff]
  %v98 = vld [vmem:[%s1 + $0x90] sm:$0xff]
  %v99 = vld [vmem:[%s1 + $0x98] sm:$0xff]
  %v100 = vld [vmem:[%s1 + $0xa0] sm:$0xff]
  %v101 = vld [vmem:[%s1 + $0xa8] sm:$0xff]
  %v102 = vld [vmem:[%s1 + $0xb0] sm:$0xff]
  %v103 = vld [vmem:[%s1 + $0xb8] sm:$0xff]
  %v104 = vld [vmem:[%s1 + $0xc0] sm:$0xff]
  %v105 = vld [vmem:[%s1 + $0xc8] sm:$0xff]
  %v106 = vld [vmem:[%s1 + $0xd0] sm:$0xff]
  %v107 = vld [vmem:[%s1 + $0xd8] sm:$0xff]
  %v108 = vld [vmem:[%s1 + $0xe0] sm:$0xff]
  %v109 = vld [vmem:[%s1 + $0xe8] sm:$0xff]
  %v110 = vld [vmem:[%s1 + $0xf0] sm:$0xff]
  %v111 = vld [vmem:[%s1 + $0xf8] sm:$0xff]
  %v112 = vld [vmem:[%s2] sm:$0x3]
  %v114 = vlaneseq
  %v115 = vshrl.u32 %v114, 7
  %v116 = vsub.s32 0, %v115
  %v117 = vrot.slane %v112, %v116
  %v118 = vlaneseq
  %v119 = vshrl.u32 %v118, 7
  %v120 = vsub.s32 1, %v119
  %v121 = vrot.slane %v112, %v120
  %v156 = vunpack.c.l.b16 %v80
  %v157 = vunpack.c.h.b16 %v80
  %v158 = vunpack.c.l.b16 %v81
  %v159 = vunpack.c.h.b16 %v81
  %v160 = vunpack.c.l.b16 %v82
  %v161 = vunpack.c.h.b16 %v82
  %v162 = vunpack.c.l.b16 %v83
  %v163 = vunpack.c.h.b16 %v83
  %v164 = vunpack.c.l.b16 %v84
  %v165 = vunpack.c.h.b16 %v84
  %v166 = vunpack.c.l.b16 %v85
  %v167 = vunpack.c.h.b16 %v85
  %v168 = vunpack.c.l.b16 %v86
  %v169 = vunpack.c.h.b16 %v86
  %v170 = vunpack.c.l.b16 %v87
  %v171 = vunpack.c.h.b16 %v87
  %v172 = vunpack.c.l.b16 %v88
  %v173 = vunpack.c.h.b16 %v88
  %v174 = vunpack.c.l.b16 %v89
  %v175 = vunpack.c.h.b16 %v89
  %v176 = vunpack.c.l.b16 %v90
  %v177 = vunpack.c.h.b16 %v90
  %v178 = vunpack.c.l.b16 %v91
  %v179 = vunpack.c.h.b16 %v91
  %v180 = vunpack.c.l.b16 %v92
  %v181 = vunpack.c.h.b16 %v92
  %v182 = vunpack.c.l.b16 %v93
  %v183 = vunpack.c.h.b16 %v93
  %v184 = vunpack.c.l.b16 %v94
  %v185 = vunpack.c.h.b16 %v94
  %v186 = vunpack.c.l.b16 %v95
  %v187 = vunpack.c.h.b16 %v95
  %v188 = vunpack.c.l.b16 %v96
  %v189 = vunpack.c.h.b16 %v96
  %v190 = vunpack.c.l.b16 %v97
  %v191 = vunpack.c.h.b16 %v97
  %v192 = vunpack.c.l.b16 %v98
  %v193 = vunpack.c.h.b16 %v98
  %v194 = vunpack.c.l.b16 %v99
  %v195 = vunpack.c.h.b16 %v99
  %v196 = vunpack.c.l.b16 %v100
  %v197 = vunpack.c.h.b16 %v100
  %v198 = vunpack.c.l.b16 %v101
  %v199 = vunpack.c.h.b16 %v101
  %v200 = vunpack.c.l.b16 %v102
  %v201 = vunpack.c.h.b16 %v102
  %v202 = vunpack.c.l.b16 %v103
  %v203 = vunpack.c.h.b16 %v103
  %v204 = vunpack.c.l.b16 %v104
  %v205 = vunpack.c.h.b16 %v104
  %v206 = vunpack.c.l.b16 %v105
  %v207 = vunpack.c.h.b16 %v105
  %v208 = vunpack.c.l.b16 %v106
  %v209 = vunpack.c.h.b16 %v106
  %v210 = vunpack.c.l.b16 %v107
  %v211 = vunpack.c.h.b16 %v107
  %v212 = vunpack.c.l.b16 %v108
  %v213 = vunpack.c.h.b16 %v108
  %v214 = vunpack.c.l.b16 %v109
  %v215 = vunpack.c.h.b16 %v109
  %v216 = vunpack.c.l.b16 %v110
  %v217 = vunpack.c.h.b16 %v110
  %v218 = vunpack.c.l.b16 %v111
  %v219 = vunpack.c.h.b16 %v111
  %v220 = vpack.c.b16 %v158, %v156
  %v221 = vpack.c.b16 %v159, %v157
  %v222 = vpack.c.b16 %v162, %v160
  %v223 = vpack.c.b16 %v163, %v161
  %v224 = vpack.c.b16 %v166, %v164
  %v225 = vpack.c.b16 %v167, %v165
  %v226 = vpack.c.b16 %v170, %v168
  %v227 = vpack.c.b16 %v171, %v169
  %v228 = vpack.c.b16 %v174, %v172
  %v229 = vpack.c.b16 %v175, %v173
  %v230 = vpack.c.b16 %v178, %v176
  %v231 = vpack.c.b16 %v179, %v177
  %v232 = vpack.c.b16 %v182, %v180
  %v233 = vpack.c.b16 %v183, %v181
  %v234 = vpack.c.b16 %v186, %v184
  %v235 = vpack.c.b16 %v187, %v185
  %v236 = vpack.c.b16 %v190, %v188
  %v237 = vpack.c.b16 %v191, %v189
  %v238 = vpack.c.b16 %v194, %v192
  %v239 = vpack.c.b16 %v195, %v193
  %v240 = vpack.c.b16 %v198, %v196
  %v241 = vpack.c.b16 %v199, %v197
  %v242 = vpack.c.b16 %v202, %v200
  %v243 = vpack.c.b16 %v203, %v201
  %v244 = vpack.c.b16 %v206, %v204
  %v245 = vpack.c.b16 %v207, %v205
  %v246 = vpack.c.b16 %v210, %v208
  %v247 = vpack.c.b16 %v211, %v209
  %v248 = vpack.c.b16 %v214, %v212
  %v249 = vpack.c.b16 %v215, %v213
  %v250 = vpack.c.b16 %v218, %v216
  %v251 = vpack.c.b16 %v219, %v217
  %284 = vmatprep.subr.bf16.mxu0 %v221
  %285 = vmatpush1.bf16.msra.mxu0 %v220
  %286 = vmatprep.subr.bf16.mxu0 %v223
  %287 = vmatpush1.bf16.msra.mxu0 %v222
  %288 = vmatprep.subr.bf16.mxu0 %v225
  %289 = vmatpush1.bf16.msra.mxu0 %v224
  %290 = vmatprep.subr.bf16.mxu0 %v227
  %291 = vmatpush1.bf16.msra.mxu0 %v226
  %292 = vmatprep.subr.bf16.mxu0 %v229
  %293 = vmatpush1.bf16.msra.mxu0 %v228
  %294 = vmatprep.subr.bf16.mxu0 %v231
  %295 = vmatpush1.bf16.msra.mxu0 %v230
  %296 = vmatprep.subr.bf16.mxu0 %v233
  %297 = vmatpush1.bf16.msra.mxu0 %v232
  %298 = vmatprep.subr.bf16.mxu0 %v235
  %299 = vmatpush1.bf16.msra.mxu0 %v234
  %300 = vmatprep.subr.bf16.mxu0 %v237
  %301 = vmatpush1.bf16.msra.mxu0 %v236
  %302 = vmatprep.subr.bf16.mxu0 %v239
  %303 = vmatpush1.bf16.msra.mxu0 %v238
  %304 = vmatprep.subr.bf16.mxu0 %v241
  %305 = vmatpush1.bf16.msra.mxu0 %v240
  %306 = vmatprep.subr.bf16.mxu0 %v243
  %307 = vmatpush1.bf16.msra.mxu0 %v242
  %308 = vmatprep.subr.bf16.mxu0 %v245
  %309 = vmatpush1.bf16.msra.mxu0 %v244
  %310 = vmatprep.subr.bf16.mxu0 %v247
  %311 = vmatpush1.bf16.msra.mxu0 %v246
  %312 = vmatprep.subr.bf16.mxu0 %v249
  %313 = vmatpush1.bf16.msra.mxu0 %v248
  %314 = vmatprep.subr.bf16.mxu0 %v251
  %315 = vmatpush1.bf16.msra.mxu0 %v250
  %316 = vmatprep.mubr.bf16.mxu0 %v59
  %317 = vmatmul.mubr.bf16.gmra.mrb[0].mxu0 %v58
  %v318 = vpop.f32.mrb[0].mxu0
  %v319 = vadd.f32 %v117, %v318
  %v320 = vpop.f32.mrb[0].mxu0
  %v321 = vadd.f32 %v121, %v320
  %v322 = vpop.f32.mrb[0].mxu0
  %v323 = vadd.f32 %v117, %v322
  %v324 = vpop.f32.mrb[0].mxu0
  %v325 = vadd.f32 %v121, %v324
  %326 = vmatprep.mubr.bf16.mxu0 %v61
  %327 = vmatmul.mubr.bf16.gmra.mrb[0].mxu0 %v60
  %v328 = vpop.f32.mrb[0].mxu0
  %v329 = vadd.f32 %v117, %v328
  %v330 = vpop.f32.mrb[0].mxu0
  %v331 = vadd.f32 %v121, %v330
  %v332 = vpop.f32.mrb[0].mxu0
  %v333 = vadd.f32 %v117, %v332
  %v334 = vpop.f32.mrb[0].mxu0
  %v335 = vadd.f32 %v121, %v334
  %336 = vmatprep.mubr.bf16.mxu0 %v63
  %337 = vmatmul.mubr.bf16.gmra.mrb[0].mxu0 %v62
  %v338 = vpop.f32.mrb[0].mxu0
  %v339 = vadd.f32 %v117, %v338
  %v340 = vpop.f32.mrb[0].mxu0
  %v341 = vadd.f32 %v121, %v340
  %v342 = vpop.f32.mrb[0].mxu0
  %v343 = vadd.f32 %v117, %v342
  %v344 = vpop.f32.mrb[0].mxu0
  %v345 = vadd.f32 %v121, %v344
  %346 = vmatprep.mubr.bf16.mxu0 %v65
  %347 = vmatmul.mubr.bf16.gmra.mrb[0].mxu0 %v64
  %v348 = vpop.f32.mrb[0].mxu0
  %v349 = vadd.f32 %v117, %v348
  %v350 = vpop.f32.mrb[0].mxu0
  %v351 = vadd.f32 %v121, %v350
  %v352 = vpop.f32.mrb[0].mxu0
  %v353 = vadd.f32 %v117, %v352
  %v354 = vpop.f32.mrb[0].mxu0
  %v355 = vadd.f32 %v121, %v354
  %356 = vmatprep.mubr.bf16.mxu0 %v67
  %357 = vmatmul.mubr.bf16.gmra.mrb[0].mxu0 %v66
  %v358 = vpop.f32.mrb[0].mxu0
  %v359 = vadd.f32 %v117, %v358
  %v360 = vpop.f32.mrb[0].mxu0
  %v361 = vadd.f32 %v121, %v360
  %v362 = vpop.f32.mrb[0].mxu0
  %v363 = vadd.f32 %v117, %v362
  %v364 = vpop.f32.mrb[0].mxu0
  %v365 = vadd.f32 %v121, %v364
  %366 = vmatprep.mubr.bf16.mxu0 %v69
  %367 = vmatmul.mubr.bf16.gmra.mrb[0].mxu0 %v68
  %v368 = vpop.f32.mrb[0].mxu0
  %v369 = vadd.f32 %v117, %v368
  %v370 = vpop.f32.mrb[0].mxu0
  %v371 = vadd.f32 %v121, %v370
  %v372 = vpop.f32.mrb[0].mxu0
  %v373 = vadd.f32 %v117, %v372
  %v374 = vpop.f32.mrb[0].mxu0
  %v375 = vadd.f32 %v121, %v374
  %376 = vmatprep.mubr.bf16.mxu0 %v71
  %377 = vmatmul.mubr.bf16.gmra.mrb[0].mxu0 %v70
  %v378 = vpop.f32.mrb[0].mxu0
  %v379 = vadd.f32 %v117, %v378
  %v380 = vpop.f32.mrb[0].mxu0
  %v381 = vadd.f32 %v121, %v380
  %v382 = vpop.f32.mrb[0].mxu0
  %v383 = vadd.f32 %v117, %v382
  %v384 = vpop.f32.mrb[0].mxu0
  %v385 = vadd.f32 %v121, %v384
  %386 = vmatprep.mubr.bf16.mxu0 %v73
  %387 = vmatmul.mubr.bf16.gmra.mrb[0].mxu0 %v72
  %v388 = vpop.f32.mrb[0].mxu0
  %v389 = vadd.f32 %v117, %v388
  %v390 = vpop.f32.mrb[0].mxu0
  %v391 = vadd.f32 %v121, %v390
  %v392 = vpop.f32.mrb[0].mxu0
  %v393 = vadd.f32 %v117, %v392
  %v394 = vpop.f32.mrb[0].mxu0
  %v395 = vadd.f32 %v121, %v394
  %396 = vmatprep.mubr.bf16.mxu0 %v75
  %397 = vmatmul.mubr.bf16.gmra.mrb[0].mxu0 %v74
  %v398 = vpop.f32.mrb[0].mxu0
  %v399 = vadd.f32 %v117, %v398
  %v400 = vpop.f32.mrb[0].mxu0
  %v401 = vadd.f32 %v121, %v400
  %v402 = vpop.f32.mrb[0].mxu0
  %v403 = vadd.f32 %v117, %v402
  %v404 = vpop.f32.mrb[0].mxu0
  %v405 = vadd.f32 %v121, %v404
  %406 = vmatprep.mubr.bf16.mxu0 %v77
  %407 = vmatmul.mubr.bf16.gmra.mrb[0].mxu0 %v76
  %v408 = vpop.f32.mrb[0].mxu0
  %v409 = vadd.f32 %v117, %v408
  %v410 = vpop.f32.mrb[0].mxu0
  %v411 = vadd.f32 %v121, %v410
  %v412 = vpop.f32.mrb[0].mxu0
  %v413 = vadd.f32 %v117, %v412
  %v414 = vpop.f32.mrb[0].mxu0
  %v415 = vadd.f32 %v121, %v414
  %416 = vmatprep.mubr.bf16.mxu0 %v79
  %417 = vmatmul.mubr.bf16.gmra.mrb[0].mxu0 %v78
  %v418 = vpop.f32.mrb[0].mxu0
  %v419 = vadd.f32 %v117, %v418
  %v420 = vpop.f32.mrb[0].mxu0
  %v421 = vadd.f32 %v121, %v420
  %v422 = vpop.f32.mrb[0].mxu0
  %v423 = vadd.f32 %v117, %v422
  %v424 = vpop.f32.mrb[0].mxu0
  %v425 = vadd.f32 %v121, %v424
  %426 = vdwg.mxu0
  %427 = vst [vmem:[%s3] sm:$0xff] %v319
  %428 = vst [vmem:[%s3 + $0x8] sm:$0xff] %v321
  %429 = vst [vmem:[%s3 + $0x10] sm:$0xff] %v323
  %430 = vst [vmem:[%s3 + $0x18] sm:$0xff] %v325
  %431 = vst [vmem:[%s3 + $0x20] sm:$0xff] %v329
  %432 = vst [vmem:[%s3 + $0x28] sm:$0xff] %v331
  %433 = vst [vmem:[%s3 + $0x30] sm:$0xff] %v333
  %434 = vst [vmem:[%s3 + $0x38] sm:$0xff] %v335
  %435 = vst [vmem:[%s3 + $0x40] sm:$0xff] %v339
  %436 = vst [vmem:[%s3 + $0x48] sm:$0xff] %v341
  %437 = vst [vmem:[%s3 + $0x50] sm:$0xff] %v343
  %438 = vst [vmem:[%s3 + $0x58] sm:$0xff] %v345
  %439 = vst [vmem:[%s3 + $0x60] sm:$0xff] %v349
  %440 = vst [vmem:[%s3 + $0x68] sm:$0xff] %v351
  %441 = vst [vmem:[%s3 + $0x70] sm:$0xff] %v353
  %442 = vst [vmem:[%s3 + $0x78] sm:$0xff] %v355
  %443 = vst [vmem:[%s3 + $0x80] sm:$0xff] %v359
  %444 = vst [vmem:[%s3 + $0x88] sm:$0xff] %v361
  %445 = vst [vmem:[%s3 + $0x90] sm:$0xff] %v363
  %446 = vst [vmem:[%s3 + $0x98] sm:$0xff] %v365
  %447 = vst [vmem:[%s3 + $0xa0] sm:$0xff] %v369
  %448 = vst [vmem:[%s3 + $0xa8] sm:$0xff] %v371
  %449 = vst [vmem:[%s3 + $0xb0] sm:$0xff] %v373
  %450 = vst [vmem:[%s3 + $0xb8] sm:$0xff] %v375
  %451 = vst [vmem:[%s3 + $0xc0] sm:$0xff] %v379
  %452 = vst [vmem:[%s3 + $0xc8] sm:$0xff] %v381
  %453 = vst [vmem:[%s3 + $0xd0] sm:$0xff] %v383
  %454 = vst [vmem:[%s3 + $0xd8] sm:$0xff] %v385
  %455 = vst [vmem:[%s3 + $0xe0] sm:$0xff] %v389
  %456 = vst [vmem:[%s3 + $0xe8] sm:$0xff] %v391
  %457 = vst [vmem:[%s3 + $0xf0] sm:$0xff] %v393
  %458 = vst [vmem:[%s3 + $0xf8] sm:$0xff] %v395
  %459 = vst [vmem:[%s3 + $0x100] sm:$0xff] %v399
  %460 = vst [vmem:[%s3 + $0x108] sm:$0xff] %v401
  %461 = vst [vmem:[%s3 + $0x110] sm:$0xff] %v403
  %462 = vst [vmem:[%s3 + $0x118] sm:$0xff] %v405
  %463 = vst [vmem:[%s3 + $0x120] sm:$0xff] %v409
  %464 = vst [vmem:[%s3 + $0x128] sm:$0xff] %v411
  %465 = vst [vmem:[%s3 + $0x130] sm:$0xff] %v413
  %466 = vst [vmem:[%s3 + $0x138] sm:$0xff] %v415
  %467 = vst [vmem:[%s3 + $0x140] sm:$0xff] %v419
  %468 = vst [vmem:[%s3 + $0x148] sm:$0xff] %v421
  %469 = vst [vmem:[%s3 + $0x150] sm:$0xff] %v423
  %470 = vst [vmem:[%s3 + $0x158] sm:$0xff] %v425
  // Predicated region
  $region14: #{depth_aware_transformer_forward.40} parent=0 // pred_check
    _
  $region15: #{depth_aware_transformer_forward.40} parent=0 // pred_check_branch
    %472 = sbr.rel (0) target = $region17
  $region16: #{depth_aware_transformer_forward.40} parent=0 // pred_region
    _
  $region17: #{depth_aware_transformer_forward.40} parent=0 // pred_fallthru
    _
  // Predicated region
  $region18: #{depth_aware_transformer_forward.40} parent=0 // pred_check
    _
  $region19: #{depth_aware_transformer_forward.40} parent=0 // pred_check_branch
    %474 = sbr.rel (0) target = $region21
  $region20: #{depth_aware_transformer_forward.40} parent=0 // pred_region
    _
  $region21: #{depth_aware_transformer_forward.40} parent=0 // pred_fallthru
    _

// kernel: depth_aware_transformer_forward.43
$region0: #{depth_aware_transformer_forward.43}
  #allocation0 [shape = 'u32[]', space=smem, size = 0x4, offset = 0x4, fixed_abs, tag = 'smem constant byte address 0x4 - core index']
  #allocation1 [shape = 'u32[144,128]{1,0:T(1,128)}', space=vmem, size = 0x12000, scoped, tag = 'internal scratch']
  %s0 = inlined_call_operand.vmem [shape: f32[176,256], index: 0, kind: input, shape index: {}]
  %s1 = inlined_call_operand.vmem [shape: f32[176,256], index: 1, kind: input, shape index: {}]
  %s2 = inlined_call_operand.vmem [shape: f32[1,256], index: 2, kind: input, shape index: {}]
  %s3 = inlined_call_operand.vmem [shape: f32[1,256], index: 3, kind: input, shape index: {}]
  %s4 = inlined_call_operand.vmem [shape: f32[176,256], index: 4, kind: output, shape index: {}]
  %s5 = sld [smem:[#allocation0]]
  $region26: #{depth_aware_transformer_forward.43} parent=0
    _
  %s7 = ssub.s32 1, %s5
  %s8 = scalar_select 0, %s7, %s5
  // Predicated region
  $region2: #{depth_aware_transformer_forward.43} parent=0 // pred_check
    _
  $region3: #{depth_aware_transformer_forward.43} parent=0 // pred_check_branch
    %10 = sbr.rel (0) target = $region5
  $region4: #{depth_aware_transformer_forward.43} parent=0 // pred_region
    _
  $region5: #{depth_aware_transformer_forward.43} parent=0 // pred_fallthru
    _
  // Predicated region
  $region6: #{depth_aware_transformer_forward.43} parent=0 // pred_check
    _
  $region7: #{depth_aware_transformer_forward.43} parent=0 // pred_check_branch
    %12 = sbr.rel (0) target = $region9
  $region8: #{depth_aware_transformer_forward.43} parent=0 // pred_region
    _
  $region9: #{depth_aware_transformer_forward.43} parent=0 // pred_fallthru
    _
  // Predicated region
  $region10: #{depth_aware_transformer_forward.43} parent=0 // pred_check
    _
  $region11: #{depth_aware_transformer_forward.43} parent=0 // pred_check_branch
    %14 = sbr.rel (0) target = $region13
  $region12: #{depth_aware_transformer_forward.43} parent=0 // pred_region
    _
  $region13: #{depth_aware_transformer_forward.43} parent=0 // pred_fallthru
    _
  // Predicated region
  $region14: #{depth_aware_transformer_forward.43} parent=0 // pred_check
    _
  $region15: #{depth_aware_transformer_forward.43} parent=0 // pred_check_branch
    %16 = sbr.rel (0) target = $region17
  $region16: #{depth_aware_transformer_forward.43} parent=0 // pred_region
    _
  $region17: #{depth_aware_transformer_forward.43} parent=0 // pred_fallthru
    _
  %v17 = vld [vmem:[%s0] sm:$0xff]
  %v18 = vld [vmem:[%s0 + $0x8] sm:$0xff]
  %v19 = vld [vmem:[%s0 + $0x10] sm:$0xff]
  %v20 = vld [vmem:[%s0 + $0x18] sm:$0xff]
  %v21 = vld [vmem:[%s0 + $0x20] sm:$0xff]
  %v22 = vld [vmem:[%s0 + $0x28] sm:$0xff]
  %v23 = vld [vmem:[%s0 + $0x30] sm:$0xff]
  %v24 = vld [vmem:[%s0 + $0x38] sm:$0xff]
  %v25 = vld [vmem:[%s0 + $0x40] sm:$0xff]
  %v26 = vld [vmem:[%s0 + $0x48] sm:$0xff]
  %v27 = vld [vmem:[%s0 + $0x50] sm:$0xff]
  %v28 = vld [vmem:[%s0 + $0x58] sm:$0xff]
  %v29 = vld [vmem:[%s0 + $0x60] sm:$0xff]
  %v30 = vld [vmem:[%s0 + $0x68] sm:$0xff]
  %v31 = vld [vmem:[%s0 + $0x70] sm:$0xff]
  %v32 = vld [vmem:[%s0 + $0x78] sm:$0xff]
  %v33 = vld [vmem:[%s0 + $0x80] sm:$0xff]
  %v34 = vld [vmem:[%s0 + $0x88] sm:$0xff]
  %v35 = vld [vmem:[%s0 + $0x90] sm:$0xff]
  %v36 = vld [vmem:[%s0 + $0x98] sm:$0xff]
  %v37 = vld [vmem:[%s0 + $0xa0] sm:$0xff]
  %v38 = vld [vmem:[%s0 + $0xa8] sm:$0xff]
  %v39 = vld [vmem:[%s0 + $0xb0] sm:$0xff]
  %v40 = vld [vmem:[%s0 + $0xb8] sm:$0xff]
  %v41 = vld [vmem:[%s0 + $0xc0] sm:$0xff]
  %v42 = vld [vmem:[%s0 + $0xc8] sm:$0xff]
  %v43 = vld [vmem:[%s0 + $0xd0] sm:$0xff]
  %v44 = vld [vmem:[%s0 + $0xd8] sm:$0xff]
  %v45 = vld [vmem:[%s0 + $0xe0] sm:$0xff]
  %v46 = vld [vmem:[%s0 + $0xe8] sm:$0xff]
  %v47 = vld [vmem:[%s0 + $0xf0] sm:$0xff]
  %v48 = vld [vmem:[%s0 + $0xf8] sm:$0xff]
  %v49 = vld [vmem:[%s0 + $0x100] sm:$0xff]
  %v50 = vld [vmem:[%s0 + $0x108] sm:$0xff]
  %v51 = vld [vmem:[%s0 + $0x110] sm:$0xff]
  %v52 = vld [vmem:[%s0 + $0x118] sm:$0xff]
  %v53 = vld [vmem:[%s0 + $0x120] sm:$0xff]
  %v54 = vld [vmem:[%s0 + $0x128] sm:$0xff]
  %v55 = vld [vmem:[%s0 + $0x130] sm:$0xff]
  %v56 = vld [vmem:[%s0 + $0x138] sm:$0xff]
  %v57 = vld [vmem:[%s0 + $0x140] sm:$0xff]
  %v58 = vld [vmem:[%s0 + $0x148] sm:$0xff]
  %v59 = vld [vmem:[%s0 + $0x150] sm:$0xff]
  %v60 = vld [vmem:[%s0 + $0x158] sm:$0xff]
  %v61 = vld [vmem:[%s1] sm:$0xff]
  %v62 = vld [vmem:[%s1 + $0x8] sm:$0xff]
  %v63 = vld [vmem:[%s1 + $0x10] sm:$0xff]
  %v64 = vld [vmem:[%s1 + $0x18] sm:$0xff]
  %v65 = vld [vmem:[%s1 + $0x20] sm:$0xff]
  %v66 = vld [vmem:[%s1 + $0x28] sm:$0xff]
  %v67 = vld [vmem:[%s1 + $0x30] sm:$0xff]
  %v68 = vld [vmem:[%s1 + $0x38] sm:$0xff]
  %v69 = vld [vmem:[%s1 + $0x40] sm:$0xff]
  %v70 = vld [vmem:[%s1 + $0x48] sm:$0xff]
  %v71 = vld [vmem:[%s1 + $0x50] sm:$0xff]
  %v72 = vld [vmem:[%s1 + $0x58] sm:$0xff]
  %v73 = vld [vmem:[%s1 + $0x60] sm:$0xff]
  %v74 = vld [vmem:[%s1 + $0x68] sm:$0xff]
  %v75 = vld [vmem:[%s1 + $0x70] sm:$0xff]
  %v76 = vld [vmem:[%s1 + $0x78] sm:$0xff]
  %v77 = vld [vmem:[%s1 + $0x80] sm:$0xff]
  %v78 = vld [vmem:[%s1 + $0x88] sm:$0xff]
  %v79 = vld [vmem:[%s1 + $0x90] sm:$0xff]
  %v80 = vld [vmem:[%s1 + $0x98] sm:$0xff]
  %v81 = vld [vmem:[%s1 + $0xa0] sm:$0xff]
  %v82 = vld [vmem:[%s1 + $0xa8] sm:$0xff]
  %v83 = vld [vmem:[%s1 + $0xb0] sm:$0xff]
  %v84 = vld [vmem:[%s1 + $0xb8] sm:$0xff]
  %v85 = vld [vmem:[%s1 + $0xc0] sm:$0xff]
  %v86 = vld [vmem:[%s1 + $0xc8] sm:$0xff]
  %v87 = vld [vmem:[%s1 + $0xd0] sm:$0xff]
  %v88 = vld [vmem:[%s1 + $0xd8] sm:$0xff]
  %v89 = vld [vmem:[%s1 + $0xe0] sm:$0xff]
  %v90 = vld [vmem:[%s1 + $0xe8] sm:$0xff]
  %v91 = vld [vmem:[%s1 + $0xf0] sm:$0xff]
  %v92 = vld [vmem:[%s1 + $0xf8] sm:$0xff]
  %v93 = vld [vmem:[%s1 + $0x100] sm:$0xff]
  %v94 = vld [vmem:[%s1 + $0x108] sm:$0xff]
  %v95 = vld [vmem:[%s1 + $0x110] sm:$0xff]
  %v96 = vld [vmem:[%s1 + $0x118] sm:$0xff]
  %v97 = vld [vmem:[%s1 + $0x120] sm:$0xff]
  %v98 = vld [vmem:[%s1 + $0x128] sm:$0xff]
  %v99 = vld [vmem:[%s1 + $0x130] sm:$0xff]
  %v100 = vld [vmem:[%s1 + $0x138] sm:$0xff]
  %v101 = vld [vmem:[%s1 + $0x140] sm:$0xff]
  %v102 = vld [vmem:[%s1 + $0x148] sm:$0xff]
  %v103 = vld [vmem:[%s1 + $0x150] sm:$0xff]
  %v104 = vld [vmem:[%s1 + $0x158] sm:$0xff]
  %v105 = vadd.f32 %v17, %v61
  %v106 = vadd.f32 %v18, %v62
  %v107 = vadd.f32 %v19, %v63
  %v108 = vadd.f32 %v20, %v64
  %v109 = vadd.f32 %v21, %v65
  %v110 = vadd.f32 %v22, %v66
  %v111 = vadd.f32 %v23, %v67
  %v112 = vadd.f32 %v24, %v68
  %v113 = vadd.f32 %v25, %v69
  %v114 = vadd.f32 %v26, %v70
  %v115 = vadd.f32 %v27, %v71
  %v116 = vadd.f32 %v28, %v72
  %v117 = vadd.f32 %v29, %v73
  %v118 = vadd.f32 %v30, %v74
  %v119 = vadd.f32 %v31, %v75
  %v120 = vadd.f32 %v32, %v76
  %v121 = vadd.f32 %v33, %v77
  %v122 = vadd.f32 %v34, %v78
  %v123 = vadd.f32 %v35, %v79
  %v124 = vadd.f32 %v36, %v80
  %v125 = vadd.f32 %v37, %v81
  %v126 = vadd.f32 %v38, %v82
  %v127 = vadd.f32 %v39, %v83
  %v128 = vadd.f32 %v40, %v84
  %v129 = vadd.f32 %v41, %v85
  %v130 = vadd.f32 %v42, %v86
  %v131 = vadd.f32 %v43, %v87
  %v132 = vadd.f32 %v44, %v88
  %v133 = vadd.f32 %v45, %v89
  %v134 = vadd.f32 %v46, %v90
  %v135 = vadd.f32 %v47, %v91
  %v136 = vadd.f32 %v48, %v92
  %v137 = vadd.f32 %v49, %v93
  %v138 = vadd.f32 %v50, %v94
  %v139 = vadd.f32 %v51, %v95
  %v140 = vadd.f32 %v52, %v96
  %v141 = vadd.f32 %v53, %v97
  %v142 = vadd.f32 %v54, %v98
  %v143 = vadd.f32 %v55, %v99
  %v144 = vadd.f32 %v56, %v100
  %v145 = vadd.f32 %v57, %v101
  %v146 = vadd.f32 %v58, %v102
  %v147 = vadd.f32 %v59, %v103
  %v148 = vadd.f32 %v60, %v104
  %v149 = vadd.f32 %v105, %v106
  %150 = vadd.xlane.f32.xlu0 %v149
  %v151 = vpop.xlane.xlu0 %150
  %v152 = vadd.f32 %v107, %v108
  %153 = vadd.xlane.f32.xlu0 %v152
  %v154 = vpop.xlane.xlu0 %153
  %v155 = vadd.f32 %v109, %v110
  %156 = vadd.xlane.f32.xlu0 %v155
  %v157 = vpop.xlane.xlu0 %156
  %v158 = vadd.f32 %v111, %v112
  %159 = vadd.xlane.f32.xlu0 %v158
  %v160 = vpop.xlane.xlu0 %159
  %v161 = vadd.f32 %v113, %v114
  %162 = vadd.xlane.f32.xlu0 %v161
  %v163 = vpop.xlane.xlu0 %162
  %v164 = vadd.f32 %v115, %v116
  %165 = vadd.xlane.f32.xlu0 %v164
  %v166 = vpop.xlane.xlu0 %165
  %v167 = vadd.f32 %v117, %v118
  %168 = vadd.xlane.f32.xlu0 %v167
  %v169 = vpop.xlane.xlu0 %168
  %v170 = vadd.f32 %v119, %v120
  %171 = vadd.xlane.f32.xlu0 %v170
  %v172 = vpop.xlane.xlu0 %171
  %v173 = vadd.f32 %v121, %v122
  %174 = vadd.xlane.f32.xlu0 %v173
  %v175 = vpop.xlane.xlu0 %174
  %v176 = vadd.f32 %v123, %v124
  %177 = vadd.xlane.f32.xlu0 %v176
  %v178 = vpop.xlane.xlu0 %177
  %v179 = vadd.f32 %v125, %v126
  %180 = vadd.xlane.f32.xlu0 %v179
  %v181 = vpop.xlane.xlu0 %180
  %v182 = vadd.f32 %v127, %v128
  %183 = vadd.xlane.f32.xlu0 %v182
  %v184 = vpop.xlane.xlu0 %183
  %v185 = vadd.f32 %v129, %v130
  %186 = vadd.xlane.f32.xlu0 %v185
  %v187 = vpop.xlane.xlu0 %186
  %v188 = vadd.f32 %v131, %v132
  %189 = vadd.xlane.f32.xlu0 %v188
  %v190 = vpop.xlane.xlu0 %189
  %v191 = vadd.f32 %v133, %v134
  %192 = vadd.xlane.f32.xlu0 %v191
  %v193 = vpop.xlane.xlu0 %192
  %v194 = vadd.f32 %v135, %v136
  %195 = vadd.xlane.f32.xlu0 %v194
  %v196 = vpop.xlane.xlu0 %195
  %v197 = vadd.f32 %v137, %v138
  %198 = vadd.xlane.f32.xlu0 %v197
  %v199 = vpop.xlane.xlu0 %198
  %v200 = vadd.f32 %v139, %v140
  %201 = vadd.xlane.f32.xlu0 %v200
  %v202 = vpop.xlane.xlu0 %201
  %v203 = vadd.f32 %v141, %v142
  %204 = vadd.xlane.f32.xlu0 %v203
  %v205 = vpop.xlane.xlu0 %204
  %v206 = vadd.f32 %v143, %v144
  %207 = vadd.xlane.f32.xlu0 %v206
  %v208 = vpop.xlane.xlu0 %207
  %v209 = vadd.f32 %v145, %v146
  %210 = vadd.xlane.f32.xlu0 %v209
  %v211 = vpop.xlane.xlu0 %210
  %v212 = vadd.f32 %v147, %v148
  %213 = vadd.xlane.f32.xlu0 %v212
  %v214 = vpop.xlane.xlu0 %213
  %v215 = vrcp.pop 256.0
  %v216 = vmul.f32 %v151, %v215
  %v217 = vmul.f32 %v154, %v215
  %v218 = vmul.f32 %v157, %v215
  %v219 = vmul.f32 %v160, %v215
  %v220 = vmul.f32 %v163, %v215
  %v221 = vmul.f32 %v166, %v215
  %v222 = vmul.f32 %v169, %v215
  %v223 = vmul.f32 %v172, %v215
  %v224 = vmul.f32 %v175, %v215
  %v225 = vmul.f32 %v178, %v215
  %v226 = vmul.f32 %v181, %v215
  %v227 = vmul.f32 %v184, %v215
  %v228 = vmul.f32 %v187, %v215
  %v229 = vmul.f32 %v190, %v215
  %v230 = vmul.f32 %v193, %v215
  %v231 = vmul.f32 %v196, %v215
  %v232 = vmul.f32 %v199, %v215
  %v233 = vmul.f32 %v202, %v215
  %v234 = vmul.f32 %v205, %v215
  %v235 = vmul.f32 %v208, %v215
  %v236 = vmul.f32 %v211, %v215
  %v237 = vmul.f32 %v214, %v215
  %v238 = vsub.f32 %v105, %v216
  %v239 = vsub.f32 %v106, %v216
  %v240 = vsub.f32 %v107, %v217
  %v241 = vsub.f32 %v108, %v217
  %v242 = vsub.f32 %v109, %v218
  %v243 = vsub.f32 %v110, %v218
  %v244 = vsub.f32 %v111, %v219
  %v245 = vsub.f32 %v112, %v219
  %v246 = vsub.f32 %v113, %v220
  %v247 = vsub.f32 %v114, %v220
  %v248 = vsub.f32 %v115, %v221
  %v249 = vsub.f32 %v116, %v221
  %v250 = vsub.f32 %v117, %v222
  %v251 = vsub.f32 %v118, %v222
  %v252 = vsub.f32 %v119, %v223
  %v253 = vsub.f32 %v120, %v223
  %v254 = vsub.f32 %v121, %v224
  %v255 = vsub.f32 %v122, %v224
  %v256 = vsub.f32 %v123, %v225
  %v257 = vsub.f32 %v124, %v225
  %v258 = vsub.f32 %v125, %v226
  %v259 = vsub.f32 %v126, %v226
  %v260 = vsub.f32 %v127, %v227
  %v261 = vsub.f32 %v128, %v227
  %v262 = vsub.f32 %v129, %v228
  %v263 = vsub.f32 %v130, %v228
  %v264 = vsub.f32 %v131, %v229
  %v265 = vsub.f32 %v132, %v229
  %v266 = vsub.f32 %v133, %v230
  %v267 = vsub.f32 %v134, %v230
  %v268 = vsub.f32 %v135, %v231
  %v269 = vsub.f32 %v136, %v231
  %v270 = vsub.f32 %v137, %v232
  %v271 = vsub.f32 %v138, %v232
  %v272 = vsub.f32 %v139, %v233
  %v273 = vsub.f32 %v140, %v233
  %v274 = vsub.f32 %v141, %v234
  %v275 = vsub.f32 %v142, %v234
  %v276 = vsub.f32 %v143, %v235
  %v277 = vsub.f32 %v144, %v235
  %v278 = vsub.f32 %v145, %v236
  %v279 = vsub.f32 %v146, %v236
  %v280 = vsub.f32 %v147, %v237
  %v281 = vsub.f32 %v148, %v237
  %v282 = vmul.f32 %v238, %v238
  %v283 = vmul.f32 %v239, %v239
  %v284 = vmul.f32 %v240, %v240
  %v285 = vmul.f32 %v241, %v241
  %v286 = vmul.f32 %v242, %v242
  %v287 = vmul.f32 %v243, %v243
  %v288 = vmul.f32 %v244, %v244
  %v289 = vmul.f32 %v245, %v245
  %v290 = vmul.f32 %v246, %v246
  %v291 = vmul.f32 %v247, %v247
  %v292 = vmul.f32 %v248, %v248
  %v293 = vmul.f32 %v249, %v249
  %v294 = vmul.f32 %v250, %v250
  %v295 = vmul.f32 %v251, %v251
  %v296 = vmul.f32 %v252, %v252
  %v297 = vmul.f32 %v253, %v253
  %v298 = vmul.f32 %v254, %v254
  %v299 = vmul.f32 %v255, %v255
  %v300 = vmul.f32 %v256, %v256
  %v301 = vmul.f32 %v257, %v257
  %v302 = vmul.f32 %v258, %v258
  %v303 = vmul.f32 %v259, %v259
  %v304 = vmul.f32 %v260, %v260
  %v305 = vmul.f32 %v261, %v261
  %v306 = vmul.f32 %v262, %v262
  %v307 = vmul.f32 %v263, %v263
  %v308 = vmul.f32 %v264, %v264
  %v309 = vmul.f32 %v265, %v265
  %v310 = vmul.f32 %v266, %v266
  %v311 = vmul.f32 %v267, %v267
  %v312 = vmul.f32 %v268, %v268
  %v313 = vmul.f32 %v269, %v269
  %v314 = vmul.f32 %v270, %v270
  %v315 = vmul.f32 %v271, %v271
  %v316 = vmul.f32 %v272, %v272
  %v317 = vmul.f32 %v273, %v273
  %v318 = vmul.f32 %v274, %v274
  %v319 = vmul.f32 %v275, %v275
  %v320 = vmul.f32 %v276, %v276
  %v321 = vmul.f32 %v277, %v277
  %v322 = vmul.f32 %v278, %v278
  %v323 = vmul.f32 %v279, %v279
  %v324 = vmul.f32 %v280, %v280
  %v325 = vmul.f32 %v281, %v281
  %v326 = vadd.f32 %v282, %v283
  %327 = vadd.xlane.f32.xlu0 %v326
  %v328 = vpop.xlane.xlu0 %327
  %v329 = vadd.f32 %v284, %v285
  %330 = vadd.xlane.f32.xlu0 %v329
  %v331 = vpop.xlane.xlu0 %330
  %v332 = vadd.f32 %v286, %v287
  %333 = vadd.xlane.f32.xlu0 %v332
  %v334 = vpop.xlane.xlu0 %333
  %v335 = vadd.f32 %v288, %v289
  %336 = vadd.xlane.f32.xlu0 %v335
  %v337 = vpop.xlane.xlu0 %336
  %v338 = vadd.f32 %v290, %v291
  %339 = vadd.xlane.f32.xlu0 %v338
  %v340 = vpop.xlane.xlu0 %339
  %v341 = vadd.f32 %v292, %v293
  %342 = vadd.xlane.f32.xlu0 %v341
  %v343 = vpop.xlane.xlu0 %342
  %v344 = vadd.f32 %v294, %v295
  %345 = vadd.xlane.f32.xlu0 %v344
  %v346 = vpop.xlane.xlu0 %345
  %v347 = vadd.f32 %v296, %v297
  %348 = vadd.xlane.f32.xlu0 %v347
  %v349 = vpop.xlane.xlu0 %348
  %v350 = vadd.f32 %v298, %v299
  %351 = vadd.xlane.f32.xlu0 %v350
  %v352 = vpop.xlane.xlu0 %351
  %v353 = vadd.f32 %v300, %v301
  %354 = vadd.xlane.f32.xlu0 %v353
  %v355 = vpop.xlane.xlu0 %354
  %v356 = vadd.f32 %v302, %v303
  %357 = vadd.xlane.f32.xlu0 %v356
  %v358 = vpop.xlane.xlu0 %357
  %v359 = vadd.f32 %v304, %v305
  %360 = vadd.xlane.f32.xlu0 %v359
  %v361 = vpop.xlane.xlu0 %360
  %v362 = vadd.f32 %v306, %v307
  %363 = vadd.xlane.f32.xlu0 %v362
  %v364 = vpop.xlane.xlu0 %363
  %v365 = vadd.f32 %v308, %v309
  %366 = vadd.xlane.f32.xlu0 %v365
  %v367 = vpop.xlane.xlu0 %366
  %v368 = vadd.f32 %v310, %v311
  %369 = vadd.xlane.f32.xlu0 %v368
  %v370 = vpop.xlane.xlu0 %369
  %v371 = vadd.f32 %v312, %v313
  %372 = vadd.xlane.f32.xlu0 %v371
  %v373 = vpop.xlane.xlu0 %372
  %v374 = vadd.f32 %v314, %v315
  %375 = vadd.xlane.f32.xlu0 %v374
  %v376 = vpop.xlane.xlu0 %375
  %v377 = vadd.f32 %v316, %v317
  %378 = vadd.xlane.f32.xlu0 %v377
  %v379 = vpop.xlane.xlu0 %378
  %v380 = vadd.f32 %v318, %v319
  %381 = vadd.xlane.f32.xlu0 %v380
  %v382 = vpop.xlane.xlu0 %381
  %v383 = vadd.f32 %v320, %v321
  %384 = vadd.xlane.f32.xlu0 %v383
  %v385 = vpop.xlane.xlu0 %384
  %v386 = vadd.f32 %v322, %v323
  %387 = vadd.xlane.f32.xlu0 %v386
  %v388 = vpop.xlane.xlu0 %387
  %v389 = vadd.f32 %v324, %v325
  %390 = vadd.xlane.f32.xlu0 %v389
  %v391 = vpop.xlane.xlu0 %390
  %v392 = vmul.f32 %v328, %v215
  %v393 = vmul.f32 %v331, %v215
  %v394 = vmul.f32 %v334, %v215
  %v395 = vmul.f32 %v337, %v215
  %v396 = vmul.f32 %v340, %v215
  %v397 = vmul.f32 %v343, %v215
  %v398 = vmul.f32 %v346, %v215
  %v399 = vmul.f32 %v349, %v215
  %v400 = vmul.f32 %v352, %v215
  %v401 = vmul.f32 %v355, %v215
  %v402 = vmul.f32 %v358, %v215
  %v403 = vmul.f32 %v361, %v215
  %v404 = vmul.f32 %v364, %v215
  %v405 = vmul.f32 %v367, %v215
  %v406 = vmul.f32 %v370, %v215
  %v407 = vmul.f32 %v373, %v215
  %v408 = vmul.f32 %v376, %v215
  %v409 = vmul.f32 %v379, %v215
  %v410 = vmul.f32 %v382, %v215
  %v411 = vmul.f32 %v385, %v215
  %v412 = vmul.f32 %v388, %v215
  %v413 = vmul.f32 %v391, %v215
  %v414 = vadd.f32 %v392, 1e-05
  %v415 = vadd.f32 %v393, 1e-05
  %v416 = vadd.f32 %v394, 1e-05
  %v417 = vadd.f32 %v395, 1e-05
  %v418 = vadd.f32 %v396, 1e-05
  %v419 = vadd.f32 %v397, 1e-05
  %v420 = vadd.f32 %v398, 1e-05
  %v421 = vadd.f32 %v399, 1e-05
  %v422 = vadd.f32 %v400, 1e-05
  %v423 = vadd.f32 %v401, 1e-05
  %v424 = vadd.f32 %v402, 1e-05
  %v425 = vadd.f32 %v403, 1e-05
  %v426 = vadd.f32 %v404, 1e-05
  %v427 = vadd.f32 %v405, 1e-05
  %v428 = vadd.f32 %v406, 1e-05
  %v429 = vadd.f32 %v407, 1e-05
  %v430 = vadd.f32 %v408, 1e-05
  %v431 = vadd.f32 %v409, 1e-05
  %v432 = vadd.f32 %v410, 1e-05
  %v433 = vadd.f32 %v411, 1e-05
  %v434 = vadd.f32 %v412, 1e-05
  %v435 = vadd.f32 %v413, 1e-05
  %v436 = vrsqrt.pop %v414
  %v437 = vrsqrt.pop %v415
  %v438 = vrsqrt.pop %v416
  %v439 = vrsqrt.pop %v417
  %v440 = vrsqrt.pop %v418
  %v441 = vrsqrt.pop %v419
  %v442 = vrsqrt.pop %v420
  %v443 = vrsqrt.pop %v421
  %v444 = vrsqrt.pop %v422
  %v445 = vrsqrt.pop %v423
  %v446 = vrsqrt.pop %v424
  %v447 = vrsqrt.pop %v425
  %v448 = vrsqrt.pop %v426
  %v449 = vrsqrt.pop %v427
  %v450 = vrsqrt.pop %v428
  %v451 = vrsqrt.pop %v429
  %v452 = vrsqrt.pop %v430
  %v453 = vrsqrt.pop %v431
  %v454 = vrsqrt.pop %v432
  %v455 = vrsqrt.pop %v433
  %v456 = vrsqrt.pop %v434
  %v457 = vrsqrt.pop %v435
  %v458 = vmul.f32 %v238, %v436
  %v459 = vmul.f32 %v239, %v436
  %v460 = vmul.f32 %v240, %v437
  %v461 = vmul.f32 %v241, %v437
  %v462 = vmul.f32 %v242, %v438
  %v463 = vmul.f32 %v243, %v438
  %v464 = vmul.f32 %v244, %v439
  %v465 = vmul.f32 %v245, %v439
  %v466 = vmul.f32 %v246, %v440
  %v467 = vmul.f32 %v247, %v440
  %v468 = vmul.f32 %v248, %v441
  %v469 = vmul.f32 %v249, %v441
  %v470 = vmul.f32 %v250, %v442
  %v471 = vmul.f32 %v251, %v442
  %v472 = vmul.f32 %v252, %v443
  %v473 = vmul.f32 %v253, %v443
  %v474 = vmul.f32 %v254, %v444
  %v475 = vmul.f32 %v255, %v444
  %v476 = vmul.f32 %v256, %v445
  %v477 = vmul.f32 %v257, %v445
  %v478 = vmul.f32 %v258, %v446
  %v479 = vmul.f32 %v259, %v446
  %v480 = vmul.f32 %v260, %v447
  %v481 = vmul.f32 %v261, %v447
  %v482 = vmul.f32 %v262, %v448
  %v483 = vmul.f32 %v263, %v448
  %v484 = vmul.f32 %v264, %v449
  %v485 = vmul.f32 %v265, %v449
  %v486 = vmul.f32 %v266, %v450
  %v487 = vmul.f32 %v267, %v450
  %v488 = vmul.f32 %v268, %v451
  %v489 = vmul.f32 %v269, %v451
  %v490 = vmul.f32 %v270, %v452
  %v491 = vmul.f32 %v271, %v452
  %v492 = vmul.f32 %v272, %v453
  %v493 = vmul.f32 %v273, %v453
  %v494 = vmul.f32 %v274, %v454
  %v495 = vmul.f32 %v275, %v454
  %v496 = vmul.f32 %v276, %v455
  %v497 = vmul.f32 %v277, %v455
  %v498 = vmul.f32 %v278, %v456
  %v499 = vmul.f32 %v279, %v456
  %v500 = vmul.f32 %v280, %v457
  %v501 = vmul.f32 %v281, %v457
  %v502 = vld [vmem:[%s2] sm:$0x3]
  %v504 = vlaneseq
  %v505 = vshrl.u32 %v504, 7
  %v506 = vsub.s32 0, %v505
  %v507 = vrot.slane %v502, %v506
  %v508 = vlaneseq
  %v509 = vshrl.u32 %v508, 7
  %v510 = vsub.s32 1, %v509
  %v511 = vrot.slane %v502, %v510
  %v514 = vmul.f32 %v458, %v507
  %v515 = vmul.f32 %v459, %v511
  %v516 = vmul.f32 %v460, %v507
  %v517 = vmul.f32 %v461, %v511
  %v518 = vmul.f32 %v462, %v507
  %v519 = vmul.f32 %v463, %v511
  %v520 = vmul.f32 %v464, %v507
  %v521 = vmul.f32 %v465, %v511
  %v522 = vmul.f32 %v466, %v507
  %v523 = vmul.f32 %v467, %v511
  %v524 = vmul.f32 %v468, %v507
  %v525 = vmul.f32 %v469, %v511
  %v526 = vmul.f32 %v470, %v507
  %v527 = vmul.f32 %v471, %v511
  %v528 = vmul.f32 %v472, %v507
  %v529 = vmul.f32 %v473, %v511
  %v530 = vmul.f32 %v474, %v507
  %v531 = vmul.f32 %v475, %v511
  %v532 = vmul.f32 %v476, %v507
  %v533 = vmul.f32 %v477, %v511
  %v534 = vmul.f32 %v478, %v507
  %v535 = vmul.f32 %v479, %v511
  %v536 = vmul.f32 %v480, %v507
  %v537 = vmul.f32 %v481, %v511
  %v538 = vmul.f32 %v482, %v507
  %v539 = vmul.f32 %v483, %v511
  %v540 = vmul.f32 %v484, %v507
  %v541 = vmul.f32 %v485, %v511
  %v542 = vmul.f32 %v486, %v507
  %v543 = vmul.f32 %v487, %v511
  %v544 = vmul.f32 %v488, %v507
  %v545 = vmul.f32 %v489, %v511
  %v546 = vmul.f32 %v490, %v507
  %v547 = vmul.f32 %v491, %v511
  %v548 = vmul.f32 %v492, %v507
  %v549 = vmul.f32 %v493, %v511
  %v550 = vmul.f32 %v494, %v507
  %v551 = vmul.f32 %v495, %v511
  %v552 = vmul.f32 %v496, %v507
  %v553 = vmul.f32 %v497, %v511
  %v554 = vmul.f32 %v498, %v507
  %v555 = vmul.f32 %v499, %v511
  %v556 = vmul.f32 %v500, %v507
  %v557 = vmul.f32 %v501, %v511
  %v558 = vld [vmem:[%s3] sm:$0x3]
  %v560 = vlaneseq
  %v561 = vshrl.u32 %v560, 7
  %v562 = vsub.s32 0, %v561
  %v563 = vrot.slane %v558, %v562
  %v564 = vlaneseq
  %v565 = vshrl.u32 %v564, 7
  %v566 = vsub.s32 1, %v565
  %v567 = vrot.slane %v558, %v566
  %v570 = vadd.f32 %v514, %v563
  %v571 = vadd.f32 %v515, %v567
  %v572 = vadd.f32 %v516, %v563
  %v573 = vadd.f32 %v517, %v567
  %v574 = vadd.f32 %v518, %v563
  %v575 = vadd.f32 %v519, %v567
  %v576 = vadd.f32 %v520, %v563
  %v577 = vadd.f32 %v521, %v567
  %v578 = vadd.f32 %v522, %v563
  %v579 = vadd.f32 %v523, %v567
  %v580 = vadd.f32 %v524, %v563
  %v581 = vadd.f32 %v525, %v567
  %v582 = vadd.f32 %v526, %v563
  %v583 = vadd.f32 %v527, %v567
  %v584 = vadd.f32 %v528, %v563
  %v585 = vadd.f32 %v529, %v567
  %v586 = vadd.f32 %v530, %v563
  %v587 = vadd.f32 %v531, %v567
  %v588 = vadd.f32 %v532, %v563
  %v589 = vadd.f32 %v533, %v567
  %v590 = vadd.f32 %v534, %v563
  %v591 = vadd.f32 %v535, %v567
  %v592 = vadd.f32 %v536, %v563
  %v593 = vadd.f32 %v537, %v567
  %v594 = vadd.f32 %v538, %v563
  %v595 = vadd.f32 %v539, %v567
  %v596 = vadd.f32 %v540, %v563
  %v597 = vadd.f32 %v541, %v567
  %v598 = vadd.f32 %v542, %v563
  %v599 = vadd.f32 %v543, %v567
  %v600 = vadd.f32 %v544, %v563
  %v601 = vadd.f32 %v545, %v567
  %v602 = vadd.f32 %v546, %v563
  %v603 = vadd.f32 %v547, %v567
  %v604 = vadd.f32 %v548, %v563
  %v605 = vadd.f32 %v549, %v567
  %v606 = vadd.f32 %v550, %v563
  %v607 = vadd.f32 %v551, %v567
  %v608 = vadd.f32 %v552, %v563
  %v609 = vadd.f32 %v553, %v567
  %v610 = vadd.f32 %v554, %v563
  %v611 = vadd.f32 %v555, %v567
  %v612 = vadd.f32 %v556, %v563
  %v613 = vadd.f32 %v557, %v567
  %614 = vst [vmem:[%s4] sm:$0xff] %v570
  %615 = vst [vmem:[%s4 + $0x8] sm:$0xff] %v571
  %616 = vst [vmem:[%s4 + $0x10] sm:$0xff] %v572
  %617 = vst [vmem:[%s4 + $0x18] sm:$0xff] %v573
  %618 = vst [vmem:[%s4 + $0x20] sm:$0xff] %v574
  %619 = vst [vmem:[%s4 + $0x28] sm:$0xff] %v575
  %620 = vst [vmem:[%s4 + $0x30] sm:$0xff] %v576
  %621 = vst [vmem:[%s4 + $0x38] sm:$0xff] %v577
  %622 = vst [vmem:[%s4 + $0x40] sm:$0xff] %v578
  %623 = vst [vmem:[%s4 + $0x48] sm:$0xff] %v579
  %624 = vst [vmem:[%s4 + $0x50] sm:$0xff] %v580
  %625 = vst [vmem:[%s4 + $0x58] sm:$0xff] %v581
  %626 = vst [vmem:[%s4 + $0x60] sm:$0xff] %v582
  %627 = vst [vmem:[%s4 + $0x68] sm:$0xff] %v583
  %628 = vst [vmem:[%s4 + $0x70] sm:$0xff] %v584
  %629 = vst [vmem:[%s4 + $0x78] sm:$0xff] %v585
  %630 = vst [vmem:[%s4 + $0x80] sm:$0xff] %v586
  %631 = vst [vmem:[%s4 + $0x88] sm:$0xff] %v587
  %632 = vst [vmem:[%s4 + $0x90] sm:$0xff] %v588
  %633 = vst [vmem:[%s4 + $0x98] sm:$0xff] %v589
  %634 = vst [vmem:[%s4 + $0xa0] sm:$0xff] %v590
  %635 = vst [vmem:[%s4 + $0xa8] sm:$0xff] %v591
  %636 = vst [vmem:[%s4 + $0xb0] sm:$0xff] %v592
  %637 = vst [vmem:[%s4 + $0xb8] sm:$0xff] %v593
  %638 = vst [vmem:[%s4 + $0xc0] sm:$0xff] %v594
  %639 = vst [vmem:[%s4 + $0xc8] sm:$0xff] %v595
  %640 = vst [vmem:[%s4 + $0xd0] sm:$0xff] %v596
  %641 = vst [vmem:[%s4 + $0xd8] sm:$0xff] %v597
  %642 = vst [vmem:[%s4 + $0xe0] sm:$0xff] %v598
  %643 = vst [vmem:[%s4 + $0xe8] sm:$0xff] %v599
  %644 = vst [vmem:[%s4 + $0xf0] sm:$0xff] %v600
  %645 = vst [vmem:[%s4 + $0xf8] sm:$0xff] %v601
  %646 = vst [vmem:[%s4 + $0x100] sm:$0xff] %v602
  %647 = vst [vmem:[%s4 + $0x108] sm:$0xff] %v603
  %648 = vst [vmem:[%s4 + $0x110] sm:$0xff] %v604
  %649 = vst [vmem:[%s4 + $0x118] sm:$0xff] %v605
  %650 = vst [vmem:[%s4 + $0x120] sm:$0xff] %v606
  %651 = vst [vmem:[%s4 + $0x128] sm:$0xff] %v607
  %652 = vst [vmem:[%s4 + $0x130] sm:$0xff] %v608
  %653 = vst [vmem:[%s4 + $0x138] sm:$0xff] %v609
  %654 = vst [vmem:[%s4 + $0x140] sm:$0xff] %v610
  %655 = vst [vmem:[%s4 + $0x148] sm:$0xff] %v611
  %656 = vst [vmem:[%s4 + $0x150] sm:$0xff] %v612
  %657 = vst [vmem:[%s4 + $0x158] sm:$0xff] %v613
  // Predicated region
  $region18: #{depth_aware_transformer_forward.43} parent=0 // pred_check
    _
  $region19: #{depth_aware_transformer_forward.43} parent=0 // pred_check_branch
    %659 = sbr.rel (0) target = $region21
  $region20: #{depth_aware_transformer_forward.43} parent=0 // pred_region
    _
  $region21: #{depth_aware_transformer_forward.43} parent=0 // pred_fallthru
    _
  // Predicated region
  $region22: #{depth_aware_transformer_forward.43} parent=0 // pred_check
    _
  $region23: #{depth_aware_transformer_forward.43} parent=0 // pred_check_branch
    %661 = sbr.rel (0) target = $region25
  $region24: #{depth_aware_transformer_forward.43} parent=0 // pred_region
    _
  $region25: #{depth_aware_transformer_forward.43} parent=0 // pred_fallthru
    _

// kernel: depth_aware_transformer_forward.44
$region0: #{depth_aware_transformer_forward.44}
  #allocation0 [shape = 'u32[]', space=smem, size = 0x4, offset = 0x4, fixed_abs, tag = 'smem constant byte address 0x4 - core index']
  #allocation1 [shape = 'u32[144,128]{1,0:T(1,128)}', space=vmem, size = 0x12000, scoped, tag = 'internal scratch']
  %s0 = inlined_call_operand.vmem [shape: f32[176,256], index: 0, kind: input, shape index: {}]
  %s1 = inlined_call_operand.vmem [shape: bf16[256,256], index: 1, kind: input, shape index: {}]
  %s2 = inlined_call_operand.vmem [shape: f32[1,256], index: 2, kind: input, shape index: {}]
  %s3 = inlined_call_operand.vmem [shape: bf16[256,256], index: 3, kind: input, shape index: {}]
  %s4 = inlined_call_operand.vmem [shape: f32[1,256], index: 4, kind: input, shape index: {}]
  %s5 = inlined_call_operand.vmem [shape: f32[1,256], index: 5, kind: input, shape index: {}]
  %s6 = inlined_call_operand.vmem [shape: f32[1,256], index: 6, kind: input, shape index: {}]
  %s7 = inlined_call_operand.vmem [shape: f32[176,256], index: 7, kind: output, shape index: {}]
  %s8 = sld [smem:[#allocation0]]
  $region38: #{depth_aware_transformer_forward.44} parent=0
    _
  %s10 = ssub.s32 1, %s8
  %s11 = scalar_select 0, %s10, %s8
  // Predicated region
  $region2: #{depth_aware_transformer_forward.44} parent=0 // pred_check
    _
  $region3: #{depth_aware_transformer_forward.44} parent=0 // pred_check_branch
    %13 = sbr.rel (0) target = $region5
  $region4: #{depth_aware_transformer_forward.44} parent=0 // pred_region
    _
  $region5: #{depth_aware_transformer_forward.44} parent=0 // pred_fallthru
    _
  // Predicated region
  $region6: #{depth_aware_transformer_forward.44} parent=0 // pred_check
    _
  $region7: #{depth_aware_transformer_forward.44} parent=0 // pred_check_branch
    %15 = sbr.rel (0) target = $region9
  $region8: #{depth_aware_transformer_forward.44} parent=0 // pred_region
    _
  $region9: #{depth_aware_transformer_forward.44} parent=0 // pred_fallthru
    _
  // Predicated region
  $region10: #{depth_aware_transformer_forward.44} parent=0 // pred_check
    _
  $region11: #{depth_aware_transformer_forward.44} parent=0 // pred_check_branch
    %17 = sbr.rel (0) target = $region13
  $region12: #{depth_aware_transformer_forward.44} parent=0 // pred_region
    _
  $region13: #{depth_aware_transformer_forward.44} parent=0 // pred_fallthru
    _
  // Predicated region
  $region14: #{depth_aware_transformer_forward.44} parent=0 // pred_check
    _
  $region15: #{depth_aware_transformer_forward.44} parent=0 // pred_check_branch
    %19 = sbr.rel (0) target = $region17
  $region16: #{depth_aware_transformer_forward.44} parent=0 // pred_region
    _
  $region17: #{depth_aware_transformer_forward.44} parent=0 // pred_fallthru
    _
  // Predicated region
  $region18: #{depth_aware_transformer_forward.44} parent=0 // pred_check
    _
  $region19: #{depth_aware_transformer_forward.44} parent=0 // pred_check_branch
    %21 = sbr.rel (0) target = $region21
  $region20: #{depth_aware_transformer_forward.44} parent=0 // pred_region
    _
  $region21: #{depth_aware_transformer_forward.44} parent=0 // pred_fallthru
    _
  // Predicated region
  $region22: #{depth_aware_transformer_forward.44} parent=0 // pred_check
    _
  $region23: #{depth_aware_transformer_forward.44} parent=0 // pred_check_branch
    %23 = sbr.rel (0) target = $region25
  $region24: #{depth_aware_transformer_forward.44} parent=0 // pred_region
    _
  $region25: #{depth_aware_transformer_forward.44} parent=0 // pred_fallthru
    _
  // Predicated region
  $region26: #{depth_aware_transformer_forward.44} parent=0 // pred_check
    _
  $region27: #{depth_aware_transformer_forward.44} parent=0 // pred_check_branch
    %25 = sbr.rel (0) target = $region29
  $region28: #{depth_aware_transformer_forward.44} parent=0 // pred_region
    _
  $region29: #{depth_aware_transformer_forward.44} parent=0 // pred_fallthru
    _
  %v26 = vld [vmem:[%s0] sm:$0xff]
  %v27 = vld [vmem:[%s0 + $0x8] sm:$0xff]
  %v28 = vld [vmem:[%s0 + $0x10] sm:$0xff]
  %v29 = vld [vmem:[%s0 + $0x18] sm:$0xff]
  %v30 = vld [vmem:[%s0 + $0x20] sm:$0xff]
  %v31 = vld [vmem:[%s0 + $0x28] sm:$0xff]
  %v32 = vld [vmem:[%s0 + $0x30] sm:$0xff]
  %v33 = vld [vmem:[%s0 + $0x38] sm:$0xff]
  %v34 = vld [vmem:[%s0 + $0x40] sm:$0xff]
  %v35 = vld [vmem:[%s0 + $0x48] sm:$0xff]
  %v36 = vld [vmem:[%s0 + $0x50] sm:$0xff]
  %v37 = vld [vmem:[%s0 + $0x58] sm:$0xff]
  %v38 = vld [vmem:[%s0 + $0x60] sm:$0xff]
  %v39 = vld [vmem:[%s0 + $0x68] sm:$0xff]
  %v40 = vld [vmem:[%s0 + $0x70] sm:$0xff]
  %v41 = vld [vmem:[%s0 + $0x78] sm:$0xff]
  %v42 = vld [vmem:[%s0 + $0x80] sm:$0xff]
  %v43 = vld [vmem:[%s0 + $0x88] sm:$0xff]
  %v44 = vld [vmem:[%s0 + $0x90] sm:$0xff]
  %v45 = vld [vmem:[%s0 + $0x98] sm:$0xff]
  %v46 = vld [vmem:[%s0 + $0xa0] sm:$0xff]
  %v47 = vld [vmem:[%s0 + $0xa8] sm:$0xff]
  %v48 = vld [vmem:[%s0 + $0xb0] sm:$0xff]
  %v49 = vld [vmem:[%s0 + $0xb8] sm:$0xff]
  %v50 = vld [vmem:[%s0 + $0xc0] sm:$0xff]
  %v51 = vld [vmem:[%s0 + $0xc8] sm:$0xff]
  %v52 = vld [vmem:[%s0 + $0xd0] sm:$0xff]
  %v53 = vld [vmem:[%s0 + $0xd8] sm:$0xff]
  %v54 = vld [vmem:[%s0 + $0xe0] sm:$0xff]
  %v55 = vld [vmem:[%s0 + $0xe8] sm:$0xff]
  %v56 = vld [vmem:[%s0 + $0xf0] sm:$0xff]
  %v57 = vld [vmem:[%s0 + $0xf8] sm:$0xff]
  %v58 = vld [vmem:[%s0 + $0x100] sm:$0xff]
  %v59 = vld [vmem:[%s0 + $0x108] sm:$0xff]
  %v60 = vld [vmem:[%s0 + $0x110] sm:$0xff]
  %v61 = vld [vmem:[%s0 + $0x118] sm:$0xff]
  %v62 = vld [vmem:[%s0 + $0x120] sm:$0xff]
  %v63 = vld [vmem:[%s0 + $0x128] sm:$0xff]
  %v64 = vld [vmem:[%s0 + $0x130] sm:$0xff]
  %v65 = vld [vmem:[%s0 + $0x138] sm:$0xff]
  %v66 = vld [vmem:[%s0 + $0x140] sm:$0xff]
  %v67 = vld [vmem:[%s0 + $0x148] sm:$0xff]
  %v68 = vld [vmem:[%s0 + $0x150] sm:$0xff]
  %v69 = vld [vmem:[%s0 + $0x158] sm:$0xff]
  %v70 = vpack.c.bf16 %v28, %v26
  %v71 = vpack.c.bf16 %v29, %v27
  %v72 = vpack.c.bf16 %v32, %v30
  %v73 = vpack.c.bf16 %v33, %v31
  %v74 = vpack.c.bf16 %v36, %v34
  %v75 = vpack.c.bf16 %v37, %v35
  %v76 = vpack.c.bf16 %v40, %v38
  %v77 = vpack.c.bf16 %v41, %v39
  %v78 = vpack.c.bf16 %v44, %v42
  %v79 = vpack.c.bf16 %v45, %v43
  %v80 = vpack.c.bf16 %v48, %v46
  %v81 = vpack.c.bf16 %v49, %v47
  %v82 = vpack.c.bf16 %v52, %v50
  %v83 = vpack.c.bf16 %v53, %v51
  %v84 = vpack.c.bf16 %v56, %v54
  %v85 = vpack.c.bf16 %v57, %v55
  %v86 = vpack.c.bf16 %v60, %v58
  %v87 = vpack.c.bf16 %v61, %v59
  %v88 = vpack.c.bf16 %v64, %v62
  %v89 = vpack.c.bf16 %v65, %v63
  %v90 = vpack.c.bf16 %v68, %v66
  %v91 = vpack.c.bf16 %v69, %v67
  %v92 = vld [vmem:[%s1] sm:$0xff]
  %v93 = vld [vmem:[%s1 + $0x8] sm:$0xff]
  %v94 = vld [vmem:[%s1 + $0x10] sm:$0xff]
  %v95 = vld [vmem:[%s1 + $0x18] sm:$0xff]
  %v96 = vld [vmem:[%s1 + $0x20] sm:$0xff]
  %v97 = vld [vmem:[%s1 + $0x28] sm:$0xff]
  %v98 = vld [vmem:[%s1 + $0x30] sm:$0xff]
  %v99 = vld [vmem:[%s1 + $0x38] sm:$0xff]
  %v100 = vld [vmem:[%s1 + $0x40] sm:$0xff]
  %v101 = vld [vmem:[%s1 + $0x48] sm:$0xff]
  %v102 = vld [vmem:[%s1 + $0x50] sm:$0xff]
  %v103 = vld [vmem:[%s1 + $0x58] sm:$0xff]
  %v104 = vld [vmem:[%s1 + $0x60] sm:$0xff]
  %v105 = vld [vmem:[%s1 + $0x68] sm:$0xff]
  %v106 = vld [vmem:[%s1 + $0x70] sm:$0xff]
  %v107 = vld [vmem:[%s1 + $0x78] sm:$0xff]
  %v108 = vld [vmem:[%s1 + $0x80] sm:$0xff]
  %v109 = vld [vmem:[%s1 + $0x88] sm:$0xff]
  %v110 = vld [vmem:[%s1 + $0x90] sm:$0xff]
  %v111 = vld [vmem:[%s1 + $0x98] sm:$0xff]
  %v112 = vld [vmem:[%s1 + $0xa0] sm:$0xff]
  %v113 = vld [vmem:[%s1 + $0xa8] sm:$0xff]
  %v114 = vld [vmem:[%s1 + $0xb0] sm:$0xff]
  %v115 = vld [vmem:[%s1 + $0xb8] sm:$0xff]
  %v116 = vld [vmem:[%s1 + $0xc0] sm:$0xff]
  %v117 = vld [vmem:[%s1 + $0xc8] sm:$0xff]
  %v118 = vld [vmem:[%s1 + $0xd0] sm:$0xff]
  %v119 = vld [vmem:[%s1 + $0xd8] sm:$0xff]
  %v120 = vld [vmem:[%s1 + $0xe0] sm:$0xff]
  %v121 = vld [vmem:[%s1 + $0xe8] sm:$0xff]
  %v122 = vld [vmem:[%s1 + $0xf0] sm:$0xff]
  %v123 = vld [vmem:[%s1 + $0xf8] sm:$0xff]
  %v124 = vld [vmem:[%s2] sm:$0x3]
  %v126 = vlaneseq
  %v127 = vshrl.u32 %v126, 7
  %v128 = vsub.s32 0, %v127
  %v129 = vrot.slane %v124, %v128
  %v130 = vlaneseq
  %v131 = vshrl.u32 %v130, 7
  %v132 = vsub.s32 1, %v131
  %v133 = vrot.slane %v124, %v132
  %v168 = vunpack.c.l.b16 %v92
  %v169 = vunpack.c.h.b16 %v92
  %v170 = vunpack.c.l.b16 %v93
  %v171 = vunpack.c.h.b16 %v93
  %v172 = vunpack.c.l.b16 %v94
  %v173 = vunpack.c.h.b16 %v94
  %v174 = vunpack.c.l.b16 %v95
  %v175 = vunpack.c.h.b16 %v95
  %v176 = vunpack.c.l.b16 %v96
  %v177 = vunpack.c.h.b16 %v96
  %v178 = vunpack.c.l.b16 %v97
  %v179 = vunpack.c.h.b16 %v97
  %v180 = vunpack.c.l.b16 %v98
  %v181 = vunpack.c.h.b16 %v98
  %v182 = vunpack.c.l.b16 %v99
  %v183 = vunpack.c.h.b16 %v99
  %v184 = vunpack.c.l.b16 %v100
  %v185 = vunpack.c.h.b16 %v100
  %v186 = vunpack.c.l.b16 %v101
  %v187 = vunpack.c.h.b16 %v101
  %v188 = vunpack.c.l.b16 %v102
  %v189 = vunpack.c.h.b16 %v102
  %v190 = vunpack.c.l.b16 %v103
  %v191 = vunpack.c.h.b16 %v103
  %v192 = vunpack.c.l.b16 %v104
  %v193 = vunpack.c.h.b16 %v104
  %v194 = vunpack.c.l.b16 %v105
  %v195 = vunpack.c.h.b16 %v105
  %v196 = vunpack.c.l.b16 %v106
  %v197 = vunpack.c.h.b16 %v106
  %v198 = vunpack.c.l.b16 %v107
  %v199 = vunpack.c.h.b16 %v107
  %v200 = vunpack.c.l.b16 %v108
  %v201 = vunpack.c.h.b16 %v108
  %v202 = vunpack.c.l.b16 %v109
  %v203 = vunpack.c.h.b16 %v109
  %v204 = vunpack.c.l.b16 %v110
  %v205 = vunpack.c.h.b16 %v110
  %v206 = vunpack.c.l.b16 %v111
  %v207 = vunpack.c.h.b16 %v111
  %v208 = vunpack.c.l.b16 %v112
  %v209 = vunpack.c.h.b16 %v112
  %v210 = vunpack.c.l.b16 %v113
  %v211 = vunpack.c.h.b16 %v113
  %v212 = vunpack.c.l.b16 %v114
  %v213 = vunpack.c.h.b16 %v114
  %v214 = vunpack.c.l.b16 %v115
  %v215 = vunpack.c.h.b16 %v115
  %v216 = vunpack.c.l.b16 %v116
  %v217 = vunpack.c.h.b16 %v116
  %v218 = vunpack.c.l.b16 %v117
  %v219 = vunpack.c.h.b16 %v117
  %v220 = vunpack.c.l.b16 %v118
  %v221 = vunpack.c.h.b16 %v118
  %v222 = vunpack.c.l.b16 %v119
  %v223 = vunpack.c.h.b16 %v119
  %v224 = vunpack.c.l.b16 %v120
  %v225 = vunpack.c.h.b16 %v120
  %v226 = vunpack.c.l.b16 %v121
  %v227 = vunpack.c.h.b16 %v121
  %v228 = vunpack.c.l.b16 %v122
  %v229 = vunpack.c.h.b16 %v122
  %v230 = vunpack.c.l.b16 %v123
  %v231 = vunpack.c.h.b16 %v123
  %v232 = vpack.c.b16 %v170, %v168
  %v233 = vpack.c.b16 %v171, %v169
  %v234 = vpack.c.b16 %v174, %v172
  %v235 = vpack.c.b16 %v175, %v173
  %v236 = vpack.c.b16 %v178, %v176
  %v237 = vpack.c.b16 %v179, %v177
  %v238 = vpack.c.b16 %v182, %v180
  %v239 = vpack.c.b16 %v183, %v181
  %v240 = vpack.c.b16 %v186, %v184
  %v241 = vpack.c.b16 %v187, %v185
  %v242 = vpack.c.b16 %v190, %v188
  %v243 = vpack.c.b16 %v191, %v189
  %v244 = vpack.c.b16 %v194, %v192
  %v245 = vpack.c.b16 %v195, %v193
  %v246 = vpack.c.b16 %v198, %v196
  %v247 = vpack.c.b16 %v199, %v197
  %v248 = vpack.c.b16 %v202, %v200
  %v249 = vpack.c.b16 %v203, %v201
  %v250 = vpack.c.b16 %v206, %v204
  %v251 = vpack.c.b16 %v207, %v205
  %v252 = vpack.c.b16 %v210, %v208
  %v253 = vpack.c.b16 %v211, %v209
  %v254 = vpack.c.b16 %v214, %v212
  %v255 = vpack.c.b16 %v215, %v213
  %v256 = vpack.c.b16 %v218, %v216
  %v257 = vpack.c.b16 %v219, %v217
  %v258 = vpack.c.b16 %v222, %v220
  %v259 = vpack.c.b16 %v223, %v221
  %v260 = vpack.c.b16 %v226, %v224
  %v261 = vpack.c.b16 %v227, %v225
  %v262 = vpack.c.b16 %v230, %v228
  %v263 = vpack.c.b16 %v231, %v229
  %296 = vmatprep.subr.bf16.mxu0 %v233
  %297 = vmatpush1.bf16.msra.mxu0 %v232
  %298 = vmatprep.subr.bf16.mxu0 %v235
  %299 = vmatpush1.bf16.msra.mxu0 %v234
  %300 = vmatprep.subr.bf16.mxu0 %v237
  %301 = vmatpush1.bf16.msra.mxu0 %v236
  %302 = vmatprep.subr.bf16.mxu0 %v239
  %303 = vmatpush1.bf16.msra.mxu0 %v238
  %304 = vmatprep.subr.bf16.mxu0 %v241
  %305 = vmatpush1.bf16.msra.mxu0 %v240
  %306 = vmatprep.subr.bf16.mxu0 %v243
  %307 = vmatpush1.bf16.msra.mxu0 %v242
  %308 = vmatprep.subr.bf16.mxu0 %v245
  %309 = vmatpush1.bf16.msra.mxu0 %v244
  %310 = vmatprep.subr.bf16.mxu0 %v247
  %311 = vmatpush1.bf16.msra.mxu0 %v246
  %312 = vmatprep.subr.bf16.mxu0 %v249
  %313 = vmatpush1.bf16.msra.mxu0 %v248
  %314 = vmatprep.subr.bf16.mxu0 %v251
  %315 = vmatpush1.bf16.msra.mxu0 %v250
  %316 = vmatprep.subr.bf16.mxu0 %v253
  %317 = vmatpush1.bf16.msra.mxu0 %v252
  %318 = vmatprep.subr.bf16.mxu0 %v255
  %319 = vmatpush1.bf16.msra.mxu0 %v254
  %320 = vmatprep.subr.bf16.mxu0 %v257
  %321 = vmatpush1.bf16.msra.mxu0 %v256
  %322 = vmatprep.subr.bf16.mxu0 %v259
  %323 = vmatpush1.bf16.msra.mxu0 %v258
  %324 = vmatprep.subr.bf16.mxu0 %v261
  %325 = vmatpush1.bf16.msra.mxu0 %v260
  %326 = vmatprep.subr.bf16.mxu0 %v263
  %327 = vmatpush1.bf16.msra.mxu0 %v262
  %328 = vmatprep.mubr.bf16.mxu0 %v71
  %329 = vmatmul.mubr.bf16.gmra.mrb[0].mxu0 %v70
  %v330 = vpop.f32.mrb[0].mxu0
  %v331 = vadd.f32 %v129, %v330
  %v332 = vpop.f32.mrb[0].mxu0
  %v333 = vadd.f32 %v133, %v332
  %v334 = vpop.f32.mrb[0].mxu0
  %v335 = vadd.f32 %v129, %v334
  %v336 = vpop.f32.mrb[0].mxu0
  %v337 = vadd.f32 %v133, %v336
  %338 = vmatprep.mubr.bf16.mxu0 %v73
  %339 = vmatmul.mubr.bf16.gmra.mrb[0].mxu0 %v72
  %v340 = vpop.f32.mrb[0].mxu0
  %v341 = vadd.f32 %v129, %v340
  %v342 = vpop.f32.mrb[0].mxu0
  %v343 = vadd.f32 %v133, %v342
  %v344 = vpop.f32.mrb[0].mxu0
  %v345 = vadd.f32 %v129, %v344
  %v346 = vpop.f32.mrb[0].mxu0
  %v347 = vadd.f32 %v133, %v346
  %348 = vmatprep.mubr.bf16.mxu0 %v75
  %349 = vmatmul.mubr.bf16.gmra.mrb[0].mxu0 %v74
  %v350 = vpop.f32.mrb[0].mxu0
  %v351 = vadd.f32 %v129, %v350
  %v352 = vpop.f32.mrb[0].mxu0
  %v353 = vadd.f32 %v133, %v352
  %v354 = vpop.f32.mrb[0].mxu0
  %v355 = vadd.f32 %v129, %v354
  %v356 = vpop.f32.mrb[0].mxu0
  %v357 = vadd.f32 %v133, %v356
  %358 = vmatprep.mubr.bf16.mxu0 %v77
  %359 = vmatmul.mubr.bf16.gmra.mrb[0].mxu0 %v76
  %v360 = vpop.f32.mrb[0].mxu0
  %v361 = vadd.f32 %v129, %v360
  %v362 = vpop.f32.mrb[0].mxu0
  %v363 = vadd.f32 %v133, %v362
  %v364 = vpop.f32.mrb[0].mxu0
  %v365 = vadd.f32 %v129, %v364
  %v366 = vpop.f32.mrb[0].mxu0
  %v367 = vadd.f32 %v133, %v366
  %368 = vmatprep.mubr.bf16.mxu0 %v79
  %369 = vmatmul.mubr.bf16.gmra.mrb[0].mxu0 %v78
  %v370 = vpop.f32.mrb[0].mxu0
  %v371 = vadd.f32 %v129, %v370
  %v372 = vpop.f32.mrb[0].mxu0
  %v373 = vadd.f32 %v133, %v372
  %v374 = vpop.f32.mrb[0].mxu0
  %v375 = vadd.f32 %v129, %v374
  %v376 = vpop.f32.mrb[0].mxu0
  %v377 = vadd.f32 %v133, %v376
  %378 = vmatprep.mubr.bf16.mxu0 %v81
  %379 = vmatmul.mubr.bf16.gmra.mrb[0].mxu0 %v80
  %v380 = vpop.f32.mrb[0].mxu0
  %v381 = vadd.f32 %v129, %v380
  %v382 = vpop.f32.mrb[0].mxu0
  %v383 = vadd.f32 %v133, %v382
  %v384 = vpop.f32.mrb[0].mxu0
  %v385 = vadd.f32 %v129, %v384
  %v386 = vpop.f32.mrb[0].mxu0
  %v387 = vadd.f32 %v133, %v386
  %388 = vmatprep.mubr.bf16.mxu0 %v83
  %389 = vmatmul.mubr.bf16.gmra.mrb[0].mxu0 %v82
  %v390 = vpop.f32.mrb[0].mxu0
  %v391 = vadd.f32 %v129, %v390
  %v392 = vpop.f32.mrb[0].mxu0
  %v393 = vadd.f32 %v133, %v392
  %v394 = vpop.f32.mrb[0].mxu0
  %v395 = vadd.f32 %v129, %v394
  %v396 = vpop.f32.mrb[0].mxu0
  %v397 = vadd.f32 %v133, %v396
  %398 = vmatprep.mubr.bf16.mxu0 %v85
  %399 = vmatmul.mubr.bf16.gmra.mrb[0].mxu0 %v84
  %v400 = vpop.f32.mrb[0].mxu0
  %v401 = vadd.f32 %v129, %v400
  %v402 = vpop.f32.mrb[0].mxu0
  %v403 = vadd.f32 %v133, %v402
  %v404 = vpop.f32.mrb[0].mxu0
  %v405 = vadd.f32 %v129, %v404
  %v406 = vpop.f32.mrb[0].mxu0
  %v407 = vadd.f32 %v133, %v406
  %408 = vmatprep.mubr.bf16.mxu0 %v87
  %409 = vmatmul.mubr.bf16.gmra.mrb[0].mxu0 %v86
  %v410 = vpop.f32.mrb[0].mxu0
  %v411 = vadd.f32 %v129, %v410
  %v412 = vpop.f32.mrb[0].mxu0
  %v413 = vadd.f32 %v133, %v412
  %v414 = vpop.f32.mrb[0].mxu0
  %v415 = vadd.f32 %v129, %v414
  %v416 = vpop.f32.mrb[0].mxu0
  %v417 = vadd.f32 %v133, %v416
  %418 = vmatprep.mubr.bf16.mxu0 %v89
  %419 = vmatmul.mubr.bf16.gmra.mrb[0].mxu0 %v88
  %v420 = vpop.f32.mrb[0].mxu0
  %v421 = vadd.f32 %v129, %v420
  %v422 = vpop.f32.mrb[0].mxu0
  %v423 = vadd.f32 %v133, %v422
  %v424 = vpop.f32.mrb[0].mxu0
  %v425 = vadd.f32 %v129, %v424
  %v426 = vpop.f32.mrb[0].mxu0
  %v427 = vadd.f32 %v133, %v426
  %428 = vmatprep.mubr.bf16.mxu0 %v91
  %429 = vmatmul.mubr.bf16.gmra.mrb[0].mxu0 %v90
  %v430 = vpop.f32.mrb[0].mxu0
  %v431 = vadd.f32 %v129, %v430
  %v432 = vpop.f32.mrb[0].mxu0
  %v433 = vadd.f32 %v133, %v432
  %v434 = vpop.f32.mrb[0].mxu0
  %v435 = vadd.f32 %v129, %v434
  %v436 = vpop.f32.mrb[0].mxu0
  %v437 = vadd.f32 %v133, %v436
  %438 = vdwg.mxu0
  %v439 = vmax.f32 %v331, 0.0
  %v440 = vmax.f32 %v333, 0.0
  %v441 = vmax.f32 %v335, 0.0
  %v442 = vmax.f32 %v337, 0.0
  %v443 = vmax.f32 %v341, 0.0
  %v444 = vmax.f32 %v343, 0.0
  %v445 = vmax.f32 %v345, 0.0
  %v446 = vmax.f32 %v347, 0.0
  %v447 = vmax.f32 %v351, 0.0
  %v448 = vmax.f32 %v353, 0.0
  %v449 = vmax.f32 %v355, 0.0
  %v450 = vmax.f32 %v357, 0.0
  %v451 = vmax.f32 %v361, 0.0
  %v452 = vmax.f32 %v363, 0.0
  %v453 = vmax.f32 %v365, 0.0
  %v454 = vmax.f32 %v367, 0.0
  %v455 = vmax.f32 %v371, 0.0
  %v456 = vmax.f32 %v373, 0.0
  %v457 = vmax.f32 %v375, 0.0
  %v458 = vmax.f32 %v377, 0.0
  %v459 = vmax.f32 %v381, 0.0
  %v460 = vmax.f32 %v383, 0.0
  %v461 = vmax.f32 %v385, 0.0
  %v462 = vmax.f32 %v387, 0.0
  %v463 = vmax.f32 %v391, 0.0
  %v464 = vmax.f32 %v393, 0.0
  %v465 = vmax.f32 %v395, 0.0
  %v466 = vmax.f32 %v397, 0.0
  %v467 = vmax.f32 %v401, 0.0
  %v468 = vmax.f32 %v403, 0.0
  %v469 = vmax.f32 %v405, 0.0
  %v470 = vmax.f32 %v407, 0.0
  %v471 = vmax.f32 %v411, 0.0
  %v472 = vmax.f32 %v413, 0.0
  %v473 = vmax.f32 %v415, 0.0
  %v474 = vmax.f32 %v417, 0.0
  %v475 = vmax.f32 %v421, 0.0
  %v476 = vmax.f32 %v423, 0.0
  %v477 = vmax.f32 %v425, 0.0
  %v478 = vmax.f32 %v427, 0.0
  %v479 = vmax.f32 %v431, 0.0
  %v480 = vmax.f32 %v433, 0.0
  %v481 = vmax.f32 %v435, 0.0
  %v482 = vmax.f32 %v437, 0.0
  %v483 = vpack.c.bf16 %v441, %v439
  %v484 = vpack.c.bf16 %v442, %v440
  %v485 = vpack.c.bf16 %v445, %v443
  %v486 = vpack.c.bf16 %v446, %v444
  %v487 = vpack.c.bf16 %v449, %v447
  %v488 = vpack.c.bf16 %v450, %v448
  %v489 = vpack.c.bf16 %v453, %v451
  %v490 = vpack.c.bf16 %v454, %v452
  %v491 = vpack.c.bf16 %v457, %v455
  %v492 = vpack.c.bf16 %v458, %v456
  %v493 = vpack.c.bf16 %v461, %v459
  %v494 = vpack.c.bf16 %v462, %v460
  %v495 = vpack.c.bf16 %v465, %v463
  %v496 = vpack.c.bf16 %v466, %v464
  %v497 = vpack.c.bf16 %v469, %v467
  %v498 = vpack.c.bf16 %v470, %v468
  %v499 = vpack.c.bf16 %v473, %v471
  %v500 = vpack.c.bf16 %v474, %v472
  %v501 = vpack.c.bf16 %v477, %v475
  %v502 = vpack.c.bf16 %v478, %v476
  %v503 = vpack.c.bf16 %v481, %v479
  %v504 = vpack.c.bf16 %v482, %v480
  %v505 = vld [vmem:[%s3] sm:$0xff]
  %v506 = vld [vmem:[%s3 + $0x8] sm:$0xff]
  %v507 = vld [vmem:[%s3 + $0x10] sm:$0xff]
  %v508 = vld [vmem:[%s3 + $0x18] sm:$0xff]
  %v509 = vld [vmem:[%s3 + $0x20] sm:$0xff]
  %v510 = vld [vmem:[%s3 + $0x28] sm:$0xff]
  %v511 = vld [vmem:[%s3 + $0x30] sm:$0xff]
  %v512 = vld [vmem:[%s3 + $0x38] sm:$0xff]
  %v513 = vld [vmem:[%s3 + $0x40] sm:$0xff]
  %v514 = vld [vmem:[%s3 + $0x48] sm:$0xff]
  %v515 = vld [vmem:[%s3 + $0x50] sm:$0xff]
  %v516 = vld [vmem:[%s3 + $0x58] sm:$0xff]
  %v517 = vld [vmem:[%s3 + $0x60] sm:$0xff]
  %v518 = vld [vmem:[%s3 + $0x68] sm:$0xff]
  %v519 = vld [vmem:[%s3 + $0x70] sm:$0xff]
  %v520 = vld [vmem:[%s3 + $0x78] sm:$0xff]
  %v521 = vld [vmem:[%s3 + $0x80] sm:$0xff]
  %v522 = vld [vmem:[%s3 + $0x88] sm:$0xff]
  %v523 = vld [vmem:[%s3 + $0x90] sm:$0xff]
  %v524 = vld [vmem:[%s3 + $0x98] sm:$0xff]
  %v525 = vld [vmem:[%s3 + $0xa0] sm:$0xff]
  %v526 = vld [vmem:[%s3 + $0xa8] sm:$0xff]
  %v527 = vld [vmem:[%s3 + $0xb0] sm:$0xff]
  %v528 = vld [vmem:[%s3 + $0xb8] sm:$0xff]
  %v529 = vld [vmem:[%s3 + $0xc0] sm:$0xff]
  %v530 = vld [vmem:[%s3 + $0xc8] sm:$0xff]
  %v531 = vld [vmem:[%s3 + $0xd0] sm:$0xff]
  %v532 = vld [vmem:[%s3 + $0xd8] sm:$0xff]
  %v533 = vld [vmem:[%s3 + $0xe0] sm:$0xff]
  %v534 = vld [vmem:[%s3 + $0xe8] sm:$0xff]
  %v535 = vld [vmem:[%s3 + $0xf0] sm:$0xff]
  %v536 = vld [vmem:[%s3 + $0xf8] sm:$0xff]
  %v537 = vld [vmem:[%s4] sm:$0x3]
  %v539 = vlaneseq
  %v540 = vshrl.u32 %v539, 7
  %v541 = vsub.s32 0, %v540
  %v542 = vrot.slane %v537, %v541
  %v543 = vlaneseq
  %v544 = vshrl.u32 %v543, 7
  %v545 = vsub.s32 1, %v544
  %v546 = vrot.slane %v537, %v545
  %v581 = vunpack.c.l.b16 %v505
  %v582 = vunpack.c.h.b16 %v505
  %v583 = vunpack.c.l.b16 %v506
  %v584 = vunpack.c.h.b16 %v506
  %v585 = vunpack.c.l.b16 %v507
  %v586 = vunpack.c.h.b16 %v507
  %v587 = vunpack.c.l.b16 %v508
  %v588 = vunpack.c.h.b16 %v508
  %v589 = vunpack.c.l.b16 %v509
  %v590 = vunpack.c.h.b16 %v509
  %v591 = vunpack.c.l.b16 %v510
  %v592 = vunpack.c.h.b16 %v510
  %v593 = vunpack.c.l.b16 %v511
  %v594 = vunpack.c.h.b16 %v511
  %v595 = vunpack.c.l.b16 %v512
  %v596 = vunpack.c.h.b16 %v512
  %v597 = vunpack.c.l.b16 %v513
  %v598 = vunpack.c.h.b16 %v513
  %v599 = vunpack.c.l.b16 %v514
  %v600 = vunpack.c.h.b16 %v514
  %v601 = vunpack.c.l.b16 %v515
  %v602 = vunpack.c.h.b16 %v515
  %v603 = vunpack.c.l.b16 %v516
  %v604 = vunpack.c.h.b16 %v516
  %v605 = vunpack.c.l.b16 %v517
  %v606 = vunpack.c.h.b16 %v517
  %v607 = vunpack.c.l.b16 %v518
  %v608 = vunpack.c.h.b16 %v518
  %v609 = vunpack.c.l.b16 %v519
  %v610 = vunpack.c.h.b16 %v519
  %v611 = vunpack.c.l.b16 %v520
  %v612 = vunpack.c.h.b16 %v520
  %v613 = vunpack.c.l.b16 %v521
  %v614 = vunpack.c.h.b16 %v521
  %v615 = vunpack.c.l.b16 %v522
  %v616 = vunpack.c.h.b16 %v522
  %v617 = vunpack.c.l.b16 %v523
  %v618 = vunpack.c.h.b16 %v523
  %v619 = vunpack.c.l.b16 %v524
  %v620 = vunpack.c.h.b16 %v524
  %v621 = vunpack.c.l.b16 %v525
  %v622 = vunpack.c.h.b16 %v525
  %v623 = vunpack.c.l.b16 %v526
  %v624 = vunpack.c.h.b16 %v526
  %v625 = vunpack.c.l.b16 %v527
  %v626 = vunpack.c.h.b16 %v527
  %v627 = vunpack.c.l.b16 %v528
  %v628 = vunpack.c.h.b16 %v528
  %v629 = vunpack.c.l.b16 %v529
  %v630 = vunpack.c.h.b16 %v529
  %v631 = vunpack.c.l.b16 %v530
  %v632 = vunpack.c.h.b16 %v530
  %v633 = vunpack.c.l.b16 %v531
  %v634 = vunpack.c.h.b16 %v531
  %v635 = vunpack.c.l.b16 %v532
  %v636 = vunpack.c.h.b16 %v532
  %v637 = vunpack.c.l.b16 %v533
  %v638 = vunpack.c.h.b16 %v533
  %v639 = vunpack.c.l.b16 %v534
  %v640 = vunpack.c.h.b16 %v534
  %v641 = vunpack.c.l.b16 %v535
  %v642 = vunpack.c.h.b16 %v535
  %v643 = vunpack.c.l.b16 %v536
  %v644 = vunpack.c.h.b16 %v536
  %v645 = vpack.c.b16 %v583, %v581
  %v646 = vpack.c.b16 %v584, %v582
  %v647 = vpack.c.b16 %v587, %v585
  %v648 = vpack.c.b16 %v588, %v586
  %v649 = vpack.c.b16 %v591, %v589
  %v650 = vpack.c.b16 %v592, %v590
  %v651 = vpack.c.b16 %v595, %v593
  %v652 = vpack.c.b16 %v596, %v594
  %v653 = vpack.c.b16 %v599, %v597
  %v654 = vpack.c.b16 %v600, %v598
  %v655 = vpack.c.b16 %v603, %v601
  %v656 = vpack.c.b16 %v604, %v602
  %v657 = vpack.c.b16 %v607, %v605
  %v658 = vpack.c.b16 %v608, %v606
  %v659 = vpack.c.b16 %v611, %v609
  %v660 = vpack.c.b16 %v612, %v610
  %v661 = vpack.c.b16 %v615, %v613
  %v662 = vpack.c.b16 %v616, %v614
  %v663 = vpack.c.b16 %v619, %v617
  %v664 = vpack.c.b16 %v620, %v618
  %v665 = vpack.c.b16 %v623, %v621
  %v666 = vpack.c.b16 %v624, %v622
  %v667 = vpack.c.b16 %v627, %v625
  %v668 = vpack.c.b16 %v628, %v626
  %v669 = vpack.c.b16 %v631, %v629
  %v670 = vpack.c.b16 %v632, %v630
  %v671 = vpack.c.b16 %v635, %v633
  %v672 = vpack.c.b16 %v636, %v634
  %v673 = vpack.c.b16 %v639, %v637
  %v674 = vpack.c.b16 %v640, %v638
  %v675 = vpack.c.b16 %v643, %v641
  %v676 = vpack.c.b16 %v644, %v642
  %709 = vmatprep.subr.bf16.mxu0 %v646
  %710 = vmatpush1.bf16.msra.mxu0 %v645
  %711 = vmatprep.subr.bf16.mxu0 %v648
  %712 = vmatpush1.bf16.msra.mxu0 %v647
  %713 = vmatprep.subr.bf16.mxu0 %v650
  %714 = vmatpush1.bf16.msra.mxu0 %v649
  %715 = vmatprep.subr.bf16.mxu0 %v652
  %716 = vmatpush1.bf16.msra.mxu0 %v651
  %717 = vmatprep.subr.bf16.mxu0 %v654
  %718 = vmatpush1.bf16.msra.mxu0 %v653
  %719 = vmatprep.subr.bf16.mxu0 %v656
  %720 = vmatpush1.bf16.msra.mxu0 %v655
  %721 = vmatprep.subr.bf16.mxu0 %v658
  %722 = vmatpush1.bf16.msra.mxu0 %v657
  %723 = vmatprep.subr.bf16.mxu0 %v660
  %724 = vmatpush1.bf16.msra.mxu0 %v659
  %725 = vmatprep.subr.bf16.mxu0 %v662
  %726 = vmatpush1.bf16.msra.mxu0 %v661
  %727 = vmatprep.subr.bf16.mxu0 %v664
  %728 = vmatpush1.bf16.msra.mxu0 %v663
  %729 = vmatprep.subr.bf16.mxu0 %v666
  %730 = vmatpush1.bf16.msra.mxu0 %v665
  %731 = vmatprep.subr.bf16.mxu0 %v668
  %732 = vmatpush1.bf16.msra.mxu0 %v667
  %733 = vmatprep.subr.bf16.mxu0 %v670
  %734 = vmatpush1.bf16.msra.mxu0 %v669
  %735 = vmatprep.subr.bf16.mxu0 %v672
  %736 = vmatpush1.bf16.msra.mxu0 %v671
  %737 = vmatprep.subr.bf16.mxu0 %v674
  %738 = vmatpush1.bf16.msra.mxu0 %v673
  %739 = vmatprep.subr.bf16.mxu0 %v676
  %740 = vmatpush1.bf16.msra.mxu0 %v675
  %741 = vmatprep.mubr.bf16.mxu0 %v484
  %742 = vmatmul.mubr.bf16.gmra.mrb[0].mxu0 %v483
  %v743 = vpop.f32.mrb[0].mxu0
  %v744 = vadd.f32 %v542, %v743
  %v745 = vpop.f32.mrb[0].mxu0
  %v746 = vadd.f32 %v546, %v745
  %v747 = vpop.f32.mrb[0].mxu0
  %v748 = vadd.f32 %v542, %v747
  %v749 = vpop.f32.mrb[0].mxu0
  %v750 = vadd.f32 %v546, %v749
  %751 = vmatprep.mubr.bf16.mxu0 %v486
  %752 = vmatmul.mubr.bf16.gmra.mrb[0].mxu0 %v485
  %v753 = vpop.f32.mrb[0].mxu0
  %v754 = vadd.f32 %v542, %v753
  %v755 = vpop.f32.mrb[0].mxu0
  %v756 = vadd.f32 %v546, %v755
  %v757 = vpop.f32.mrb[0].mxu0
  %v758 = vadd.f32 %v542, %v757
  %v759 = vpop.f32.mrb[0].mxu0
  %v760 = vadd.f32 %v546, %v759
  %761 = vmatprep.mubr.bf16.mxu0 %v488
  %762 = vmatmul.mubr.bf16.gmra.mrb[0].mxu0 %v487
  %v763 = vpop.f32.mrb[0].mxu0
  %v764 = vadd.f32 %v542, %v763
  %v765 = vpop.f32.mrb[0].mxu0
  %v766 = vadd.f32 %v546, %v765
  %v767 = vpop.f32.mrb[0].mxu0
  %v768 = vadd.f32 %v542, %v767
  %v769 = vpop.f32.mrb[0].mxu0
  %v770 = vadd.f32 %v546, %v769
  %771 = vmatprep.mubr.bf16.mxu0 %v490
  %772 = vmatmul.mubr.bf16.gmra.mrb[0].mxu0 %v489
  %v773 = vpop.f32.mrb[0].mxu0
  %v774 = vadd.f32 %v542, %v773
  %v775 = vpop.f32.mrb[0].mxu0
  %v776 = vadd.f32 %v546, %v775
  %v777 = vpop.f32.mrb[0].mxu0
  %v778 = vadd.f32 %v542, %v777
  %v779 = vpop.f32.mrb[0].mxu0
  %v780 = vadd.f32 %v546, %v779
  %781 = vmatprep.mubr.bf16.mxu0 %v492
  %782 = vmatmul.mubr.bf16.gmra.mrb[0].mxu0 %v491
  %v783 = vpop.f32.mrb[0].mxu0
  %v784 = vadd.f32 %v542, %v783
  %v785 = vpop.f32.mrb[0].mxu0
  %v786 = vadd.f32 %v546, %v785
  %v787 = vpop.f32.mrb[0].mxu0
  %v788 = vadd.f32 %v542, %v787
  %v789 = vpop.f32.mrb[0].mxu0
  %v790 = vadd.f32 %v546, %v789
  %791 = vmatprep.mubr.bf16.mxu0 %v494
  %792 = vmatmul.mubr.bf16.gmra.mrb[0].mxu0 %v493
  %v793 = vpop.f32.mrb[0].mxu0
  %v794 = vadd.f32 %v542, %v793
  %v795 = vpop.f32.mrb[0].mxu0
  %v796 = vadd.f32 %v546, %v795
  %v797 = vpop.f32.mrb[0].mxu0
  %v798 = vadd.f32 %v542, %v797
  %v799 = vpop.f32.mrb[0].mxu0
  %v800 = vadd.f32 %v546, %v799
  %801 = vmatprep.mubr.bf16.mxu0 %v496
  %802 = vmatmul.mubr.bf16.gmra.mrb[0].mxu0 %v495
  %v803 = vpop.f32.mrb[0].mxu0
  %v804 = vadd.f32 %v542, %v803
  %v805 = vpop.f32.mrb[0].mxu0
  %v806 = vadd.f32 %v546, %v805
  %v807 = vpop.f32.mrb[0].mxu0
  %v808 = vadd.f32 %v542, %v807
  %v809 = vpop.f32.mrb[0].mxu0
  %v810 = vadd.f32 %v546, %v809
  %811 = vmatprep.mubr.bf16.mxu0 %v498
  %812 = vmatmul.mubr.bf16.gmra.mrb[0].mxu0 %v497
  %v813 = vpop.f32.mrb[0].mxu0
  %v814 = vadd.f32 %v542, %v813
  %v815 = vpop.f32.mrb[0].mxu0
  %v816 = vadd.f32 %v546, %v815
  %v817 = vpop.f32.mrb[0].mxu0
  %v818 = vadd.f32 %v542, %v817
  %v819 = vpop.f32.mrb[0].mxu0
  %v820 = vadd.f32 %v546, %v819
  %821 = vmatprep.mubr.bf16.mxu0 %v500
  %822 = vmatmul.mubr.bf16.gmra.mrb[0].mxu0 %v499
  %v823 = vpop.f32.mrb[0].mxu0
  %v824 = vadd.f32 %v542, %v823
  %v825 = vpop.f32.mrb[0].mxu0
  %v826 = vadd.f32 %v546, %v825
  %v827 = vpop.f32.mrb[0].mxu0
  %v828 = vadd.f32 %v542, %v827
  %v829 = vpop.f32.mrb[0].mxu0
  %v830 = vadd.f32 %v546, %v829
  %831 = vmatprep.mubr.bf16.mxu0 %v502
  %832 = vmatmul.mubr.bf16.gmra.mrb[0].mxu0 %v501
  %v833 = vpop.f32.mrb[0].mxu0
  %v834 = vadd.f32 %v542, %v833
  %v835 = vpop.f32.mrb[0].mxu0
  %v836 = vadd.f32 %v546, %v835
  %v837 = vpop.f32.mrb[0].mxu0
  %v838 = vadd.f32 %v542, %v837
  %v839 = vpop.f32.mrb[0].mxu0
  %v840 = vadd.f32 %v546, %v839
  %841 = vmatprep.mubr.bf16.mxu0 %v504
  %842 = vmatmul.mubr.bf16.gmra.mrb[0].mxu0 %v503
  %v843 = vpop.f32.mrb[0].mxu0
  %v844 = vadd.f32 %v542, %v843
  %v845 = vpop.f32.mrb[0].mxu0
  %v846 = vadd.f32 %v546, %v845
  %v847 = vpop.f32.mrb[0].mxu0
  %v848 = vadd.f32 %v542, %v847
  %v849 = vpop.f32.mrb[0].mxu0
  %v850 = vadd.f32 %v546, %v849
  %851 = vdwg.mxu0
  %v852 = vadd.f32 %v26, %v744
  %v853 = vadd.f32 %v27, %v746
  %v854 = vadd.f32 %v28, %v748
  %v855 = vadd.f32 %v29, %v750
  %v856 = vadd.f32 %v30, %v754
  %v857 = vadd.f32 %v31, %v756
  %v858 = vadd.f32 %v32, %v758
  %v859 = vadd.f32 %v33, %v760
  %v860 = vadd.f32 %v34, %v764
  %v861 = vadd.f32 %v35, %v766
  %v862 = vadd.f32 %v36, %v768
  %v863 = vadd.f32 %v37, %v770
  %v864 = vadd.f32 %v38, %v774
  %v865 = vadd.f32 %v39, %v776
  %v866 = vadd.f32 %v40, %v778
  %v867 = vadd.f32 %v41, %v780
  %v868 = vadd.f32 %v42, %v784
  %v869 = vadd.f32 %v43, %v786
  %v870 = vadd.f32 %v44, %v788
  %v871 = vadd.f32 %v45, %v790
  %v872 = vadd.f32 %v46, %v794
  %v873 = vadd.f32 %v47, %v796
  %v874 = vadd.f32 %v48, %v798
  %v875 = vadd.f32 %v49, %v800
  %v876 = vadd.f32 %v50, %v804
  %v877 = vadd.f32 %v51, %v806
  %v878 = vadd.f32 %v52, %v808
  %v879 = vadd.f32 %v53, %v810
  %v880 = vadd.f32 %v54, %v814
  %v881 = vadd.f32 %v55, %v816
  %v882 = vadd.f32 %v56, %v818
  %v883 = vadd.f32 %v57, %v820
  %v884 = vadd.f32 %v58, %v824
  %v885 = vadd.f32 %v59, %v826
  %v886 = vadd.f32 %v60, %v828
  %v887 = vadd.f32 %v61, %v830
  %v888 = vadd.f32 %v62, %v834
  %v889 = vadd.f32 %v63, %v836
  %v890 = vadd.f32 %v64, %v838
  %v891 = vadd.f32 %v65, %v840
  %v892 = vadd.f32 %v66, %v844
  %v893 = vadd.f32 %v67, %v846
  %v894 = vadd.f32 %v68, %v848
  %v895 = vadd.f32 %v69, %v850
  %v896 = vadd.f32 %v852, %v853
  %897 = vadd.xlane.f32.xlu0 %v896
  %v898 = vpop.xlane.xlu0 %897
  %v899 = vadd.f32 %v854, %v855
  %900 = vadd.xlane.f32.xlu0 %v899
  %v901 = vpop.xlane.xlu0 %900
  %v902 = vadd.f32 %v856, %v857
  %903 = vadd.xlane.f32.xlu0 %v902
  %v904 = vpop.xlane.xlu0 %903
  %v905 = vadd.f32 %v858, %v859
  %906 = vadd.xlane.f32.xlu0 %v905
  %v907 = vpop.xlane.xlu0 %906
  %v908 = vadd.f32 %v860, %v861
  %909 = vadd.xlane.f32.xlu0 %v908
  %v910 = vpop.xlane.xlu0 %909
  %v911 = vadd.f32 %v862, %v863
  %912 = vadd.xlane.f32.xlu0 %v911
  %v913 = vpop.xlane.xlu0 %912
  %v914 = vadd.f32 %v864, %v865
  %915 = vadd.xlane.f32.xlu0 %v914
  %v916 = vpop.xlane.xlu0 %915
  %v917 = vadd.f32 %v866, %v867
  %918 = vadd.xlane.f32.xlu0 %v917
  %v919 = vpop.xlane.xlu0 %918
  %v920 = vadd.f32 %v868, %v869
  %921 = vadd.xlane.f32.xlu0 %v920
  %v922 = vpop.xlane.xlu0 %921
  %v923 = vadd.f32 %v870, %v871
  %924 = vadd.xlane.f32.xlu0 %v923
  %v925 = vpop.xlane.xlu0 %924
  %v926 = vadd.f32 %v872, %v873
  %927 = vadd.xlane.f32.xlu0 %v926
  %v928 = vpop.xlane.xlu0 %927
  %v929 = vadd.f32 %v874, %v875
  %930 = vadd.xlane.f32.xlu0 %v929
  %v931 = vpop.xlane.xlu0 %930
  %v932 = vadd.f32 %v876, %v877
  %933 = vadd.xlane.f32.xlu0 %v932
  %v934 = vpop.xlane.xlu0 %933
  %v935 = vadd.f32 %v878, %v879
  %936 = vadd.xlane.f32.xlu0 %v935
  %v937 = vpop.xlane.xlu0 %936
  %v938 = vadd.f32 %v880, %v881
  %939 = vadd.xlane.f32.xlu0 %v938
  %v940 = vpop.xlane.xlu0 %939
  %v941 = vadd.f32 %v882, %v883
  %942 = vadd.xlane.f32.xlu0 %v941
  %v943 = vpop.xlane.xlu0 %942
  %v944 = vadd.f32 %v884, %v885
  %945 = vadd.xlane.f32.xlu0 %v944
  %v946 = vpop.xlane.xlu0 %945
  %v947 = vadd.f32 %v886, %v887
  %948 = vadd.xlane.f32.xlu0 %v947
  %v949 = vpop.xlane.xlu0 %948
  %v950 = vadd.f32 %v888, %v889
  %951 = vadd.xlane.f32.xlu0 %v950
  %v952 = vpop.xlane.xlu0 %951
  %v953 = vadd.f32 %v890, %v891
  %954 = vadd.xlane.f32.xlu0 %v953
  %v955 = vpop.xlane.xlu0 %954
  %v956 = vadd.f32 %v892, %v893
  %957 = vadd.xlane.f32.xlu0 %v956
  %v958 = vpop.xlane.xlu0 %957
  %v959 = vadd.f32 %v894, %v895
  %960 = vadd.xlane.f32.xlu0 %v959
  %v961 = vpop.xlane.xlu0 %960
  %v962 = vrcp.pop 256.0
  %v963 = vmul.f32 %v898, %v962
  %v964 = vmul.f32 %v901, %v962
  %v965 = vmul.f32 %v904, %v962
  %v966 = vmul.f32 %v907, %v962
  %v967 = vmul.f32 %v910, %v962
  %v968 = vmul.f32 %v913, %v962
  %v969 = vmul.f32 %v916, %v962
  %v970 = vmul.f32 %v919, %v962
  %v971 = vmul.f32 %v922, %v962
  %v972 = vmul.f32 %v925, %v962
  %v973 = vmul.f32 %v928, %v962
  %v974 = vmul.f32 %v931, %v962
  %v975 = vmul.f32 %v934, %v962
  %v976 = vmul.f32 %v937, %v962
  %v977 = vmul.f32 %v940, %v962
  %v978 = vmul.f32 %v943, %v962
  %v979 = vmul.f32 %v946, %v962
  %v980 = vmul.f32 %v949, %v962
  %v981 = vmul.f32 %v952, %v962
  %v982 = vmul.f32 %v955, %v962
  %v983 = vmul.f32 %v958, %v962
  %v984 = vmul.f32 %v961, %v962
  %v985 = vsub.f32 %v852, %v963
  %v986 = vsub.f32 %v853, %v963
  %v987 = vsub.f32 %v854, %v964
  %v988 = vsub.f32 %v855, %v964
  %v989 = vsub.f32 %v856, %v965
  %v990 = vsub.f32 %v857, %v965
  %v991 = vsub.f32 %v858, %v966
  %v992 = vsub.f32 %v859, %v966
  %v993 = vsub.f32 %v860, %v967
  %v994 = vsub.f32 %v861, %v967
  %v995 = vsub.f32 %v862, %v968
  %v996 = vsub.f32 %v863, %v968
  %v997 = vsub.f32 %v864, %v969
  %v998 = vsub.f32 %v865, %v969
  %v999 = vsub.f32 %v866, %v970
  %v1000 = vsub.f32 %v867, %v970
  %v1001 = vsub.f32 %v868, %v971
  %v1002 = vsub.f32 %v869, %v971
  %v1003 = vsub.f32 %v870, %v972
  %v1004 = vsub.f32 %v871, %v972
  %v1005 = vsub.f32 %v872, %v973
  %v1006 = vsub.f32 %v873, %v973
  %v1007 = vsub.f32 %v874, %v974
  %v1008 = vsub.f32 %v875, %v974
  %v1009 = vsub.f32 %v876, %v975
  %v1010 = vsub.f32 %v877, %v975
  %v1011 = vsub.f32 %v878, %v976
  %v1012 = vsub.f32 %v879, %v976
  %v1013 = vsub.f32 %v880, %v977
  %v1014 = vsub.f32 %v881, %v977
  %v1015 = vsub.f32 %v882, %v978
  %v1016 = vsub.f32 %v883, %v978
  %v1017 = vsub.f32 %v884, %v979
  %v1018 = vsub.f32 %v885, %v979
  %v1019 = vsub.f32 %v886, %v980
  %v1020 = vsub.f32 %v887, %v980
  %v1021 = vsub.f32 %v888, %v981
  %v1022 = vsub.f32 %v889, %v981
  %v1023 = vsub.f32 %v890, %v982
  %v1024 = vsub.f32 %v891, %v982
  %v1025 = vsub.f32 %v892, %v983
  %v1026 = vsub.f32 %v893, %v983
  %v1027 = vsub.f32 %v894, %v984
  %v1028 = vsub.f32 %v895, %v984
  %v1029 = vmul.f32 %v985, %v985
  %v1030 = vmul.f32 %v986, %v986
  %v1031 = vmul.f32 %v987, %v987
  %v1032 = vmul.f32 %v988, %v988
  %v1033 = vmul.f32 %v989, %v989
  %v1034 = vmul.f32 %v990, %v990
  %v1035 = vmul.f32 %v991, %v991
  %v1036 = vmul.f32 %v992, %v992
  %v1037 = vmul.f32 %v993, %v993
  %v1038 = vmul.f32 %v994, %v994
  %v1039 = vmul.f32 %v995, %v995
  %v1040 = vmul.f32 %v996, %v996
  %v1041 = vmul.f32 %v997, %v997
  %v1042 = vmul.f32 %v998, %v998
  %v1043 = vmul.f32 %v999, %v999
  %v1044 = vmul.f32 %v1000, %v1000
  %v1045 = vmul.f32 %v1001, %v1001
  %v1046 = vmul.f32 %v1002, %v1002
  %v1047 = vmul.f32 %v1003, %v1003
  %v1048 = vmul.f32 %v1004, %v1004
  %v1049 = vmul.f32 %v1005, %v1005
  %v1050 = vmul.f32 %v1006, %v1006
  %v1051 = vmul.f32 %v1007, %v1007
  %v1052 = vmul.f32 %v1008, %v1008
  %v1053 = vmul.f32 %v1009, %v1009
  %v1054 = vmul.f32 %v1010, %v1010
  %v1055 = vmul.f32 %v1011, %v1011
  %v1056 = vmul.f32 %v1012, %v1012
  %v1057 = vmul.f32 %v1013, %v1013
  %v1058 = vmul.f32 %v1014, %v1014
  %v1059 = vmul.f32 %v1015, %v1015
  %v1060 = vmul.f32 %v1016, %v1016
  %v1061 = vmul.f32 %v1017, %v1017
  %v1062 = vmul.f32 %v1018, %v1018
  %v1063 = vmul.f32 %v1019, %v1019
  %v1064 = vmul.f32 %v1020, %v1020
  %v1065 = vmul.f32 %v1021, %v1021
  %v1066 = vmul.f32 %v1022, %v1022
  %v1067 = vmul.f32 %v1023, %v1023
  %v1068 = vmul.f32 %v1024, %v1024
  %v1069 = vmul.f32 %v1025, %v1025
  %v1070 = vmul.f32 %v1026, %v1026
  %v1071 = vmul.f32 %v1027, %v1027
  %v1072 = vmul.f32 %v1028, %v1028
  %v1073 = vadd.f32 %v1029, %v1030
  %1074 = vadd.xlane.f32.xlu0 %v1073
  %v1075 = vpop.xlane.xlu0 %1074
  %v1076 = vadd.f32 %v1031, %v1032
  %1077 = vadd.xlane.f32.xlu0 %v1076
  %v1078 = vpop.xlane.xlu0 %1077
  %v1079 = vadd.f32 %v1033, %v1034
  %1080 = vadd.xlane.f32.xlu0 %v1079
  %v1081 = vpop.xlane.xlu0 %1080
  %v1082 = vadd.f32 %v1035, %v1036
  %1083 = vadd.xlane.f32.xlu0 %v1082
  %v1084 = vpop.xlane.xlu0 %1083
  %v1085 = vadd.f32 %v1037, %v1038
  %1086 = vadd.xlane.f32.xlu0 %v1085
  %v1087 = vpop.xlane.xlu0 %1086
  %v1088 = vadd.f32 %v1039, %v1040
  %1089 = vadd.xlane.f32.xlu0 %v1088
  %v1090 = vpop.xlane.xlu0 %1089
  %v1091 = vadd.f32 %v1041, %v1042
  %1092 = vadd.xlane.f32.xlu0 %v1091
  %v1093 = vpop.xlane.xlu0 %1092
  %v1094 = vadd.f32 %v1043, %v1044
  %1095 = vadd.xlane.f32.xlu0 %v1094
  %v1096 = vpop.xlane.xlu0 %1095
  %v1097 = vadd.f32 %v1045, %v1046
  %1098 = vadd.xlane.f32.xlu0 %v1097
  %v1099 = vpop.xlane.xlu0 %1098
  %v1100 = vadd.f32 %v1047, %v1048
  %1101 = vadd.xlane.f32.xlu0 %v1100
  %v1102 = vpop.xlane.xlu0 %1101
  %v1103 = vadd.f32 %v1049, %v1050
  %1104 = vadd.xlane.f32.xlu0 %v1103
  %v1105 = vpop.xlane.xlu0 %1104
  %v1106 = vadd.f32 %v1051, %v1052
  %1107 = vadd.xlane.f32.xlu0 %v1106
  %v1108 = vpop.xlane.xlu0 %1107
  %v1109 = vadd.f32 %v1053, %v1054
  %1110 = vadd.xlane.f32.xlu0 %v1109
  %v1111 = vpop.xlane.xlu0 %1110
  %v1112 = vadd.f32 %v1055, %v1056
  %1113 = vadd.xlane.f32.xlu0 %v1112
  %v1114 = vpop.xlane.xlu0 %1113
  %v1115 = vadd.f32 %v1057, %v1058
  %1116 = vadd.xlane.f32.xlu0 %v1115
  %v1117 = vpop.xlane.xlu0 %1116
  %v1118 = vadd.f32 %v1059, %v1060
  %1119 = vadd.xlane.f32.xlu0 %v1118
  %v1120 = vpop.xlane.xlu0 %1119
  %v1121 = vadd.f32 %v1061, %v1062
  %1122 = vadd.xlane.f32.xlu0 %v1121
  %v1123 = vpop.xlane.xlu0 %1122
  %v1124 = vadd.f32 %v1063, %v1064
  %1125 = vadd.xlane.f32.xlu0 %v1124
  %v1126 = vpop.xlane.xlu0 %1125
  %v1127 = vadd.f32 %v1065, %v1066
  %1128 = vadd.xlane.f32.xlu0 %v1127
  %v1129 = vpop.xlane.xlu0 %1128
  %v1130 = vadd.f32 %v1067, %v1068
  %1131 = vadd.xlane.f32.xlu0 %v1130
  %v1132 = vpop.xlane.xlu0 %1131
  %v1133 = vadd.f32 %v1069, %v1070
  %1134 = vadd.xlane.f32.xlu0 %v1133
  %v1135 = vpop.xlane.xlu0 %1134
  %v1136 = vadd.f32 %v1071, %v1072
  %1137 = vadd.xlane.f32.xlu0 %v1136
  %v1138 = vpop.xlane.xlu0 %1137
  %v1139 = vmul.f32 %v1075, %v962
  %v1140 = vmul.f32 %v1078, %v962
  %v1141 = vmul.f32 %v1081, %v962
  %v1142 = vmul.f32 %v1084, %v962
  %v1143 = vmul.f32 %v1087, %v962
  %v1144 = vmul.f32 %v1090, %v962
  %v1145 = vmul.f32 %v1093, %v962
  %v1146 = vmul.f32 %v1096, %v962
  %v1147 = vmul.f32 %v1099, %v962
  %v1148 = vmul.f32 %v1102, %v962
  %v1149 = vmul.f32 %v1105, %v962
  %v1150 = vmul.f32 %v1108, %v962
  %v1151 = vmul.f32 %v1111, %v962
  %v1152 = vmul.f32 %v1114, %v962
  %v1153 = vmul.f32 %v1117, %v962
  %v1154 = vmul.f32 %v1120, %v962
  %v1155 = vmul.f32 %v1123, %v962
  %v1156 = vmul.f32 %v1126, %v962
  %v1157 = vmul.f32 %v1129, %v962
  %v1158 = vmul.f32 %v1132, %v962
  %v1159 = vmul.f32 %v1135, %v962
  %v1160 = vmul.f32 %v1138, %v962
  %v1161 = vadd.f32 %v1139, 1e-05
  %v1162 = vadd.f32 %v1140, 1e-05
  %v1163 = vadd.f32 %v1141, 1e-05
  %v1164 = vadd.f32 %v1142, 1e-05
  %v1165 = vadd.f32 %v1143, 1e-05
  %v1166 = vadd.f32 %v1144, 1e-05
  %v1167 = vadd.f32 %v1145, 1e-05
  %v1168 = vadd.f32 %v1146, 1e-05
  %v1169 = vadd.f32 %v1147, 1e-05
  %v1170 = vadd.f32 %v1148, 1e-05
  %v1171 = vadd.f32 %v1149, 1e-05
  %v1172 = vadd.f32 %v1150, 1e-05
  %v1173 = vadd.f32 %v1151, 1e-05
  %v1174 = vadd.f32 %v1152, 1e-05
  %v1175 = vadd.f32 %v1153, 1e-05
  %v1176 = vadd.f32 %v1154, 1e-05
  %v1177 = vadd.f32 %v1155, 1e-05
  %v1178 = vadd.f32 %v1156, 1e-05
  %v1179 = vadd.f32 %v1157, 1e-05
  %v1180 = vadd.f32 %v1158, 1e-05
  %v1181 = vadd.f32 %v1159, 1e-05
  %v1182 = vadd.f32 %v1160, 1e-05
  %v1183 = vrsqrt.pop %v1161
  %v1184 = vrsqrt.pop %v1162
  %v1185 = vrsqrt.pop %v1163
  %v1186 = vrsqrt.pop %v1164
  %v1187 = vrsqrt.pop %v1165
  %v1188 = vrsqrt.pop %v1166
  %v1189 = vrsqrt.pop %v1167
  %v1190 = vrsqrt.pop %v1168
  %v1191 = vrsqrt.pop %v1169
  %v1192 = vrsqrt.pop %v1170
  %v1193 = vrsqrt.pop %v1171
  %v1194 = vrsqrt.pop %v1172
  %v1195 = vrsqrt.pop %v1173
  %v1196 = vrsqrt.pop %v1174
  %v1197 = vrsqrt.pop %v1175
  %v1198 = vrsqrt.pop %v1176
  %v1199 = vrsqrt.pop %v1177
  %v1200 = vrsqrt.pop %v1178
  %v1201 = vrsqrt.pop %v1179
  %v1202 = vrsqrt.pop %v1180
  %v1203 = vrsqrt.pop %v1181
  %v1204 = vrsqrt.pop %v1182
  %v1205 = vmul.f32 %v985, %v1183
  %v1206 = vmul.f32 %v986, %v1183
  %v1207 = vmul.f32 %v987, %v1184
  %v1208 = vmul.f32 %v988, %v1184
  %v1209 = vmul.f32 %v989, %v1185
  %v1210 = vmul.f32 %v990, %v1185
  %v1211 = vmul.f32 %v991, %v1186
  %v1212 = vmul.f32 %v992, %v1186
  %v1213 = vmul.f32 %v993, %v1187
  %v1214 = vmul.f32 %v994, %v1187
  %v1215 = vmul.f32 %v995, %v1188
  %v1216 = vmul.f32 %v996, %v1188
  %v1217 = vmul.f32 %v997, %v1189
  %v1218 = vmul.f32 %v998, %v1189
  %v1219 = vmul.f32 %v999, %v1190
  %v1220 = vmul.f32 %v1000, %v1190
  %v1221 = vmul.f32 %v1001, %v1191
  %v1222 = vmul.f32 %v1002, %v1191
  %v1223 = vmul.f32 %v1003, %v1192
  %v1224 = vmul.f32 %v1004, %v1192
  %v1225 = vmul.f32 %v1005, %v1193
  %v1226 = vmul.f32 %v1006, %v1193
  %v1227 = vmul.f32 %v1007, %v1194
  %v1228 = vmul.f32 %v1008, %v1194
  %v1229 = vmul.f32 %v1009, %v1195
  %v1230 = vmul.f32 %v1010, %v1195
  %v1231 = vmul.f32 %v1011, %v1196
  %v1232 = vmul.f32 %v1012, %v1196
  %v1233 = vmul.f32 %v1013, %v1197
  %v1234 = vmul.f32 %v1014, %v1197
  %v1235 = vmul.f32 %v1015, %v1198
  %v1236 = vmul.f32 %v1016, %v1198
  %v1237 = vmul.f32 %v1017, %v1199
  %v1238 = vmul.f32 %v1018, %v1199
  %v1239 = vmul.f32 %v1019, %v1200
  %v1240 = vmul.f32 %v1020, %v1200
  %v1241 = vmul.f32 %v1021, %v1201
  %v1242 = vmul.f32 %v1022, %v1201
  %v1243 = vmul.f32 %v1023, %v1202
  %v1244 = vmul.f32 %v1024, %v1202
  %v1245 = vmul.f32 %v1025, %v1203
  %v1246 = vmul.f32 %v1026, %v1203
  %v1247 = vmul.f32 %v1027, %v1204
  %v1248 = vmul.f32 %v1028, %v1204
  %v1249 = vld [vmem:[%s5] sm:$0x3]
  %v1251 = vlaneseq
  %v1252 = vshrl.u32 %v1251, 7
  %v1253 = vsub.s32 0, %v1252
  %v1254 = vrot.slane %v1249, %v1253
  %v1255 = vlaneseq
  %v1256 = vshrl.u32 %v1255, 7
  %v1257 = vsub.s32 1, %v1256
  %v1258 = vrot.slane %v1249, %v1257
  %v1261 = vmul.f32 %v1205, %v1254
  %v1262 = vmul.f32 %v1206, %v1258
  %v1263 = vmul.f32 %v1207, %v1254
  %v1264 = vmul.f32 %v1208, %v1258
  %v1265 = vmul.f32 %v1209, %v1254
  %v1266 = vmul.f32 %v1210, %v1258
  %v1267 = vmul.f32 %v1211, %v1254
  %v1268 = vmul.f32 %v1212, %v1258
  %v1269 = vmul.f32 %v1213, %v1254
  %v1270 = vmul.f32 %v1214, %v1258
  %v1271 = vmul.f32 %v1215, %v1254
  %v1272 = vmul.f32 %v1216, %v1258
  %v1273 = vmul.f32 %v1217, %v1254
  %v1274 = vmul.f32 %v1218, %v1258
  %v1275 = vmul.f32 %v1219, %v1254
  %v1276 = vmul.f32 %v1220, %v1258
  %v1277 = vmul.f32 %v1221, %v1254
  %v1278 = vmul.f32 %v1222, %v1258
  %v1279 = vmul.f32 %v1223, %v1254
  %v1280 = vmul.f32 %v1224, %v1258
  %v1281 = vmul.f32 %v1225, %v1254
  %v1282 = vmul.f32 %v1226, %v1258
  %v1283 = vmul.f32 %v1227, %v1254
  %v1284 = vmul.f32 %v1228, %v1258
  %v1285 = vmul.f32 %v1229, %v1254
  %v1286 = vmul.f32 %v1230, %v1258
  %v1287 = vmul.f32 %v1231, %v1254
  %v1288 = vmul.f32 %v1232, %v1258
  %v1289 = vmul.f32 %v1233, %v1254
  %v1290 = vmul.f32 %v1234, %v1258
  %v1291 = vmul.f32 %v1235, %v1254
  %v1292 = vmul.f32 %v1236, %v1258
  %v1293 = vmul.f32 %v1237, %v1254
  %v1294 = vmul.f32 %v1238, %v1258
  %v1295 = vmul.f32 %v1239, %v1254
  %v1296 = vmul.f32 %v1240, %v1258
  %v1297 = vmul.f32 %v1241, %v1254
  %v1298 = vmul.f32 %v1242, %v1258
  %v1299 = vmul.f32 %v1243, %v1254
  %v1300 = vmul.f32 %v1244, %v1258
  %v1301 = vmul.f32 %v1245, %v1254
  %v1302 = vmul.f32 %v1246, %v1258
  %v1303 = vmul.f32 %v1247, %v1254
  %v1304 = vmul.f32 %v1248, %v1258
  %v1305 = vld [vmem:[%s6] sm:$0x3]
  %v1307 = vlaneseq
  %v1308 = vshrl.u32 %v1307, 7
  %v1309 = vsub.s32 0, %v1308
  %v1310 = vrot.slane %v1305, %v1309
  %v1311 = vlaneseq
  %v1312 = vshrl.u32 %v1311, 7
  %v1313 = vsub.s32 1, %v1312
  %v1314 = vrot.slane %v1305, %v1313
  %v1317 = vadd.f32 %v1261, %v1310
  %v1318 = vadd.f32 %v1262, %v1314
  %v1319 = vadd.f32 %v1263, %v1310
  %v1320 = vadd.f32 %v1264, %v1314
  %v1321 = vadd.f32 %v1265, %v1310
  %v1322 = vadd.f32 %v1266, %v1314
  %v1323 = vadd.f32 %v1267, %v1310
  %v1324 = vadd.f32 %v1268, %v1314
  %v1325 = vadd.f32 %v1269, %v1310
  %v1326 = vadd.f32 %v1270, %v1314
  %v1327 = vadd.f32 %v1271, %v1310
  %v1328 = vadd.f32 %v1272, %v1314
  %v1329 = vadd.f32 %v1273, %v1310
  %v1330 = vadd.f32 %v1274, %v1314
  %v1331 = vadd.f32 %v1275, %v1310
  %v1332 = vadd.f32 %v1276, %v1314
  %v1333 = vadd.f32 %v1277, %v1310
  %v1334 = vadd.f32 %v1278, %v1314
  %v1335 = vadd.f32 %v1279, %v1310
  %v1336 = vadd.f32 %v1280, %v1314
  %v1337 = vadd.f32 %v1281, %v1310
  %v1338 = vadd.f32 %v1282, %v1314
  %v1339 = vadd.f32 %v1283, %v1310
  %v1340 = vadd.f32 %v1284, %v1314
  %v1341 = vadd.f32 %v1285, %v1310
  %v1342 = vadd.f32 %v1286, %v1314
  %v1343 = vadd.f32 %v1287, %v1310
  %v1344 = vadd.f32 %v1288, %v1314
  %v1345 = vadd.f32 %v1289, %v1310
  %v1346 = vadd.f32 %v1290, %v1314
  %v1347 = vadd.f32 %v1291, %v1310
  %v1348 = vadd.f32 %v1292, %v1314
  %v1349 = vadd.f32 %v1293, %v1310
  %v1350 = vadd.f32 %v1294, %v1314
  %v1351 = vadd.f32 %v1295, %v1310
  %v1352 = vadd.f32 %v1296, %v1314
  %v1353 = vadd.f32 %v1297, %v1310
  %v1354 = vadd.f32 %v1298, %v1314
  %v1355 = vadd.f32 %v1299, %v1310
  %v1356 = vadd.f32 %v1300, %v1314
  %v1357 = vadd.f32 %v1301, %v1310
  %v1358 = vadd.f32 %v1302, %v1314
  %v1359 = vadd.f32 %v1303, %v1310
  %v1360 = vadd.f32 %v1304, %v1314
  %1361 = vst [vmem:[%s7] sm:$0xff] %v1317
  %1362 = vst [vmem:[%s7 + $0x8] sm:$0xff] %v1318
  %1363 = vst [vmem:[%s7 + $0x10] sm:$0xff] %v1319
  %1364 = vst [vmem:[%s7 + $0x18] sm:$0xff] %v1320
  %1365 = vst [vmem:[%s7 + $0x20] sm:$0xff] %v1321
  %1366 = vst [vmem:[%s7 + $0x28] sm:$0xff] %v1322
  %1367 = vst [vmem:[%s7 + $0x30] sm:$0xff] %v1323
  %1368 = vst [vmem:[%s7 + $0x38] sm:$0xff] %v1324
  %1369 = vst [vmem:[%s7 + $0x40] sm:$0xff] %v1325
  %1370 = vst [vmem:[%s7 + $0x48] sm:$0xff] %v1326
  %1371 = vst [vmem:[%s7 + $0x50] sm:$0xff] %v1327
  %1372 = vst [vmem:[%s7 + $0x58] sm:$0xff] %v1328
  %1373 = vst [vmem:[%s7 + $0x60] sm:$0xff] %v1329
  %1374 = vst [vmem:[%s7 + $0x68] sm:$0xff] %v1330
  %1375 = vst [vmem:[%s7 + $0x70] sm:$0xff] %v1331
  %1376 = vst [vmem:[%s7 + $0x78] sm:$0xff] %v1332
  %1377 = vst [vmem:[%s7 + $0x80] sm:$0xff] %v1333
  %1378 = vst [vmem:[%s7 + $0x88] sm:$0xff] %v1334
  %1379 = vst [vmem:[%s7 + $0x90] sm:$0xff] %v1335
  %1380 = vst [vmem:[%s7 + $0x98] sm:$0xff] %v1336
  %1381 = vst [vmem:[%s7 + $0xa0] sm:$0xff] %v1337
  %1382 = vst [vmem:[%s7 + $0xa8] sm:$0xff] %v1338
  %1383 = vst [vmem:[%s7 + $0xb0] sm:$0xff] %v1339
  %1384 = vst [vmem:[%s7 + $0xb8] sm:$0xff] %v1340
  %1385 = vst [vmem:[%s7 + $0xc0] sm:$0xff] %v1341
  %1386 = vst [vmem:[%s7 + $0xc8] sm:$0xff] %v1342
  %1387 = vst [vmem:[%s7 + $0xd0] sm:$0xff] %v1343
  %1388 = vst [vmem:[%s7 + $0xd8] sm:$0xff] %v1344
  %1389 = vst [vmem:[%s7 + $0xe0] sm:$0xff] %v1345
  %1390 = vst [vmem:[%s7 + $0xe8] sm:$0xff] %v1346
  %1391 = vst [vmem:[%s7 + $0xf0] sm:$0xff] %v1347
  %1392 = vst [vmem:[%s7 + $0xf8] sm:$0xff] %v1348
  %1393 = vst [vmem:[%s7 + $0x100] sm:$0xff] %v1349
  %1394 = vst [vmem:[%s7 + $0x108] sm:$0xff] %v1350
  %1395 = vst [vmem:[%s7 + $0x110] sm:$0xff] %v1351
  %1396 = vst [vmem:[%s7 + $0x118] sm:$0xff] %v1352
  %1397 = vst [vmem:[%s7 + $0x120] sm:$0xff] %v1353
  %1398 = vst [vmem:[%s7 + $0x128] sm:$0xff] %v1354
  %1399 = vst [vmem:[%s7 + $0x130] sm:$0xff] %v1355
  %1400 = vst [vmem:[%s7 + $0x138] sm:$0xff] %v1356
  %1401 = vst [vmem:[%s7 + $0x140] sm:$0xff] %v1357
  %1402 = vst [vmem:[%s7 + $0x148] sm:$0xff] %v1358
  %1403 = vst [vmem:[%s7 + $0x150] sm:$0xff] %v1359
  %1404 = vst [vmem:[%s7 + $0x158] sm:$0xff] %v1360
  // Predicated region
  $region30: #{depth_aware_transformer_forward.44} parent=0 // pred_check
    _
  $region31: #{depth_aware_transformer_forward.44} parent=0 // pred_check_branch
    %1406 = sbr.rel (0) target = $region33
  $region32: #{depth_aware_transformer_forward.44} parent=0 // pred_region
    _
  $region33: #{depth_aware_transformer_forward.44} parent=0 // pred_fallthru
    _
  // Predicated region
  $region34: #{depth_aware_transformer_forward.44} parent=0 // pred_check
    _
  $region35: #{depth_aware_transformer_forward.44} parent=0 // pred_check_branch
    %1408 = sbr.rel (0) target = $region37
  $region36: #{depth_aware_transformer_forward.44} parent=0 // pred_region
    _
  $region37: #{depth_aware_transformer_forward.44} parent=0 // pred_fallthru
    _

// kernel: depth_aware_transformer_forward.50
$region0: #{depth_aware_transformer_forward.50}
  #allocation0 [shape = 'u32[]', space=smem, size = 0x4, offset = 0x4, fixed_abs, tag = 'smem constant byte address 0x4 - core index']
  #allocation1 [shape = 'u32[144,128]{1,0:T(1,128)}', space=vmem, size = 0x12000, scoped, tag = 'internal scratch']
  %s0 = inlined_call_operand.vmem [shape: f32[32,256], index: 0, kind: input, shape index: {}]
  %s1 = inlined_call_operand.vmem [shape: bf16[256,256], index: 1, kind: input, shape index: {}]
  %s2 = inlined_call_operand.vmem [shape: f32[1,256], index: 2, kind: input, shape index: {}]
  %s3 = inlined_call_operand.vmem [shape: f32[32,256], index: 3, kind: output, shape index: {}]
  %s4 = sld [smem:[#allocation0]]
  $region22: #{depth_aware_transformer_forward.50} parent=0
    _
  %s6 = ssub.s32 1, %s4
  %s7 = scalar_select 0, %s6, %s4
  // Predicated region
  $region2: #{depth_aware_transformer_forward.50} parent=0 // pred_check
    _
  $region3: #{depth_aware_transformer_forward.50} parent=0 // pred_check_branch
    %9 = sbr.rel (0) target = $region5
  $region4: #{depth_aware_transformer_forward.50} parent=0 // pred_region
    _
  $region5: #{depth_aware_transformer_forward.50} parent=0 // pred_fallthru
    _
  // Predicated region
  $region6: #{depth_aware_transformer_forward.50} parent=0 // pred_check
    _
  $region7: #{depth_aware_transformer_forward.50} parent=0 // pred_check_branch
    %11 = sbr.rel (0) target = $region9
  $region8: #{depth_aware_transformer_forward.50} parent=0 // pred_region
    _
  $region9: #{depth_aware_transformer_forward.50} parent=0 // pred_fallthru
    _
  // Predicated region
  $region10: #{depth_aware_transformer_forward.50} parent=0 // pred_check
    _
  $region11: #{depth_aware_transformer_forward.50} parent=0 // pred_check_branch
    %13 = sbr.rel (0) target = $region13
  $region12: #{depth_aware_transformer_forward.50} parent=0 // pred_region
    _
  $region13: #{depth_aware_transformer_forward.50} parent=0 // pred_fallthru
    _
  %v14 = vld [vmem:[%s0] sm:$0xff]
  %v15 = vld [vmem:[%s0 + $0x8] sm:$0xff]
  %v16 = vld [vmem:[%s0 + $0x10] sm:$0xff]
  %v17 = vld [vmem:[%s0 + $0x18] sm:$0xff]
  %v18 = vld [vmem:[%s0 + $0x20] sm:$0xff]
  %v19 = vld [vmem:[%s0 + $0x28] sm:$0xff]
  %v20 = vld [vmem:[%s0 + $0x30] sm:$0xff]
  %v21 = vld [vmem:[%s0 + $0x38] sm:$0xff]
  %v22 = vpack.c.bf16 %v16, %v14
  %v23 = vpack.c.bf16 %v17, %v15
  %v24 = vpack.c.bf16 %v20, %v18
  %v25 = vpack.c.bf16 %v21, %v19
  %v26 = vld [vmem:[%s1] sm:$0xff]
  %v27 = vld [vmem:[%s1 + $0x8] sm:$0xff]
  %v28 = vld [vmem:[%s1 + $0x10] sm:$0xff]
  %v29 = vld [vmem:[%s1 + $0x18] sm:$0xff]
  %v30 = vld [vmem:[%s1 + $0x20] sm:$0xff]
  %v31 = vld [vmem:[%s1 + $0x28] sm:$0xff]
  %v32 = vld [vmem:[%s1 + $0x30] sm:$0xff]
  %v33 = vld [vmem:[%s1 + $0x38] sm:$0xff]
  %v34 = vld [vmem:[%s1 + $0x40] sm:$0xff]
  %v35 = vld [vmem:[%s1 + $0x48] sm:$0xff]
  %v36 = vld [vmem:[%s1 + $0x50] sm:$0xff]
  %v37 = vld [vmem:[%s1 + $0x58] sm:$0xff]
  %v38 = vld [vmem:[%s1 + $0x60] sm:$0xff]
  %v39 = vld [vmem:[%s1 + $0x68] sm:$0xff]
  %v40 = vld [vmem:[%s1 + $0x70] sm:$0xff]
  %v41 = vld [vmem:[%s1 + $0x78] sm:$0xff]
  %v42 = vld [vmem:[%s1 + $0x80] sm:$0xff]
  %v43 = vld [vmem:[%s1 + $0x88] sm:$0xff]
  %v44 = vld [vmem:[%s1 + $0x90] sm:$0xff]
  %v45 = vld [vmem:[%s1 + $0x98] sm:$0xff]
  %v46 = vld [vmem:[%s1 + $0xa0] sm:$0xff]
  %v47 = vld [vmem:[%s1 + $0xa8] sm:$0xff]
  %v48 = vld [vmem:[%s1 + $0xb0] sm:$0xff]
  %v49 = vld [vmem:[%s1 + $0xb8] sm:$0xff]
  %v50 = vld [vmem:[%s1 + $0xc0] sm:$0xff]
  %v51 = vld [vmem:[%s1 + $0xc8] sm:$0xff]
  %v52 = vld [vmem:[%s1 + $0xd0] sm:$0xff]
  %v53 = vld [vmem:[%s1 + $0xd8] sm:$0xff]
  %v54 = vld [vmem:[%s1 + $0xe0] sm:$0xff]
  %v55 = vld [vmem:[%s1 + $0xe8] sm:$0xff]
  %v56 = vld [vmem:[%s1 + $0xf0] sm:$0xff]
  %v57 = vld [vmem:[%s1 + $0xf8] sm:$0xff]
  %v58 = vld [vmem:[%s2] sm:$0x3]
  %v60 = vlaneseq
  %v61 = vshrl.u32 %v60, 7
  %v62 = vsub.s32 0, %v61
  %v63 = vrot.slane %v58, %v62
  %v64 = vlaneseq
  %v65 = vshrl.u32 %v64, 7
  %v66 = vsub.s32 1, %v65
  %v67 = vrot.slane %v58, %v66
  %v102 = vunpack.c.l.b16 %v26
  %v103 = vunpack.c.h.b16 %v26
  %v104 = vunpack.c.l.b16 %v27
  %v105 = vunpack.c.h.b16 %v27
  %v106 = vunpack.c.l.b16 %v28
  %v107 = vunpack.c.h.b16 %v28
  %v108 = vunpack.c.l.b16 %v29
  %v109 = vunpack.c.h.b16 %v29
  %v110 = vunpack.c.l.b16 %v30
  %v111 = vunpack.c.h.b16 %v30
  %v112 = vunpack.c.l.b16 %v31
  %v113 = vunpack.c.h.b16 %v31
  %v114 = vunpack.c.l.b16 %v32
  %v115 = vunpack.c.h.b16 %v32
  %v116 = vunpack.c.l.b16 %v33
  %v117 = vunpack.c.h.b16 %v33
  %v118 = vunpack.c.l.b16 %v34
  %v119 = vunpack.c.h.b16 %v34
  %v120 = vunpack.c.l.b16 %v35
  %v121 = vunpack.c.h.b16 %v35
  %v122 = vunpack.c.l.b16 %v36
  %v123 = vunpack.c.h.b16 %v36
  %v124 = vunpack.c.l.b16 %v37
  %v125 = vunpack.c.h.b16 %v37
  %v126 = vunpack.c.l.b16 %v38
  %v127 = vunpack.c.h.b16 %v38
  %v128 = vunpack.c.l.b16 %v39
  %v129 = vunpack.c.h.b16 %v39
  %v130 = vunpack.c.l.b16 %v40
  %v131 = vunpack.c.h.b16 %v40
  %v132 = vunpack.c.l.b16 %v41
  %v133 = vunpack.c.h.b16 %v41
  %v134 = vunpack.c.l.b16 %v42
  %v135 = vunpack.c.h.b16 %v42
  %v136 = vunpack.c.l.b16 %v43
  %v137 = vunpack.c.h.b16 %v43
  %v138 = vunpack.c.l.b16 %v44
  %v139 = vunpack.c.h.b16 %v44
  %v140 = vunpack.c.l.b16 %v45
  %v141 = vunpack.c.h.b16 %v45
  %v142 = vunpack.c.l.b16 %v46
  %v143 = vunpack.c.h.b16 %v46
  %v144 = vunpack.c.l.b16 %v47
  %v145 = vunpack.c.h.b16 %v47
  %v146 = vunpack.c.l.b16 %v48
  %v147 = vunpack.c.h.b16 %v48
  %v148 = vunpack.c.l.b16 %v49
  %v149 = vunpack.c.h.b16 %v49
  %v150 = vunpack.c.l.b16 %v50
  %v151 = vunpack.c.h.b16 %v50
  %v152 = vunpack.c.l.b16 %v51
  %v153 = vunpack.c.h.b16 %v51
  %v154 = vunpack.c.l.b16 %v52
  %v155 = vunpack.c.h.b16 %v52
  %v156 = vunpack.c.l.b16 %v53
  %v157 = vunpack.c.h.b16 %v53
  %v158 = vunpack.c.l.b16 %v54
  %v159 = vunpack.c.h.b16 %v54
  %v160 = vunpack.c.l.b16 %v55
  %v161 = vunpack.c.h.b16 %v55
  %v162 = vunpack.c.l.b16 %v56
  %v163 = vunpack.c.h.b16 %v56
  %v164 = vunpack.c.l.b16 %v57
  %v165 = vunpack.c.h.b16 %v57
  %v166 = vpack.c.b16 %v104, %v102
  %v167 = vpack.c.b16 %v105, %v103
  %v168 = vpack.c.b16 %v108, %v106
  %v169 = vpack.c.b16 %v109, %v107
  %v170 = vpack.c.b16 %v112, %v110
  %v171 = vpack.c.b16 %v113, %v111
  %v172 = vpack.c.b16 %v116, %v114
  %v173 = vpack.c.b16 %v117, %v115
  %v174 = vpack.c.b16 %v120, %v118
  %v175 = vpack.c.b16 %v121, %v119
  %v176 = vpack.c.b16 %v124, %v122
  %v177 = vpack.c.b16 %v125, %v123
  %v178 = vpack.c.b16 %v128, %v126
  %v179 = vpack.c.b16 %v129, %v127
  %v180 = vpack.c.b16 %v132, %v130
  %v181 = vpack.c.b16 %v133, %v131
  %v182 = vpack.c.b16 %v136, %v134
  %v183 = vpack.c.b16 %v137, %v135
  %v184 = vpack.c.b16 %v140, %v138
  %v185 = vpack.c.b16 %v141, %v139
  %v186 = vpack.c.b16 %v144, %v142
  %v187 = vpack.c.b16 %v145, %v143
  %v188 = vpack.c.b16 %v148, %v146
  %v189 = vpack.c.b16 %v149, %v147
  %v190 = vpack.c.b16 %v152, %v150
  %v191 = vpack.c.b16 %v153, %v151
  %v192 = vpack.c.b16 %v156, %v154
  %v193 = vpack.c.b16 %v157, %v155
  %v194 = vpack.c.b16 %v160, %v158
  %v195 = vpack.c.b16 %v161, %v159
  %v196 = vpack.c.b16 %v164, %v162
  %v197 = vpack.c.b16 %v165, %v163
  %230 = vmatprep.subr.bf16.mxu0 %v167
  %231 = vmatpush1.bf16.msra.mxu0 %v166
  %232 = vmatprep.subr.bf16.mxu0 %v169
  %233 = vmatpush1.bf16.msra.mxu0 %v168
  %234 = vmatprep.subr.bf16.mxu0 %v171
  %235 = vmatpush1.bf16.msra.mxu0 %v170
  %236 = vmatprep.subr.bf16.mxu0 %v173
  %237 = vmatpush1.bf16.msra.mxu0 %v172
  %238 = vmatprep.subr.bf16.mxu0 %v175
  %239 = vmatpush1.bf16.msra.mxu0 %v174
  %240 = vmatprep.subr.bf16.mxu0 %v177
  %241 = vmatpush1.bf16.msra.mxu0 %v176
  %242 = vmatprep.subr.bf16.mxu0 %v179
  %243 = vmatpush1.bf16.msra.mxu0 %v178
  %244 = vmatprep.subr.bf16.mxu0 %v181
  %245 = vmatpush1.bf16.msra.mxu0 %v180
  %246 = vmatprep.subr.bf16.mxu0 %v183
  %247 = vmatpush1.bf16.msra.mxu0 %v182
  %248 = vmatprep.subr.bf16.mxu0 %v185
  %249 = vmatpush1.bf16.msra.mxu0 %v184
  %250 = vmatprep.subr.bf16.mxu0 %v187
  %251 = vmatpush1.bf16.msra.mxu0 %v186
  %252 = vmatprep.subr.bf16.mxu0 %v189
  %253 = vmatpush1.bf16.msra.mxu0 %v188
  %254 = vmatprep.subr.bf16.mxu0 %v191
  %255 = vmatpush1.bf16.msra.mxu0 %v190
  %256 = vmatprep.subr.bf16.mxu0 %v193
  %257 = vmatpush1.bf16.msra.mxu0 %v192
  %258 = vmatprep.subr.bf16.mxu0 %v195
  %259 = vmatpush1.bf16.msra.mxu0 %v194
  %260 = vmatprep.subr.bf16.mxu0 %v197
  %261 = vmatpush1.bf16.msra.mxu0 %v196
  %262 = vmatprep.mubr.bf16.mxu0 %v23
  %263 = vmatmul.mubr.bf16.gmra.mrb[0].mxu0 %v22
  %v264 = vpop.f32.mrb[0].mxu0
  %v265 = vadd.f32 %v63, %v264
  %v266 = vpop.f32.mrb[0].mxu0
  %v267 = vadd.f32 %v67, %v266
  %v268 = vpop.f32.mrb[0].mxu0
  %v269 = vadd.f32 %v63, %v268
  %v270 = vpop.f32.mrb[0].mxu0
  %v271 = vadd.f32 %v67, %v270
  %272 = vmatprep.mubr.bf16.mxu0 %v25
  %273 = vmatmul.mubr.bf16.gmra.mrb[0].mxu0 %v24
  %v274 = vpop.f32.mrb[0].mxu0
  %v275 = vadd.f32 %v63, %v274
  %v276 = vpop.f32.mrb[0].mxu0
  %v277 = vadd.f32 %v67, %v276
  %v278 = vpop.f32.mrb[0].mxu0
  %v279 = vadd.f32 %v63, %v278
  %v280 = vpop.f32.mrb[0].mxu0
  %v281 = vadd.f32 %v67, %v280
  %282 = vdwg.mxu0
  %283 = vst [vmem:[%s3] sm:$0xff] %v265
  %284 = vst [vmem:[%s3 + $0x8] sm:$0xff] %v267
  %285 = vst [vmem:[%s3 + $0x10] sm:$0xff] %v269
  %286 = vst [vmem:[%s3 + $0x18] sm:$0xff] %v271
  %287 = vst [vmem:[%s3 + $0x20] sm:$0xff] %v275
  %288 = vst [vmem:[%s3 + $0x28] sm:$0xff] %v277
  %289 = vst [vmem:[%s3 + $0x30] sm:$0xff] %v279
  %290 = vst [vmem:[%s3 + $0x38] sm:$0xff] %v281
  // Predicated region
  $region14: #{depth_aware_transformer_forward.50} parent=0 // pred_check
    _
  $region15: #{depth_aware_transformer_forward.50} parent=0 // pred_check_branch
    %292 = sbr.rel (0) target = $region17
  $region16: #{depth_aware_transformer_forward.50} parent=0 // pred_region
    _
  $region17: #{depth_aware_transformer_forward.50} parent=0 // pred_fallthru
    _
  // Predicated region
  $region18: #{depth_aware_transformer_forward.50} parent=0 // pred_check
    _
  $region19: #{depth_aware_transformer_forward.50} parent=0 // pred_check_branch
    %294 = sbr.rel (0) target = $region21
  $region20: #{depth_aware_transformer_forward.50} parent=0 // pred_region
    _
  $region21: #{depth_aware_transformer_forward.50} parent=0 // pred_fallthru
    _

// kernel: depth_aware_transformer_forward.51
$region0: #{depth_aware_transformer_forward.51}
  #allocation0 [shape = 'u32[]', space=smem, size = 0x4, offset = 0x4, fixed_abs, tag = 'smem constant byte address 0x4 - core index']
  #allocation1 [shape = 'u32[144,128]{1,0:T(1,128)}', space=vmem, size = 0x12000, scoped, tag = 'internal scratch']
  %s0 = inlined_call_operand.vmem [shape: f32[32,256], index: 0, kind: input, shape index: {}]
  %s1 = inlined_call_operand.vmem [shape: bf16[256,512], index: 1, kind: input, shape index: {}]
  %s2 = inlined_call_operand.vmem [shape: f32[1,512], index: 2, kind: input, shape index: {}]
  %s3 = inlined_call_operand.vmem [shape: f32[32,512], index: 3, kind: output, shape index: {}]
  %s4 = sld [smem:[#allocation0]]
  $region22: #{depth_aware_transformer_forward.51} parent=0
    _
  %s6 = ssub.s32 1, %s4
  %s7 = scalar_select 0, %s6, %s4
  // Predicated region
  $region2: #{depth_aware_transformer_forward.51} parent=0 // pred_check
    _
  $region3: #{depth_aware_transformer_forward.51} parent=0 // pred_check_branch
    %9 = sbr.rel (0) target = $region5
  $region4: #{depth_aware_transformer_forward.51} parent=0 // pred_region
    _
  $region5: #{depth_aware_transformer_forward.51} parent=0 // pred_fallthru
    _
  // Predicated region
  $region6: #{depth_aware_transformer_forward.51} parent=0 // pred_check
    _
  $region7: #{depth_aware_transformer_forward.51} parent=0 // pred_check_branch
    %11 = sbr.rel (0) target = $region9
  $region8: #{depth_aware_transformer_forward.51} parent=0 // pred_region
    _
  $region9: #{depth_aware_transformer_forward.51} parent=0 // pred_fallthru
    _
  // Predicated region
  $region10: #{depth_aware_transformer_forward.51} parent=0 // pred_check
    _
  $region11: #{depth_aware_transformer_forward.51} parent=0 // pred_check_branch
    %13 = sbr.rel (0) target = $region13
  $region12: #{depth_aware_transformer_forward.51} parent=0 // pred_region
    _
  $region13: #{depth_aware_transformer_forward.51} parent=0 // pred_fallthru
    _
  %v14 = vld [vmem:[%s0] sm:$0xff]
  %v15 = vld [vmem:[%s0 + $0x8] sm:$0xff]
  %v16 = vld [vmem:[%s0 + $0x10] sm:$0xff]
  %v17 = vld [vmem:[%s0 + $0x18] sm:$0xff]
  %v18 = vld [vmem:[%s0 + $0x20] sm:$0xff]
  %v19 = vld [vmem:[%s0 + $0x28] sm:$0xff]
  %v20 = vld [vmem:[%s0 + $0x30] sm:$0xff]
  %v21 = vld [vmem:[%s0 + $0x38] sm:$0xff]
  %v22 = vpack.c.bf16 %v16, %v14
  %v23 = vpack.c.bf16 %v17, %v15
  %v24 = vpack.c.bf16 %v20, %v18
  %v25 = vpack.c.bf16 %v21, %v19
  %v26 = vld [vmem:[%s1] sm:$0xff]
  %v27 = vld [vmem:[%s1 + $0x8] sm:$0xff]
  %v28 = vld [vmem:[%s1 + $0x10] sm:$0xff]
  %v29 = vld [vmem:[%s1 + $0x18] sm:$0xff]
  %v30 = vld [vmem:[%s1 + $0x20] sm:$0xff]
  %v31 = vld [vmem:[%s1 + $0x28] sm:$0xff]
  %v32 = vld [vmem:[%s1 + $0x30] sm:$0xff]
  %v33 = vld [vmem:[%s1 + $0x38] sm:$0xff]
  %v34 = vld [vmem:[%s1 + $0x40] sm:$0xff]
  %v35 = vld [vmem:[%s1 + $0x48] sm:$0xff]
  %v36 = vld [vmem:[%s1 + $0x50] sm:$0xff]
  %v37 = vld [vmem:[%s1 + $0x58] sm:$0xff]
  %v38 = vld [vmem:[%s1 + $0x60] sm:$0xff]
  %v39 = vld [vmem:[%s1 + $0x68] sm:$0xff]
  %v40 = vld [vmem:[%s1 + $0x70] sm:$0xff]
  %v41 = vld [vmem:[%s1 + $0x78] sm:$0xff]
  %v42 = vld [vmem:[%s1 + $0x80] sm:$0xff]
  %v43 = vld [vmem:[%s1 + $0x88] sm:$0xff]
  %v44 = vld [vmem:[%s1 + $0x90] sm:$0xff]
  %v45 = vld [vmem:[%s1 + $0x98] sm:$0xff]
  %v46 = vld [vmem:[%s1 + $0xa0] sm:$0xff]
  %v47 = vld [vmem:[%s1 + $0xa8] sm:$0xff]
  %v48 = vld [vmem:[%s1 + $0xb0] sm:$0xff]
  %v49 = vld [vmem:[%s1 + $0xb8] sm:$0xff]
  %v50 = vld [vmem:[%s1 + $0xc0] sm:$0xff]
  %v51 = vld [vmem:[%s1 + $0xc8] sm:$0xff]
  %v52 = vld [vmem:[%s1 + $0xd0] sm:$0xff]
  %v53 = vld [vmem:[%s1 + $0xd8] sm:$0xff]
  %v54 = vld [vmem:[%s1 + $0xe0] sm:$0xff]
  %v55 = vld [vmem:[%s1 + $0xe8] sm:$0xff]
  %v56 = vld [vmem:[%s1 + $0xf0] sm:$0xff]
  %v57 = vld [vmem:[%s1 + $0xf8] sm:$0xff]
  %v58 = vld [vmem:[%s1 + $0x100] sm:$0xff]
  %v59 = vld [vmem:[%s1 + $0x108] sm:$0xff]
  %v60 = vld [vmem:[%s1 + $0x110] sm:$0xff]
  %v61 = vld [vmem:[%s1 + $0x118] sm:$0xff]
  %v62 = vld [vmem:[%s1 + $0x120] sm:$0xff]
  %v63 = vld [vmem:[%s1 + $0x128] sm:$0xff]
  %v64 = vld [vmem:[%s1 + $0x130] sm:$0xff]
  %v65 = vld [vmem:[%s1 + $0x138] sm:$0xff]
  %v66 = vld [vmem:[%s1 + $0x140] sm:$0xff]
  %v67 = vld [vmem:[%s1 + $0x148] sm:$0xff]
  %v68 = vld [vmem:[%s1 + $0x150] sm:$0xff]
  %v69 = vld [vmem:[%s1 + $0x158] sm:$0xff]
  %v70 = vld [vmem:[%s1 + $0x160] sm:$0xff]
  %v71 = vld [vmem:[%s1 + $0x168] sm:$0xff]
  %v72 = vld [vmem:[%s1 + $0x170] sm:$0xff]
  %v73 = vld [vmem:[%s1 + $0x178] sm:$0xff]
  %v74 = vld [vmem:[%s1 + $0x180] sm:$0xff]
  %v75 = vld [vmem:[%s1 + $0x188] sm:$0xff]
  %v76 = vld [vmem:[%s1 + $0x190] sm:$0xff]
  %v77 = vld [vmem:[%s1 + $0x198] sm:$0xff]
  %v78 = vld [vmem:[%s1 + $0x1a0] sm:$0xff]
  %v79 = vld [vmem:[%s1 + $0x1a8] sm:$0xff]
  %v80 = vld [vmem:[%s1 + $0x1b0] sm:$0xff]
  %v81 = vld [vmem:[%s1 + $0x1b8] sm:$0xff]
  %v82 = vld [vmem:[%s1 + $0x1c0] sm:$0xff]
  %v83 = vld [vmem:[%s1 + $0x1c8] sm:$0xff]
  %v84 = vld [vmem:[%s1 + $0x1d0] sm:$0xff]
  %v85 = vld [vmem:[%s1 + $0x1d8] sm:$0xff]
  %v86 = vld [vmem:[%s1 + $0x1e0] sm:$0xff]
  %v87 = vld [vmem:[%s1 + $0x1e8] sm:$0xff]
  %v88 = vld [vmem:[%s1 + $0x1f0] sm:$0xff]
  %v89 = vld [vmem:[%s1 + $0x1f8] sm:$0xff]
  %v90 = vld [vmem:[%s2] sm:$0xf]
  %v92 = vlaneseq
  %v93 = vshrl.u32 %v92, 7
  %v94 = vsub.s32 0, %v93
  %v95 = vrot.slane %v90, %v94
  %v96 = vlaneseq
  %v97 = vshrl.u32 %v96, 7
  %v98 = vsub.s32 1, %v97
  %v99 = vrot.slane %v90, %v98
  %v100 = vlaneseq
  %v101 = vshrl.u32 %v100, 7
  %v102 = vsub.s32 2, %v101
  %v103 = vrot.slane %v90, %v102
  %v104 = vlaneseq
  %v105 = vshrl.u32 %v104, 7
  %v106 = vsub.s32 3, %v105
  %v107 = vrot.slane %v90, %v106
  %v176 = vunpack.c.l.b16 %v26
  %v177 = vunpack.c.h.b16 %v26
  %v178 = vunpack.c.l.b16 %v27
  %v179 = vunpack.c.h.b16 %v27
  %v180 = vunpack.c.l.b16 %v28
  %v181 = vunpack.c.h.b16 %v28
  %v182 = vunpack.c.l.b16 %v29
  %v183 = vunpack.c.h.b16 %v29
  %v184 = vunpack.c.l.b16 %v30
  %v185 = vunpack.c.h.b16 %v30
  %v186 = vunpack.c.l.b16 %v31
  %v187 = vunpack.c.h.b16 %v31
  %v188 = vunpack.c.l.b16 %v32
  %v189 = vunpack.c.h.b16 %v32
  %v190 = vunpack.c.l.b16 %v33
  %v191 = vunpack.c.h.b16 %v33
  %v192 = vunpack.c.l.b16 %v34
  %v193 = vunpack.c.h.b16 %v34
  %v194 = vunpack.c.l.b16 %v35
  %v195 = vunpack.c.h.b16 %v35
  %v196 = vunpack.c.l.b16 %v36
  %v197 = vunpack.c.h.b16 %v36
  %v198 = vunpack.c.l.b16 %v37
  %v199 = vunpack.c.h.b16 %v37
  %v200 = vunpack.c.l.b16 %v38
  %v201 = vunpack.c.h.b16 %v38
  %v202 = vunpack.c.l.b16 %v39
  %v203 = vunpack.c.h.b16 %v39
  %v204 = vunpack.c.l.b16 %v40
  %v205 = vunpack.c.h.b16 %v40
  %v206 = vunpack.c.l.b16 %v41
  %v207 = vunpack.c.h.b16 %v41
  %v208 = vunpack.c.l.b16 %v42
  %v209 = vunpack.c.h.b16 %v42
  %v210 = vunpack.c.l.b16 %v43
  %v211 = vunpack.c.h.b16 %v43
  %v212 = vunpack.c.l.b16 %v44
  %v213 = vunpack.c.h.b16 %v44
  %v214 = vunpack.c.l.b16 %v45
  %v215 = vunpack.c.h.b16 %v45
  %v216 = vunpack.c.l.b16 %v46
  %v217 = vunpack.c.h.b16 %v46
  %v218 = vunpack.c.l.b16 %v47
  %v219 = vunpack.c.h.b16 %v47
  %v220 = vunpack.c.l.b16 %v48
  %v221 = vunpack.c.h.b16 %v48
  %v222 = vunpack.c.l.b16 %v49
  %v223 = vunpack.c.h.b16 %v49
  %v224 = vunpack.c.l.b16 %v50
  %v225 = vunpack.c.h.b16 %v50
  %v226 = vunpack.c.l.b16 %v51
  %v227 = vunpack.c.h.b16 %v51
  %v228 = vunpack.c.l.b16 %v52
  %v229 = vunpack.c.h.b16 %v52
  %v230 = vunpack.c.l.b16 %v53
  %v231 = vunpack.c.h.b16 %v53
  %v232 = vunpack.c.l.b16 %v54
  %v233 = vunpack.c.h.b16 %v54
  %v234 = vunpack.c.l.b16 %v55
  %v235 = vunpack.c.h.b16 %v55
  %v236 = vunpack.c.l.b16 %v56
  %v237 = vunpack.c.h.b16 %v56
  %v238 = vunpack.c.l.b16 %v57
  %v239 = vunpack.c.h.b16 %v57
  %v240 = vunpack.c.l.b16 %v58
  %v241 = vunpack.c.h.b16 %v58
  %v242 = vunpack.c.l.b16 %v59
  %v243 = vunpack.c.h.b16 %v59
  %v244 = vunpack.c.l.b16 %v60
  %v245 = vunpack.c.h.b16 %v60
  %v246 = vunpack.c.l.b16 %v61
  %v247 = vunpack.c.h.b16 %v61
  %v248 = vunpack.c.l.b16 %v62
  %v249 = vunpack.c.h.b16 %v62
  %v250 = vunpack.c.l.b16 %v63
  %v251 = vunpack.c.h.b16 %v63
  %v252 = vunpack.c.l.b16 %v64
  %v253 = vunpack.c.h.b16 %v64
  %v254 = vunpack.c.l.b16 %v65
  %v255 = vunpack.c.h.b16 %v65
  %v256 = vunpack.c.l.b16 %v66
  %v257 = vunpack.c.h.b16 %v66
  %v258 = vunpack.c.l.b16 %v67
  %v259 = vunpack.c.h.b16 %v67
  %v260 = vunpack.c.l.b16 %v68
  %v261 = vunpack.c.h.b16 %v68
  %v262 = vunpack.c.l.b16 %v69
  %v263 = vunpack.c.h.b16 %v69
  %v264 = vunpack.c.l.b16 %v70
  %v265 = vunpack.c.h.b16 %v70
  %v266 = vunpack.c.l.b16 %v71
  %v267 = vunpack.c.h.b16 %v71
  %v268 = vunpack.c.l.b16 %v72
  %v269 = vunpack.c.h.b16 %v72
  %v270 = vunpack.c.l.b16 %v73
  %v271 = vunpack.c.h.b16 %v73
  %v272 = vunpack.c.l.b16 %v74
  %v273 = vunpack.c.h.b16 %v74
  %v274 = vunpack.c.l.b16 %v75
  %v275 = vunpack.c.h.b16 %v75
  %v276 = vunpack.c.l.b16 %v76
  %v277 = vunpack.c.h.b16 %v76
  %v278 = vunpack.c.l.b16 %v77
  %v279 = vunpack.c.h.b16 %v77
  %v280 = vunpack.c.l.b16 %v78
  %v281 = vunpack.c.h.b16 %v78
  %v282 = vunpack.c.l.b16 %v79
  %v283 = vunpack.c.h.b16 %v79
  %v284 = vunpack.c.l.b16 %v80
  %v285 = vunpack.c.h.b16 %v80
  %v286 = vunpack.c.l.b16 %v81
  %v287 = vunpack.c.h.b16 %v81
  %v288 = vunpack.c.l.b16 %v82
  %v289 = vunpack.c.h.b16 %v82
  %v290 = vunpack.c.l.b16 %v83
  %v291 = vunpack.c.h.b16 %v83
  %v292 = vunpack.c.l.b16 %v84
  %v293 = vunpack.c.h.b16 %v84
  %v294 = vunpack.c.l.b16 %v85
  %v295 = vunpack.c.h.b16 %v85
  %v296 = vunpack.c.l.b16 %v86
  %v297 = vunpack.c.h.b16 %v86
  %v298 = vunpack.c.l.b16 %v87
  %v299 = vunpack.c.h.b16 %v87
  %v300 = vunpack.c.l.b16 %v88
  %v301 = vunpack.c.h.b16 %v88
  %v302 = vunpack.c.l.b16 %v89
  %v303 = vunpack.c.h.b16 %v89
  %v304 = vpack.c.b16 %v180, %v176
  %v305 = vpack.c.b16 %v181, %v177
  %v306 = vpack.c.b16 %v182, %v178
  %v307 = vpack.c.b16 %v183, %v179
  %v308 = vpack.c.b16 %v188, %v184
  %v309 = vpack.c.b16 %v189, %v185
  %v310 = vpack.c.b16 %v190, %v186
  %v311 = vpack.c.b16 %v191, %v187
  %v312 = vpack.c.b16 %v196, %v192
  %v313 = vpack.c.b16 %v197, %v193
  %v314 = vpack.c.b16 %v198, %v194
  %v315 = vpack.c.b16 %v199, %v195
  %v316 = vpack.c.b16 %v204, %v200
  %v317 = vpack.c.b16 %v205, %v201
  %v318 = vpack.c.b16 %v206, %v202
  %v319 = vpack.c.b16 %v207, %v203
  %v320 = vpack.c.b16 %v212, %v208
  %v321 = vpack.c.b16 %v213, %v209
  %v322 = vpack.c.b16 %v214, %v210
  %v323 = vpack.c.b16 %v215, %v211
  %v324 = vpack.c.b16 %v220, %v216
  %v325 = vpack.c.b16 %v221, %v217
  %v326 = vpack.c.b16 %v222, %v218
  %v327 = vpack.c.b16 %v223, %v219
  %v328 = vpack.c.b16 %v228, %v224
  %v329 = vpack.c.b16 %v229, %v225
  %v330 = vpack.c.b16 %v230, %v226
  %v331 = vpack.c.b16 %v231, %v227
  %v332 = vpack.c.b16 %v236, %v232
  %v333 = vpack.c.b16 %v237, %v233
  %v334 = vpack.c.b16 %v238, %v234
  %v335 = vpack.c.b16 %v239, %v235
  %v336 = vpack.c.b16 %v244, %v240
  %v337 = vpack.c.b16 %v245, %v241
  %v338 = vpack.c.b16 %v246, %v242
  %v339 = vpack.c.b16 %v247, %v243
  %v340 = vpack.c.b16 %v252, %v248
  %v341 = vpack.c.b16 %v253, %v249
  %v342 = vpack.c.b16 %v254, %v250
  %v343 = vpack.c.b16 %v255, %v251
  %v344 = vpack.c.b16 %v260, %v256
  %v345 = vpack.c.b16 %v261, %v257
  %v346 = vpack.c.b16 %v262, %v258
  %v347 = vpack.c.b16 %v263, %v259
  %v348 = vpack.c.b16 %v268, %v264
  %v349 = vpack.c.b16 %v269, %v265
  %v350 = vpack.c.b16 %v270, %v266
  %v351 = vpack.c.b16 %v271, %v267
  %v352 = vpack.c.b16 %v276, %v272
  %v353 = vpack.c.b16 %v277, %v273
  %v354 = vpack.c.b16 %v278, %v274
  %v355 = vpack.c.b16 %v279, %v275
  %v356 = vpack.c.b16 %v284, %v280
  %v357 = vpack.c.b16 %v285, %v281
  %v358 = vpack.c.b16 %v286, %v282
  %v359 = vpack.c.b16 %v287, %v283
  %v360 = vpack.c.b16 %v292, %v288
  %v361 = vpack.c.b16 %v293, %v289
  %v362 = vpack.c.b16 %v294, %v290
  %v363 = vpack.c.b16 %v295, %v291
  %v364 = vpack.c.b16 %v300, %v296
  %v365 = vpack.c.b16 %v301, %v297
  %v366 = vpack.c.b16 %v302, %v298
  %v367 = vpack.c.b16 %v303, %v299
  %432 = vmatprep.subr.bf16.mxu0 %v305
  %433 = vmatpush1.bf16.msra.mxu0 %v304
  %434 = vmatprep.subr.bf16.mxu0 %v309
  %435 = vmatpush1.bf16.msra.mxu0 %v308
  %436 = vmatprep.subr.bf16.mxu0 %v313
  %437 = vmatpush1.bf16.msra.mxu0 %v312
  %438 = vmatprep.subr.bf16.mxu0 %v317
  %439 = vmatpush1.bf16.msra.mxu0 %v316
  %440 = vmatprep.subr.bf16.mxu0 %v321
  %441 = vmatpush1.bf16.msra.mxu0 %v320
  %442 = vmatprep.subr.bf16.mxu0 %v325
  %443 = vmatpush1.bf16.msra.mxu0 %v324
  %444 = vmatprep.subr.bf16.mxu0 %v329
  %445 = vmatpush1.bf16.msra.mxu0 %v328
  %446 = vmatprep.subr.bf16.mxu0 %v333
  %447 = vmatpush1.bf16.msra.mxu0 %v332
  %448 = vmatprep.subr.bf16.mxu0 %v337
  %449 = vmatpush1.bf16.msra.mxu0 %v336
  %450 = vmatprep.subr.bf16.mxu0 %v341
  %451 = vmatpush1.bf16.msra.mxu0 %v340
  %452 = vmatprep.subr.bf16.mxu0 %v345
  %453 = vmatpush1.bf16.msra.mxu0 %v344
  %454 = vmatprep.subr.bf16.mxu0 %v349
  %455 = vmatpush1.bf16.msra.mxu0 %v348
  %456 = vmatprep.subr.bf16.mxu0 %v353
  %457 = vmatpush1.bf16.msra.mxu0 %v352
  %458 = vmatprep.subr.bf16.mxu0 %v357
  %459 = vmatpush1.bf16.msra.mxu0 %v356
  %460 = vmatprep.subr.bf16.mxu0 %v361
  %461 = vmatpush1.bf16.msra.mxu0 %v360
  %462 = vmatprep.subr.bf16.mxu0 %v365
  %463 = vmatpush1.bf16.msra.mxu0 %v364
  %464 = vmatprep.mubr.bf16.mxu0 %v23
  %465 = vmatmul.mubr.bf16.gmra.mrb[0].mxu0 %v22
  %v466 = vpop.f32.mrb[0].mxu0
  %v467 = vadd.f32 %v95, %v466
  %v468 = vpop.f32.mrb[0].mxu0
  %v469 = vadd.f32 %v99, %v468
  %v470 = vpop.f32.mrb[0].mxu0
  %v471 = vadd.f32 %v95, %v470
  %v472 = vpop.f32.mrb[0].mxu0
  %v473 = vadd.f32 %v99, %v472
  %474 = vmatprep.mubr.bf16.mxu0 %v25
  %475 = vmatmul.mubr.bf16.gmra.mrb[0].mxu0 %v24
  %v476 = vpop.f32.mrb[0].mxu0
  %v477 = vadd.f32 %v95, %v476
  %v478 = vpop.f32.mrb[0].mxu0
  %v479 = vadd.f32 %v99, %v478
  %v480 = vpop.f32.mrb[0].mxu0
  %v481 = vadd.f32 %v95, %v480
  %v482 = vpop.f32.mrb[0].mxu0
  %v483 = vadd.f32 %v99, %v482
  %484 = vdwg.mxu0
  %485 = vmatprep.subr.bf16.mxu0 %v307
  %486 = vmatpush1.bf16.msra.mxu0 %v306
  %487 = vmatprep.subr.bf16.mxu0 %v311
  %488 = vmatpush1.bf16.msra.mxu0 %v310
  %489 = vmatprep.subr.bf16.mxu0 %v315
  %490 = vmatpush1.bf16.msra.mxu0 %v314
  %491 = vmatprep.subr.bf16.mxu0 %v319
  %492 = vmatpush1.bf16.msra.mxu0 %v318
  %493 = vmatprep.subr.bf16.mxu0 %v323
  %494 = vmatpush1.bf16.msra.mxu0 %v322
  %495 = vmatprep.subr.bf16.mxu0 %v327
  %496 = vmatpush1.bf16.msra.mxu0 %v326
  %497 = vmatprep.subr.bf16.mxu0 %v331
  %498 = vmatpush1.bf16.msra.mxu0 %v330
  %499 = vmatprep.subr.bf16.mxu0 %v335
  %500 = vmatpush1.bf16.msra.mxu0 %v334
  %501 = vmatprep.subr.bf16.mxu0 %v339
  %502 = vmatpush1.bf16.msra.mxu0 %v338
  %503 = vmatprep.subr.bf16.mxu0 %v343
  %504 = vmatpush1.bf16.msra.mxu0 %v342
  %505 = vmatprep.subr.bf16.mxu0 %v347
  %506 = vmatpush1.bf16.msra.mxu0 %v346
  %507 = vmatprep.subr.bf16.mxu0 %v351
  %508 = vmatpush1.bf16.msra.mxu0 %v350
  %509 = vmatprep.subr.bf16.mxu0 %v355
  %510 = vmatpush1.bf16.msra.mxu0 %v354
  %511 = vmatprep.subr.bf16.mxu0 %v359
  %512 = vmatpush1.bf16.msra.mxu0 %v358
  %513 = vmatprep.subr.bf16.mxu0 %v363
  %514 = vmatpush1.bf16.msra.mxu0 %v362
  %515 = vmatprep.subr.bf16.mxu0 %v367
  %516 = vmatpush1.bf16.msra.mxu0 %v366
  %517 = vmatprep.mubr.bf16.mxu0 %v23
  %518 = vmatmul.mubr.bf16.gmra.mrb[0].mxu0 %v22
  %v519 = vpop.f32.mrb[0].mxu0
  %v520 = vadd.f32 %v103, %v519
  %v521 = vpop.f32.mrb[0].mxu0
  %v522 = vadd.f32 %v107, %v521
  %v523 = vpop.f32.mrb[0].mxu0
  %v524 = vadd.f32 %v103, %v523
  %v525 = vpop.f32.mrb[0].mxu0
  %v526 = vadd.f32 %v107, %v525
  %527 = vmatprep.mubr.bf16.mxu0 %v25
  %528 = vmatmul.mubr.bf16.gmra.mrb[0].mxu0 %v24
  %v529 = vpop.f32.mrb[0].mxu0
  %v530 = vadd.f32 %v103, %v529
  %v531 = vpop.f32.mrb[0].mxu0
  %v532 = vadd.f32 %v107, %v531
  %v533 = vpop.f32.mrb[0].mxu0
  %v534 = vadd.f32 %v103, %v533
  %v535 = vpop.f32.mrb[0].mxu0
  %v536 = vadd.f32 %v107, %v535
  %537 = vdwg.mxu0
  %538 = vst [vmem:[%s3] sm:$0xff] %v467
  %539 = vst [vmem:[%s3 + $0x8] sm:$0xff] %v469
  %540 = vst [vmem:[%s3 + $0x10] sm:$0xff] %v520
  %541 = vst [vmem:[%s3 + $0x18] sm:$0xff] %v522
  %542 = vst [vmem:[%s3 + $0x20] sm:$0xff] %v471
  %543 = vst [vmem:[%s3 + $0x28] sm:$0xff] %v473
  %544 = vst [vmem:[%s3 + $0x30] sm:$0xff] %v524
  %545 = vst [vmem:[%s3 + $0x38] sm:$0xff] %v526
  %546 = vst [vmem:[%s3 + $0x40] sm:$0xff] %v477
  %547 = vst [vmem:[%s3 + $0x48] sm:$0xff] %v479
  %548 = vst [vmem:[%s3 + $0x50] sm:$0xff] %v530
  %549 = vst [vmem:[%s3 + $0x58] sm:$0xff] %v532
  %550 = vst [vmem:[%s3 + $0x60] sm:$0xff] %v481
  %551 = vst [vmem:[%s3 + $0x68] sm:$0xff] %v483
  %552 = vst [vmem:[%s3 + $0x70] sm:$0xff] %v534
  %553 = vst [vmem:[%s3 + $0x78] sm:$0xff] %v536
  // Predicated region
  $region14: #{depth_aware_transformer_forward.51} parent=0 // pred_check
    _
  $region15: #{depth_aware_transformer_forward.51} parent=0 // pred_check_branch
    %555 = sbr.rel (0) target = $region17
  $region16: #{depth_aware_transformer_forward.51} parent=0 // pred_region
    _
  $region17: #{depth_aware_transformer_forward.51} parent=0 // pred_fallthru
    _
  // Predicated region
  $region18: #{depth_aware_transformer_forward.51} parent=0 // pred_check
    _
  $region19: #{depth_aware_transformer_forward.51} parent=0 // pred_check_branch
    %557 = sbr.rel (0) target = $region21
  $region20: #{depth_aware_transformer_forward.51} parent=0 // pred_region
    _
  $region21: #{depth_aware_transformer_forward.51} parent=0 // pred_fallthru
    _

// kernel: depth_aware_transformer_forward.54
$region0: #{depth_aware_transformer_forward.54}
  #allocation0 [shape = 'u32[]', space=smem, size = 0x4, offset = 0x4, fixed_abs, tag = 'smem constant byte address 0x4 - core index']
  #allocation1 [shape = 'u32[144,128]{1,0:T(1,128)}', space=vmem, size = 0x12000, scoped, tag = 'internal scratch']
  %s0 = inlined_call_operand.vmem [shape: f32[32,256], index: 0, kind: input, shape index: {}]
  %s1 = inlined_call_operand.vmem [shape: f32[32,256], index: 1, kind: input, shape index: {}]
  %s2 = inlined_call_operand.vmem [shape: f32[1,256], index: 2, kind: input, shape index: {}]
  %s3 = inlined_call_operand.vmem [shape: f32[1,256], index: 3, kind: input, shape index: {}]
  %s4 = inlined_call_operand.vmem [shape: f32[32,256], index: 4, kind: output, shape index: {}]
  %s5 = sld [smem:[#allocation0]]
  $region26: #{depth_aware_transformer_forward.54} parent=0
    _
  %s7 = ssub.s32 1, %s5
  %s8 = scalar_select 0, %s7, %s5
  // Predicated region
  $region2: #{depth_aware_transformer_forward.54} parent=0 // pred_check
    _
  $region3: #{depth_aware_transformer_forward.54} parent=0 // pred_check_branch
    %10 = sbr.rel (0) target = $region5
  $region4: #{depth_aware_transformer_forward.54} parent=0 // pred_region
    _
  $region5: #{depth_aware_transformer_forward.54} parent=0 // pred_fallthru
    _
  // Predicated region
  $region6: #{depth_aware_transformer_forward.54} parent=0 // pred_check
    _
  $region7: #{depth_aware_transformer_forward.54} parent=0 // pred_check_branch
    %12 = sbr.rel (0) target = $region9
  $region8: #{depth_aware_transformer_forward.54} parent=0 // pred_region
    _
  $region9: #{depth_aware_transformer_forward.54} parent=0 // pred_fallthru
    _
  // Predicated region
  $region10: #{depth_aware_transformer_forward.54} parent=0 // pred_check
    _
  $region11: #{depth_aware_transformer_forward.54} parent=0 // pred_check_branch
    %14 = sbr.rel (0) target = $region13
  $region12: #{depth_aware_transformer_forward.54} parent=0 // pred_region
    _
  $region13: #{depth_aware_transformer_forward.54} parent=0 // pred_fallthru
    _
  // Predicated region
  $region14: #{depth_aware_transformer_forward.54} parent=0 // pred_check
    _
  $region15: #{depth_aware_transformer_forward.54} parent=0 // pred_check_branch
    %16 = sbr.rel (0) target = $region17
  $region16: #{depth_aware_transformer_forward.54} parent=0 // pred_region
    _
  $region17: #{depth_aware_transformer_forward.54} parent=0 // pred_fallthru
    _
  %v17 = vld [vmem:[%s0] sm:$0xff]
  %v18 = vld [vmem:[%s0 + $0x8] sm:$0xff]
  %v19 = vld [vmem:[%s0 + $0x10] sm:$0xff]
  %v20 = vld [vmem:[%s0 + $0x18] sm:$0xff]
  %v21 = vld [vmem:[%s0 + $0x20] sm:$0xff]
  %v22 = vld [vmem:[%s0 + $0x28] sm:$0xff]
  %v23 = vld [vmem:[%s0 + $0x30] sm:$0xff]
  %v24 = vld [vmem:[%s0 + $0x38] sm:$0xff]
  %v25 = vld [vmem:[%s1] sm:$0xff]
  %v26 = vld [vmem:[%s1 + $0x8] sm:$0xff]
  %v27 = vld [vmem:[%s1 + $0x10] sm:$0xff]
  %v28 = vld [vmem:[%s1 + $0x18] sm:$0xff]
  %v29 = vld [vmem:[%s1 + $0x20] sm:$0xff]
  %v30 = vld [vmem:[%s1 + $0x28] sm:$0xff]
  %v31 = vld [vmem:[%s1 + $0x30] sm:$0xff]
  %v32 = vld [vmem:[%s1 + $0x38] sm:$0xff]
  %v33 = vadd.f32 %v17, %v25
  %v34 = vadd.f32 %v18, %v26
  %v35 = vadd.f32 %v19, %v27
  %v36 = vadd.f32 %v20, %v28
  %v37 = vadd.f32 %v21, %v29
  %v38 = vadd.f32 %v22, %v30
  %v39 = vadd.f32 %v23, %v31
  %v40 = vadd.f32 %v24, %v32
  %v41 = vadd.f32 %v33, %v34
  %42 = vadd.xlane.f32.xlu0 %v41
  %v43 = vpop.xlane.xlu0 %42
  %v44 = vadd.f32 %v35, %v36
  %45 = vadd.xlane.f32.xlu0 %v44
  %v46 = vpop.xlane.xlu0 %45
  %v47 = vadd.f32 %v37, %v38
  %48 = vadd.xlane.f32.xlu0 %v47
  %v49 = vpop.xlane.xlu0 %48
  %v50 = vadd.f32 %v39, %v40
  %51 = vadd.xlane.f32.xlu0 %v50
  %v52 = vpop.xlane.xlu0 %51
  %v53 = vrcp.pop 256.0
  %v54 = vmul.f32 %v43, %v53
  %v55 = vmul.f32 %v46, %v53
  %v56 = vmul.f32 %v49, %v53
  %v57 = vmul.f32 %v52, %v53
  %v58 = vsub.f32 %v33, %v54
  %v59 = vsub.f32 %v34, %v54
  %v60 = vsub.f32 %v35, %v55
  %v61 = vsub.f32 %v36, %v55
  %v62 = vsub.f32 %v37, %v56
  %v63 = vsub.f32 %v38, %v56
  %v64 = vsub.f32 %v39, %v57
  %v65 = vsub.f32 %v40, %v57
  %v66 = vmul.f32 %v58, %v58
  %v67 = vmul.f32 %v59, %v59
  %v68 = vmul.f32 %v60, %v60
  %v69 = vmul.f32 %v61, %v61
  %v70 = vmul.f32 %v62, %v62
  %v71 = vmul.f32 %v63, %v63
  %v72 = vmul.f32 %v64, %v64
  %v73 = vmul.f32 %v65, %v65
  %v74 = vadd.f32 %v66, %v67
  %75 = vadd.xlane.f32.xlu0 %v74
  %v76 = vpop.xlane.xlu0 %75
  %v77 = vadd.f32 %v68, %v69
  %78 = vadd.xlane.f32.xlu0 %v77
  %v79 = vpop.xlane.xlu0 %78
  %v80 = vadd.f32 %v70, %v71
  %81 = vadd.xlane.f32.xlu0 %v80
  %v82 = vpop.xlane.xlu0 %81
  %v83 = vadd.f32 %v72, %v73
  %84 = vadd.xlane.f32.xlu0 %v83
  %v85 = vpop.xlane.xlu0 %84
  %v86 = vmul.f32 %v76, %v53
  %v87 = vmul.f32 %v79, %v53
  %v88 = vmul.f32 %v82, %v53
  %v89 = vmul.f32 %v85, %v53
  %v90 = vadd.f32 %v86, 1e-05
  %v91 = vadd.f32 %v87, 1e-05
  %v92 = vadd.f32 %v88, 1e-05
  %v93 = vadd.f32 %v89, 1e-05
  %v94 = vrsqrt.pop %v90
  %v95 = vrsqrt.pop %v91
  %v96 = vrsqrt.pop %v92
  %v97 = vrsqrt.pop %v93
  %v98 = vmul.f32 %v58, %v94
  %v99 = vmul.f32 %v59, %v94
  %v100 = vmul.f32 %v60, %v95
  %v101 = vmul.f32 %v61, %v95
  %v102 = vmul.f32 %v62, %v96
  %v103 = vmul.f32 %v63, %v96
  %v104 = vmul.f32 %v64, %v97
  %v105 = vmul.f32 %v65, %v97
  %v106 = vld [vmem:[%s2] sm:$0x3]
  %v108 = vlaneseq
  %v109 = vshrl.u32 %v108, 7
  %v110 = vsub.s32 0, %v109
  %v111 = vrot.slane %v106, %v110
  %v112 = vlaneseq
  %v113 = vshrl.u32 %v112, 7
  %v114 = vsub.s32 1, %v113
  %v115 = vrot.slane %v106, %v114
  %v118 = vmul.f32 %v98, %v111
  %v119 = vmul.f32 %v99, %v115
  %v120 = vmul.f32 %v100, %v111
  %v121 = vmul.f32 %v101, %v115
  %v122 = vmul.f32 %v102, %v111
  %v123 = vmul.f32 %v103, %v115
  %v124 = vmul.f32 %v104, %v111
  %v125 = vmul.f32 %v105, %v115
  %v126 = vld [vmem:[%s3] sm:$0x3]
  %v128 = vlaneseq
  %v129 = vshrl.u32 %v128, 7
  %v130 = vsub.s32 0, %v129
  %v131 = vrot.slane %v126, %v130
  %v132 = vlaneseq
  %v133 = vshrl.u32 %v132, 7
  %v134 = vsub.s32 1, %v133
  %v135 = vrot.slane %v126, %v134
  %v138 = vadd.f32 %v118, %v131
  %v139 = vadd.f32 %v119, %v135
  %v140 = vadd.f32 %v120, %v131
  %v141 = vadd.f32 %v121, %v135
  %v142 = vadd.f32 %v122, %v131
  %v143 = vadd.f32 %v123, %v135
  %v144 = vadd.f32 %v124, %v131
  %v145 = vadd.f32 %v125, %v135
  %146 = vst [vmem:[%s4] sm:$0xff] %v138
  %147 = vst [vmem:[%s4 + $0x8] sm:$0xff] %v139
  %148 = vst [vmem:[%s4 + $0x10] sm:$0xff] %v140
  %149 = vst [vmem:[%s4 + $0x18] sm:$0xff] %v141
  %150 = vst [vmem:[%s4 + $0x20] sm:$0xff] %v142
  %151 = vst [vmem:[%s4 + $0x28] sm:$0xff] %v143
  %152 = vst [vmem:[%s4 + $0x30] sm:$0xff] %v144
  %153 = vst [vmem:[%s4 + $0x38] sm:$0xff] %v145
  // Predicated region
  $region18: #{depth_aware_transformer_forward.54} parent=0 // pred_check
    _
  $region19: #{depth_aware_transformer_forward.54} parent=0 // pred_check_branch
    %155 = sbr.rel (0) target = $region21
  $region20: #{depth_aware_transformer_forward.54} parent=0 // pred_region
    _
  $region21: #{depth_aware_transformer_forward.54} parent=0 // pred_fallthru
    _
  // Predicated region
  $region22: #{depth_aware_transformer_forward.54} parent=0 // pred_check
    _
  $region23: #{depth_aware_transformer_forward.54} parent=0 // pred_check_branch
    %157 = sbr.rel (0) target = $region25
  $region24: #{depth_aware_transformer_forward.54} parent=0 // pred_region
    _
  $region25: #{depth_aware_transformer_forward.54} parent=0 // pred_fallthru
    _

// kernel: depth_aware_transformer_forward.52
$region0: #{depth_aware_transformer_forward.52}
  #allocation0 [shape = 'u32[]', space=smem, size = 0x4, offset = 0x4, fixed_abs, tag = 'smem constant byte address 0x4 - core index']
  #allocation1 [shape = 'u32[144,128]{1,0:T(1,128)}', space=vmem, size = 0x12000, scoped, tag = 'internal scratch']
  %s0 = inlined_call_operand.vmem [shape: f32[2,16,256], index: 0, kind: input, shape index: {}]
  %s1 = inlined_call_operand.vmem [shape: f32[2,16,256], index: 1, kind: input, shape index: {}]
  %s2 = inlined_call_operand.vmem [shape: f32[2,16,256], index: 2, kind: input, shape index: {}]
  %s3 = inlined_call_operand.vmem [shape: f32[2,1,16], index: 3, kind: input, shape index: {}]
  %s4 = inlined_call_operand.vmem [shape: f32[2,16,256], index: 4, kind: output, shape index: {}]
  %s5 = sld [smem:[#allocation0]]
  $region49: #{depth_aware_transformer_forward.52} parent=0
    _
  %s7 = ssub.s32 1, %s5
  %s8 = scalar_select 0, %s7, %s5
  loop: start=0, step=1, limit=4
  $region2: #{depth_aware_transformer_forward.52} parent=0 // loop_pre_header
    _
  $region3: #{depth_aware_transformer_forward.52} parent=0 // loop_header
    %s10 = sphi 0, %s14
    %p11 = scmp.ge.s32.totalorder %s10, 4
    %s20 = sphi 0, %s22
    %s23 = sphi 0, %s20
    %s24 = sphi 0, %s23
    %s40 = sphi 0, %s24
    %s46 = sphi 0, %s48
    %s49 = sphi 0, %s46
    %s50 = sphi 0, %s49
    %s66 = sphi 0, %s50
    %s72 = sphi 0, %s74
    %s75 = sphi 0, %s72
    %s76 = sphi 0, %s75
    %s92 = sphi 0, %s76
    %s98 = sphi 0, %s100
    %s101 = sphi 0, %s98
    %s102 = sphi 0, %s101
    %s118 = sphi 0, %s102
    %s124 = sphi 0, %s126
    %s127 = sphi 0, %s124
    %s128 = sphi 0, %s127
    %s144 = sphi 0, %s128
  $region4: #{depth_aware_transformer_forward.52} parent=0 // loop_header_branch
    %13 = sbr.rel (%p11) target = $region8
  $region5: #{depth_aware_transformer_forward.52} parent=0 // loop_body
    %s15 = ssub.s32 %s10, 1
    %s16 = ssub.s32 %s10, 2
    %s17 = sadd.s32 %s10, 1
    %s18 = ssub.s32 %s10, %s17
    %p19 = scmp.eq.s32.totalorder %s18, 0
    %s21 = sadd.s32 %s20, 1
    %s22 = scalar_select %p19, %s20, %s21
    %p25 = pneg %p19
    %p26 = scmp.eq.s32.totalorder %s10, 1
    %p27 = por %p25, %p26
    %p28 = scmp.ne.s32.totalorder %s20, %s23
    %p29 = scmp.eq.s32.totalorder %s10, 0
    %p30 = por %p28, %p29
    %p31 = scmp.ne.s32.totalorder %s20, %s23
    %p32 = scmp.eq.s32.totalorder %s15, 1
    %p33 = por %p31, %p32
    %p34 = scmp.ne.s32.totalorder %s23, %s24
    %p35 = scmp.eq.s32.totalorder %s15, 0
    %p36 = por %p34, %p35
    %p37 = scmp.ne.s32.totalorder %s23, %s24
    %p38 = scmp.eq.s32.totalorder %s16, 1
    %p39 = por %p37, %p38
    %p41 = scmp.ne.s32.totalorder %s24, %s40
    %p42 = scmp.eq.s32.totalorder %s16, 0
    %p43 = por %p41, %p42
    %s44 = ssub.s32 %s10, %s17
    %p45 = scmp.eq.s32.totalorder %s44, 0
    %s47 = sadd.s32 %s46, 1
    %s48 = scalar_select %p45, %s46, %s47
    %p51 = pneg %p45
    %p52 = scmp.eq.s32.totalorder %s10, 1
    %p53 = por %p51, %p52
    %p54 = scmp.ne.s32.totalorder %s46, %s49
    %p55 = scmp.eq.s32.totalorder %s10, 0
    %p56 = por %p54, %p55
    %p57 = scmp.ne.s32.totalorder %s46, %s49
    %p58 = scmp.eq.s32.totalorder %s15, 1
    %p59 = por %p57, %p58
    %p60 = scmp.ne.s32.totalorder %s49, %s50
    %p61 = scmp.eq.s32.totalorder %s15, 0
    %p62 = por %p60, %p61
    %p63 = scmp.ne.s32.totalorder %s49, %s50
    %p64 = scmp.eq.s32.totalorder %s16, 1
    %p65 = por %p63, %p64
    %p67 = scmp.ne.s32.totalorder %s50, %s66
    %p68 = scmp.eq.s32.totalorder %s16, 0
    %p69 = por %p67, %p68
    %s70 = ssub.s32 %s10, %s17
    %p71 = scmp.eq.s32.totalorder %s70, 0
    %s73 = sadd.s32 %s72, 1
    %s74 = scalar_select %p71, %s72, %s73
    %p77 = pneg %p71
    %p78 = scmp.eq.s32.totalorder %s10, 1
    %p79 = por %p77, %p78
    %p80 = scmp.ne.s32.totalorder %s72, %s75
    %p81 = scmp.eq.s32.totalorder %s10, 0
    %p82 = por %p80, %p81
    %p83 = scmp.ne.s32.totalorder %s72, %s75
    %p84 = scmp.eq.s32.totalorder %s15, 1
    %p85 = por %p83, %p84
    %p86 = scmp.ne.s32.totalorder %s75, %s76
    %p87 = scmp.eq.s32.totalorder %s15, 0
    %p88 = por %p86, %p87
    %p89 = scmp.ne.s32.totalorder %s75, %s76
    %p90 = scmp.eq.s32.totalorder %s16, 1
    %p91 = por %p89, %p90
    %p93 = scmp.ne.s32.totalorder %s76, %s92
    %p94 = scmp.eq.s32.totalorder %s16, 0
    %p95 = por %p93, %p94
    %s96 = ssub.s32 %s10, %s17
    %p97 = scmp.eq.s32.totalorder %s96, 0
    %s99 = sadd.s32 %s98, 1
    %s100 = scalar_select %p97, %s98, %s99
    %p103 = pneg %p97
    %p104 = scmp.eq.s32.totalorder %s10, 1
    %p105 = por %p103, %p104
    %p106 = scmp.ne.s32.totalorder %s98, %s101
    %p107 = scmp.eq.s32.totalorder %s10, 0
    %p108 = por %p106, %p107
    %p109 = scmp.ne.s32.totalorder %s98, %s101
    %p110 = scmp.eq.s32.totalorder %s15, 1
    %p111 = por %p109, %p110
    %p112 = scmp.ne.s32.totalorder %s101, %s102
    %p113 = scmp.eq.s32.totalorder %s15, 0
    %p114 = por %p112, %p113
    %p115 = scmp.ne.s32.totalorder %s101, %s102
    %p116 = scmp.eq.s32.totalorder %s16, 1
    %p117 = por %p115, %p116
    %p119 = scmp.ne.s32.totalorder %s102, %s118
    %p120 = scmp.eq.s32.totalorder %s16, 0
    %p121 = por %p119, %p120
    %s122 = ssub.s32 %s10, %s17
    %p123 = scmp.eq.s32.totalorder %s122, 0
    %s125 = sadd.s32 %s124, 1
    %s126 = scalar_select %p123, %s124, %s125
    %p129 = pneg %p123
    %p130 = scmp.eq.s32.totalorder %s10, 1
    %p131 = por %p129, %p130
    %p132 = scmp.ne.s32.totalorder %s124, %s127
    %p133 = scmp.eq.s32.totalorder %s10, 0
    %p134 = por %p132, %p133
    %p135 = scmp.ne.s32.totalorder %s124, %s127
    %p136 = scmp.eq.s32.totalorder %s15, 1
    %p137 = por %p135, %p136
    %p138 = scmp.ne.s32.totalorder %s127, %s128
    %p139 = scmp.eq.s32.totalorder %s15, 0
    %p140 = por %p138, %p139
    %p141 = scmp.ne.s32.totalorder %s127, %s128
    %p142 = scmp.eq.s32.totalorder %s16, 1
    %p143 = por %p141, %p142
    %p145 = scmp.ne.s32.totalorder %s128, %s144
    %p146 = scmp.eq.s32.totalorder %s16, 0
    %p147 = por %p145, %p146
    %p148 = scmp.le.s32.totalorder 1, %s10
    %p149 = scmp.lt.s32.totalorder %s10, 3
    %p150 = pnand %p148, %p149
    %p151 = pneg %p150
    // Predicated region
    $region9: #{depth_aware_transformer_forward.52} parent=5 // pred_check
      _
    $region10: #{depth_aware_transformer_forward.52} parent=5 // pred_check_branch
      %153 = sbr.rel (%p150) target = $region12
    $region11: #{depth_aware_transformer_forward.52} parent=5 // pred_region
      %s154 = ssub.s32 %s10, 1
    $region12: #{depth_aware_transformer_forward.52} parent=5 // pred_fallthru
      _
    %p155 = scmp.lt.s32.totalorder %s10, 2
    // Predicated region
    $region13: #{depth_aware_transformer_forward.52} parent=5 // pred_check
      %p156 = pneg %p155
    $region14: #{depth_aware_transformer_forward.52} parent=5 // pred_check_branch
      %158 = sbr.rel (%p156) target = $region16
    $region15: #{depth_aware_transformer_forward.52} parent=5 // pred_region
      // Predicated region
      $region17: #{depth_aware_transformer_forward.52} parent=15 // pred_check
        %p159 = pneg %p30
      $region18: #{depth_aware_transformer_forward.52} parent=15 // pred_check_branch
        %161 = sbr.rel (%p159) target = $region20
      $region19: #{depth_aware_transformer_forward.52} parent=15 // pred_region
        %p162 = scmp.lt.s32.totalorder %s10, 1
        %s163 = scalar_select %p162, %s10, 1
        %s164 = smul.addr %s163, 4
        %s165 = smul.addr %s164, 8
        %s166 = scalar_lea.vmem %s0, %s165
      $region20: #{depth_aware_transformer_forward.52} parent=15 // pred_fallthru
        _
      // Predicated region
      $region21: #{depth_aware_transformer_forward.52} parent=15 // pred_check
        %p167 = pneg %p56
      $region22: #{depth_aware_transformer_forward.52} parent=15 // pred_check_branch
        %169 = sbr.rel (%p167) target = $region24
      $region23: #{depth_aware_transformer_forward.52} parent=15 // pred_region
        %p170 = scmp.lt.s32.totalorder %s10, 1
        %s171 = scalar_select %p170, %s10, 1
        %s172 = smul.addr %s171, 4
        %s173 = smul.addr %s172, 8
        %s174 = scalar_lea.vmem %s1, %s173
      $region24: #{depth_aware_transformer_forward.52} parent=15 // pred_fallthru
        _
      // Predicated region
      $region25: #{depth_aware_transformer_forward.52} parent=15 // pred_check
        %p175 = pneg %p82
      $region26: #{depth_aware_transformer_forward.52} parent=15 // pred_check_branch
        %177 = sbr.rel (%p175) target = $region28
      $region27: #{depth_aware_transformer_forward.52} parent=15 // pred_region
        %p178 = scmp.lt.s32.totalorder %s10, 1
        %s179 = scalar_select %p178, %s10, 1
        %s180 = smul.addr %s179, 4
        %s181 = smul.addr %s180, 8
        %s182 = scalar_lea.vmem %s2, %s181
      $region28: #{depth_aware_transformer_forward.52} parent=15 // pred_fallthru
        _
      // Predicated region
      $region29: #{depth_aware_transformer_forward.52} parent=15 // pred_check
        %p183 = pneg %p108
      $region30: #{depth_aware_transformer_forward.52} parent=15 // pred_check_branch
        %185 = sbr.rel (%p183) target = $region32
      $region31: #{depth_aware_transformer_forward.52} parent=15 // pred_region
        %p186 = scmp.lt.s32.totalorder %s10, 1
        %s187 = scalar_select %p186, %s10, 1
        %s188 = scalar_lea.vmem %s3, %s187
      $region32: #{depth_aware_transformer_forward.52} parent=15 // pred_fallthru
        _
    $region16: #{depth_aware_transformer_forward.52} parent=5 // pred_fallthru
      _
    %p189 = scmp.le.s32.totalorder 1, %s10
    %p190 = scmp.lt.s32.totalorder %s10, 3
    %p191 = pnand %p189, %p190
    %p192 = pneg %p191
    // Predicated region
    $region33: #{depth_aware_transformer_forward.52} parent=5 // pred_check
      _
    $region34: #{depth_aware_transformer_forward.52} parent=5 // pred_check_branch
      %194 = sbr.rel (%p191) target = $region36
    $region35: #{depth_aware_transformer_forward.52} parent=5 // pred_region
      %s195 = ssub.s32 %s10, 1
      %p196 = scmp.lt.s32.totalorder %s15, 1
      %s197 = scalar_select %p196, %s15, 1
      %s198 = smul.addr %s197, 4
      %s199 = smul.addr %s198, 8
      %s200 = scalar_lea.vmem %s0, %s199
      %p201 = pneg %p36
      %p202 = pneg %p33
      %p203 = scmp.lt.s32.totalorder %s15, 1
      %s204 = scalar_select %p203, %s15, 1
      %s205 = smul.addr %s204, 4
      %s206 = smul.addr %s205, 8
      %s207 = scalar_lea.vmem %s1, %s206
      %p208 = pneg %p62
      %p209 = pneg %p59
      %p210 = scmp.lt.s32.totalorder %s15, 1
      %s211 = scalar_select %p210, %s15, 1
      %s212 = smul.addr %s211, 4
      %s213 = smul.addr %s212, 8
      %s214 = scalar_lea.vmem %s2, %s213
      %p215 = pneg %p88
      %p216 = pneg %p85
      %p217 = scmp.lt.s32.totalorder %s15, 1
      %s218 = scalar_select %p217, %s15, 1
      %s219 = scalar_lea.vmem %s3, %s218
      %p220 = pneg %p114
      %p221 = pneg %p111
      %p222 = pneg %p140
      %p223 = pneg %p137
      %p224 = scmp.lt.s32.totalorder %s15, 1
      %s225 = scalar_select %p224, %s15, 1
      %s226 = smul.addr %s225, 4
      %s227 = smul.addr %s226, 8
      %s228 = scalar_lea.vmem %s4, %s227
      %p229 = scmp.lt.s32.totalorder %s15, 1
      %s230 = scalar_select %p229, %s15, 1
      %s231 = smul.addr %s230, 4
      %s232 = smul.addr %s231, 8
      %s233 = scalar_lea.vmem %s0, %s232
      %p234 = scmp.lt.s32.totalorder %s15, 1
      %s235 = scalar_select %p234, %s15, 1
      %s236 = smul.addr %s235, 4
      %s237 = smul.addr %s236, 8
      %s238 = scalar_lea.vmem %s1, %s237
      %p239 = scmp.lt.s32.totalorder %s15, 1
      %s240 = scalar_select %p239, %s15, 1
      %s241 = smul.addr %s240, 4
      %s242 = smul.addr %s241, 8
      %s243 = scalar_lea.vmem %s2, %s242
      %p244 = scmp.lt.s32.totalorder %s15, 1
      %s245 = scalar_select %p244, %s15, 1
      %s246 = scalar_lea.vmem %s3, %s245
      %p247 = scmp.lt.s32.totalorder %s15, 1
      %s248 = scalar_select %p247, %s15, 1
      %s249 = smul.addr %s248, 4
      %s250 = smul.addr %s249, 8
      %s251 = scalar_lea.vmem %s4, %s250
      %v253 = vld [vmem:[%s246] sm:$0x1]
      %v254 = vmul.f32 %v253, -1e+30
      %v255 = vld [vmem:[%s233] sm:$0xff]
      %v256 = vld [vmem:[%s233 + $0x10] sm:$0xff]
      %v257 = vmul.f32 %v255, 0.17677669
      %v258 = vmul.f32 %v256, 0.17677669
      %v259 = vpack.c.bf16 %v258, %v257
      %v260 = vld [vmem:[%s238] sm:$0xff]
      %v261 = vld [vmem:[%s238 + $0x10] sm:$0xff]
      %v262 = vpack.c.bf16 %v261, %v260
      %v263 = vld [vmem:[%s243] sm:$0xff]
      %v264 = vld [vmem:[%s243 + $0x10] sm:$0xff]
      %v265 = vpack.c.bf16 %v264, %v263
      %v267 = vlaneseq
      %v268 = vshrl.u32 %v267, 7
      %v269 = vsub.s32 0, %v268
      %v270 = vrot.slane %v254, %v269
      %vm272 = vcmask 261120
      %v274 = vsel %vm272, %v259, 0
      %v277 = vsel %vm272, %v262, 0
      %279 = vmatprep.subr.bf16.mxu0 0
      %280 = vmatpush1.bf16.xpose.msra.mxu0 %v277
      %281 = vmatprep.subr.bf16.mxu0 0
      %282 = vmatpush1.bf16.xpose.msra.mxu0 0
      %283 = vmatprep.subr.bf16.mxu0 0
      %284 = vmatpush1.bf16.xpose.msra.mxu0 0
      %285 = vmatprep.subr.bf16.mxu0 0
      %286 = vmatpush1.bf16.xpose.msra.mxu0 0
      %287 = vmatprep.subr.bf16.mxu0 0
      %288 = vmatpush1.bf16.xpose.msra.mxu0 0
      %289 = vmatprep.subr.bf16.mxu0 0
      %290 = vmatpush1.bf16.xpose.msra.mxu0 0
      %291 = vmatprep.subr.bf16.mxu0 0
      %292 = vmatpush1.bf16.xpose.msra.mxu0 0
      %293 = vmatprep.subr.bf16.mxu0 0
      %294 = vmatpush1.bf16.xpose.msra.mxu0 0
      %295 = vmatprep.subr.bf16.mxu0 0
      %296 = vmatpush1.bf16.xpose.msra.mxu0 0
      %297 = vmatprep.subr.bf16.mxu0 0
      %298 = vmatpush1.bf16.xpose.msra.mxu0 0
      %299 = vmatprep.subr.bf16.mxu0 0
      %300 = vmatpush1.bf16.xpose.msra.mxu0 0
      %301 = vmatprep.subr.bf16.mxu0 0
      %302 = vmatpush1.bf16.xpose.msra.mxu0 0
      %303 = vmatprep.subr.bf16.mxu0 0
      %304 = vmatpush1.bf16.xpose.msra.mxu0 0
      %305 = vmatprep.subr.bf16.mxu0 0
      %306 = vmatpush1.bf16.xpose.msra.mxu0 0
      %307 = vmatprep.subr.bf16.mxu0 0
      %308 = vmatpush1.bf16.xpose.msra.mxu0 0
      %309 = vmatprep.subr.bf16.mxu0 0
      %310 = vmatpush1.bf16.xpose.msra.mxu0 0
      %311 = vmatprep.mubr.bf16.mxu0 0
      %312 = vmatmul.mubr.bf16.gmra.mrb[0].mxu0 %v274
      %v313 = vpop.f32.mrb[0].mxu0
      %v314 = vadd.f32 %v270, %v313
      %v315 = vpop.f32.mrb[0].mxu0
      %v316 = vpop.f32.mrb[0].mxu0
      %v317 = vadd.f32 %v270, %v316
      %v318 = vpop.f32.mrb[0].mxu0
      %319 = vdwg.mxu0
      %vm320 = vcmask 130048
      %v321 = vsel %vm320, %v314, -inf
      %322 = vmax.xlane.f32.xlu0 %v321
      %v323 = vpop.xlane.xlu0 %322
      %v324 = vsel %vm320, %v317, -inf
      %325 = vmax.xlane.f32.xlu0 %v324
      %v326 = vpop.xlane.xlu0 %325
      %v327 = vsub.f32 %v314, %v323
      %v328 = vsub.f32 %v317, %v326
      %v329 = vmul.f32 %v327, 1.442695
      %v330 = vpow.pop %v329
      %v331 = vmul.f32 %v328, 1.442695
      %v332 = vpow.pop %v331
      %v333 = vsel %vm320, %v330, 0.0
      %334 = vadd.xlane.f32.xlu0 %v333
      %v335 = vpop.xlane.xlu0 %334
      %v336 = vsel %vm320, %v332, 0.0
      %337 = vadd.xlane.f32.xlu0 %v336
      %v338 = vpop.xlane.xlu0 %337
      %v339 = vrcp.pop %v335
      %v340 = vrcp.pop %v338
      %v341 = vmul.f32 %v330, %v339
      %v342 = vmul.f32 %v332, %v340
      %v343 = vpack.c.bf16 %v342, %v341
      %v345 = vsel %vm320, %v343, 0
      %347 = vmatprep.subr.bf16.mxu0 0
      %348 = vmatpush1.bf16.msra.mxu0 %v265
      %349 = vmatprep.subr.bf16.mxu0 0
      %350 = vmatpush1.bf16.msra.mxu0 0
      %351 = vmatprep.subr.bf16.mxu0 0
      %352 = vmatpush1.bf16.msra.mxu0 0
      %353 = vmatprep.subr.bf16.mxu0 0
      %354 = vmatpush1.bf16.msra.mxu0 0
      %355 = vmatprep.subr.bf16.mxu0 0
      %356 = vmatpush1.bf16.msra.mxu0 0
      %357 = vmatprep.subr.bf16.mxu0 0
      %358 = vmatpush1.bf16.msra.mxu0 0
      %359 = vmatprep.subr.bf16.mxu0 0
      %360 = vmatpush1.bf16.msra.mxu0 0
      %361 = vmatprep.subr.bf16.mxu0 0
      %362 = vmatpush1.bf16.msra.mxu0 0
      %363 = vmatprep.subr.bf16.mxu0 0
      %364 = vmatpush1.bf16.msra.mxu0 0
      %365 = vmatprep.subr.bf16.mxu0 0
      %366 = vmatpush1.bf16.msra.mxu0 0
      %367 = vmatprep.subr.bf16.mxu0 0
      %368 = vmatpush1.bf16.msra.mxu0 0
      %369 = vmatprep.subr.bf16.mxu0 0
      %370 = vmatpush1.bf16.msra.mxu0 0
      %371 = vmatprep.subr.bf16.mxu0 0
      %372 = vmatpush1.bf16.msra.mxu0 0
      %373 = vmatprep.subr.bf16.mxu0 0
      %374 = vmatpush1.bf16.msra.mxu0 0
      %375 = vmatprep.subr.bf16.mxu0 0
      %376 = vmatpush1.bf16.msra.mxu0 0
      %377 = vmatprep.subr.bf16.mxu0 0
      %378 = vmatpush1.bf16.msra.mxu0 0
      %379 = vmatprep.mubr.bf16.mxu0 0
      %380 = vmatmul.mubr.bf16.gmra.mrb[0].mxu0 %v345
      %v381 = vpop.f32.mrb[0].mxu0
      %v382 = vadd.f32 0.0, %v381
      %v383 = vpop.f32.mrb[0].mxu0
      %v384 = vpop.f32.mrb[0].mxu0
      %v385 = vadd.f32 0.0, %v384
      %v386 = vpop.f32.mrb[0].mxu0
      %387 = vdwg.mxu0
      %388 = vst.msk [vmem:[%s251] sm:$0xff] %vm272, %v382
      %389 = vst.msk [vmem:[%s251 + $0x10] sm:$0xff] %vm272, %v385
      %v390 = vld [vmem:[%s233] sm:$0xff]
      %v391 = vld [vmem:[%s233 + $0x10] sm:$0xff]
      %v392 = vmul.f32 %v390, 0.17677669
      %v393 = vmul.f32 %v391, 0.17677669
      %v394 = vpack.c.bf16 %v393, %v392
      %v395 = vld [vmem:[%s238] sm:$0xff]
      %v396 = vld [vmem:[%s238 + $0x10] sm:$0xff]
      %v397 = vpack.c.bf16 %v396, %v395
      %v398 = vld [vmem:[%s243] sm:$0xff]
      %v399 = vld [vmem:[%s243 + $0x10] sm:$0xff]
      %v400 = vpack.c.bf16 %v399, %v398
      %402 = vrot.lane.b32.xlu0 %v394, 96
      %v403 = vpop.permute.xlu0 %402
      %405 = vrot.lane.b32.xlu0 %v397, 96
      %v406 = vpop.permute.xlu0 %405
      %v408 = vsel %vm272, %v403, 0
      %v411 = vsel %vm272, %v406, 0
      %413 = vmatprep.subr.bf16.mxu0 0
      %414 = vmatpush1.bf16.xpose.msra.mxu0 %v411
      %415 = vmatprep.subr.bf16.mxu0 0
      %416 = vmatpush1.bf16.xpose.msra.mxu0 0
      %417 = vmatprep.subr.bf16.mxu0 0
      %418 = vmatpush1.bf16.xpose.msra.mxu0 0
      %419 = vmatprep.subr.bf16.mxu0 0
      %420 = vmatpush1.bf16.xpose.msra.mxu0 0
      %421 = vmatprep.subr.bf16.mxu0 0
      %422 = vmatpush1.bf16.xpose.msra.mxu0 0
      %423 = vmatprep.subr.bf16.mxu0 0
      %424 = vmatpush1.bf16.xpose.msra.mxu0 0
      %425 = vmatprep.subr.bf16.mxu0 0
      %426 = vmatpush1.bf16.xpose.msra.mxu0 0
      %427 = vmatprep.subr.bf16.mxu0 0
      %428 = vmatpush1.bf16.xpose.msra.mxu0 0
      %429 = vmatprep.subr.bf16.mxu0 0
      %430 = vmatpush1.bf16.xpose.msra.mxu0 0
      %431 = vmatprep.subr.bf16.mxu0 0
      %432 = vmatpush1.bf16.xpose.msra.mxu0 0
      %433 = vmatprep.subr.bf16.mxu0 0
      %434 = vmatpush1.bf16.xpose.msra.mxu0 0
      %435 = vmatprep.subr.bf16.mxu0 0
      %436 = vmatpush1.bf16.xpose.msra.mxu0 0
      %437 = vmatprep.subr.bf16.mxu0 0
      %438 = vmatpush1.bf16.xpose.msra.mxu0 0
      %439 = vmatprep.subr.bf16.mxu0 0
      %440 = vmatpush1.bf16.xpose.msra.mxu0 0
      %441 = vmatprep.subr.bf16.mxu0 0
      %442 = vmatpush1.bf16.xpose.msra.mxu0 0
      %443 = vmatprep.subr.bf16.mxu0 0
      %444 = vmatpush1.bf16.xpose.msra.mxu0 0
      %445 = vmatprep.mubr.bf16.mxu0 0
      %446 = vmatmul.mubr.bf16.gmra.mrb[0].mxu0 %v408
      %v447 = vpop.f32.mrb[0].mxu0
      %v448 = vadd.f32 %v270, %v447
      %v449 = vpop.f32.mrb[0].mxu0
      %v450 = vpop.f32.mrb[0].mxu0
      %v451 = vadd.f32 %v270, %v450
      %v452 = vpop.f32.mrb[0].mxu0
      %453 = vdwg.mxu0
      %v454 = vsel %vm320, %v448, -inf
      %455 = vmax.xlane.f32.xlu0 %v454
      %v456 = vpop.xlane.xlu0 %455
      %v457 = vsel %vm320, %v451, -inf
      %458 = vmax.xlane.f32.xlu0 %v457
      %v459 = vpop.xlane.xlu0 %458
      %v460 = vsub.f32 %v448, %v456
      %v461 = vsub.f32 %v451, %v459
      %v462 = vmul.f32 %v460, 1.442695
      %v463 = vpow.pop %v462
      %v464 = vmul.f32 %v461, 1.442695
      %v465 = vpow.pop %v464
      %v466 = vsel %vm320, %v463, 0.0
      %467 = vadd.xlane.f32.xlu0 %v466
      %v468 = vpop.xlane.xlu0 %467
      %v469 = vsel %vm320, %v465, 0.0
      %470 = vadd.xlane.f32.xlu0 %v469
      %v471 = vpop.xlane.xlu0 %470
      %v472 = vrcp.pop %v468
      %v473 = vrcp.pop %v471
      %v474 = vmul.f32 %v463, %v472
      %v475 = vmul.f32 %v465, %v473
      %v476 = vpack.c.bf16 %v475, %v474
      %478 = vrot.lane.b32.xlu0 %v400, 96
      %v479 = vpop.permute.xlu0 %478
      %v482 = vsel %vm320, %v476, 0
      %484 = vmatprep.subr.bf16.mxu0 0
      %485 = vmatpush1.bf16.msra.mxu0 %v479
      %486 = vmatprep.subr.bf16.mxu0 0
      %487 = vmatpush1.bf16.msra.mxu0 0
      %488 = vmatprep.subr.bf16.mxu0 0
      %489 = vmatpush1.bf16.msra.mxu0 0
      %490 = vmatprep.subr.bf16.mxu0 0
      %491 = vmatpush1.bf16.msra.mxu0 0
      %492 = vmatprep.subr.bf16.mxu0 0
      %493 = vmatpush1.bf16.msra.mxu0 0
      %494 = vmatprep.subr.bf16.mxu0 0
      %495 = vmatpush1.bf16.msra.mxu0 0
      %496 = vmatprep.subr.bf16.mxu0 0
      %497 = vmatpush1.bf16.msra.mxu0 0
      %498 = vmatprep.subr.bf16.mxu0 0
      %499 = vmatpush1.bf16.msra.mxu0 0
      %500 = vmatprep.subr.bf16.mxu0 0
      %501 = vmatpush1.bf16.msra.mxu0 0
      %502 = vmatprep.subr.bf16.mxu0 0
      %503 = vmatpush1.bf16.msra.mxu0 0
      %504 = vmatprep.subr.bf16.mxu0 0
      %505 = vmatpush1.bf16.msra.mxu0 0
      %506 = vmatprep.subr.bf16.mxu0 0
      %507 = vmatpush1.bf16.msra.mxu0 0
      %508 = vmatprep.subr.bf16.mxu0 0
      %509 = vmatpush1.bf16.msra.mxu0 0
      %510 = vmatprep.subr.bf16.mxu0 0
      %511 = vmatpush1.bf16.msra.mxu0 0
      %512 = vmatprep.subr.bf16.mxu0 0
      %513 = vmatpush1.bf16.msra.mxu0 0
      %514 = vmatprep.subr.bf16.mxu0 0
      %515 = vmatpush1.bf16.msra.mxu0 0
      %516 = vmatprep.mubr.bf16.mxu0 0
      %517 = vmatmul.mubr.bf16.gmra.mrb[0].mxu0 %v482
      %v518 = vpop.f32.mrb[0].mxu0
      %v519 = vadd.f32 0.0, %v518
      %v520 = vpop.f32.mrb[0].mxu0
      %v521 = vpop.f32.mrb[0].mxu0
      %v522 = vadd.f32 0.0, %v521
      %v523 = vpop.f32.mrb[0].mxu0
      %524 = vdwg.mxu0
      %527 = vrot.lane.b32.xlu0 %v519, 32
      %v528 = vpop.permute.xlu0 %527
      %529 = vrot.lane.b32.xlu0 %v522, 32
      %v530 = vpop.permute.xlu0 %529
      %vm533 = vcmask 523520
      %534 = vst.msk [vmem:[%s251] sm:$0xff] %vm533, %v528
      %535 = vst.msk [vmem:[%s251 + $0x10] sm:$0xff] %vm533, %v530
      %v536 = vld [vmem:[%s233] sm:$0xff]
      %v537 = vld [vmem:[%s233 + $0x10] sm:$0xff]
      %v538 = vmul.f32 %v536, 0.17677669
      %v539 = vmul.f32 %v537, 0.17677669
      %v540 = vpack.c.bf16 %v539, %v538
      %v541 = vld [vmem:[%s238] sm:$0xff]
      %v542 = vld [vmem:[%s238 + $0x10] sm:$0xff]
      %v543 = vpack.c.bf16 %v542, %v541
      %v544 = vld [vmem:[%s243] sm:$0xff]
      %v545 = vld [vmem:[%s243 + $0x10] sm:$0xff]
      %v546 = vpack.c.bf16 %v545, %v544
      %548 = vrot.lane.b32.xlu0 %v540, 64
      %v549 = vpop.permute.xlu0 %548
      %551 = vrot.lane.b32.xlu0 %v543, 64
      %v552 = vpop.permute.xlu0 %551
      %v554 = vsel %vm272, %v549, 0
      %v557 = vsel %vm272, %v552, 0
      %559 = vmatprep.subr.bf16.mxu0 0
      %560 = vmatpush1.bf16.xpose.msra.mxu0 %v557
      %561 = vmatprep.subr.bf16.mxu0 0
      %562 = vmatpush1.bf16.xpose.msra.mxu0 0
      %563 = vmatprep.subr.bf16.mxu0 0
      %564 = vmatpush1.bf16.xpose.msra.mxu0 0
      %565 = vmatprep.subr.bf16.mxu0 0
      %566 = vmatpush1.bf16.xpose.msra.mxu0 0
      %567 = vmatprep.subr.bf16.mxu0 0
      %568 = vmatpush1.bf16.xpose.msra.mxu0 0
      %569 = vmatprep.subr.bf16.mxu0 0
      %570 = vmatpush1.bf16.xpose.msra.mxu0 0
      %571 = vmatprep.subr.bf16.mxu0 0
      %572 = vmatpush1.bf16.xpose.msra.mxu0 0
      %573 = vmatprep.subr.bf16.mxu0 0
      %574 = vmatpush1.bf16.xpose.msra.mxu0 0
      %575 = vmatprep.subr.bf16.mxu0 0
      %576 = vmatpush1.bf16.xpose.msra.mxu0 0
      %577 = vmatprep.subr.bf16.mxu0 0
      %578 = vmatpush1.bf16.xpose.msra.mxu0 0
      %579 = vmatprep.subr.bf16.mxu0 0
      %580 = vmatpush1.bf16.xpose.msra.mxu0 0
      %581 = vmatprep.subr.bf16.mxu0 0
      %582 = vmatpush1.bf16.xpose.msra.mxu0 0
      %583 = vmatprep.subr.bf16.mxu0 0
      %584 = vmatpush1.bf16.xpose.msra.mxu0 0
      %585 = vmatprep.subr.bf16.mxu0 0
      %586 = vmatpush1.bf16.xpose.msra.mxu0 0
      %587 = vmatprep.subr.bf16.mxu0 0
      %588 = vmatpush1.bf16.xpose.msra.mxu0 0
      %589 = vmatprep.subr.bf16.mxu0 0
      %590 = vmatpush1.bf16.xpose.msra.mxu0 0
      %591 = vmatprep.mubr.bf16.mxu0 0
      %592 = vmatmul.mubr.bf16.gmra.mrb[0].mxu0 %v554
      %v593 = vpop.f32.mrb[0].mxu0
      %v594 = vadd.f32 %v270, %v593
      %v595 = vpop.f32.mrb[0].mxu0
      %v596 = vpop.f32.mrb[0].mxu0
      %v597 = vadd.f32 %v270, %v596
      %v598 = vpop.f32.mrb[0].mxu0
      %599 = vdwg.mxu0
      %v600 = vsel %vm320, %v594, -inf
      %601 = vmax.xlane.f32.xlu0 %v600
      %v602 = vpop.xlane.xlu0 %601
      %v603 = vsel %vm320, %v597, -inf
      %604 = vmax.xlane.f32.xlu0 %v603
      %v605 = vpop.xlane.xlu0 %604
      %v606 = vsub.f32 %v594, %v602
      %v607 = vsub.f32 %v597, %v605
      %v608 = vmul.f32 %v606, 1.442695
      %v609 = vpow.pop %v608
      %v610 = vmul.f32 %v607, 1.442695
      %v611 = vpow.pop %v610
      %v612 = vsel %vm320, %v609, 0.0
      %613 = vadd.xlane.f32.xlu0 %v612
      %v614 = vpop.xlane.xlu0 %613
      %v615 = vsel %vm320, %v611, 0.0
      %616 = vadd.xlane.f32.xlu0 %v615
      %v617 = vpop.xlane.xlu0 %616
      %v618 = vrcp.pop %v614
      %v619 = vrcp.pop %v617
      %v620 = vmul.f32 %v609, %v618
      %v621 = vmul.f32 %v611, %v619
      %v622 = vpack.c.bf16 %v621, %v620
      %624 = vrot.lane.b32.xlu0 %v546, 64
      %v625 = vpop.permute.xlu0 %624
      %v628 = vsel %vm320, %v622, 0
      %630 = vmatprep.subr.bf16.mxu0 0
      %631 = vmatpush1.bf16.msra.mxu0 %v625
      %632 = vmatprep.subr.bf16.mxu0 0
      %633 = vmatpush1.bf16.msra.mxu0 0
      %634 = vmatprep.subr.bf16.mxu0 0
      %635 = vmatpush1.bf16.msra.mxu0 0
      %636 = vmatprep.subr.bf16.mxu0 0
      %637 = vmatpush1.bf16.msra.mxu0 0
      %638 = vmatprep.subr.bf16.mxu0 0
      %639 = vmatpush1.bf16.msra.mxu0 0
      %640 = vmatprep.subr.bf16.mxu0 0
      %641 = vmatpush1.bf16.msra.mxu0 0
      %642 = vmatprep.subr.bf16.mxu0 0
      %643 = vmatpush1.bf16.msra.mxu0 0
      %644 = vmatprep.subr.bf16.mxu0 0
      %645 = vmatpush1.bf16.msra.mxu0 0
      %646 = vmatprep.subr.bf16.mxu0 0
      %647 = vmatpush1.bf16.msra.mxu0 0
      %648 = vmatprep.subr.bf16.mxu0 0
      %649 = vmatpush1.bf16.msra.mxu0 0
      %650 = vmatprep.subr.bf16.mxu0 0
      %651 = vmatpush1.bf16.msra.mxu0 0
      %652 = vmatprep.subr.bf16.mxu0 0
      %653 = vmatpush1.bf16.msra.mxu0 0
      %654 = vmatprep.subr.bf16.mxu0 0
      %655 = vmatpush1.bf16.msra.mxu0 0
      %656 = vmatprep.subr.bf16.mxu0 0
      %657 = vmatpush1.bf16.msra.mxu0 0
      %658 = vmatprep.subr.bf16.mxu0 0
      %659 = vmatpush1.bf16.msra.mxu0 0
      %660 = vmatprep.subr.bf16.mxu0 0
      %661 = vmatpush1.bf16.msra.mxu0 0
      %662 = vmatprep.mubr.bf16.mxu0 0
      %663 = vmatmul.mubr.bf16.gmra.mrb[0].mxu0 %v628
      %v664 = vpop.f32.mrb[0].mxu0
      %v665 = vadd.f32 0.0, %v664
      %v666 = vpop.f32.mrb[0].mxu0
      %v667 = vpop.f32.mrb[0].mxu0
      %v668 = vadd.f32 0.0, %v667
      %v669 = vpop.f32.mrb[0].mxu0
      %670 = vdwg.mxu0
      %673 = vrot.lane.b32.xlu0 %v665, 64
      %v674 = vpop.permute.xlu0 %673
      %675 = vrot.lane.b32.xlu0 %v668, 64
      %v676 = vpop.permute.xlu0 %675
      %vm679 = vcmask 785920
      %680 = vst.msk [vmem:[%s251] sm:$0xff] %vm679, %v674
      %681 = vst.msk [vmem:[%s251 + $0x10] sm:$0xff] %vm679, %v676
      %v682 = vld [vmem:[%s233] sm:$0xff]
      %v683 = vld [vmem:[%s233 + $0x10] sm:$0xff]
      %v684 = vmul.f32 %v682, 0.17677669
      %v685 = vmul.f32 %v683, 0.17677669
      %v686 = vpack.c.bf16 %v685, %v684
      %v687 = vld [vmem:[%s238] sm:$0xff]
      %v688 = vld [vmem:[%s238 + $0x10] sm:$0xff]
      %v689 = vpack.c.bf16 %v688, %v687
      %v690 = vld [vmem:[%s243] sm:$0xff]
      %v691 = vld [vmem:[%s243 + $0x10] sm:$0xff]
      %v692 = vpack.c.bf16 %v691, %v690
      %694 = vrot.lane.b32.xlu0 %v686, 32
      %v695 = vpop.permute.xlu0 %694
      %697 = vrot.lane.b32.xlu0 %v689, 32
      %v698 = vpop.permute.xlu0 %697
      %v700 = vsel %vm272, %v695, 0
      %v703 = vsel %vm272, %v698, 0
      %705 = vmatprep.subr.bf16.mxu0 0
      %706 = vmatpush1.bf16.xpose.msra.mxu0 %v703
      %707 = vmatprep.subr.bf16.mxu0 0
      %708 = vmatpush1.bf16.xpose.msra.mxu0 0
      %709 = vmatprep.subr.bf16.mxu0 0
      %710 = vmatpush1.bf16.xpose.msra.mxu0 0
      %711 = vmatprep.subr.bf16.mxu0 0
      %712 = vmatpush1.bf16.xpose.msra.mxu0 0
      %713 = vmatprep.subr.bf16.mxu0 0
      %714 = vmatpush1.bf16.xpose.msra.mxu0 0
      %715 = vmatprep.subr.bf16.mxu0 0
      %716 = vmatpush1.bf16.xpose.msra.mxu0 0
      %717 = vmatprep.subr.bf16.mxu0 0
      %718 = vmatpush1.bf16.xpose.msra.mxu0 0
      %719 = vmatprep.subr.bf16.mxu0 0
      %720 = vmatpush1.bf16.xpose.msra.mxu0 0
      %721 = vmatprep.subr.bf16.mxu0 0
      %722 = vmatpush1.bf16.xpose.msra.mxu0 0
      %723 = vmatprep.subr.bf16.mxu0 0
      %724 = vmatpush1.bf16.xpose.msra.mxu0 0
      %725 = vmatprep.subr.bf16.mxu0 0
      %726 = vmatpush1.bf16.xpose.msra.mxu0 0
      %727 = vmatprep.subr.bf16.mxu0 0
      %728 = vmatpush1.bf16.xpose.msra.mxu0 0
      %729 = vmatprep.subr.bf16.mxu0 0
      %730 = vmatpush1.bf16.xpose.msra.mxu0 0
      %731 = vmatprep.subr.bf16.mxu0 0
      %732 = vmatpush1.bf16.xpose.msra.mxu0 0
      %733 = vmatprep.subr.bf16.mxu0 0
      %734 = vmatpush1.bf16.xpose.msra.mxu0 0
      %735 = vmatprep.subr.bf16.mxu0 0
      %736 = vmatpush1.bf16.xpose.msra.mxu0 0
      %737 = vmatprep.mubr.bf16.mxu0 0
      %738 = vmatmul.mubr.bf16.gmra.mrb[0].mxu0 %v700
      %v739 = vpop.f32.mrb[0].mxu0
      %v740 = vadd.f32 %v270, %v739
      %v741 = vpop.f32.mrb[0].mxu0
      %v742 = vpop.f32.mrb[0].mxu0
      %v743 = vadd.f32 %v270, %v742
      %v744 = vpop.f32.mrb[0].mxu0
      %745 = vdwg.mxu0
      %v746 = vsel %vm320, %v740, -inf
      %747 = vmax.xlane.f32.xlu0 %v746
      %v748 = vpop.xlane.xlu0 %747
      %v749 = vsel %vm320, %v743, -inf
      %750 = vmax.xlane.f32.xlu0 %v749
      %v751 = vpop.xlane.xlu0 %750
      %v752 = vsub.f32 %v740, %v748
      %v753 = vsub.f32 %v743, %v751
      %v754 = vmul.f32 %v752, 1.442695
      %v755 = vpow.pop %v754
      %v756 = vmul.f32 %v753, 1.442695
      %v757 = vpow.pop %v756
      %v758 = vsel %vm320, %v755, 0.0
      %759 = vadd.xlane.f32.xlu0 %v758
      %v760 = vpop.xlane.xlu0 %759
      %v761 = vsel %vm320, %v757, 0.0
      %762 = vadd.xlane.f32.xlu0 %v761
      %v763 = vpop.xlane.xlu0 %762
      %v764 = vrcp.pop %v760
      %v765 = vrcp.pop %v763
      %v766 = vmul.f32 %v755, %v764
      %v767 = vmul.f32 %v757, %v765
      %v768 = vpack.c.bf16 %v767, %v766
      %770 = vrot.lane.b32.xlu0 %v692, 32
      %v771 = vpop.permute.xlu0 %770
      %v774 = vsel %vm320, %v768, 0
      %776 = vmatprep.subr.bf16.mxu0 0
      %777 = vmatpush1.bf16.msra.mxu0 %v771
      %778 = vmatprep.subr.bf16.mxu0 0
      %779 = vmatpush1.bf16.msra.mxu0 0
      %780 = vmatprep.subr.bf16.mxu0 0
      %781 = vmatpush1.bf16.msra.mxu0 0
      %782 = vmatprep.subr.bf16.mxu0 0
      %783 = vmatpush1.bf16.msra.mxu0 0
      %784 = vmatprep.subr.bf16.mxu0 0
      %785 = vmatpush1.bf16.msra.mxu0 0
      %786 = vmatprep.subr.bf16.mxu0 0
      %787 = vmatpush1.bf16.msra.mxu0 0
      %788 = vmatprep.subr.bf16.mxu0 0
      %789 = vmatpush1.bf16.msra.mxu0 0
      %790 = vmatprep.subr.bf16.mxu0 0
      %791 = vmatpush1.bf16.msra.mxu0 0
      %792 = vmatprep.subr.bf16.mxu0 0
      %793 = vmatpush1.bf16.msra.mxu0 0
      %794 = vmatprep.subr.bf16.mxu0 0
      %795 = vmatpush1.bf16.msra.mxu0 0
      %796 = vmatprep.subr.bf16.mxu0 0
      %797 = vmatpush1.bf16.msra.mxu0 0
      %798 = vmatprep.subr.bf16.mxu0 0
      %799 = vmatpush1.bf16.msra.mxu0 0
      %800 = vmatprep.subr.bf16.mxu0 0
      %801 = vmatpush1.bf16.msra.mxu0 0
      %802 = vmatprep.subr.bf16.mxu0 0
      %803 = vmatpush1.bf16.msra.mxu0 0
      %804 = vmatprep.subr.bf16.mxu0 0
      %805 = vmatpush1.bf16.msra.mxu0 0
      %806 = vmatprep.subr.bf16.mxu0 0
      %807 = vmatpush1.bf16.msra.mxu0 0
      %808 = vmatprep.mubr.bf16.mxu0 0
      %809 = vmatmul.mubr.bf16.gmra.mrb[0].mxu0 %v774
      %v810 = vpop.f32.mrb[0].mxu0
      %v811 = vadd.f32 0.0, %v810
      %v812 = vpop.f32.mrb[0].mxu0
      %v813 = vpop.f32.mrb[0].mxu0
      %v814 = vadd.f32 0.0, %v813
      %v815 = vpop.f32.mrb[0].mxu0
      %816 = vdwg.mxu0
      %819 = vrot.lane.b32.xlu0 %v811, 96
      %v820 = vpop.permute.xlu0 %819
      %821 = vrot.lane.b32.xlu0 %v814, 96
      %v822 = vpop.permute.xlu0 %821
      %vm825 = vcmask 1048320
      %826 = vst.msk [vmem:[%s251] sm:$0xff] %vm825, %v820
      %827 = vst.msk [vmem:[%s251 + $0x10] sm:$0xff] %vm825, %v822
      %v828 = vld [vmem:[%s233 + $0x8] sm:$0xff]
      %v829 = vld [vmem:[%s233 + $0x18] sm:$0xff]
      %v830 = vmul.f32 %v828, 0.17677669
      %v831 = vmul.f32 %v829, 0.17677669
      %v832 = vpack.c.bf16 %v831, %v830
      %v833 = vld [vmem:[%s238 + $0x8] sm:$0xff]
      %v834 = vld [vmem:[%s238 + $0x18] sm:$0xff]
      %v835 = vpack.c.bf16 %v834, %v833
      %v836 = vld [vmem:[%s243 + $0x8] sm:$0xff]
      %v837 = vld [vmem:[%s243 + $0x18] sm:$0xff]
      %v838 = vpack.c.bf16 %v837, %v836
      %v840 = vsel %vm272, %v832, 0
      %v843 = vsel %vm272, %v835, 0
      %845 = vmatprep.subr.bf16.mxu0 0
      %846 = vmatpush1.bf16.xpose.msra.mxu0 %v843
      %847 = vmatprep.subr.bf16.mxu0 0
      %848 = vmatpush1.bf16.xpose.msra.mxu0 0
      %849 = vmatprep.subr.bf16.mxu0 0
      %850 = vmatpush1.bf16.xpose.msra.mxu0 0
      %851 = vmatprep.subr.bf16.mxu0 0
      %852 = vmatpush1.bf16.xpose.msra.mxu0 0
      %853 = vmatprep.subr.bf16.mxu0 0
      %854 = vmatpush1.bf16.xpose.msra.mxu0 0
      %855 = vmatprep.subr.bf16.mxu0 0
      %856 = vmatpush1.bf16.xpose.msra.mxu0 0
      %857 = vmatprep.subr.bf16.mxu0 0
      %858 = vmatpush1.bf16.xpose.msra.mxu0 0
      %859 = vmatprep.subr.bf16.mxu0 0
      %860 = vmatpush1.bf16.xpose.msra.mxu0 0
      %861 = vmatprep.subr.bf16.mxu0 0
      %862 = vmatpush1.bf16.xpose.msra.mxu0 0
      %863 = vmatprep.subr.bf16.mxu0 0
      %864 = vmatpush1.bf16.xpose.msra.mxu0 0
      %865 = vmatprep.subr.bf16.mxu0 0
      %866 = vmatpush1.bf16.xpose.msra.mxu0 0
      %867 = vmatprep.subr.bf16.mxu0 0
      %868 = vmatpush1.bf16.xpose.msra.mxu0 0
      %869 = vmatprep.subr.bf16.mxu0 0
      %870 = vmatpush1.bf16.xpose.msra.mxu0 0
      %871 = vmatprep.subr.bf16.mxu0 0
      %872 = vmatpush1.bf16.xpose.msra.mxu0 0
      %873 = vmatprep.subr.bf16.mxu0 0
      %874 = vmatpush1.bf16.xpose.msra.mxu0 0
      %875 = vmatprep.subr.bf16.mxu0 0
      %876 = vmatpush1.bf16.xpose.msra.mxu0 0
      %877 = vmatprep.mubr.bf16.mxu0 0
      %878 = vmatmul.mubr.bf16.gmra.mrb[0].mxu0 %v840
      %v879 = vpop.f32.mrb[0].mxu0
      %v880 = vadd.f32 %v270, %v879
      %v881 = vpop.f32.mrb[0].mxu0
      %v882 = vpop.f32.mrb[0].mxu0
      %v883 = vadd.f32 %v270, %v882
      %v884 = vpop.f32.mrb[0].mxu0
      %885 = vdwg.mxu0
      %v886 = vsel %vm320, %v880, -inf
      %887 = vmax.xlane.f32.xlu0 %v886
      %v888 = vpop.xlane.xlu0 %887
      %v889 = vsel %vm320, %v883, -inf
      %890 = vmax.xlane.f32.xlu0 %v889
      %v891 = vpop.xlane.xlu0 %890
      %v892 = vsub.f32 %v880, %v888
      %v893 = vsub.f32 %v883, %v891
      %v894 = vmul.f32 %v892, 1.442695
      %v895 = vpow.pop %v894
      %v896 = vmul.f32 %v893, 1.442695
      %v897 = vpow.pop %v896
      %v898 = vsel %vm320, %v895, 0.0
      %899 = vadd.xlane.f32.xlu0 %v898
      %v900 = vpop.xlane.xlu0 %899
      %v901 = vsel %vm320, %v897, 0.0
      %902 = vadd.xlane.f32.xlu0 %v901
      %v903 = vpop.xlane.xlu0 %902
      %v904 = vrcp.pop %v900
      %v905 = vrcp.pop %v903
      %v906 = vmul.f32 %v895, %v904
      %v907 = vmul.f32 %v897, %v905
      %v908 = vpack.c.bf16 %v907, %v906
      %v910 = vsel %vm320, %v908, 0
      %912 = vmatprep.subr.bf16.mxu0 0
      %913 = vmatpush1.bf16.msra.mxu0 %v838
      %914 = vmatprep.subr.bf16.mxu0 0
      %915 = vmatpush1.bf16.msra.mxu0 0
      %916 = vmatprep.subr.bf16.mxu0 0
      %917 = vmatpush1.bf16.msra.mxu0 0
      %918 = vmatprep.subr.bf16.mxu0 0
      %919 = vmatpush1.bf16.msra.mxu0 0
      %920 = vmatprep.subr.bf16.mxu0 0
      %921 = vmatpush1.bf16.msra.mxu0 0
      %922 = vmatprep.subr.bf16.mxu0 0
      %923 = vmatpush1.bf16.msra.mxu0 0
      %924 = vmatprep.subr.bf16.mxu0 0
      %925 = vmatpush1.bf16.msra.mxu0 0
      %926 = vmatprep.subr.bf16.mxu0 0
      %927 = vmatpush1.bf16.msra.mxu0 0
      %928 = vmatprep.subr.bf16.mxu0 0
      %929 = vmatpush1.bf16.msra.mxu0 0
      %930 = vmatprep.subr.bf16.mxu0 0
      %931 = vmatpush1.bf16.msra.mxu0 0
      %932 = vmatprep.subr.bf16.mxu0 0
      %933 = vmatpush1.bf16.msra.mxu0 0
      %934 = vmatprep.subr.bf16.mxu0 0
      %935 = vmatpush1.bf16.msra.mxu0 0
      %936 = vmatprep.subr.bf16.mxu0 0
      %937 = vmatpush1.bf16.msra.mxu0 0
      %938 = vmatprep.subr.bf16.mxu0 0
      %939 = vmatpush1.bf16.msra.mxu0 0
      %940 = vmatprep.subr.bf16.mxu0 0
      %941 = vmatpush1.bf16.msra.mxu0 0
      %942 = vmatprep.subr.bf16.mxu0 0
      %943 = vmatpush1.bf16.msra.mxu0 0
      %944 = vmatprep.mubr.bf16.mxu0 0
      %945 = vmatmul.mubr.bf16.gmra.mrb[0].mxu0 %v910
      %v946 = vpop.f32.mrb[0].mxu0
      %v947 = vadd.f32 0.0, %v946
      %v948 = vpop.f32.mrb[0].mxu0
      %v949 = vpop.f32.mrb[0].mxu0
      %v950 = vadd.f32 0.0, %v949
      %v951 = vpop.f32.mrb[0].mxu0
      %952 = vdwg.mxu0
      %953 = vst.msk [vmem:[%s251 + $0x8] sm:$0xff] %vm272, %v947
      %954 = vst.msk [vmem:[%s251 + $0x18] sm:$0xff] %vm272, %v950
      %v955 = vld [vmem:[%s233 + $0x8] sm:$0xff]
      %v956 = vld [vmem:[%s233 + $0x18] sm:$0xff]
      %v957 = vmul.f32 %v955, 0.17677669
      %v958 = vmul.f32 %v956, 0.17677669
      %v959 = vpack.c.bf16 %v958, %v957
      %v960 = vld [vmem:[%s238 + $0x8] sm:$0xff]
      %v961 = vld [vmem:[%s238 + $0x18] sm:$0xff]
      %v962 = vpack.c.bf16 %v961, %v960
      %v963 = vld [vmem:[%s243 + $0x8] sm:$0xff]
      %v964 = vld [vmem:[%s243 + $0x18] sm:$0xff]
      %v965 = vpack.c.bf16 %v964, %v963
      %967 = vrot.lane.b32.xlu0 %v959, 96
      %v968 = vpop.permute.xlu0 %967
      %970 = vrot.lane.b32.xlu0 %v962, 96
      %v971 = vpop.permute.xlu0 %970
      %v973 = vsel %vm272, %v968, 0
      %v976 = vsel %vm272, %v971, 0
      %978 = vmatprep.subr.bf16.mxu0 0
      %979 = vmatpush1.bf16.xpose.msra.mxu0 %v976
      %980 = vmatprep.subr.bf16.mxu0 0
      %981 = vmatpush1.bf16.xpose.msra.mxu0 0
      %982 = vmatprep.subr.bf16.mxu0 0
      %983 = vmatpush1.bf16.xpose.msra.mxu0 0
      %984 = vmatprep.subr.bf16.mxu0 0
      %985 = vmatpush1.bf16.xpose.msra.mxu0 0
      %986 = vmatprep.subr.bf16.mxu0 0
      %987 = vmatpush1.bf16.xpose.msra.mxu0 0
      %988 = vmatprep.subr.bf16.mxu0 0
      %989 = vmatpush1.bf16.xpose.msra.mxu0 0
      %990 = vmatprep.subr.bf16.mxu0 0
      %991 = vmatpush1.bf16.xpose.msra.mxu0 0
      %992 = vmatprep.subr.bf16.mxu0 0
      %993 = vmatpush1.bf16.xpose.msra.mxu0 0
      %994 = vmatprep.subr.bf16.mxu0 0
      %995 = vmatpush1.bf16.xpose.msra.mxu0 0
      %996 = vmatprep.subr.bf16.mxu0 0
      %997 = vmatpush1.bf16.xpose.msra.mxu0 0
      %998 = vmatprep.subr.bf16.mxu0 0
      %999 = vmatpush1.bf16.xpose.msra.mxu0 0
      %1000 = vmatprep.subr.bf16.mxu0 0
      %1001 = vmatpush1.bf16.xpose.msra.mxu0 0
      %1002 = vmatprep.subr.bf16.mxu0 0
      %1003 = vmatpush1.bf16.xpose.msra.mxu0 0
      %1004 = vmatprep.subr.bf16.mxu0 0
      %1005 = vmatpush1.bf16.xpose.msra.mxu0 0
      %1006 = vmatprep.subr.bf16.mxu0 0
      %1007 = vmatpush1.bf16.xpose.msra.mxu0 0
      %1008 = vmatprep.subr.bf16.mxu0 0
      %1009 = vmatpush1.bf16.xpose.msra.mxu0 0
      %1010 = vmatprep.mubr.bf16.mxu0 0
      %1011 = vmatmul.mubr.bf16.gmra.mrb[0].mxu0 %v973
      %v1012 = vpop.f32.mrb[0].mxu0
      %v1013 = vadd.f32 %v270, %v1012
      %v1014 = vpop.f32.mrb[0].mxu0
      %v1015 = vpop.f32.mrb[0].mxu0
      %v1016 = vadd.f32 %v270, %v1015
      %v1017 = vpop.f32.mrb[0].mxu0
      %1018 = vdwg.mxu0
      %v1019 = vsel %vm320, %v1013, -inf
      %1020 = vmax.xlane.f32.xlu0 %v1019
      %v1021 = vpop.xlane.xlu0 %1020
      %v1022 = vsel %vm320, %v1016, -inf
      %1023 = vmax.xlane.f32.xlu0 %v1022
      %v1024 = vpop.xlane.xlu0 %1023
      %v1025 = vsub.f32 %v1013, %v1021
      %v1026 = vsub.f32 %v1016, %v1024
      %v1027 = vmul.f32 %v1025, 1.442695
      %v1028 = vpow.pop %v1027
      %v1029 = vmul.f32 %v1026, 1.442695
      %v1030 = vpow.pop %v1029
      %v1031 = vsel %vm320, %v1028, 0.0
      %1032 = vadd.xlane.f32.xlu0 %v1031
      %v1033 = vpop.xlane.xlu0 %1032
      %v1034 = vsel %vm320, %v1030, 0.0
      %1035 = vadd.xlane.f32.xlu0 %v1034
      %v1036 = vpop.xlane.xlu0 %1035
      %v1037 = vrcp.pop %v1033
      %v1038 = vrcp.pop %v1036
      %v1039 = vmul.f32 %v1028, %v1037
      %v1040 = vmul.f32 %v1030, %v1038
      %v1041 = vpack.c.bf16 %v1040, %v1039
      %1043 = vrot.lane.b32.xlu0 %v965, 96
      %v1044 = vpop.permute.xlu0 %1043
      %v1047 = vsel %vm320, %v1041, 0
      %1049 = vmatprep.subr.bf16.mxu0 0
      %1050 = vmatpush1.bf16.msra.mxu0 %v1044
      %1051 = vmatprep.subr.bf16.mxu0 0
      %1052 = vmatpush1.bf16.msra.mxu0 0
      %1053 = vmatprep.subr.bf16.mxu0 0
      %1054 = vmatpush1.bf16.msra.mxu0 0
      %1055 = vmatprep.subr.bf16.mxu0 0
      %1056 = vmatpush1.bf16.msra.mxu0 0
      %1057 = vmatprep.subr.bf16.mxu0 0
      %1058 = vmatpush1.bf16.msra.mxu0 0
      %1059 = vmatprep.subr.bf16.mxu0 0
      %1060 = vmatpush1.bf16.msra.mxu0 0
      %1061 = vmatprep.subr.bf16.mxu0 0
      %1062 = vmatpush1.bf16.msra.mxu0 0
      %1063 = vmatprep.subr.bf16.mxu0 0
      %1064 = vmatpush1.bf16.msra.mxu0 0
      %1065 = vmatprep.subr.bf16.mxu0 0
      %1066 = vmatpush1.bf16.msra.mxu0 0
      %1067 = vmatprep.subr.bf16.mxu0 0
      %1068 = vmatpush1.bf16.msra.mxu0 0
      %1069 = vmatprep.subr.bf16.mxu0 0
      %1070 = vmatpush1.bf16.msra.mxu0 0
      %1071 = vmatprep.subr.bf16.mxu0 0
      %1072 = vmatpush1.bf16.msra.mxu0 0
      %1073 = vmatprep.subr.bf16.mxu0 0
      %1074 = vmatpush1.bf16.msra.mxu0 0
      %1075 = vmatprep.subr.bf16.mxu0 0
      %1076 = vmatpush1.bf16.msra.mxu0 0
      %1077 = vmatprep.subr.bf16.mxu0 0
      %1078 = vmatpush1.bf16.msra.mxu0 0
      %1079 = vmatprep.subr.bf16.mxu0 0
      %1080 = vmatpush1.bf16.msra.mxu0 0
      %1081 = vmatprep.mubr.bf16.mxu0 0
      %1082 = vmatmul.mubr.bf16.gmra.mrb[0].mxu0 %v1047
      %v1083 = vpop.f32.mrb[0].mxu0
      %v1084 = vadd.f32 0.0, %v1083
      %v1085 = vpop.f32.mrb[0].mxu0
      %v1086 = vpop.f32.mrb[0].mxu0
      %v1087 = vadd.f32 0.0, %v1086
      %v1088 = vpop.f32.mrb[0].mxu0
      %1089 = vdwg.mxu0
      %1092 = vrot.lane.b32.xlu0 %v1084, 32
      %v1093 = vpop.permute.xlu0 %1092
      %1094 = vrot.lane.b32.xlu0 %v1087, 32
      %v1095 = vpop.permute.xlu0 %1094
      %1098 = vst.msk [vmem:[%s251 + $0x8] sm:$0xff] %vm533, %v1093
      %1099 = vst.msk [vmem:[%s251 + $0x18] sm:$0xff] %vm533, %v1095
      %v1100 = vld [vmem:[%s233 + $0x8] sm:$0xff]
      %v1101 = vld [vmem:[%s233 + $0x18] sm:$0xff]
      %v1102 = vmul.f32 %v1100, 0.17677669
      %v1103 = vmul.f32 %v1101, 0.17677669
      %v1104 = vpack.c.bf16 %v1103, %v1102
      %v1105 = vld [vmem:[%s238 + $0x8] sm:$0xff]
      %v1106 = vld [vmem:[%s238 + $0x18] sm:$0xff]
      %v1107 = vpack.c.bf16 %v1106, %v1105
      %v1108 = vld [vmem:[%s243 + $0x8] sm:$0xff]
      %v1109 = vld [vmem:[%s243 + $0x18] sm:$0xff]
      %v1110 = vpack.c.bf16 %v1109, %v1108
      %1112 = vrot.lane.b32.xlu0 %v1104, 64
      %v1113 = vpop.permute.xlu0 %1112
      %1115 = vrot.lane.b32.xlu0 %v1107, 64
      %v1116 = vpop.permute.xlu0 %1115
      %v1118 = vsel %vm272, %v1113, 0
      %v1121 = vsel %vm272, %v1116, 0
      %1123 = vmatprep.subr.bf16.mxu0 0
      %1124 = vmatpush1.bf16.xpose.msra.mxu0 %v1121
      %1125 = vmatprep.subr.bf16.mxu0 0
      %1126 = vmatpush1.bf16.xpose.msra.mxu0 0
      %1127 = vmatprep.subr.bf16.mxu0 0
      %1128 = vmatpush1.bf16.xpose.msra.mxu0 0
      %1129 = vmatprep.subr.bf16.mxu0 0
      %1130 = vmatpush1.bf16.xpose.msra.mxu0 0
      %1131 = vmatprep.subr.bf16.mxu0 0
      %1132 = vmatpush1.bf16.xpose.msra.mxu0 0
      %1133 = vmatprep.subr.bf16.mxu0 0
      %1134 = vmatpush1.bf16.xpose.msra.mxu0 0
      %1135 = vmatprep.subr.bf16.mxu0 0
      %1136 = vmatpush1.bf16.xpose.msra.mxu0 0
      %1137 = vmatprep.subr.bf16.mxu0 0
      %1138 = vmatpush1.bf16.xpose.msra.mxu0 0
      %1139 = vmatprep.subr.bf16.mxu0 0
      %1140 = vmatpush1.bf16.xpose.msra.mxu0 0
      %1141 = vmatprep.subr.bf16.mxu0 0
      %1142 = vmatpush1.bf16.xpose.msra.mxu0 0
      %1143 = vmatprep.subr.bf16.mxu0 0
      %1144 = vmatpush1.bf16.xpose.msra.mxu0 0
      %1145 = vmatprep.subr.bf16.mxu0 0
      %1146 = vmatpush1.bf16.xpose.msra.mxu0 0
      %1147 = vmatprep.subr.bf16.mxu0 0
      %1148 = vmatpush1.bf16.xpose.msra.mxu0 0
      %1149 = vmatprep.subr.bf16.mxu0 0
      %1150 = vmatpush1.bf16.xpose.msra.mxu0 0
      %1151 = vmatprep.subr.bf16.mxu0 0
      %1152 = vmatpush1.bf16.xpose.msra.mxu0 0
      %1153 = vmatprep.subr.bf16.mxu0 0
      %1154 = vmatpush1.bf16.xpose.msra.mxu0 0
      %1155 = vmatprep.mubr.bf16.mxu0 0
      %1156 = vmatmul.mubr.bf16.gmra.mrb[0].mxu0 %v1118
      %v1157 = vpop.f32.mrb[0].mxu0
      %v1158 = vadd.f32 %v270, %v1157
      %v1159 = vpop.f32.mrb[0].mxu0
      %v1160 = vpop.f32.mrb[0].mxu0
      %v1161 = vadd.f32 %v270, %v1160
      %v1162 = vpop.f32.mrb[0].mxu0
      %1163 = vdwg.mxu0
      %v1164 = vsel %vm320, %v1158, -inf
      %1165 = vmax.xlane.f32.xlu0 %v1164
      %v1166 = vpop.xlane.xlu0 %1165
      %v1167 = vsel %vm320, %v1161, -inf
      %1168 = vmax.xlane.f32.xlu0 %v1167
      %v1169 = vpop.xlane.xlu0 %1168
      %v1170 = vsub.f32 %v1158, %v1166
      %v1171 = vsub.f32 %v1161, %v1169
      %v1172 = vmul.f32 %v1170, 1.442695
      %v1173 = vpow.pop %v1172
      %v1174 = vmul.f32 %v1171, 1.442695
      %v1175 = vpow.pop %v1174
      %v1176 = vsel %vm320, %v1173, 0.0
      %1177 = vadd.xlane.f32.xlu0 %v1176
      %v1178 = vpop.xlane.xlu0 %1177
      %v1179 = vsel %vm320, %v1175, 0.0
      %1180 = vadd.xlane.f32.xlu0 %v1179
      %v1181 = vpop.xlane.xlu0 %1180
      %v1182 = vrcp.pop %v1178
      %v1183 = vrcp.pop %v1181
      %v1184 = vmul.f32 %v1173, %v1182
      %v1185 = vmul.f32 %v1175, %v1183
      %v1186 = vpack.c.bf16 %v1185, %v1184
      %1188 = vrot.lane.b32.xlu0 %v1110, 64
      %v1189 = vpop.permute.xlu0 %1188
      %v1192 = vsel %vm320, %v1186, 0
      %1194 = vmatprep.subr.bf16.mxu0 0
      %1195 = vmatpush1.bf16.msra.mxu0 %v1189
      %1196 = vmatprep.subr.bf16.mxu0 0
      %1197 = vmatpush1.bf16.msra.mxu0 0
      %1198 = vmatprep.subr.bf16.mxu0 0
      %1199 = vmatpush1.bf16.msra.mxu0 0
      %1200 = vmatprep.subr.bf16.mxu0 0
      %1201 = vmatpush1.bf16.msra.mxu0 0
      %1202 = vmatprep.subr.bf16.mxu0 0
      %1203 = vmatpush1.bf16.msra.mxu0 0
      %1204 = vmatprep.subr.bf16.mxu0 0
      %1205 = vmatpush1.bf16.msra.mxu0 0
      %1206 = vmatprep.subr.bf16.mxu0 0
      %1207 = vmatpush1.bf16.msra.mxu0 0
      %1208 = vmatprep.subr.bf16.mxu0 0
      %1209 = vmatpush1.bf16.msra.mxu0 0
      %1210 = vmatprep.subr.bf16.mxu0 0
      %1211 = vmatpush1.bf16.msra.mxu0 0
      %1212 = vmatprep.subr.bf16.mxu0 0
      %1213 = vmatpush1.bf16.msra.mxu0 0
      %1214 = vmatprep.subr.bf16.mxu0 0
      %1215 = vmatpush1.bf16.msra.mxu0 0
      %1216 = vmatprep.subr.bf16.mxu0 0
      %1217 = vmatpush1.bf16.msra.mxu0 0
      %1218 = vmatprep.subr.bf16.mxu0 0
      %1219 = vmatpush1.bf16.msra.mxu0 0
      %1220 = vmatprep.subr.bf16.mxu0 0
      %1221 = vmatpush1.bf16.msra.mxu0 0
      %1222 = vmatprep.subr.bf16.mxu0 0
      %1223 = vmatpush1.bf16.msra.mxu0 0
      %1224 = vmatprep.subr.bf16.mxu0 0
      %1225 = vmatpush1.bf16.msra.mxu0 0
      %1226 = vmatprep.mubr.bf16.mxu0 0
      %1227 = vmatmul.mubr.bf16.gmra.mrb[0].mxu0 %v1192
      %v1228 = vpop.f32.mrb[0].mxu0
      %v1229 = vadd.f32 0.0, %v1228
      %v1230 = vpop.f32.mrb[0].mxu0
      %v1231 = vpop.f32.mrb[0].mxu0
      %v1232 = vadd.f32 0.0, %v1231
      %v1233 = vpop.f32.mrb[0].mxu0
      %1234 = vdwg.mxu0
      %1237 = vrot.lane.b32.xlu0 %v1229, 64
      %v1238 = vpop.permute.xlu0 %1237
      %1239 = vrot.lane.b32.xlu0 %v1232, 64
      %v1240 = vpop.permute.xlu0 %1239
      %1243 = vst.msk [vmem:[%s251 + $0x8] sm:$0xff] %vm679, %v1238
      %1244 = vst.msk [vmem:[%s251 + $0x18] sm:$0xff] %vm679, %v1240
      %v1245 = vld [vmem:[%s233 + $0x8] sm:$0xff]
      %v1246 = vld [vmem:[%s233 + $0x18] sm:$0xff]
      %v1247 = vmul.f32 %v1245, 0.17677669
      %v1248 = vmul.f32 %v1246, 0.17677669
      %v1249 = vpack.c.bf16 %v1248, %v1247
      %v1250 = vld [vmem:[%s238 + $0x8] sm:$0xff]
      %v1251 = vld [vmem:[%s238 + $0x18] sm:$0xff]
      %v1252 = vpack.c.bf16 %v1251, %v1250
      %v1253 = vld [vmem:[%s243 + $0x8] sm:$0xff]
      %v1254 = vld [vmem:[%s243 + $0x18] sm:$0xff]
      %v1255 = vpack.c.bf16 %v1254, %v1253
      %1257 = vrot.lane.b32.xlu0 %v1249, 32
      %v1258 = vpop.permute.xlu0 %1257
      %1260 = vrot.lane.b32.xlu0 %v1252, 32
      %v1261 = vpop.permute.xlu0 %1260
      %v1263 = vsel %vm272, %v1258, 0
      %v1266 = vsel %vm272, %v1261, 0
      %1268 = vmatprep.subr.bf16.mxu0 0
      %1269 = vmatpush1.bf16.xpose.msra.mxu0 %v1266
      %1270 = vmatprep.subr.bf16.mxu0 0
      %1271 = vmatpush1.bf16.xpose.msra.mxu0 0
      %1272 = vmatprep.subr.bf16.mxu0 0
      %1273 = vmatpush1.bf16.xpose.msra.mxu0 0
      %1274 = vmatprep.subr.bf16.mxu0 0
      %1275 = vmatpush1.bf16.xpose.msra.mxu0 0
      %1276 = vmatprep.subr.bf16.mxu0 0
      %1277 = vmatpush1.bf16.xpose.msra.mxu0 0
      %1278 = vmatprep.subr.bf16.mxu0 0
      %1279 = vmatpush1.bf16.xpose.msra.mxu0 0
      %1280 = vmatprep.subr.bf16.mxu0 0
      %1281 = vmatpush1.bf16.xpose.msra.mxu0 0
      %1282 = vmatprep.subr.bf16.mxu0 0
      %1283 = vmatpush1.bf16.xpose.msra.mxu0 0
      %1284 = vmatprep.subr.bf16.mxu0 0
      %1285 = vmatpush1.bf16.xpose.msra.mxu0 0
      %1286 = vmatprep.subr.bf16.mxu0 0
      %1287 = vmatpush1.bf16.xpose.msra.mxu0 0
      %1288 = vmatprep.subr.bf16.mxu0 0
      %1289 = vmatpush1.bf16.xpose.msra.mxu0 0
      %1290 = vmatprep.subr.bf16.mxu0 0
      %1291 = vmatpush1.bf16.xpose.msra.mxu0 0
      %1292 = vmatprep.subr.bf16.mxu0 0
      %1293 = vmatpush1.bf16.xpose.msra.mxu0 0
      %1294 = vmatprep.subr.bf16.mxu0 0
      %1295 = vmatpush1.bf16.xpose.msra.mxu0 0
      %1296 = vmatprep.subr.bf16.mxu0 0
      %1297 = vmatpush1.bf16.xpose.msra.mxu0 0
      %1298 = vmatprep.subr.bf16.mxu0 0
      %1299 = vmatpush1.bf16.xpose.msra.mxu0 0
      %1300 = vmatprep.mubr.bf16.mxu0 0
      %1301 = vmatmul.mubr.bf16.gmra.mrb[0].mxu0 %v1263
      %v1302 = vpop.f32.mrb[0].mxu0
      %v1303 = vadd.f32 %v270, %v1302
      %v1304 = vpop.f32.mrb[0].mxu0
      %v1305 = vpop.f32.mrb[0].mxu0
      %v1306 = vadd.f32 %v270, %v1305
      %v1307 = vpop.f32.mrb[0].mxu0
      %1308 = vdwg.mxu0
      %v1309 = vsel %vm320, %v1303, -inf
      %1310 = vmax.xlane.f32.xlu0 %v1309
      %v1311 = vpop.xlane.xlu0 %1310
      %v1312 = vsel %vm320, %v1306, -inf
      %1313 = vmax.xlane.f32.xlu0 %v1312
      %v1314 = vpop.xlane.xlu0 %1313
      %v1315 = vsub.f32 %v1303, %v1311
      %v1316 = vsub.f32 %v1306, %v1314
      %v1317 = vmul.f32 %v1315, 1.442695
      %v1318 = vpow.pop %v1317
      %v1319 = vmul.f32 %v1316, 1.442695
      %v1320 = vpow.pop %v1319
      %v1321 = vsel %vm320, %v1318, 0.0
      %1322 = vadd.xlane.f32.xlu0 %v1321
      %v1323 = vpop.xlane.xlu0 %1322
      %v1324 = vsel %vm320, %v1320, 0.0
      %1325 = vadd.xlane.f32.xlu0 %v1324
      %v1326 = vpop.xlane.xlu0 %1325
      %v1327 = vrcp.pop %v1323
      %v1328 = vrcp.pop %v1326
      %v1329 = vmul.f32 %v1318, %v1327
      %v1330 = vmul.f32 %v1320, %v1328
      %v1331 = vpack.c.bf16 %v1330, %v1329
      %1333 = vrot.lane.b32.xlu0 %v1255, 32
      %v1334 = vpop.permute.xlu0 %1333
      %v1337 = vsel %vm320, %v1331, 0
      %1339 = vmatprep.subr.bf16.mxu0 0
      %1340 = vmatpush1.bf16.msra.mxu0 %v1334
      %1341 = vmatprep.subr.bf16.mxu0 0
      %1342 = vmatpush1.bf16.msra.mxu0 0
      %1343 = vmatprep.subr.bf16.mxu0 0
      %1344 = vmatpush1.bf16.msra.mxu0 0
      %1345 = vmatprep.subr.bf16.mxu0 0
      %1346 = vmatpush1.bf16.msra.mxu0 0
      %1347 = vmatprep.subr.bf16.mxu0 0
      %1348 = vmatpush1.bf16.msra.mxu0 0
      %1349 = vmatprep.subr.bf16.mxu0 0
      %1350 = vmatpush1.bf16.msra.mxu0 0
      %1351 = vmatprep.subr.bf16.mxu0 0
      %1352 = vmatpush1.bf16.msra.mxu0 0
      %1353 = vmatprep.subr.bf16.mxu0 0
      %1354 = vmatpush1.bf16.msra.mxu0 0
      %1355 = vmatprep.subr.bf16.mxu0 0
      %1356 = vmatpush1.bf16.msra.mxu0 0
      %1357 = vmatprep.subr.bf16.mxu0 0
      %1358 = vmatpush1.bf16.msra.mxu0 0
      %1359 = vmatprep.subr.bf16.mxu0 0
      %1360 = vmatpush1.bf16.msra.mxu0 0
      %1361 = vmatprep.subr.bf16.mxu0 0
      %1362 = vmatpush1.bf16.msra.mxu0 0
      %1363 = vmatprep.subr.bf16.mxu0 0
      %1364 = vmatpush1.bf16.msra.mxu0 0
      %1365 = vmatprep.subr.bf16.mxu0 0
      %1366 = vmatpush1.bf16.msra.mxu0 0
      %1367 = vmatprep.subr.bf16.mxu0 0
      %1368 = vmatpush1.bf16.msra.mxu0 0
      %1369 = vmatprep.subr.bf16.mxu0 0
      %1370 = vmatpush1.bf16.msra.mxu0 0
      %1371 = vmatprep.mubr.bf16.mxu0 0
      %1372 = vmatmul.mubr.bf16.gmra.mrb[0].mxu0 %v1337
      %v1373 = vpop.f32.mrb[0].mxu0
      %v1374 = vadd.f32 0.0, %v1373
      %v1375 = vpop.f32.mrb[0].mxu0
      %v1376 = vpop.f32.mrb[0].mxu0
      %v1377 = vadd.f32 0.0, %v1376
      %v1378 = vpop.f32.mrb[0].mxu0
      %1379 = vdwg.mxu0
      %1382 = vrot.lane.b32.xlu0 %v1374, 96
      %v1383 = vpop.permute.xlu0 %1382
      %1384 = vrot.lane.b32.xlu0 %v1377, 96
      %v1385 = vpop.permute.xlu0 %1384
      %1388 = vst.msk [vmem:[%s251 + $0x8] sm:$0xff] %vm825, %v1383
      %1389 = vst.msk [vmem:[%s251 + $0x18] sm:$0xff] %vm825, %v1385
      %p1390 = scmp.lt.s32.totalorder %s15, 1
      %s1391 = scalar_select %p1390, %s15, 1
      %s1392 = smul.addr %s1391, 4
      %s1393 = smul.addr %s1392, 8
      %s1394 = scalar_lea.vmem %s4, %s1393
      // Predicated region
      $region37: #{depth_aware_transformer_forward.52} parent=35 // pred_check
        %p1395 = pneg %p137
      $region38: #{depth_aware_transformer_forward.52} parent=35 // pred_check_branch
        %1397 = sbr.rel (%p1395) target = $region40
      $region39: #{depth_aware_transformer_forward.52} parent=35 // pred_region
        _
      $region40: #{depth_aware_transformer_forward.52} parent=35 // pred_fallthru
        _
    $region36: #{depth_aware_transformer_forward.52} parent=5 // pred_fallthru
      _
    %p1398 = scmp.le.s32.totalorder 2, %s10
    // Predicated region
    $region41: #{depth_aware_transformer_forward.52} parent=5 // pred_check
      %p1399 = pneg %p1398
    $region42: #{depth_aware_transformer_forward.52} parent=5 // pred_check_branch
      %1401 = sbr.rel (%p1399) target = $region44
    $region43: #{depth_aware_transformer_forward.52} parent=5 // pred_region
      %s1402 = ssub.s32 %s10, 2
      // Predicated region
      $region45: #{depth_aware_transformer_forward.52} parent=43 // pred_check
        %p1403 = pneg %p143
      $region46: #{depth_aware_transformer_forward.52} parent=43 // pred_check_branch
        %1405 = sbr.rel (%p1403) target = $region48
      $region47: #{depth_aware_transformer_forward.52} parent=43 // pred_region
        %p1406 = scmp.lt.s32.totalorder %s16, 1
        %s1407 = scalar_select %p1406, %s16, 1
        %s1408 = smul.addr %s1407, 4
        %s1409 = smul.addr %s1408, 8
        %s1410 = scalar_lea.vmem %s4, %s1409
      $region48: #{depth_aware_transformer_forward.52} parent=43 // pred_fallthru
        _
    $region44: #{depth_aware_transformer_forward.52} parent=5 // pred_fallthru
      _
  $region6: #{depth_aware_transformer_forward.52} parent=0 // loop_footer
    %s14 = sadd.s32 1, %s10
  $region7: #{depth_aware_transformer_forward.52} parent=0 // loop_footer_branch
    %9 = sbr.rel target = $region3
  $region8: #{depth_aware_transformer_forward.52} parent=0 // loop_exit
    _

// kernel: depth_aware_transformer_forward.57
$region0: #{depth_aware_transformer_forward.57}
  #allocation0 [shape = 'u32[]', space=smem, size = 0x4, offset = 0x4, fixed_abs, tag = 'smem constant byte address 0x4 - core index']
  #allocation1 [shape = 'u32[144,128]{1,0:T(1,128)}', space=vmem, size = 0x12000, scoped, tag = 'internal scratch']
  %s0 = inlined_call_operand.vmem [shape: f32[2,16,256], index: 0, kind: input, shape index: {}]
  %s1 = inlined_call_operand.vmem [shape: f32[2,16,256], index: 1, kind: input, shape index: {}]
  %s2 = inlined_call_operand.vmem [shape: f32[2,16,256], index: 2, kind: input, shape index: {}]
  %s3 = inlined_call_operand.vmem [shape: f32[2,16,256], index: 3, kind: output, shape index: {}]
  %s4 = sld [smem:[#allocation0]]
  $region45: #{depth_aware_transformer_forward.57} parent=0
    _
  %s6 = ssub.s32 1, %s4
  %s7 = scalar_select 0, %s6, %s4
  loop: start=0, step=1, limit=4
  $region2: #{depth_aware_transformer_forward.57} parent=0 // loop_pre_header
    _
  $region3: #{depth_aware_transformer_forward.57} parent=0 // loop_header
    %s9 = sphi 0, %s13
    %p10 = scmp.ge.s32.totalorder %s9, 4
    %s19 = sphi 0, %s21
    %s22 = sphi 0, %s19
    %s23 = sphi 0, %s22
    %s39 = sphi 0, %s23
    %s45 = sphi 0, %s47
    %s48 = sphi 0, %s45
    %s49 = sphi 0, %s48
    %s65 = sphi 0, %s49
    %s71 = sphi 0, %s73
    %s74 = sphi 0, %s71
    %s75 = sphi 0, %s74
    %s91 = sphi 0, %s75
    %s97 = sphi 0, %s99
    %s100 = sphi 0, %s97
    %s101 = sphi 0, %s100
    %s117 = sphi 0, %s101
  $region4: #{depth_aware_transformer_forward.57} parent=0 // loop_header_branch
    %12 = sbr.rel (%p10) target = $region8
  $region5: #{depth_aware_transformer_forward.57} parent=0 // loop_body
    %s14 = ssub.s32 %s9, 1
    %s15 = ssub.s32 %s9, 2
    %s16 = sadd.s32 %s9, 1
    %s17 = ssub.s32 %s9, %s16
    %p18 = scmp.eq.s32.totalorder %s17, 0
    %s20 = sadd.s32 %s19, 1
    %s21 = scalar_select %p18, %s19, %s20
    %p24 = pneg %p18
    %p25 = scmp.eq.s32.totalorder %s9, 1
    %p26 = por %p24, %p25
    %p27 = scmp.ne.s32.totalorder %s19, %s22
    %p28 = scmp.eq.s32.totalorder %s9, 0
    %p29 = por %p27, %p28
    %p30 = scmp.ne.s32.totalorder %s19, %s22
    %p31 = scmp.eq.s32.totalorder %s14, 1
    %p32 = por %p30, %p31
    %p33 = scmp.ne.s32.totalorder %s22, %s23
    %p34 = scmp.eq.s32.totalorder %s14, 0
    %p35 = por %p33, %p34
    %p36 = scmp.ne.s32.totalorder %s22, %s23
    %p37 = scmp.eq.s32.totalorder %s15, 1
    %p38 = por %p36, %p37
    %p40 = scmp.ne.s32.totalorder %s23, %s39
    %p41 = scmp.eq.s32.totalorder %s15, 0
    %p42 = por %p40, %p41
    %s43 = ssub.s32 %s9, %s16
    %p44 = scmp.eq.s32.totalorder %s43, 0
    %s46 = sadd.s32 %s45, 1
    %s47 = scalar_select %p44, %s45, %s46
    %p50 = pneg %p44
    %p51 = scmp.eq.s32.totalorder %s9, 1
    %p52 = por %p50, %p51
    %p53 = scmp.ne.s32.totalorder %s45, %s48
    %p54 = scmp.eq.s32.totalorder %s9, 0
    %p55 = por %p53, %p54
    %p56 = scmp.ne.s32.totalorder %s45, %s48
    %p57 = scmp.eq.s32.totalorder %s14, 1
    %p58 = por %p56, %p57
    %p59 = scmp.ne.s32.totalorder %s48, %s49
    %p60 = scmp.eq.s32.totalorder %s14, 0
    %p61 = por %p59, %p60
    %p62 = scmp.ne.s32.totalorder %s48, %s49
    %p63 = scmp.eq.s32.totalorder %s15, 1
    %p64 = por %p62, %p63
    %p66 = scmp.ne.s32.totalorder %s49, %s65
    %p67 = scmp.eq.s32.totalorder %s15, 0
    %p68 = por %p66, %p67
    %s69 = ssub.s32 %s9, %s16
    %p70 = scmp.eq.s32.totalorder %s69, 0
    %s72 = sadd.s32 %s71, 1
    %s73 = scalar_select %p70, %s71, %s72
    %p76 = pneg %p70
    %p77 = scmp.eq.s32.totalorder %s9, 1
    %p78 = por %p76, %p77
    %p79 = scmp.ne.s32.totalorder %s71, %s74
    %p80 = scmp.eq.s32.totalorder %s9, 0
    %p81 = por %p79, %p80
    %p82 = scmp.ne.s32.totalorder %s71, %s74
    %p83 = scmp.eq.s32.totalorder %s14, 1
    %p84 = por %p82, %p83
    %p85 = scmp.ne.s32.totalorder %s74, %s75
    %p86 = scmp.eq.s32.totalorder %s14, 0
    %p87 = por %p85, %p86
    %p88 = scmp.ne.s32.totalorder %s74, %s75
    %p89 = scmp.eq.s32.totalorder %s15, 1
    %p90 = por %p88, %p89
    %p92 = scmp.ne.s32.totalorder %s75, %s91
    %p93 = scmp.eq.s32.totalorder %s15, 0
    %p94 = por %p92, %p93
    %s95 = ssub.s32 %s9, %s16
    %p96 = scmp.eq.s32.totalorder %s95, 0
    %s98 = sadd.s32 %s97, 1
    %s99 = scalar_select %p96, %s97, %s98
    %p102 = pneg %p96
    %p103 = scmp.eq.s32.totalorder %s9, 1
    %p104 = por %p102, %p103
    %p105 = scmp.ne.s32.totalorder %s97, %s100
    %p106 = scmp.eq.s32.totalorder %s9, 0
    %p107 = por %p105, %p106
    %p108 = scmp.ne.s32.totalorder %s97, %s100
    %p109 = scmp.eq.s32.totalorder %s14, 1
    %p110 = por %p108, %p109
    %p111 = scmp.ne.s32.totalorder %s100, %s101
    %p112 = scmp.eq.s32.totalorder %s14, 0
    %p113 = por %p111, %p112
    %p114 = scmp.ne.s32.totalorder %s100, %s101
    %p115 = scmp.eq.s32.totalorder %s15, 1
    %p116 = por %p114, %p115
    %p118 = scmp.ne.s32.totalorder %s101, %s117
    %p119 = scmp.eq.s32.totalorder %s15, 0
    %p120 = por %p118, %p119
    %p121 = scmp.le.s32.totalorder 1, %s9
    %p122 = scmp.lt.s32.totalorder %s9, 3
    %p123 = pnand %p121, %p122
    %p124 = pneg %p123
    // Predicated region
    $region9: #{depth_aware_transformer_forward.57} parent=5 // pred_check
      _
    $region10: #{depth_aware_transformer_forward.57} parent=5 // pred_check_branch
      %126 = sbr.rel (%p123) target = $region12
    $region11: #{depth_aware_transformer_forward.57} parent=5 // pred_region
      %s127 = ssub.s32 %s9, 1
    $region12: #{depth_aware_transformer_forward.57} parent=5 // pred_fallthru
      _
    %p128 = scmp.lt.s32.totalorder %s9, 2
    // Predicated region
    $region13: #{depth_aware_transformer_forward.57} parent=5 // pred_check
      %p129 = pneg %p128
    $region14: #{depth_aware_transformer_forward.57} parent=5 // pred_check_branch
      %131 = sbr.rel (%p129) target = $region16
    $region15: #{depth_aware_transformer_forward.57} parent=5 // pred_region
      // Predicated region
      $region17: #{depth_aware_transformer_forward.57} parent=15 // pred_check
        %p132 = pneg %p29
      $region18: #{depth_aware_transformer_forward.57} parent=15 // pred_check_branch
        %134 = sbr.rel (%p132) target = $region20
      $region19: #{depth_aware_transformer_forward.57} parent=15 // pred_region
        %p135 = scmp.lt.s32.totalorder %s9, 1
        %s136 = scalar_select %p135, %s9, 1
        %s137 = smul.addr %s136, 4
        %s138 = smul.addr %s137, 8
        %s139 = scalar_lea.vmem %s0, %s138
      $region20: #{depth_aware_transformer_forward.57} parent=15 // pred_fallthru
        _
      // Predicated region
      $region21: #{depth_aware_transformer_forward.57} parent=15 // pred_check
        %p140 = pneg %p55
      $region22: #{depth_aware_transformer_forward.57} parent=15 // pred_check_branch
        %142 = sbr.rel (%p140) target = $region24
      $region23: #{depth_aware_transformer_forward.57} parent=15 // pred_region
        %p143 = scmp.lt.s32.totalorder %s9, 1
        %s144 = scalar_select %p143, %s9, 1
        %s145 = smul.addr %s144, 4
        %s146 = smul.addr %s145, 8
        %s147 = scalar_lea.vmem %s1, %s146
      $region24: #{depth_aware_transformer_forward.57} parent=15 // pred_fallthru
        _
      // Predicated region
      $region25: #{depth_aware_transformer_forward.57} parent=15 // pred_check
        %p148 = pneg %p81
      $region26: #{depth_aware_transformer_forward.57} parent=15 // pred_check_branch
        %150 = sbr.rel (%p148) target = $region28
      $region27: #{depth_aware_transformer_forward.57} parent=15 // pred_region
        %p151 = scmp.lt.s32.totalorder %s9, 1
        %s152 = scalar_select %p151, %s9, 1
        %s153 = smul.addr %s152, 4
        %s154 = smul.addr %s153, 8
        %s155 = scalar_lea.vmem %s2, %s154
      $region28: #{depth_aware_transformer_forward.57} parent=15 // pred_fallthru
        _
    $region16: #{depth_aware_transformer_forward.57} parent=5 // pred_fallthru
      _
    %p156 = scmp.le.s32.totalorder 1, %s9
    %p157 = scmp.lt.s32.totalorder %s9, 3
    %p158 = pnand %p156, %p157
    %p159 = pneg %p158
    // Predicated region
    $region29: #{depth_aware_transformer_forward.57} parent=5 // pred_check
      _
    $region30: #{depth_aware_transformer_forward.57} parent=5 // pred_check_branch
      %161 = sbr.rel (%p158) target = $region32
    $region31: #{depth_aware_transformer_forward.57} parent=5 // pred_region
      %s162 = ssub.s32 %s9, 1
      %p163 = scmp.lt.s32.totalorder %s14, 1
      %s164 = scalar_select %p163, %s14, 1
      %s165 = smul.addr %s164, 4
      %s166 = smul.addr %s165, 8
      %s167 = scalar_lea.vmem %s0, %s166
      %p168 = pneg %p35
      %p169 = pneg %p32
      %p170 = scmp.lt.s32.totalorder %s14, 1
      %s171 = scalar_select %p170, %s14, 1
      %s172 = smul.addr %s171, 4
      %s173 = smul.addr %s172, 8
      %s174 = scalar_lea.vmem %s1, %s173
      %p175 = pneg %p61
      %p176 = pneg %p58
      %p177 = scmp.lt.s32.totalorder %s14, 1
      %s178 = scalar_select %p177, %s14, 1
      %s179 = smul.addr %s178, 4
      %s180 = smul.addr %s179, 8
      %s181 = scalar_lea.vmem %s2, %s180
      %p182 = pneg %p87
      %p183 = pneg %p84
      %p184 = pneg %p113
      %p185 = pneg %p110
      %p186 = scmp.lt.s32.totalorder %s14, 1
      %s187 = scalar_select %p186, %s14, 1
      %s188 = smul.addr %s187, 4
      %s189 = smul.addr %s188, 8
      %s190 = scalar_lea.vmem %s3, %s189
      %p191 = scmp.lt.s32.totalorder %s14, 1
      %s192 = scalar_select %p191, %s14, 1
      %s193 = smul.addr %s192, 4
      %s194 = smul.addr %s193, 8
      %s195 = scalar_lea.vmem %s0, %s194
      %p196 = scmp.lt.s32.totalorder %s14, 1
      %s197 = scalar_select %p196, %s14, 1
      %s198 = smul.addr %s197, 4
      %s199 = smul.addr %s198, 8
      %s200 = scalar_lea.vmem %s1, %s199
      %p201 = scmp.lt.s32.totalorder %s14, 1
      %s202 = scalar_select %p201, %s14, 1
      %s203 = smul.addr %s202, 4
      %s204 = smul.addr %s203, 8
      %s205 = scalar_lea.vmem %s2, %s204
      %p206 = scmp.lt.s32.totalorder %s14, 1
      %s207 = scalar_select %p206, %s14, 1
      %s208 = smul.addr %s207, 4
      %s209 = smul.addr %s208, 8
      %s210 = scalar_lea.vmem %s3, %s209
      %v212 = vld [vmem:[%s195] sm:$0xff]
      %v213 = vld [vmem:[%s195 + $0x10] sm:$0xff]
      %v214 = vmul.f32 %v212, 0.17677669
      %v215 = vmul.f32 %v213, 0.17677669
      %v216 = vpack.c.bf16 %v215, %v214
      %v217 = vld [vmem:[%s200] sm:$0xff]
      %v218 = vld [vmem:[%s200 + $0x10] sm:$0xff]
      %v219 = vpack.c.bf16 %v218, %v217
      %v220 = vld [vmem:[%s205] sm:$0xff]
      %v221 = vld [vmem:[%s205 + $0x10] sm:$0xff]
      %v222 = vpack.c.bf16 %v221, %v220
      %vm223 = vcmask 261120
      %v225 = vsel %vm223, %v216, 0
      %v228 = vsel %vm223, %v219, 0
      %230 = vmatprep.subr.bf16.mxu0 0
      %231 = vmatpush1.bf16.xpose.msra.mxu0 %v228
      %232 = vmatprep.subr.bf16.mxu0 0
      %233 = vmatpush1.bf16.xpose.msra.mxu0 0
      %234 = vmatprep.subr.bf16.mxu0 0
      %235 = vmatpush1.bf16.xpose.msra.mxu0 0
      %236 = vmatprep.subr.bf16.mxu0 0
      %237 = vmatpush1.bf16.xpose.msra.mxu0 0
      %238 = vmatprep.subr.bf16.mxu0 0
      %239 = vmatpush1.bf16.xpose.msra.mxu0 0
      %240 = vmatprep.subr.bf16.mxu0 0
      %241 = vmatpush1.bf16.xpose.msra.mxu0 0
      %242 = vmatprep.subr.bf16.mxu0 0
      %243 = vmatpush1.bf16.xpose.msra.mxu0 0
      %244 = vmatprep.subr.bf16.mxu0 0
      %245 = vmatpush1.bf16.xpose.msra.mxu0 0
      %246 = vmatprep.subr.bf16.mxu0 0
      %247 = vmatpush1.bf16.xpose.msra.mxu0 0
      %248 = vmatprep.subr.bf16.mxu0 0
      %249 = vmatpush1.bf16.xpose.msra.mxu0 0
      %250 = vmatprep.subr.bf16.mxu0 0
      %251 = vmatpush1.bf16.xpose.msra.mxu0 0
      %252 = vmatprep.subr.bf16.mxu0 0
      %253 = vmatpush1.bf16.xpose.msra.mxu0 0
      %254 = vmatprep.subr.bf16.mxu0 0
      %255 = vmatpush1.bf16.xpose.msra.mxu0 0
      %256 = vmatprep.subr.bf16.mxu0 0
      %257 = vmatpush1.bf16.xpose.msra.mxu0 0
      %258 = vmatprep.subr.bf16.mxu0 0
      %259 = vmatpush1.bf16.xpose.msra.mxu0 0
      %260 = vmatprep.subr.bf16.mxu0 0
      %261 = vmatpush1.bf16.xpose.msra.mxu0 0
      %262 = vmatprep.mubr.bf16.mxu0 0
      %263 = vmatmul.mubr.bf16.gmra.mrb[0].mxu0 %v225
      %v264 = vpop.f32.mrb[0].mxu0
      %v265 = vadd.f32 0.0, %v264
      %v266 = vpop.f32.mrb[0].mxu0
      %v267 = vpop.f32.mrb[0].mxu0
      %v268 = vadd.f32 0.0, %v267
      %v269 = vpop.f32.mrb[0].mxu0
      %270 = vdwg.mxu0
      %vm271 = vcmask 130048
      %v272 = vsel %vm271, %v265, -inf
      %273 = vmax.xlane.f32.xlu0 %v272
      %v274 = vpop.xlane.xlu0 %273
      %v275 = vsel %vm271, %v268, -inf
      %276 = vmax.xlane.f32.xlu0 %v275
      %v277 = vpop.xlane.xlu0 %276
      %v278 = vsub.f32 %v265, %v274
      %v279 = vsub.f32 %v268, %v277
      %v280 = vmul.f32 %v278, 1.442695
      %v281 = vpow.pop %v280
      %v282 = vmul.f32 %v279, 1.442695
      %v283 = vpow.pop %v282
      %v284 = vsel %vm271, %v281, 0.0
      %285 = vadd.xlane.f32.xlu0 %v284
      %v286 = vpop.xlane.xlu0 %285
      %v287 = vsel %vm271, %v283, 0.0
      %288 = vadd.xlane.f32.xlu0 %v287
      %v289 = vpop.xlane.xlu0 %288
      %v290 = vrcp.pop %v286
      %v291 = vrcp.pop %v289
      %v292 = vmul.f32 %v281, %v290
      %v293 = vmul.f32 %v283, %v291
      %v294 = vpack.c.bf16 %v293, %v292
      %v296 = vsel %vm271, %v294, 0
      %298 = vmatprep.subr.bf16.mxu0 0
      %299 = vmatpush1.bf16.msra.mxu0 %v222
      %300 = vmatprep.subr.bf16.mxu0 0
      %301 = vmatpush1.bf16.msra.mxu0 0
      %302 = vmatprep.subr.bf16.mxu0 0
      %303 = vmatpush1.bf16.msra.mxu0 0
      %304 = vmatprep.subr.bf16.mxu0 0
      %305 = vmatpush1.bf16.msra.mxu0 0
      %306 = vmatprep.subr.bf16.mxu0 0
      %307 = vmatpush1.bf16.msra.mxu0 0
      %308 = vmatprep.subr.bf16.mxu0 0
      %309 = vmatpush1.bf16.msra.mxu0 0
      %310 = vmatprep.subr.bf16.mxu0 0
      %311 = vmatpush1.bf16.msra.mxu0 0
      %312 = vmatprep.subr.bf16.mxu0 0
      %313 = vmatpush1.bf16.msra.mxu0 0
      %314 = vmatprep.subr.bf16.mxu0 0
      %315 = vmatpush1.bf16.msra.mxu0 0
      %316 = vmatprep.subr.bf16.mxu0 0
      %317 = vmatpush1.bf16.msra.mxu0 0
      %318 = vmatprep.subr.bf16.mxu0 0
      %319 = vmatpush1.bf16.msra.mxu0 0
      %320 = vmatprep.subr.bf16.mxu0 0
      %321 = vmatpush1.bf16.msra.mxu0 0
      %322 = vmatprep.subr.bf16.mxu0 0
      %323 = vmatpush1.bf16.msra.mxu0 0
      %324 = vmatprep.subr.bf16.mxu0 0
      %325 = vmatpush1.bf16.msra.mxu0 0
      %326 = vmatprep.subr.bf16.mxu0 0
      %327 = vmatpush1.bf16.msra.mxu0 0
      %328 = vmatprep.subr.bf16.mxu0 0
      %329 = vmatpush1.bf16.msra.mxu0 0
      %330 = vmatprep.mubr.bf16.mxu0 0
      %331 = vmatmul.mubr.bf16.gmra.mrb[0].mxu0 %v296
      %v332 = vpop.f32.mrb[0].mxu0
      %v333 = vadd.f32 0.0, %v332
      %v334 = vpop.f32.mrb[0].mxu0
      %v335 = vpop.f32.mrb[0].mxu0
      %v336 = vadd.f32 0.0, %v335
      %v337 = vpop.f32.mrb[0].mxu0
      %338 = vdwg.mxu0
      %339 = vst.msk [vmem:[%s210] sm:$0xff] %vm223, %v333
      %340 = vst.msk [vmem:[%s210 + $0x10] sm:$0xff] %vm223, %v336
      %v341 = vld [vmem:[%s195] sm:$0xff]
      %v342 = vld [vmem:[%s195 + $0x10] sm:$0xff]
      %v343 = vmul.f32 %v341, 0.17677669
      %v344 = vmul.f32 %v342, 0.17677669
      %v345 = vpack.c.bf16 %v344, %v343
      %v346 = vld [vmem:[%s200] sm:$0xff]
      %v347 = vld [vmem:[%s200 + $0x10] sm:$0xff]
      %v348 = vpack.c.bf16 %v347, %v346
      %v349 = vld [vmem:[%s205] sm:$0xff]
      %v350 = vld [vmem:[%s205 + $0x10] sm:$0xff]
      %v351 = vpack.c.bf16 %v350, %v349
      %353 = vrot.lane.b32.xlu0 %v345, 96
      %v354 = vpop.permute.xlu0 %353
      %356 = vrot.lane.b32.xlu0 %v348, 96
      %v357 = vpop.permute.xlu0 %356
      %v359 = vsel %vm223, %v354, 0
      %v362 = vsel %vm223, %v357, 0
      %364 = vmatprep.subr.bf16.mxu0 0
      %365 = vmatpush1.bf16.xpose.msra.mxu0 %v362
      %366 = vmatprep.subr.bf16.mxu0 0
      %367 = vmatpush1.bf16.xpose.msra.mxu0 0
      %368 = vmatprep.subr.bf16.mxu0 0
      %369 = vmatpush1.bf16.xpose.msra.mxu0 0
      %370 = vmatprep.subr.bf16.mxu0 0
      %371 = vmatpush1.bf16.xpose.msra.mxu0 0
      %372 = vmatprep.subr.bf16.mxu0 0
      %373 = vmatpush1.bf16.xpose.msra.mxu0 0
      %374 = vmatprep.subr.bf16.mxu0 0
      %375 = vmatpush1.bf16.xpose.msra.mxu0 0
      %376 = vmatprep.subr.bf16.mxu0 0
      %377 = vmatpush1.bf16.xpose.msra.mxu0 0
      %378 = vmatprep.subr.bf16.mxu0 0
      %379 = vmatpush1.bf16.xpose.msra.mxu0 0
      %380 = vmatprep.subr.bf16.mxu0 0
      %381 = vmatpush1.bf16.xpose.msra.mxu0 0
      %382 = vmatprep.subr.bf16.mxu0 0
      %383 = vmatpush1.bf16.xpose.msra.mxu0 0
      %384 = vmatprep.subr.bf16.mxu0 0
      %385 = vmatpush1.bf16.xpose.msra.mxu0 0
      %386 = vmatprep.subr.bf16.mxu0 0
      %387 = vmatpush1.bf16.xpose.msra.mxu0 0
      %388 = vmatprep.subr.bf16.mxu0 0
      %389 = vmatpush1.bf16.xpose.msra.mxu0 0
      %390 = vmatprep.subr.bf16.mxu0 0
      %391 = vmatpush1.bf16.xpose.msra.mxu0 0
      %392 = vmatprep.subr.bf16.mxu0 0
      %393 = vmatpush1.bf16.xpose.msra.mxu0 0
      %394 = vmatprep.subr.bf16.mxu0 0
      %395 = vmatpush1.bf16.xpose.msra.mxu0 0
      %396 = vmatprep.mubr.bf16.mxu0 0
      %397 = vmatmul.mubr.bf16.gmra.mrb[0].mxu0 %v359
      %v398 = vpop.f32.mrb[0].mxu0
      %v399 = vadd.f32 0.0, %v398
      %v400 = vpop.f32.mrb[0].mxu0
      %v401 = vpop.f32.mrb[0].mxu0
      %v402 = vadd.f32 0.0, %v401
      %v403 = vpop.f32.mrb[0].mxu0
      %404 = vdwg.mxu0
      %v405 = vsel %vm271, %v399, -inf
      %406 = vmax.xlane.f32.xlu0 %v405
      %v407 = vpop.xlane.xlu0 %406
      %v408 = vsel %vm271, %v402, -inf
      %409 = vmax.xlane.f32.xlu0 %v408
      %v410 = vpop.xlane.xlu0 %409
      %v411 = vsub.f32 %v399, %v407
      %v412 = vsub.f32 %v402, %v410
      %v413 = vmul.f32 %v411, 1.442695
      %v414 = vpow.pop %v413
      %v415 = vmul.f32 %v412, 1.442695
      %v416 = vpow.pop %v415
      %v417 = vsel %vm271, %v414, 0.0
      %418 = vadd.xlane.f32.xlu0 %v417
      %v419 = vpop.xlane.xlu0 %418
      %v420 = vsel %vm271, %v416, 0.0
      %421 = vadd.xlane.f32.xlu0 %v420
      %v422 = vpop.xlane.xlu0 %421
      %v423 = vrcp.pop %v419
      %v424 = vrcp.pop %v422
      %v425 = vmul.f32 %v414, %v423
      %v426 = vmul.f32 %v416, %v424
      %v427 = vpack.c.bf16 %v426, %v425
      %429 = vrot.lane.b32.xlu0 %v351, 96
      %v430 = vpop.permute.xlu0 %429
      %v433 = vsel %vm271, %v427, 0
      %435 = vmatprep.subr.bf16.mxu0 0
      %436 = vmatpush1.bf16.msra.mxu0 %v430
      %437 = vmatprep.subr.bf16.mxu0 0
      %438 = vmatpush1.bf16.msra.mxu0 0
      %439 = vmatprep.subr.bf16.mxu0 0
      %440 = vmatpush1.bf16.msra.mxu0 0
      %441 = vmatprep.subr.bf16.mxu0 0
      %442 = vmatpush1.bf16.msra.mxu0 0
      %443 = vmatprep.subr.bf16.mxu0 0
      %444 = vmatpush1.bf16.msra.mxu0 0
      %445 = vmatprep.subr.bf16.mxu0 0
      %446 = vmatpush1.bf16.msra.mxu0 0
      %447 = vmatprep.subr.bf16.mxu0 0
      %448 = vmatpush1.bf16.msra.mxu0 0
      %449 = vmatprep.subr.bf16.mxu0 0
      %450 = vmatpush1.bf16.msra.mxu0 0
      %451 = vmatprep.subr.bf16.mxu0 0
      %452 = vmatpush1.bf16.msra.mxu0 0
      %453 = vmatprep.subr.bf16.mxu0 0
      %454 = vmatpush1.bf16.msra.mxu0 0
      %455 = vmatprep.subr.bf16.mxu0 0
      %456 = vmatpush1.bf16.msra.mxu0 0
      %457 = vmatprep.subr.bf16.mxu0 0
      %458 = vmatpush1.bf16.msra.mxu0 0
      %459 = vmatprep.subr.bf16.mxu0 0
      %460 = vmatpush1.bf16.msra.mxu0 0
      %461 = vmatprep.subr.bf16.mxu0 0
      %462 = vmatpush1.bf16.msra.mxu0 0
      %463 = vmatprep.subr.bf16.mxu0 0
      %464 = vmatpush1.bf16.msra.mxu0 0
      %465 = vmatprep.subr.bf16.mxu0 0
      %466 = vmatpush1.bf16.msra.mxu0 0
      %467 = vmatprep.mubr.bf16.mxu0 0
      %468 = vmatmul.mubr.bf16.gmra.mrb[0].mxu0 %v433
      %v469 = vpop.f32.mrb[0].mxu0
      %v470 = vadd.f32 0.0, %v469
      %v471 = vpop.f32.mrb[0].mxu0
      %v472 = vpop.f32.mrb[0].mxu0
      %v473 = vadd.f32 0.0, %v472
      %v474 = vpop.f32.mrb[0].mxu0
      %475 = vdwg.mxu0
      %478 = vrot.lane.b32.xlu0 %v470, 32
      %v479 = vpop.permute.xlu0 %478
      %480 = vrot.lane.b32.xlu0 %v473, 32
      %v481 = vpop.permute.xlu0 %480
      %vm484 = vcmask 523520
      %485 = vst.msk [vmem:[%s210] sm:$0xff] %vm484, %v479
      %486 = vst.msk [vmem:[%s210 + $0x10] sm:$0xff] %vm484, %v481
      %v487 = vld [vmem:[%s195] sm:$0xff]
      %v488 = vld [vmem:[%s195 + $0x10] sm:$0xff]
      %v489 = vmul.f32 %v487, 0.17677669
      %v490 = vmul.f32 %v488, 0.17677669
      %v491 = vpack.c.bf16 %v490, %v489
      %v492 = vld [vmem:[%s200] sm:$0xff]
      %v493 = vld [vmem:[%s200 + $0x10] sm:$0xff]
      %v494 = vpack.c.bf16 %v493, %v492
      %v495 = vld [vmem:[%s205] sm:$0xff]
      %v496 = vld [vmem:[%s205 + $0x10] sm:$0xff]
      %v497 = vpack.c.bf16 %v496, %v495
      %499 = vrot.lane.b32.xlu0 %v491, 64
      %v500 = vpop.permute.xlu0 %499
      %502 = vrot.lane.b32.xlu0 %v494, 64
      %v503 = vpop.permute.xlu0 %502
      %v505 = vsel %vm223, %v500, 0
      %v508 = vsel %vm223, %v503, 0
      %510 = vmatprep.subr.bf16.mxu0 0
      %511 = vmatpush1.bf16.xpose.msra.mxu0 %v508
      %512 = vmatprep.subr.bf16.mxu0 0
      %513 = vmatpush1.bf16.xpose.msra.mxu0 0
      %514 = vmatprep.subr.bf16.mxu0 0
      %515 = vmatpush1.bf16.xpose.msra.mxu0 0
      %516 = vmatprep.subr.bf16.mxu0 0
      %517 = vmatpush1.bf16.xpose.msra.mxu0 0
      %518 = vmatprep.subr.bf16.mxu0 0
      %519 = vmatpush1.bf16.xpose.msra.mxu0 0
      %520 = vmatprep.subr.bf16.mxu0 0
      %521 = vmatpush1.bf16.xpose.msra.mxu0 0
      %522 = vmatprep.subr.bf16.mxu0 0
      %523 = vmatpush1.bf16.xpose.msra.mxu0 0
      %524 = vmatprep.subr.bf16.mxu0 0
      %525 = vmatpush1.bf16.xpose.msra.mxu0 0
      %526 = vmatprep.subr.bf16.mxu0 0
      %527 = vmatpush1.bf16.xpose.msra.mxu0 0
      %528 = vmatprep.subr.bf16.mxu0 0
      %529 = vmatpush1.bf16.xpose.msra.mxu0 0
      %530 = vmatprep.subr.bf16.mxu0 0
      %531 = vmatpush1.bf16.xpose.msra.mxu0 0
      %532 = vmatprep.subr.bf16.mxu0 0
      %533 = vmatpush1.bf16.xpose.msra.mxu0 0
      %534 = vmatprep.subr.bf16.mxu0 0
      %535 = vmatpush1.bf16.xpose.msra.mxu0 0
      %536 = vmatprep.subr.bf16.mxu0 0
      %537 = vmatpush1.bf16.xpose.msra.mxu0 0
      %538 = vmatprep.subr.bf16.mxu0 0
      %539 = vmatpush1.bf16.xpose.msra.mxu0 0
      %540 = vmatprep.subr.bf16.mxu0 0
      %541 = vmatpush1.bf16.xpose.msra.mxu0 0
      %542 = vmatprep.mubr.bf16.mxu0 0
      %543 = vmatmul.mubr.bf16.gmra.mrb[0].mxu0 %v505
      %v544 = vpop.f32.mrb[0].mxu0
      %v545 = vadd.f32 0.0, %v544
      %v546 = vpop.f32.mrb[0].mxu0
      %v547 = vpop.f32.mrb[0].mxu0
      %v548 = vadd.f32 0.0, %v547
      %v549 = vpop.f32.mrb[0].mxu0
      %550 = vdwg.mxu0
      %v551 = vsel %vm271, %v545, -inf
      %552 = vmax.xlane.f32.xlu0 %v551
      %v553 = vpop.xlane.xlu0 %552
      %v554 = vsel %vm271, %v548, -inf
      %555 = vmax.xlane.f32.xlu0 %v554
      %v556 = vpop.xlane.xlu0 %555
      %v557 = vsub.f32 %v545, %v553
      %v558 = vsub.f32 %v548, %v556
      %v559 = vmul.f32 %v557, 1.442695
      %v560 = vpow.pop %v559
      %v561 = vmul.f32 %v558, 1.442695
      %v562 = vpow.pop %v561
      %v563 = vsel %vm271, %v560, 0.0
      %564 = vadd.xlane.f32.xlu0 %v563
      %v565 = vpop.xlane.xlu0 %564
      %v566 = vsel %vm271, %v562, 0.0
      %567 = vadd.xlane.f32.xlu0 %v566
      %v568 = vpop.xlane.xlu0 %567
      %v569 = vrcp.pop %v565
      %v570 = vrcp.pop %v568
      %v571 = vmul.f32 %v560, %v569
      %v572 = vmul.f32 %v562, %v570
      %v573 = vpack.c.bf16 %v572, %v571
      %575 = vrot.lane.b32.xlu0 %v497, 64
      %v576 = vpop.permute.xlu0 %575
      %v579 = vsel %vm271, %v573, 0
      %581 = vmatprep.subr.bf16.mxu0 0
      %582 = vmatpush1.bf16.msra.mxu0 %v576
      %583 = vmatprep.subr.bf16.mxu0 0
      %584 = vmatpush1.bf16.msra.mxu0 0
      %585 = vmatprep.subr.bf16.mxu0 0
      %586 = vmatpush1.bf16.msra.mxu0 0
      %587 = vmatprep.subr.bf16.mxu0 0
      %588 = vmatpush1.bf16.msra.mxu0 0
      %589 = vmatprep.subr.bf16.mxu0 0
      %590 = vmatpush1.bf16.msra.mxu0 0
      %591 = vmatprep.subr.bf16.mxu0 0
      %592 = vmatpush1.bf16.msra.mxu0 0
      %593 = vmatprep.subr.bf16.mxu0 0
      %594 = vmatpush1.bf16.msra.mxu0 0
      %595 = vmatprep.subr.bf16.mxu0 0
      %596 = vmatpush1.bf16.msra.mxu0 0
      %597 = vmatprep.subr.bf16.mxu0 0
      %598 = vmatpush1.bf16.msra.mxu0 0
      %599 = vmatprep.subr.bf16.mxu0 0
      %600 = vmatpush1.bf16.msra.mxu0 0
      %601 = vmatprep.subr.bf16.mxu0 0
      %602 = vmatpush1.bf16.msra.mxu0 0
      %603 = vmatprep.subr.bf16.mxu0 0
      %604 = vmatpush1.bf16.msra.mxu0 0
      %605 = vmatprep.subr.bf16.mxu0 0
      %606 = vmatpush1.bf16.msra.mxu0 0
      %607 = vmatprep.subr.bf16.mxu0 0
      %608 = vmatpush1.bf16.msra.mxu0 0
      %609 = vmatprep.subr.bf16.mxu0 0
      %610 = vmatpush1.bf16.msra.mxu0 0
      %611 = vmatprep.subr.bf16.mxu0 0
      %612 = vmatpush1.bf16.msra.mxu0 0
      %613 = vmatprep.mubr.bf16.mxu0 0
      %614 = vmatmul.mubr.bf16.gmra.mrb[0].mxu0 %v579
      %v615 = vpop.f32.mrb[0].mxu0
      %v616 = vadd.f32 0.0, %v615
      %v617 = vpop.f32.mrb[0].mxu0
      %v618 = vpop.f32.mrb[0].mxu0
      %v619 = vadd.f32 0.0, %v618
      %v620 = vpop.f32.mrb[0].mxu0
      %621 = vdwg.mxu0
      %624 = vrot.lane.b32.xlu0 %v616, 64
      %v625 = vpop.permute.xlu0 %624
      %626 = vrot.lane.b32.xlu0 %v619, 64
      %v627 = vpop.permute.xlu0 %626
      %vm630 = vcmask 785920
      %631 = vst.msk [vmem:[%s210] sm:$0xff] %vm630, %v625
      %632 = vst.msk [vmem:[%s210 + $0x10] sm:$0xff] %vm630, %v627
      %v633 = vld [vmem:[%s195] sm:$0xff]
      %v634 = vld [vmem:[%s195 + $0x10] sm:$0xff]
      %v635 = vmul.f32 %v633, 0.17677669
      %v636 = vmul.f32 %v634, 0.17677669
      %v637 = vpack.c.bf16 %v636, %v635
      %v638 = vld [vmem:[%s200] sm:$0xff]
      %v639 = vld [vmem:[%s200 + $0x10] sm:$0xff]
      %v640 = vpack.c.bf16 %v639, %v638
      %v641 = vld [vmem:[%s205] sm:$0xff]
      %v642 = vld [vmem:[%s205 + $0x10] sm:$0xff]
      %v643 = vpack.c.bf16 %v642, %v641
      %645 = vrot.lane.b32.xlu0 %v637, 32
      %v646 = vpop.permute.xlu0 %645
      %648 = vrot.lane.b32.xlu0 %v640, 32
      %v649 = vpop.permute.xlu0 %648
      %v651 = vsel %vm223, %v646, 0
      %v654 = vsel %vm223, %v649, 0
      %656 = vmatprep.subr.bf16.mxu0 0
      %657 = vmatpush1.bf16.xpose.msra.mxu0 %v654
      %658 = vmatprep.subr.bf16.mxu0 0
      %659 = vmatpush1.bf16.xpose.msra.mxu0 0
      %660 = vmatprep.subr.bf16.mxu0 0
      %661 = vmatpush1.bf16.xpose.msra.mxu0 0
      %662 = vmatprep.subr.bf16.mxu0 0
      %663 = vmatpush1.bf16.xpose.msra.mxu0 0
      %664 = vmatprep.subr.bf16.mxu0 0
      %665 = vmatpush1.bf16.xpose.msra.mxu0 0
      %666 = vmatprep.subr.bf16.mxu0 0
      %667 = vmatpush1.bf16.xpose.msra.mxu0 0
      %668 = vmatprep.subr.bf16.mxu0 0
      %669 = vmatpush1.bf16.xpose.msra.mxu0 0
      %670 = vmatprep.subr.bf16.mxu0 0
      %671 = vmatpush1.bf16.xpose.msra.mxu0 0
      %672 = vmatprep.subr.bf16.mxu0 0
      %673 = vmatpush1.bf16.xpose.msra.mxu0 0
      %674 = vmatprep.subr.bf16.mxu0 0
      %675 = vmatpush1.bf16.xpose.msra.mxu0 0
      %676 = vmatprep.subr.bf16.mxu0 0
      %677 = vmatpush1.bf16.xpose.msra.mxu0 0
      %678 = vmatprep.subr.bf16.mxu0 0
      %679 = vmatpush1.bf16.xpose.msra.mxu0 0
      %680 = vmatprep.subr.bf16.mxu0 0
      %681 = vmatpush1.bf16.xpose.msra.mxu0 0
      %682 = vmatprep.subr.bf16.mxu0 0
      %683 = vmatpush1.bf16.xpose.msra.mxu0 0
      %684 = vmatprep.subr.bf16.mxu0 0
      %685 = vmatpush1.bf16.xpose.msra.mxu0 0
      %686 = vmatprep.subr.bf16.mxu0 0
      %687 = vmatpush1.bf16.xpose.msra.mxu0 0
      %688 = vmatprep.mubr.bf16.mxu0 0
      %689 = vmatmul.mubr.bf16.gmra.mrb[0].mxu0 %v651
      %v690 = vpop.f32.mrb[0].mxu0
      %v691 = vadd.f32 0.0, %v690
      %v692 = vpop.f32.mrb[0].mxu0
      %v693 = vpop.f32.mrb[0].mxu0
      %v694 = vadd.f32 0.0, %v693
      %v695 = vpop.f32.mrb[0].mxu0
      %696 = vdwg.mxu0
      %v697 = vsel %vm271, %v691, -inf
      %698 = vmax.xlane.f32.xlu0 %v697
      %v699 = vpop.xlane.xlu0 %698
      %v700 = vsel %vm271, %v694, -inf
      %701 = vmax.xlane.f32.xlu0 %v700
      %v702 = vpop.xlane.xlu0 %701
      %v703 = vsub.f32 %v691, %v699
      %v704 = vsub.f32 %v694, %v702
      %v705 = vmul.f32 %v703, 1.442695
      %v706 = vpow.pop %v705
      %v707 = vmul.f32 %v704, 1.442695
      %v708 = vpow.pop %v707
      %v709 = vsel %vm271, %v706, 0.0
      %710 = vadd.xlane.f32.xlu0 %v709
      %v711 = vpop.xlane.xlu0 %710
      %v712 = vsel %vm271, %v708, 0.0
      %713 = vadd.xlane.f32.xlu0 %v712
      %v714 = vpop.xlane.xlu0 %713
      %v715 = vrcp.pop %v711
      %v716 = vrcp.pop %v714
      %v717 = vmul.f32 %v706, %v715
      %v718 = vmul.f32 %v708, %v716
      %v719 = vpack.c.bf16 %v718, %v717
      %721 = vrot.lane.b32.xlu0 %v643, 32
      %v722 = vpop.permute.xlu0 %721
      %v725 = vsel %vm271, %v719, 0
      %727 = vmatprep.subr.bf16.mxu0 0
      %728 = vmatpush1.bf16.msra.mxu0 %v722
      %729 = vmatprep.subr.bf16.mxu0 0
      %730 = vmatpush1.bf16.msra.mxu0 0
      %731 = vmatprep.subr.bf16.mxu0 0
      %732 = vmatpush1.bf16.msra.mxu0 0
      %733 = vmatprep.subr.bf16.mxu0 0
      %734 = vmatpush1.bf16.msra.mxu0 0
      %735 = vmatprep.subr.bf16.mxu0 0
      %736 = vmatpush1.bf16.msra.mxu0 0
      %737 = vmatprep.subr.bf16.mxu0 0
      %738 = vmatpush1.bf16.msra.mxu0 0
      %739 = vmatprep.subr.bf16.mxu0 0
      %740 = vmatpush1.bf16.msra.mxu0 0
      %741 = vmatprep.subr.bf16.mxu0 0
      %742 = vmatpush1.bf16.msra.mxu0 0
      %743 = vmatprep.subr.bf16.mxu0 0
      %744 = vmatpush1.bf16.msra.mxu0 0
      %745 = vmatprep.subr.bf16.mxu0 0
      %746 = vmatpush1.bf16.msra.mxu0 0
      %747 = vmatprep.subr.bf16.mxu0 0
      %748 = vmatpush1.bf16.msra.mxu0 0
      %749 = vmatprep.subr.bf16.mxu0 0
      %750 = vmatpush1.bf16.msra.mxu0 0
      %751 = vmatprep.subr.bf16.mxu0 0
      %752 = vmatpush1.bf16.msra.mxu0 0
      %753 = vmatprep.subr.bf16.mxu0 0
      %754 = vmatpush1.bf16.msra.mxu0 0
      %755 = vmatprep.subr.bf16.mxu0 0
      %756 = vmatpush1.bf16.msra.mxu0 0
      %757 = vmatprep.subr.bf16.mxu0 0
      %758 = vmatpush1.bf16.msra.mxu0 0
      %759 = vmatprep.mubr.bf16.mxu0 0
      %760 = vmatmul.mubr.bf16.gmra.mrb[0].mxu0 %v725
      %v761 = vpop.f32.mrb[0].mxu0
      %v762 = vadd.f32 0.0, %v761
      %v763 = vpop.f32.mrb[0].mxu0
      %v764 = vpop.f32.mrb[0].mxu0
      %v765 = vadd.f32 0.0, %v764
      %v766 = vpop.f32.mrb[0].mxu0
      %767 = vdwg.mxu0
      %770 = vrot.lane.b32.xlu0 %v762, 96
      %v771 = vpop.permute.xlu0 %770
      %772 = vrot.lane.b32.xlu0 %v765, 96
      %v773 = vpop.permute.xlu0 %772
      %vm776 = vcmask 1048320
      %777 = vst.msk [vmem:[%s210] sm:$0xff] %vm776, %v771
      %778 = vst.msk [vmem:[%s210 + $0x10] sm:$0xff] %vm776, %v773
      %v779 = vld [vmem:[%s195 + $0x8] sm:$0xff]
      %v780 = vld [vmem:[%s195 + $0x18] sm:$0xff]
      %v781 = vmul.f32 %v779, 0.17677669
      %v782 = vmul.f32 %v780, 0.17677669
      %v783 = vpack.c.bf16 %v782, %v781
      %v784 = vld [vmem:[%s200 + $0x8] sm:$0xff]
      %v785 = vld [vmem:[%s200 + $0x18] sm:$0xff]
      %v786 = vpack.c.bf16 %v785, %v784
      %v787 = vld [vmem:[%s205 + $0x8] sm:$0xff]
      %v788 = vld [vmem:[%s205 + $0x18] sm:$0xff]
      %v789 = vpack.c.bf16 %v788, %v787
      %v791 = vsel %vm223, %v783, 0
      %v794 = vsel %vm223, %v786, 0
      %796 = vmatprep.subr.bf16.mxu0 0
      %797 = vmatpush1.bf16.xpose.msra.mxu0 %v794
      %798 = vmatprep.subr.bf16.mxu0 0
      %799 = vmatpush1.bf16.xpose.msra.mxu0 0
      %800 = vmatprep.subr.bf16.mxu0 0
      %801 = vmatpush1.bf16.xpose.msra.mxu0 0
      %802 = vmatprep.subr.bf16.mxu0 0
      %803 = vmatpush1.bf16.xpose.msra.mxu0 0
      %804 = vmatprep.subr.bf16.mxu0 0
      %805 = vmatpush1.bf16.xpose.msra.mxu0 0
      %806 = vmatprep.subr.bf16.mxu0 0
      %807 = vmatpush1.bf16.xpose.msra.mxu0 0
      %808 = vmatprep.subr.bf16.mxu0 0
      %809 = vmatpush1.bf16.xpose.msra.mxu0 0
      %810 = vmatprep.subr.bf16.mxu0 0
      %811 = vmatpush1.bf16.xpose.msra.mxu0 0
      %812 = vmatprep.subr.bf16.mxu0 0
      %813 = vmatpush1.bf16.xpose.msra.mxu0 0
      %814 = vmatprep.subr.bf16.mxu0 0
      %815 = vmatpush1.bf16.xpose.msra.mxu0 0
      %816 = vmatprep.subr.bf16.mxu0 0
      %817 = vmatpush1.bf16.xpose.msra.mxu0 0
      %818 = vmatprep.subr.bf16.mxu0 0
      %819 = vmatpush1.bf16.xpose.msra.mxu0 0
      %820 = vmatprep.subr.bf16.mxu0 0
      %821 = vmatpush1.bf16.xpose.msra.mxu0 0
      %822 = vmatprep.subr.bf16.mxu0 0
      %823 = vmatpush1.bf16.xpose.msra.mxu0 0
      %824 = vmatprep.subr.bf16.mxu0 0
      %825 = vmatpush1.bf16.xpose.msra.mxu0 0
      %826 = vmatprep.subr.bf16.mxu0 0
      %827 = vmatpush1.bf16.xpose.msra.mxu0 0
      %828 = vmatprep.mubr.bf16.mxu0 0
      %829 = vmatmul.mubr.bf16.gmra.mrb[0].mxu0 %v791
      %v830 = vpop.f32.mrb[0].mxu0
      %v831 = vadd.f32 0.0, %v830
      %v832 = vpop.f32.mrb[0].mxu0
      %v833 = vpop.f32.mrb[0].mxu0
      %v834 = vadd.f32 0.0, %v833
      %v835 = vpop.f32.mrb[0].mxu0
      %836 = vdwg.mxu0
      %v837 = vsel %vm271, %v831, -inf
      %838 = vmax.xlane.f32.xlu0 %v837
      %v839 = vpop.xlane.xlu0 %838
      %v840 = vsel %vm271, %v834, -inf
      %841 = vmax.xlane.f32.xlu0 %v840
      %v842 = vpop.xlane.xlu0 %841
      %v843 = vsub.f32 %v831, %v839
      %v844 = vsub.f32 %v834, %v842
      %v845 = vmul.f32 %v843, 1.442695
      %v846 = vpow.pop %v845
      %v847 = vmul.f32 %v844, 1.442695
      %v848 = vpow.pop %v847
      %v849 = vsel %vm271, %v846, 0.0
      %850 = vadd.xlane.f32.xlu0 %v849
      %v851 = vpop.xlane.xlu0 %850
      %v852 = vsel %vm271, %v848, 0.0
      %853 = vadd.xlane.f32.xlu0 %v852
      %v854 = vpop.xlane.xlu0 %853
      %v855 = vrcp.pop %v851
      %v856 = vrcp.pop %v854
      %v857 = vmul.f32 %v846, %v855
      %v858 = vmul.f32 %v848, %v856
      %v859 = vpack.c.bf16 %v858, %v857
      %v861 = vsel %vm271, %v859, 0
      %863 = vmatprep.subr.bf16.mxu0 0
      %864 = vmatpush1.bf16.msra.mxu0 %v789
      %865 = vmatprep.subr.bf16.mxu0 0
      %866 = vmatpush1.bf16.msra.mxu0 0
      %867 = vmatprep.subr.bf16.mxu0 0
      %868 = vmatpush1.bf16.msra.mxu0 0
      %869 = vmatprep.subr.bf16.mxu0 0
      %870 = vmatpush1.bf16.msra.mxu0 0
      %871 = vmatprep.subr.bf16.mxu0 0
      %872 = vmatpush1.bf16.msra.mxu0 0
      %873 = vmatprep.subr.bf16.mxu0 0
      %874 = vmatpush1.bf16.msra.mxu0 0
      %875 = vmatprep.subr.bf16.mxu0 0
      %876 = vmatpush1.bf16.msra.mxu0 0
      %877 = vmatprep.subr.bf16.mxu0 0
      %878 = vmatpush1.bf16.msra.mxu0 0
      %879 = vmatprep.subr.bf16.mxu0 0
      %880 = vmatpush1.bf16.msra.mxu0 0
      %881 = vmatprep.subr.bf16.mxu0 0
      %882 = vmatpush1.bf16.msra.mxu0 0
      %883 = vmatprep.subr.bf16.mxu0 0
      %884 = vmatpush1.bf16.msra.mxu0 0
      %885 = vmatprep.subr.bf16.mxu0 0
      %886 = vmatpush1.bf16.msra.mxu0 0
      %887 = vmatprep.subr.bf16.mxu0 0
      %888 = vmatpush1.bf16.msra.mxu0 0
      %889 = vmatprep.subr.bf16.mxu0 0
      %890 = vmatpush1.bf16.msra.mxu0 0
      %891 = vmatprep.subr.bf16.mxu0 0
      %892 = vmatpush1.bf16.msra.mxu0 0
      %893 = vmatprep.subr.bf16.mxu0 0
      %894 = vmatpush1.bf16.msra.mxu0 0
      %895 = vmatprep.mubr.bf16.mxu0 0
      %896 = vmatmul.mubr.bf16.gmra.mrb[0].mxu0 %v861
      %v897 = vpop.f32.mrb[0].mxu0
      %v898 = vadd.f32 0.0, %v897
      %v899 = vpop.f32.mrb[0].mxu0
      %v900 = vpop.f32.mrb[0].mxu0
      %v901 = vadd.f32 0.0, %v900
      %v902 = vpop.f32.mrb[0].mxu0
      %903 = vdwg.mxu0
      %904 = vst.msk [vmem:[%s210 + $0x8] sm:$0xff] %vm223, %v898
      %905 = vst.msk [vmem:[%s210 + $0x18] sm:$0xff] %vm223, %v901
      %v906 = vld [vmem:[%s195 + $0x8] sm:$0xff]
      %v907 = vld [vmem:[%s195 + $0x18] sm:$0xff]
      %v908 = vmul.f32 %v906, 0.17677669
      %v909 = vmul.f32 %v907, 0.17677669
      %v910 = vpack.c.bf16 %v909, %v908
      %v911 = vld [vmem:[%s200 + $0x8] sm:$0xff]
      %v912 = vld [vmem:[%s200 + $0x18] sm:$0xff]
      %v913 = vpack.c.bf16 %v912, %v911
      %v914 = vld [vmem:[%s205 + $0x8] sm:$0xff]
      %v915 = vld [vmem:[%s205 + $0x18] sm:$0xff]
      %v916 = vpack.c.bf16 %v915, %v914
      %918 = vrot.lane.b32.xlu0 %v910, 96
      %v919 = vpop.permute.xlu0 %918
      %921 = vrot.lane.b32.xlu0 %v913, 96
      %v922 = vpop.permute.xlu0 %921
      %v924 = vsel %vm223, %v919, 0
      %v927 = vsel %vm223, %v922, 0
      %929 = vmatprep.subr.bf16.mxu0 0
      %930 = vmatpush1.bf16.xpose.msra.mxu0 %v927
      %931 = vmatprep.subr.bf16.mxu0 0
      %932 = vmatpush1.bf16.xpose.msra.mxu0 0
      %933 = vmatprep.subr.bf16.mxu0 0
      %934 = vmatpush1.bf16.xpose.msra.mxu0 0
      %935 = vmatprep.subr.bf16.mxu0 0
      %936 = vmatpush1.bf16.xpose.msra.mxu0 0
      %937 = vmatprep.subr.bf16.mxu0 0
      %938 = vmatpush1.bf16.xpose.msra.mxu0 0
      %939 = vmatprep.subr.bf16.mxu0 0
      %940 = vmatpush1.bf16.xpose.msra.mxu0 0
      %941 = vmatprep.subr.bf16.mxu0 0
      %942 = vmatpush1.bf16.xpose.msra.mxu0 0
      %943 = vmatprep.subr.bf16.mxu0 0
      %944 = vmatpush1.bf16.xpose.msra.mxu0 0
      %945 = vmatprep.subr.bf16.mxu0 0
      %946 = vmatpush1.bf16.xpose.msra.mxu0 0
      %947 = vmatprep.subr.bf16.mxu0 0
      %948 = vmatpush1.bf16.xpose.msra.mxu0 0
      %949 = vmatprep.subr.bf16.mxu0 0
      %950 = vmatpush1.bf16.xpose.msra.mxu0 0
      %951 = vmatprep.subr.bf16.mxu0 0
      %952 = vmatpush1.bf16.xpose.msra.mxu0 0
      %953 = vmatprep.subr.bf16.mxu0 0
      %954 = vmatpush1.bf16.xpose.msra.mxu0 0
      %955 = vmatprep.subr.bf16.mxu0 0
      %956 = vmatpush1.bf16.xpose.msra.mxu0 0
      %957 = vmatprep.subr.bf16.mxu0 0
      %958 = vmatpush1.bf16.xpose.msra.mxu0 0
      %959 = vmatprep.subr.bf16.mxu0 0
      %960 = vmatpush1.bf16.xpose.msra.mxu0 0
      %961 = vmatprep.mubr.bf16.mxu0 0
      %962 = vmatmul.mubr.bf16.gmra.mrb[0].mxu0 %v924
      %v963 = vpop.f32.mrb[0].mxu0
      %v964 = vadd.f32 0.0, %v963
      %v965 = vpop.f32.mrb[0].mxu0
      %v966 = vpop.f32.mrb[0].mxu0
      %v967 = vadd.f32 0.0, %v966
      %v968 = vpop.f32.mrb[0].mxu0
      %969 = vdwg.mxu0
      %v970 = vsel %vm271, %v964, -inf
      %971 = vmax.xlane.f32.xlu0 %v970
      %v972 = vpop.xlane.xlu0 %971
      %v973 = vsel %vm271, %v967, -inf
      %974 = vmax.xlane.f32.xlu0 %v973
      %v975 = vpop.xlane.xlu0 %974
      %v976 = vsub.f32 %v964, %v972
      %v977 = vsub.f32 %v967, %v975
      %v978 = vmul.f32 %v976, 1.442695
      %v979 = vpow.pop %v978
      %v980 = vmul.f32 %v977, 1.442695
      %v981 = vpow.pop %v980
      %v982 = vsel %vm271, %v979, 0.0
      %983 = vadd.xlane.f32.xlu0 %v982
      %v984 = vpop.xlane.xlu0 %983
      %v985 = vsel %vm271, %v981, 0.0
      %986 = vadd.xlane.f32.xlu0 %v985
      %v987 = vpop.xlane.xlu0 %986
      %v988 = vrcp.pop %v984
      %v989 = vrcp.pop %v987
      %v990 = vmul.f32 %v979, %v988
      %v991 = vmul.f32 %v981, %v989
      %v992 = vpack.c.bf16 %v991, %v990
      %994 = vrot.lane.b32.xlu0 %v916, 96
      %v995 = vpop.permute.xlu0 %994
      %v998 = vsel %vm271, %v992, 0
      %1000 = vmatprep.subr.bf16.mxu0 0
      %1001 = vmatpush1.bf16.msra.mxu0 %v995
      %1002 = vmatprep.subr.bf16.mxu0 0
      %1003 = vmatpush1.bf16.msra.mxu0 0
      %1004 = vmatprep.subr.bf16.mxu0 0
      %1005 = vmatpush1.bf16.msra.mxu0 0
      %1006 = vmatprep.subr.bf16.mxu0 0
      %1007 = vmatpush1.bf16.msra.mxu0 0
      %1008 = vmatprep.subr.bf16.mxu0 0
      %1009 = vmatpush1.bf16.msra.mxu0 0
      %1010 = vmatprep.subr.bf16.mxu0 0
      %1011 = vmatpush1.bf16.msra.mxu0 0
      %1012 = vmatprep.subr.bf16.mxu0 0
      %1013 = vmatpush1.bf16.msra.mxu0 0
      %1014 = vmatprep.subr.bf16.mxu0 0
      %1015 = vmatpush1.bf16.msra.mxu0 0
      %1016 = vmatprep.subr.bf16.mxu0 0
      %1017 = vmatpush1.bf16.msra.mxu0 0
      %1018 = vmatprep.subr.bf16.mxu0 0
      %1019 = vmatpush1.bf16.msra.mxu0 0
      %1020 = vmatprep.subr.bf16.mxu0 0
      %1021 = vmatpush1.bf16.msra.mxu0 0
      %1022 = vmatprep.subr.bf16.mxu0 0
      %1023 = vmatpush1.bf16.msra.mxu0 0
      %1024 = vmatprep.subr.bf16.mxu0 0
      %1025 = vmatpush1.bf16.msra.mxu0 0
      %1026 = vmatprep.subr.bf16.mxu0 0
      %1027 = vmatpush1.bf16.msra.mxu0 0
      %1028 = vmatprep.subr.bf16.mxu0 0
      %1029 = vmatpush1.bf16.msra.mxu0 0
      %1030 = vmatprep.subr.bf16.mxu0 0
      %1031 = vmatpush1.bf16.msra.mxu0 0
      %1032 = vmatprep.mubr.bf16.mxu0 0
      %1033 = vmatmul.mubr.bf16.gmra.mrb[0].mxu0 %v998
      %v1034 = vpop.f32.mrb[0].mxu0
      %v1035 = vadd.f32 0.0, %v1034
      %v1036 = vpop.f32.mrb[0].mxu0
      %v1037 = vpop.f32.mrb[0].mxu0
      %v1038 = vadd.f32 0.0, %v1037
      %v1039 = vpop.f32.mrb[0].mxu0
      %1040 = vdwg.mxu0
      %1043 = vrot.lane.b32.xlu0 %v1035, 32
      %v1044 = vpop.permute.xlu0 %1043
      %1045 = vrot.lane.b32.xlu0 %v1038, 32
      %v1046 = vpop.permute.xlu0 %1045
      %1049 = vst.msk [vmem:[%s210 + $0x8] sm:$0xff] %vm484, %v1044
      %1050 = vst.msk [vmem:[%s210 + $0x18] sm:$0xff] %vm484, %v1046
      %v1051 = vld [vmem:[%s195 + $0x8] sm:$0xff]
      %v1052 = vld [vmem:[%s195 + $0x18] sm:$0xff]
      %v1053 = vmul.f32 %v1051, 0.17677669
      %v1054 = vmul.f32 %v1052, 0.17677669
      %v1055 = vpack.c.bf16 %v1054, %v1053
      %v1056 = vld [vmem:[%s200 + $0x8] sm:$0xff]
      %v1057 = vld [vmem:[%s200 + $0x18] sm:$0xff]
      %v1058 = vpack.c.bf16 %v1057, %v1056
      %v1059 = vld [vmem:[%s205 + $0x8] sm:$0xff]
      %v1060 = vld [vmem:[%s205 + $0x18] sm:$0xff]
      %v1061 = vpack.c.bf16 %v1060, %v1059
      %1063 = vrot.lane.b32.xlu0 %v1055, 64
      %v1064 = vpop.permute.xlu0 %1063
      %1066 = vrot.lane.b32.xlu0 %v1058, 64
      %v1067 = vpop.permute.xlu0 %1066
      %v1069 = vsel %vm223, %v1064, 0
      %v1072 = vsel %vm223, %v1067, 0
      %1074 = vmatprep.subr.bf16.mxu0 0
      %1075 = vmatpush1.bf16.xpose.msra.mxu0 %v1072
      %1076 = vmatprep.subr.bf16.mxu0 0
      %1077 = vmatpush1.bf16.xpose.msra.mxu0 0
      %1078 = vmatprep.subr.bf16.mxu0 0
      %1079 = vmatpush1.bf16.xpose.msra.mxu0 0
      %1080 = vmatprep.subr.bf16.mxu0 0
      %1081 = vmatpush1.bf16.xpose.msra.mxu0 0
      %1082 = vmatprep.subr.bf16.mxu0 0
      %1083 = vmatpush1.bf16.xpose.msra.mxu0 0
      %1084 = vmatprep.subr.bf16.mxu0 0
      %1085 = vmatpush1.bf16.xpose.msra.mxu0 0
      %1086 = vmatprep.subr.bf16.mxu0 0
      %1087 = vmatpush1.bf16.xpose.msra.mxu0 0
      %1088 = vmatprep.subr.bf16.mxu0 0
      %1089 = vmatpush1.bf16.xpose.msra.mxu0 0
      %1090 = vmatprep.subr.bf16.mxu0 0
      %1091 = vmatpush1.bf16.xpose.msra.mxu0 0
      %1092 = vmatprep.subr.bf16.mxu0 0
      %1093 = vmatpush1.bf16.xpose.msra.mxu0 0
      %1094 = vmatprep.subr.bf16.mxu0 0
      %1095 = vmatpush1.bf16.xpose.msra.mxu0 0
      %1096 = vmatprep.subr.bf16.mxu0 0
      %1097 = vmatpush1.bf16.xpose.msra.mxu0 0
      %1098 = vmatprep.subr.bf16.mxu0 0
      %1099 = vmatpush1.bf16.xpose.msra.mxu0 0
      %1100 = vmatprep.subr.bf16.mxu0 0
      %1101 = vmatpush1.bf16.xpose.msra.mxu0 0
      %1102 = vmatprep.subr.bf16.mxu0 0
      %1103 = vmatpush1.bf16.xpose.msra.mxu0 0
      %1104 = vmatprep.subr.bf16.mxu0 0
      %1105 = vmatpush1.bf16.xpose.msra.mxu0 0
      %1106 = vmatprep.mubr.bf16.mxu0 0
      %1107 = vmatmul.mubr.bf16.gmra.mrb[0].mxu0 %v1069
      %v1108 = vpop.f32.mrb[0].mxu0
      %v1109 = vadd.f32 0.0, %v1108
      %v1110 = vpop.f32.mrb[0].mxu0
      %v1111 = vpop.f32.mrb[0].mxu0
      %v1112 = vadd.f32 0.0, %v1111
      %v1113 = vpop.f32.mrb[0].mxu0
      %1114 = vdwg.mxu0
      %v1115 = vsel %vm271, %v1109, -inf
      %1116 = vmax.xlane.f32.xlu0 %v1115
      %v1117 = vpop.xlane.xlu0 %1116
      %v1118 = vsel %vm271, %v1112, -inf
      %1119 = vmax.xlane.f32.xlu0 %v1118
      %v1120 = vpop.xlane.xlu0 %1119
      %v1121 = vsub.f32 %v1109, %v1117
      %v1122 = vsub.f32 %v1112, %v1120
      %v1123 = vmul.f32 %v1121, 1.442695
      %v1124 = vpow.pop %v1123
      %v1125 = vmul.f32 %v1122, 1.442695
      %v1126 = vpow.pop %v1125
      %v1127 = vsel %vm271, %v1124, 0.0
      %1128 = vadd.xlane.f32.xlu0 %v1127
      %v1129 = vpop.xlane.xlu0 %1128
      %v1130 = vsel %vm271, %v1126, 0.0
      %1131 = vadd.xlane.f32.xlu0 %v1130
      %v1132 = vpop.xlane.xlu0 %1131
      %v1133 = vrcp.pop %v1129
      %v1134 = vrcp.pop %v1132
      %v1135 = vmul.f32 %v1124, %v1133
      %v1136 = vmul.f32 %v1126, %v1134
      %v1137 = vpack.c.bf16 %v1136, %v1135
      %1139 = vrot.lane.b32.xlu0 %v1061, 64
      %v1140 = vpop.permute.xlu0 %1139
      %v1143 = vsel %vm271, %v1137, 0
      %1145 = vmatprep.subr.bf16.mxu0 0
      %1146 = vmatpush1.bf16.msra.mxu0 %v1140
      %1147 = vmatprep.subr.bf16.mxu0 0
      %1148 = vmatpush1.bf16.msra.mxu0 0
      %1149 = vmatprep.subr.bf16.mxu0 0
      %1150 = vmatpush1.bf16.msra.mxu0 0
      %1151 = vmatprep.subr.bf16.mxu0 0
      %1152 = vmatpush1.bf16.msra.mxu0 0
      %1153 = vmatprep.subr.bf16.mxu0 0
      %1154 = vmatpush1.bf16.msra.mxu0 0
      %1155 = vmatprep.subr.bf16.mxu0 0
      %1156 = vmatpush1.bf16.msra.mxu0 0
      %1157 = vmatprep.subr.bf16.mxu0 0
      %1158 = vmatpush1.bf16.msra.mxu0 0
      %1159 = vmatprep.subr.bf16.mxu0 0
      %1160 = vmatpush1.bf16.msra.mxu0 0
      %1161 = vmatprep.subr.bf16.mxu0 0
      %1162 = vmatpush1.bf16.msra.mxu0 0
      %1163 = vmatprep.subr.bf16.mxu0 0
      %1164 = vmatpush1.bf16.msra.mxu0 0
      %1165 = vmatprep.subr.bf16.mxu0 0
      %1166 = vmatpush1.bf16.msra.mxu0 0
      %1167 = vmatprep.subr.bf16.mxu0 0
      %1168 = vmatpush1.bf16.msra.mxu0 0
      %1169 = vmatprep.subr.bf16.mxu0 0
      %1170 = vmatpush1.bf16.msra.mxu0 0
      %1171 = vmatprep.subr.bf16.mxu0 0
      %1172 = vmatpush1.bf16.msra.mxu0 0
      %1173 = vmatprep.subr.bf16.mxu0 0
      %1174 = vmatpush1.bf16.msra.mxu0 0
      %1175 = vmatprep.subr.bf16.mxu0 0
      %1176 = vmatpush1.bf16.msra.mxu0 0
      %1177 = vmatprep.mubr.bf16.mxu0 0
      %1178 = vmatmul.mubr.bf16.gmra.mrb[0].mxu0 %v1143
      %v1179 = vpop.f32.mrb[0].mxu0
      %v1180 = vadd.f32 0.0, %v1179
      %v1181 = vpop.f32.mrb[0].mxu0
      %v1182 = vpop.f32.mrb[0].mxu0
      %v1183 = vadd.f32 0.0, %v1182
      %v1184 = vpop.f32.mrb[0].mxu0
      %1185 = vdwg.mxu0
      %1188 = vrot.lane.b32.xlu0 %v1180, 64
      %v1189 = vpop.permute.xlu0 %1188
      %1190 = vrot.lane.b32.xlu0 %v1183, 64
      %v1191 = vpop.permute.xlu0 %1190
      %1194 = vst.msk [vmem:[%s210 + $0x8] sm:$0xff] %vm630, %v1189
      %1195 = vst.msk [vmem:[%s210 + $0x18] sm:$0xff] %vm630, %v1191
      %v1196 = vld [vmem:[%s195 + $0x8] sm:$0xff]
      %v1197 = vld [vmem:[%s195 + $0x18] sm:$0xff]
      %v1198 = vmul.f32 %v1196, 0.17677669
      %v1199 = vmul.f32 %v1197, 0.17677669
      %v1200 = vpack.c.bf16 %v1199, %v1198
      %v1201 = vld [vmem:[%s200 + $0x8] sm:$0xff]
      %v1202 = vld [vmem:[%s200 + $0x18] sm:$0xff]
      %v1203 = vpack.c.bf16 %v1202, %v1201
      %v1204 = vld [vmem:[%s205 + $0x8] sm:$0xff]
      %v1205 = vld [vmem:[%s205 + $0x18] sm:$0xff]
      %v1206 = vpack.c.bf16 %v1205, %v1204
      %1208 = vrot.lane.b32.xlu0 %v1200, 32
      %v1209 = vpop.permute.xlu0 %1208
      %1211 = vrot.lane.b32.xlu0 %v1203, 32
      %v1212 = vpop.permute.xlu0 %1211
      %v1214 = vsel %vm223, %v1209, 0
      %v1217 = vsel %vm223, %v1212, 0
      %1219 = vmatprep.subr.bf16.mxu0 0
      %1220 = vmatpush1.bf16.xpose.msra.mxu0 %v1217
      %1221 = vmatprep.subr.bf16.mxu0 0
      %1222 = vmatpush1.bf16.xpose.msra.mxu0 0
      %1223 = vmatprep.subr.bf16.mxu0 0
      %1224 = vmatpush1.bf16.xpose.msra.mxu0 0
      %1225 = vmatprep.subr.bf16.mxu0 0
      %1226 = vmatpush1.bf16.xpose.msra.mxu0 0
      %1227 = vmatprep.subr.bf16.mxu0 0
      %1228 = vmatpush1.bf16.xpose.msra.mxu0 0
      %1229 = vmatprep.subr.bf16.mxu0 0
      %1230 = vmatpush1.bf16.xpose.msra.mxu0 0
      %1231 = vmatprep.subr.bf16.mxu0 0
      %1232 = vmatpush1.bf16.xpose.msra.mxu0 0
      %1233 = vmatprep.subr.bf16.mxu0 0
      %1234 = vmatpush1.bf16.xpose.msra.mxu0 0
      %1235 = vmatprep.subr.bf16.mxu0 0
      %1236 = vmatpush1.bf16.xpose.msra.mxu0 0
      %1237 = vmatprep.subr.bf16.mxu0 0
      %1238 = vmatpush1.bf16.xpose.msra.mxu0 0
      %1239 = vmatprep.subr.bf16.mxu0 0
      %1240 = vmatpush1.bf16.xpose.msra.mxu0 0
      %1241 = vmatprep.subr.bf16.mxu0 0
      %1242 = vmatpush1.bf16.xpose.msra.mxu0 0
      %1243 = vmatprep.subr.bf16.mxu0 0
      %1244 = vmatpush1.bf16.xpose.msra.mxu0 0
      %1245 = vmatprep.subr.bf16.mxu0 0
      %1246 = vmatpush1.bf16.xpose.msra.mxu0 0
      %1247 = vmatprep.subr.bf16.mxu0 0
      %1248 = vmatpush1.bf16.xpose.msra.mxu0 0
      %1249 = vmatprep.subr.bf16.mxu0 0
      %1250 = vmatpush1.bf16.xpose.msra.mxu0 0
      %1251 = vmatprep.mubr.bf16.mxu0 0
      %1252 = vmatmul.mubr.bf16.gmra.mrb[0].mxu0 %v1214
      %v1253 = vpop.f32.mrb[0].mxu0
      %v1254 = vadd.f32 0.0, %v1253
      %v1255 = vpop.f32.mrb[0].mxu0
      %v1256 = vpop.f32.mrb[0].mxu0
      %v1257 = vadd.f32 0.0, %v1256
      %v1258 = vpop.f32.mrb[0].mxu0
      %1259 = vdwg.mxu0
      %v1260 = vsel %vm271, %v1254, -inf
      %1261 = vmax.xlane.f32.xlu0 %v1260
      %v1262 = vpop.xlane.xlu0 %1261
      %v1263 = vsel %vm271, %v1257, -inf
      %1264 = vmax.xlane.f32.xlu0 %v1263
      %v1265 = vpop.xlane.xlu0 %1264
      %v1266 = vsub.f32 %v1254, %v1262
      %v1267 = vsub.f32 %v1257, %v1265
      %v1268 = vmul.f32 %v1266, 1.442695
      %v1269 = vpow.pop %v1268
      %v1270 = vmul.f32 %v1267, 1.442695
      %v1271 = vpow.pop %v1270
      %v1272 = vsel %vm271, %v1269, 0.0
      %1273 = vadd.xlane.f32.xlu0 %v1272
      %v1274 = vpop.xlane.xlu0 %1273
      %v1275 = vsel %vm271, %v1271, 0.0
      %1276 = vadd.xlane.f32.xlu0 %v1275
      %v1277 = vpop.xlane.xlu0 %1276
      %v1278 = vrcp.pop %v1274
      %v1279 = vrcp.pop %v1277
      %v1280 = vmul.f32 %v1269, %v1278
      %v1281 = vmul.f32 %v1271, %v1279
      %v1282 = vpack.c.bf16 %v1281, %v1280
      %1284 = vrot.lane.b32.xlu0 %v1206, 32
      %v1285 = vpop.permute.xlu0 %1284
      %v1288 = vsel %vm271, %v1282, 0
      %1290 = vmatprep.subr.bf16.mxu0 0
      %1291 = vmatpush1.bf16.msra.mxu0 %v1285
      %1292 = vmatprep.subr.bf16.mxu0 0
      %1293 = vmatpush1.bf16.msra.mxu0 0
      %1294 = vmatprep.subr.bf16.mxu0 0
      %1295 = vmatpush1.bf16.msra.mxu0 0
      %1296 = vmatprep.subr.bf16.mxu0 0
      %1297 = vmatpush1.bf16.msra.mxu0 0
      %1298 = vmatprep.subr.bf16.mxu0 0
      %1299 = vmatpush1.bf16.msra.mxu0 0
      %1300 = vmatprep.subr.bf16.mxu0 0
      %1301 = vmatpush1.bf16.msra.mxu0 0
      %1302 = vmatprep.subr.bf16.mxu0 0
      %1303 = vmatpush1.bf16.msra.mxu0 0
      %1304 = vmatprep.subr.bf16.mxu0 0
      %1305 = vmatpush1.bf16.msra.mxu0 0
      %1306 = vmatprep.subr.bf16.mxu0 0
      %1307 = vmatpush1.bf16.msra.mxu0 0
      %1308 = vmatprep.subr.bf16.mxu0 0
      %1309 = vmatpush1.bf16.msra.mxu0 0
      %1310 = vmatprep.subr.bf16.mxu0 0
      %1311 = vmatpush1.bf16.msra.mxu0 0
      %1312 = vmatprep.subr.bf16.mxu0 0
      %1313 = vmatpush1.bf16.msra.mxu0 0
      %1314 = vmatprep.subr.bf16.mxu0 0
      %1315 = vmatpush1.bf16.msra.mxu0 0
      %1316 = vmatprep.subr.bf16.mxu0 0
      %1317 = vmatpush1.bf16.msra.mxu0 0
      %1318 = vmatprep.subr.bf16.mxu0 0
      %1319 = vmatpush1.bf16.msra.mxu0 0
      %1320 = vmatprep.subr.bf16.mxu0 0
      %1321 = vmatpush1.bf16.msra.mxu0 0
      %1322 = vmatprep.mubr.bf16.mxu0 0
      %1323 = vmatmul.mubr.bf16.gmra.mrb[0].mxu0 %v1288
      %v1324 = vpop.f32.mrb[0].mxu0
      %v1325 = vadd.f32 0.0, %v1324
      %v1326 = vpop.f32.mrb[0].mxu0
      %v1327 = vpop.f32.mrb[0].mxu0
      %v1328 = vadd.f32 0.0, %v1327
      %v1329 = vpop.f32.mrb[0].mxu0
      %1330 = vdwg.mxu0
      %1333 = vrot.lane.b32.xlu0 %v1325, 96
      %v1334 = vpop.permute.xlu0 %1333
      %1335 = vrot.lane.b32.xlu0 %v1328, 96
      %v1336 = vpop.permute.xlu0 %1335
      %1339 = vst.msk [vmem:[%s210 + $0x8] sm:$0xff] %vm776, %v1334
      %1340 = vst.msk [vmem:[%s210 + $0x18] sm:$0xff] %vm776, %v1336
      %p1341 = scmp.lt.s32.totalorder %s14, 1
      %s1342 = scalar_select %p1341, %s14, 1
      %s1343 = smul.addr %s1342, 4
      %s1344 = smul.addr %s1343, 8
      %s1345 = scalar_lea.vmem %s3, %s1344
      // Predicated region
      $region33: #{depth_aware_transformer_forward.57} parent=31 // pred_check
        %p1346 = pneg %p110
      $region34: #{depth_aware_transformer_forward.57} parent=31 // pred_check_branch
        %1348 = sbr.rel (%p1346) target = $region36
      $region35: #{depth_aware_transformer_forward.57} parent=31 // pred_region
        _
      $region36: #{depth_aware_transformer_forward.57} parent=31 // pred_fallthru
        _
    $region32: #{depth_aware_transformer_forward.57} parent=5 // pred_fallthru
      _
    %p1349 = scmp.le.s32.totalorder 2, %s9
    // Predicated region
    $region37: #{depth_aware_transformer_forward.57} parent=5 // pred_check
      %p1350 = pneg %p1349
    $region38: #{depth_aware_transformer_forward.57} parent=5 // pred_check_branch
      %1352 = sbr.rel (%p1350) target = $region40
    $region39: #{depth_aware_transformer_forward.57} parent=5 // pred_region
      %s1353 = ssub.s32 %s9, 2
      // Predicated region
      $region41: #{depth_aware_transformer_forward.57} parent=39 // pred_check
        %p1354 = pneg %p116
      $region42: #{depth_aware_transformer_forward.57} parent=39 // pred_check_branch
        %1356 = sbr.rel (%p1354) target = $region44
      $region43: #{depth_aware_transformer_forward.57} parent=39 // pred_region
        %p1357 = scmp.lt.s32.totalorder %s15, 1
        %s1358 = scalar_select %p1357, %s15, 1
        %s1359 = smul.addr %s1358, 4
        %s1360 = smul.addr %s1359, 8
        %s1361 = scalar_lea.vmem %s3, %s1360
      $region44: #{depth_aware_transformer_forward.57} parent=39 // pred_fallthru
        _
    $region40: #{depth_aware_transformer_forward.57} parent=5 // pred_fallthru
      _
  $region6: #{depth_aware_transformer_forward.57} parent=0 // loop_footer
    %s13 = sadd.s32 1, %s9
  $region7: #{depth_aware_transformer_forward.57} parent=0 // loop_footer_branch
    %8 = sbr.rel target = $region3
  $region8: #{depth_aware_transformer_forward.57} parent=0 // loop_exit
    _

// kernel: depth_aware_transformer_forward.61
$region0: #{depth_aware_transformer_forward.61}
  #allocation0 [shape = 'u32[]', space=smem, size = 0x4, offset = 0x4, fixed_abs, tag = 'smem constant byte address 0x4 - core index']
  #allocation1 [shape = 'u32[144,128]{1,0:T(1,128)}', space=vmem, size = 0x12000, scoped, tag = 'internal scratch']
  %s0 = inlined_call_operand.vmem [shape: f32[32,256], index: 0, kind: input, shape index: {}]
  %s1 = inlined_call_operand.vmem [shape: bf16[256,384], index: 1, kind: input, shape index: {}]
  %s2 = inlined_call_operand.vmem [shape: f32[1,384], index: 2, kind: input, shape index: {}]
  %s3 = inlined_call_operand.vmem [shape: f32[32,384], index: 3, kind: output, shape index: {}]
  %s4 = sld [smem:[#allocation0]]
  $region22: #{depth_aware_transformer_forward.61} parent=0
    _
  %s6 = ssub.s32 1, %s4
  %s7 = scalar_select 0, %s6, %s4
  // Predicated region
  $region2: #{depth_aware_transformer_forward.61} parent=0 // pred_check
    _
  $region3: #{depth_aware_transformer_forward.61} parent=0 // pred_check_branch
    %9 = sbr.rel (0) target = $region5
  $region4: #{depth_aware_transformer_forward.61} parent=0 // pred_region
    _
  $region5: #{depth_aware_transformer_forward.61} parent=0 // pred_fallthru
    _
  // Predicated region
  $region6: #{depth_aware_transformer_forward.61} parent=0 // pred_check
    _
  $region7: #{depth_aware_transformer_forward.61} parent=0 // pred_check_branch
    %11 = sbr.rel (0) target = $region9
  $region8: #{depth_aware_transformer_forward.61} parent=0 // pred_region
    _
  $region9: #{depth_aware_transformer_forward.61} parent=0 // pred_fallthru
    _
  // Predicated region
  $region10: #{depth_aware_transformer_forward.61} parent=0 // pred_check
    _
  $region11: #{depth_aware_transformer_forward.61} parent=0 // pred_check_branch
    %13 = sbr.rel (0) target = $region13
  $region12: #{depth_aware_transformer_forward.61} parent=0 // pred_region
    _
  $region13: #{depth_aware_transformer_forward.61} parent=0 // pred_fallthru
    _
  %v15 = vld [vmem:[%s0] sm:$0xff]
  %v16 = vld [vmem:[%s0 + $0x8] sm:$0xff]
  %v17 = vld [vmem:[%s0 + $0x10] sm:$0xff]
  %v18 = vld [vmem:[%s0 + $0x18] sm:$0xff]
  %v19 = vld [vmem:[%s0 + $0x20] sm:$0xff]
  %v20 = vld [vmem:[%s0 + $0x28] sm:$0xff]
  %v21 = vld [vmem:[%s0 + $0x30] sm:$0xff]
  %v22 = vld [vmem:[%s0 + $0x38] sm:$0xff]
  %v23 = vpack.c.bf16 %v17, %v15
  %v24 = vpack.c.bf16 %v18, %v16
  %v25 = vpack.c.bf16 %v21, %v19
  %v26 = vpack.c.bf16 %v22, %v20
  %v27 = vld [vmem:[%s1] sm:$0xff]
  %v28 = vld [vmem:[%s1 + $0x8] sm:$0xf]
  %v29 = vld [vmem:[%s1 + $0xc] sm:$0xff]
  %v30 = vld [vmem:[%s1 + $0x14] sm:$0xf]
  %v31 = vld [vmem:[%s1 + $0x18] sm:$0xff]
  %v32 = vld [vmem:[%s1 + $0x20] sm:$0xf]
  %v33 = vld [vmem:[%s1 + $0x24] sm:$0xff]
  %v34 = vld [vmem:[%s1 + $0x2c] sm:$0xf]
  %v35 = vld [vmem:[%s1 + $0x30] sm:$0xff]
  %v36 = vld [vmem:[%s1 + $0x38] sm:$0xf]
  %v37 = vld [vmem:[%s1 + $0x3c] sm:$0xff]
  %v38 = vld [vmem:[%s1 + $0x44] sm:$0xf]
  %v39 = vld [vmem:[%s1 + $0x48] sm:$0xff]
  %v40 = vld [vmem:[%s1 + $0x50] sm:$0xf]
  %v41 = vld [vmem:[%s1 + $0x54] sm:$0xff]
  %v42 = vld [vmem:[%s1 + $0x5c] sm:$0xf]
  %v43 = vld [vmem:[%s1 + $0x60] sm:$0xff]
  %v44 = vld [vmem:[%s1 + $0x68] sm:$0xf]
  %v45 = vld [vmem:[%s1 + $0x6c] sm:$0xff]
  %v46 = vld [vmem:[%s1 + $0x74] sm:$0xf]
  %v47 = vld [vmem:[%s1 + $0x78] sm:$0xff]
  %v48 = vld [vmem:[%s1 + $0x80] sm:$0xf]
  %v49 = vld [vmem:[%s1 + $0x84] sm:$0xff]
  %v50 = vld [vmem:[%s1 + $0x8c] sm:$0xf]
  %v51 = vld [vmem:[%s1 + $0x90] sm:$0xff]
  %v52 = vld [vmem:[%s1 + $0x98] sm:$0xf]
  %v53 = vld [vmem:[%s1 + $0x9c] sm:$0xff]
  %v54 = vld [vmem:[%s1 + $0xa4] sm:$0xf]
  %v55 = vld [vmem:[%s1 + $0xa8] sm:$0xff]
  %v56 = vld [vmem:[%s1 + $0xb0] sm:$0xf]
  %v57 = vld [vmem:[%s1 + $0xb4] sm:$0xff]
  %v58 = vld [vmem:[%s1 + $0xbc] sm:$0xf]
  %v59 = vld [vmem:[%s1 + $0xc0] sm:$0xff]
  %v60 = vld [vmem:[%s1 + $0xc8] sm:$0xf]
  %v61 = vld [vmem:[%s1 + $0xcc] sm:$0xff]
  %v62 = vld [vmem:[%s1 + $0xd4] sm:$0xf]
  %v63 = vld [vmem:[%s1 + $0xd8] sm:$0xff]
  %v64 = vld [vmem:[%s1 + $0xe0] sm:$0xf]
  %v65 = vld [vmem:[%s1 + $0xe4] sm:$0xff]
  %v66 = vld [vmem:[%s1 + $0xec] sm:$0xf]
  %v67 = vld [vmem:[%s1 + $0xf0] sm:$0xff]
  %v68 = vld [vmem:[%s1 + $0xf8] sm:$0xf]
  %v69 = vld [vmem:[%s1 + $0xfc] sm:$0xff]
  %v70 = vld [vmem:[%s1 + $0x104] sm:$0xf]
  %v71 = vld [vmem:[%s1 + $0x108] sm:$0xff]
  %v72 = vld [vmem:[%s1 + $0x110] sm:$0xf]
  %v73 = vld [vmem:[%s1 + $0x114] sm:$0xff]
  %v74 = vld [vmem:[%s1 + $0x11c] sm:$0xf]
  %v75 = vld [vmem:[%s1 + $0x120] sm:$0xff]
  %v76 = vld [vmem:[%s1 + $0x128] sm:$0xf]
  %v77 = vld [vmem:[%s1 + $0x12c] sm:$0xff]
  %v78 = vld [vmem:[%s1 + $0x134] sm:$0xf]
  %v79 = vld [vmem:[%s1 + $0x138] sm:$0xff]
  %v80 = vld [vmem:[%s1 + $0x140] sm:$0xf]
  %v81 = vld [vmem:[%s1 + $0x144] sm:$0xff]
  %v82 = vld [vmem:[%s1 + $0x14c] sm:$0xf]
  %v83 = vld [vmem:[%s1 + $0x150] sm:$0xff]
  %v84 = vld [vmem:[%s1 + $0x158] sm:$0xf]
  %v85 = vld [vmem:[%s1 + $0x15c] sm:$0xff]
  %v86 = vld [vmem:[%s1 + $0x164] sm:$0xf]
  %v87 = vld [vmem:[%s1 + $0x168] sm:$0xff]
  %v88 = vld [vmem:[%s1 + $0x170] sm:$0xf]
  %v89 = vld [vmem:[%s1 + $0x174] sm:$0xff]
  %v90 = vld [vmem:[%s1 + $0x17c] sm:$0xf]
  %v91 = vld [vmem:[%s2] sm:$0x7]
  %v93 = vlaneseq
  %v94 = vshrl.u32 %v93, 7
  %v95 = vsub.s32 0, %v94
  %v96 = vrot.slane %v91, %v95
  %v97 = vlaneseq
  %v98 = vshrl.u32 %v97, 7
  %v99 = vsub.s32 1, %v98
  %v100 = vrot.slane %v91, %v99
  %v101 = vlaneseq
  %v102 = vshrl.u32 %v101, 7
  %v103 = vsub.s32 2, %v102
  %v104 = vrot.slane %v91, %v103
  %v172 = vunpack.c.l.b16 %v27
  %v173 = vunpack.c.h.b16 %v27
  %v174 = vunpack.c.l.b16 %v28
  %v175 = vunpack.c.l.b16 %v29
  %v176 = vunpack.c.h.b16 %v29
  %v177 = vunpack.c.l.b16 %v30
  %v178 = vunpack.c.l.b16 %v31
  %v179 = vunpack.c.h.b16 %v31
  %v180 = vunpack.c.l.b16 %v32
  %v181 = vunpack.c.l.b16 %v33
  %v182 = vunpack.c.h.b16 %v33
  %v183 = vunpack.c.l.b16 %v34
  %v184 = vunpack.c.l.b16 %v35
  %v185 = vunpack.c.h.b16 %v35
  %v186 = vunpack.c.l.b16 %v36
  %v187 = vunpack.c.l.b16 %v37
  %v188 = vunpack.c.h.b16 %v37
  %v189 = vunpack.c.l.b16 %v38
  %v190 = vunpack.c.l.b16 %v39
  %v191 = vunpack.c.h.b16 %v39
  %v192 = vunpack.c.l.b16 %v40
  %v193 = vunpack.c.l.b16 %v41
  %v194 = vunpack.c.h.b16 %v41
  %v195 = vunpack.c.l.b16 %v42
  %v196 = vunpack.c.l.b16 %v43
  %v197 = vunpack.c.h.b16 %v43
  %v198 = vunpack.c.l.b16 %v44
  %v199 = vunpack.c.l.b16 %v45
  %v200 = vunpack.c.h.b16 %v45
  %v201 = vunpack.c.l.b16 %v46
  %v202 = vunpack.c.l.b16 %v47
  %v203 = vunpack.c.h.b16 %v47
  %v204 = vunpack.c.l.b16 %v48
  %v205 = vunpack.c.l.b16 %v49
  %v206 = vunpack.c.h.b16 %v49
  %v207 = vunpack.c.l.b16 %v50
  %v208 = vunpack.c.l.b16 %v51
  %v209 = vunpack.c.h.b16 %v51
  %v210 = vunpack.c.l.b16 %v52
  %v211 = vunpack.c.l.b16 %v53
  %v212 = vunpack.c.h.b16 %v53
  %v213 = vunpack.c.l.b16 %v54
  %v214 = vunpack.c.l.b16 %v55
  %v215 = vunpack.c.h.b16 %v55
  %v216 = vunpack.c.l.b16 %v56
  %v217 = vunpack.c.l.b16 %v57
  %v218 = vunpack.c.h.b16 %v57
  %v219 = vunpack.c.l.b16 %v58
  %v220 = vunpack.c.l.b16 %v59
  %v221 = vunpack.c.h.b16 %v59
  %v222 = vunpack.c.l.b16 %v60
  %v223 = vunpack.c.l.b16 %v61
  %v224 = vunpack.c.h.b16 %v61
  %v225 = vunpack.c.l.b16 %v62
  %v226 = vunpack.c.l.b16 %v63
  %v227 = vunpack.c.h.b16 %v63
  %v228 = vunpack.c.l.b16 %v64
  %v229 = vunpack.c.l.b16 %v65
  %v230 = vunpack.c.h.b16 %v65
  %v231 = vunpack.c.l.b16 %v66
  %v232 = vunpack.c.l.b16 %v67
  %v233 = vunpack.c.h.b16 %v67
  %v234 = vunpack.c.l.b16 %v68
  %v235 = vunpack.c.l.b16 %v69
  %v236 = vunpack.c.h.b16 %v69
  %v237 = vunpack.c.l.b16 %v70
  %v238 = vunpack.c.l.b16 %v71
  %v239 = vunpack.c.h.b16 %v71
  %v240 = vunpack.c.l.b16 %v72
  %v241 = vunpack.c.l.b16 %v73
  %v242 = vunpack.c.h.b16 %v73
  %v243 = vunpack.c.l.b16 %v74
  %v244 = vunpack.c.l.b16 %v75
  %v245 = vunpack.c.h.b16 %v75
  %v246 = vunpack.c.l.b16 %v76
  %v247 = vunpack.c.l.b16 %v77
  %v248 = vunpack.c.h.b16 %v77
  %v249 = vunpack.c.l.b16 %v78
  %v250 = vunpack.c.l.b16 %v79
  %v251 = vunpack.c.h.b16 %v79
  %v252 = vunpack.c.l.b16 %v80
  %v253 = vunpack.c.l.b16 %v81
  %v254 = vunpack.c.h.b16 %v81
  %v255 = vunpack.c.l.b16 %v82
  %v256 = vunpack.c.l.b16 %v83
  %v257 = vunpack.c.h.b16 %v83
  %v258 = vunpack.c.l.b16 %v84
  %v259 = vunpack.c.l.b16 %v85
  %v260 = vunpack.c.h.b16 %v85
  %v261 = vunpack.c.l.b16 %v86
  %v262 = vunpack.c.l.b16 %v87
  %v263 = vunpack.c.h.b16 %v87
  %v264 = vunpack.c.l.b16 %v88
  %v265 = vunpack.c.l.b16 %v89
  %v266 = vunpack.c.h.b16 %v89
  %v267 = vunpack.c.l.b16 %v90
  %v268 = vpack.c.b16 %v175, %v172
  %v269 = vpack.c.b16 %v176, %v173
  %v270 = vpack.c.b16 %v177, %v174
  %v271 = vpack.c.b16 %v181, %v178
  %v272 = vpack.c.b16 %v182, %v179
  %v273 = vpack.c.b16 %v183, %v180
  %v274 = vpack.c.b16 %v187, %v184
  %v275 = vpack.c.b16 %v188, %v185
  %v276 = vpack.c.b16 %v189, %v186
  %v277 = vpack.c.b16 %v193, %v190
  %v278 = vpack.c.b16 %v194, %v191
  %v279 = vpack.c.b16 %v195, %v192
  %v280 = vpack.c.b16 %v199, %v196
  %v281 = vpack.c.b16 %v200, %v197
  %v282 = vpack.c.b16 %v201, %v198
  %v283 = vpack.c.b16 %v205, %v202
  %v284 = vpack.c.b16 %v206, %v203
  %v285 = vpack.c.b16 %v207, %v204
  %v286 = vpack.c.b16 %v211, %v208
  %v287 = vpack.c.b16 %v212, %v209
  %v288 = vpack.c.b16 %v213, %v210
  %v289 = vpack.c.b16 %v217, %v214
  %v290 = vpack.c.b16 %v218, %v215
  %v291 = vpack.c.b16 %v219, %v216
  %v292 = vpack.c.b16 %v223, %v220
  %v293 = vpack.c.b16 %v224, %v221
  %v294 = vpack.c.b16 %v225, %v222
  %v295 = vpack.c.b16 %v229, %v226
  %v296 = vpack.c.b16 %v230, %v227
  %v297 = vpack.c.b16 %v231, %v228
  %v298 = vpack.c.b16 %v235, %v232
  %v299 = vpack.c.b16 %v236, %v233
  %v300 = vpack.c.b16 %v237, %v234
  %v301 = vpack.c.b16 %v241, %v238
  %v302 = vpack.c.b16 %v242, %v239
  %v303 = vpack.c.b16 %v243, %v240
  %v304 = vpack.c.b16 %v247, %v244
  %v305 = vpack.c.b16 %v248, %v245
  %v306 = vpack.c.b16 %v249, %v246
  %v307 = vpack.c.b16 %v253, %v250
  %v308 = vpack.c.b16 %v254, %v251
  %v309 = vpack.c.b16 %v255, %v252
  %v310 = vpack.c.b16 %v259, %v256
  %v311 = vpack.c.b16 %v260, %v257
  %v312 = vpack.c.b16 %v261, %v258
  %v313 = vpack.c.b16 %v265, %v262
  %v314 = vpack.c.b16 %v266, %v263
  %v315 = vpack.c.b16 %v267, %v264
  %364 = vmatprep.subr.bf16.mxu0 %v269
  %365 = vmatpush1.bf16.msra.mxu0 %v268
  %366 = vmatprep.subr.bf16.mxu0 %v272
  %367 = vmatpush1.bf16.msra.mxu0 %v271
  %368 = vmatprep.subr.bf16.mxu0 %v275
  %369 = vmatpush1.bf16.msra.mxu0 %v274
  %370 = vmatprep.subr.bf16.mxu0 %v278
  %371 = vmatpush1.bf16.msra.mxu0 %v277
  %372 = vmatprep.subr.bf16.mxu0 %v281
  %373 = vmatpush1.bf16.msra.mxu0 %v280
  %374 = vmatprep.subr.bf16.mxu0 %v284
  %375 = vmatpush1.bf16.msra.mxu0 %v283
  %376 = vmatprep.subr.bf16.mxu0 %v287
  %377 = vmatpush1.bf16.msra.mxu0 %v286
  %378 = vmatprep.subr.bf16.mxu0 %v290
  %379 = vmatpush1.bf16.msra.mxu0 %v289
  %380 = vmatprep.subr.bf16.mxu0 %v293
  %381 = vmatpush1.bf16.msra.mxu0 %v292
  %382 = vmatprep.subr.bf16.mxu0 %v296
  %383 = vmatpush1.bf16.msra.mxu0 %v295
  %384 = vmatprep.subr.bf16.mxu0 %v299
  %385 = vmatpush1.bf16.msra.mxu0 %v298
  %386 = vmatprep.subr.bf16.mxu0 %v302
  %387 = vmatpush1.bf16.msra.mxu0 %v301
  %388 = vmatprep.subr.bf16.mxu0 %v305
  %389 = vmatpush1.bf16.msra.mxu0 %v304
  %390 = vmatprep.subr.bf16.mxu0 %v308
  %391 = vmatpush1.bf16.msra.mxu0 %v307
  %392 = vmatprep.subr.bf16.mxu0 %v311
  %393 = vmatpush1.bf16.msra.mxu0 %v310
  %394 = vmatprep.subr.bf16.mxu0 %v314
  %395 = vmatpush1.bf16.msra.mxu0 %v313
  %396 = vmatprep.mubr.bf16.mxu0 %v24
  %397 = vmatmul.mubr.bf16.gmra.mrb[0].mxu0 %v23
  %v398 = vpop.f32.mrb[0].mxu0
  %v399 = vadd.f32 %v96, %v398
  %v400 = vpop.f32.mrb[0].mxu0
  %v401 = vadd.f32 %v100, %v400
  %v402 = vpop.f32.mrb[0].mxu0
  %v403 = vadd.f32 %v96, %v402
  %v404 = vpop.f32.mrb[0].mxu0
  %v405 = vadd.f32 %v100, %v404
  %406 = vmatprep.mubr.bf16.mxu0 %v26
  %407 = vmatmul.mubr.bf16.gmra.mrb[0].mxu0 %v25
  %v408 = vpop.f32.mrb[0].mxu0
  %v409 = vadd.f32 %v96, %v408
  %v410 = vpop.f32.mrb[0].mxu0
  %v411 = vadd.f32 %v100, %v410
  %v412 = vpop.f32.mrb[0].mxu0
  %v413 = vadd.f32 %v96, %v412
  %v414 = vpop.f32.mrb[0].mxu0
  %v415 = vadd.f32 %v100, %v414
  %416 = vdwg.mxu0
  %417 = vmatprep.subr.bf16.mxu0 0
  %418 = vmatpush1.bf16.msra.mxu0 %v270
  %419 = vmatprep.subr.bf16.mxu0 0
  %420 = vmatpush1.bf16.msra.mxu0 %v273
  %421 = vmatprep.subr.bf16.mxu0 0
  %422 = vmatpush1.bf16.msra.mxu0 %v276
  %423 = vmatprep.subr.bf16.mxu0 0
  %424 = vmatpush1.bf16.msra.mxu0 %v279
  %425 = vmatprep.subr.bf16.mxu0 0
  %426 = vmatpush1.bf16.msra.mxu0 %v282
  %427 = vmatprep.subr.bf16.mxu0 0
  %428 = vmatpush1.bf16.msra.mxu0 %v285
  %429 = vmatprep.subr.bf16.mxu0 0
  %430 = vmatpush1.bf16.msra.mxu0 %v288
  %431 = vmatprep.subr.bf16.mxu0 0
  %432 = vmatpush1.bf16.msra.mxu0 %v291
  %433 = vmatprep.subr.bf16.mxu0 0
  %434 = vmatpush1.bf16.msra.mxu0 %v294
  %435 = vmatprep.subr.bf16.mxu0 0
  %436 = vmatpush1.bf16.msra.mxu0 %v297
  %437 = vmatprep.subr.bf16.mxu0 0
  %438 = vmatpush1.bf16.msra.mxu0 %v300
  %439 = vmatprep.subr.bf16.mxu0 0
  %440 = vmatpush1.bf16.msra.mxu0 %v303
  %441 = vmatprep.subr.bf16.mxu0 0
  %442 = vmatpush1.bf16.msra.mxu0 %v306
  %443 = vmatprep.subr.bf16.mxu0 0
  %444 = vmatpush1.bf16.msra.mxu0 %v309
  %445 = vmatprep.subr.bf16.mxu0 0
  %446 = vmatpush1.bf16.msra.mxu0 %v312
  %447 = vmatprep.subr.bf16.mxu0 0
  %448 = vmatpush1.bf16.msra.mxu0 %v315
  %449 = vmatprep.mubr.bf16.mxu0 %v24
  %450 = vmatmul.mubr.bf16.gmra.mrb[0].mxu0 %v23
  %v451 = vpop.f32.mrb[0].mxu0
  %v452 = vadd.f32 %v104, %v451
  %v453 = vpop.f32.mrb[0].mxu0
  %v454 = vpop.f32.mrb[0].mxu0
  %v455 = vadd.f32 %v104, %v454
  %v456 = vpop.f32.mrb[0].mxu0
  %457 = vmatprep.mubr.bf16.mxu0 %v26
  %458 = vmatmul.mubr.bf16.gmra.mrb[0].mxu0 %v25
  %v459 = vpop.f32.mrb[0].mxu0
  %v460 = vadd.f32 %v104, %v459
  %v461 = vpop.f32.mrb[0].mxu0
  %v462 = vpop.f32.mrb[0].mxu0
  %v463 = vadd.f32 %v104, %v462
  %v464 = vpop.f32.mrb[0].mxu0
  %465 = vdwg.mxu0
  %466 = vst [vmem:[%s3] sm:$0xff] %v399
  %467 = vst [vmem:[%s3 + $0x8] sm:$0xff] %v401
  %468 = vst [vmem:[%s3 + $0x10] sm:$0xff] %v452
  %469 = vst [vmem:[%s3 + $0x18] sm:$0xff] %v403
  %470 = vst [vmem:[%s3 + $0x20] sm:$0xff] %v405
  %471 = vst [vmem:[%s3 + $0x28] sm:$0xff] %v455
  %472 = vst [vmem:[%s3 + $0x30] sm:$0xff] %v409
  %473 = vst [vmem:[%s3 + $0x38] sm:$0xff] %v411
  %474 = vst [vmem:[%s3 + $0x40] sm:$0xff] %v460
  %475 = vst [vmem:[%s3 + $0x48] sm:$0xff] %v413
  %476 = vst [vmem:[%s3 + $0x50] sm:$0xff] %v415
  %477 = vst [vmem:[%s3 + $0x58] sm:$0xff] %v463
  // Predicated region
  $region14: #{depth_aware_transformer_forward.61} parent=0 // pred_check
    _
  $region15: #{depth_aware_transformer_forward.61} parent=0 // pred_check_branch
    %479 = sbr.rel (0) target = $region17
  $region16: #{depth_aware_transformer_forward.61} parent=0 // pred_region
    _
  $region17: #{depth_aware_transformer_forward.61} parent=0 // pred_fallthru
    _
  // Predicated region
  $region18: #{depth_aware_transformer_forward.61} parent=0 // pred_check
    _
  $region19: #{depth_aware_transformer_forward.61} parent=0 // pred_check_branch
    %481 = sbr.rel (0) target = $region21
  $region20: #{depth_aware_transformer_forward.61} parent=0 // pred_region
    _
  $region21: #{depth_aware_transformer_forward.61} parent=0 // pred_fallthru
    _

// kernel: depth_aware_transformer_forward.64
$region0: #{depth_aware_transformer_forward.64}
  #allocation0 [shape = 'u32[]', space=smem, size = 0x4, offset = 0x4, fixed_abs, tag = 'smem constant byte address 0x4 - core index']
  #allocation1 [shape = 'u32[144,128]{1,0:T(1,128)}', space=vmem, size = 0x12000, scoped, tag = 'internal scratch']
  %s0 = inlined_call_operand.vmem [shape: f32[32,256], index: 0, kind: input, shape index: {}]
  %s1 = inlined_call_operand.vmem [shape: bf16[256,256], index: 1, kind: input, shape index: {}]
  %s2 = inlined_call_operand.vmem [shape: f32[1,256], index: 2, kind: input, shape index: {}]
  %s3 = inlined_call_operand.vmem [shape: bf16[256,256], index: 3, kind: input, shape index: {}]
  %s4 = inlined_call_operand.vmem [shape: f32[1,256], index: 4, kind: input, shape index: {}]
  %s5 = inlined_call_operand.vmem [shape: f32[1,256], index: 5, kind: input, shape index: {}]
  %s6 = inlined_call_operand.vmem [shape: f32[1,256], index: 6, kind: input, shape index: {}]
  %s7 = inlined_call_operand.vmem [shape: f32[32,256], index: 7, kind: output, shape index: {}]
  %s8 = sld [smem:[#allocation0]]
  $region38: #{depth_aware_transformer_forward.64} parent=0
    _
  %s10 = ssub.s32 1, %s8
  %s11 = scalar_select 0, %s10, %s8
  // Predicated region
  $region2: #{depth_aware_transformer_forward.64} parent=0 // pred_check
    _
  $region3: #{depth_aware_transformer_forward.64} parent=0 // pred_check_branch
    %13 = sbr.rel (0) target = $region5
  $region4: #{depth_aware_transformer_forward.64} parent=0 // pred_region
    _
  $region5: #{depth_aware_transformer_forward.64} parent=0 // pred_fallthru
    _
  // Predicated region
  $region6: #{depth_aware_transformer_forward.64} parent=0 // pred_check
    _
  $region7: #{depth_aware_transformer_forward.64} parent=0 // pred_check_branch
    %15 = sbr.rel (0) target = $region9
  $region8: #{depth_aware_transformer_forward.64} parent=0 // pred_region
    _
  $region9: #{depth_aware_transformer_forward.64} parent=0 // pred_fallthru
    _
  // Predicated region
  $region10: #{depth_aware_transformer_forward.64} parent=0 // pred_check
    _
  $region11: #{depth_aware_transformer_forward.64} parent=0 // pred_check_branch
    %17 = sbr.rel (0) target = $region13
  $region12: #{depth_aware_transformer_forward.64} parent=0 // pred_region
    _
  $region13: #{depth_aware_transformer_forward.64} parent=0 // pred_fallthru
    _
  // Predicated region
  $region14: #{depth_aware_transformer_forward.64} parent=0 // pred_check
    _
  $region15: #{depth_aware_transformer_forward.64} parent=0 // pred_check_branch
    %19 = sbr.rel (0) target = $region17
  $region16: #{depth_aware_transformer_forward.64} parent=0 // pred_region
    _
  $region17: #{depth_aware_transformer_forward.64} parent=0 // pred_fallthru
    _
  // Predicated region
  $region18: #{depth_aware_transformer_forward.64} parent=0 // pred_check
    _
  $region19: #{depth_aware_transformer_forward.64} parent=0 // pred_check_branch
    %21 = sbr.rel (0) target = $region21
  $region20: #{depth_aware_transformer_forward.64} parent=0 // pred_region
    _
  $region21: #{depth_aware_transformer_forward.64} parent=0 // pred_fallthru
    _
  // Predicated region
  $region22: #{depth_aware_transformer_forward.64} parent=0 // pred_check
    _
  $region23: #{depth_aware_transformer_forward.64} parent=0 // pred_check_branch
    %23 = sbr.rel (0) target = $region25
  $region24: #{depth_aware_transformer_forward.64} parent=0 // pred_region
    _
  $region25: #{depth_aware_transformer_forward.64} parent=0 // pred_fallthru
    _
  // Predicated region
  $region26: #{depth_aware_transformer_forward.64} parent=0 // pred_check
    _
  $region27: #{depth_aware_transformer_forward.64} parent=0 // pred_check_branch
    %25 = sbr.rel (0) target = $region29
  $region28: #{depth_aware_transformer_forward.64} parent=0 // pred_region
    _
  $region29: #{depth_aware_transformer_forward.64} parent=0 // pred_fallthru
    _
  %v26 = vld [vmem:[%s0] sm:$0xff]
  %v27 = vld [vmem:[%s0 + $0x8] sm:$0xff]
  %v28 = vld [vmem:[%s0 + $0x10] sm:$0xff]
  %v29 = vld [vmem:[%s0 + $0x18] sm:$0xff]
  %v30 = vld [vmem:[%s0 + $0x20] sm:$0xff]
  %v31 = vld [vmem:[%s0 + $0x28] sm:$0xff]
  %v32 = vld [vmem:[%s0 + $0x30] sm:$0xff]
  %v33 = vld [vmem:[%s0 + $0x38] sm:$0xff]
  %v34 = vpack.c.bf16 %v28, %v26
  %v35 = vpack.c.bf16 %v29, %v27
  %v36 = vpack.c.bf16 %v32, %v30
  %v37 = vpack.c.bf16 %v33, %v31
  %v38 = vld [vmem:[%s1] sm:$0xff]
  %v39 = vld [vmem:[%s1 + $0x8] sm:$0xff]
  %v40 = vld [vmem:[%s1 + $0x10] sm:$0xff]
  %v41 = vld [vmem:[%s1 + $0x18] sm:$0xff]
  %v42 = vld [vmem:[%s1 + $0x20] sm:$0xff]
  %v43 = vld [vmem:[%s1 + $0x28] sm:$0xff]
  %v44 = vld [vmem:[%s1 + $0x30] sm:$0xff]
  %v45 = vld [vmem:[%s1 + $0x38] sm:$0xff]
  %v46 = vld [vmem:[%s1 + $0x40] sm:$0xff]
  %v47 = vld [vmem:[%s1 + $0x48] sm:$0xff]
  %v48 = vld [vmem:[%s1 + $0x50] sm:$0xff]
  %v49 = vld [vmem:[%s1 + $0x58] sm:$0xff]
  %v50 = vld [vmem:[%s1 + $0x60] sm:$0xff]
  %v51 = vld [vmem:[%s1 + $0x68] sm:$0xff]
  %v52 = vld [vmem:[%s1 + $0x70] sm:$0xff]
  %v53 = vld [vmem:[%s1 + $0x78] sm:$0xff]
  %v54 = vld [vmem:[%s1 + $0x80] sm:$0xff]
  %v55 = vld [vmem:[%s1 + $0x88] sm:$0xff]
  %v56 = vld [vmem:[%s1 + $0x90] sm:$0xff]
  %v57 = vld [vmem:[%s1 + $0x98] sm:$0xff]
  %v58 = vld [vmem:[%s1 + $0xa0] sm:$0xff]
  %v59 = vld [vmem:[%s1 + $0xa8] sm:$0xff]
  %v60 = vld [vmem:[%s1 + $0xb0] sm:$0xff]
  %v61 = vld [vmem:[%s1 + $0xb8] sm:$0xff]
  %v62 = vld [vmem:[%s1 + $0xc0] sm:$0xff]
  %v63 = vld [vmem:[%s1 + $0xc8] sm:$0xff]
  %v64 = vld [vmem:[%s1 + $0xd0] sm:$0xff]
  %v65 = vld [vmem:[%s1 + $0xd8] sm:$0xff]
  %v66 = vld [vmem:[%s1 + $0xe0] sm:$0xff]
  %v67 = vld [vmem:[%s1 + $0xe8] sm:$0xff]
  %v68 = vld [vmem:[%s1 + $0xf0] sm:$0xff]
  %v69 = vld [vmem:[%s1 + $0xf8] sm:$0xff]
  %v70 = vld [vmem:[%s2] sm:$0x3]
  %v72 = vlaneseq
  %v73 = vshrl.u32 %v72, 7
  %v74 = vsub.s32 0, %v73
  %v75 = vrot.slane %v70, %v74
  %v76 = vlaneseq
  %v77 = vshrl.u32 %v76, 7
  %v78 = vsub.s32 1, %v77
  %v79 = vrot.slane %v70, %v78
  %v114 = vunpack.c.l.b16 %v38
  %v115 = vunpack.c.h.b16 %v38
  %v116 = vunpack.c.l.b16 %v39
  %v117 = vunpack.c.h.b16 %v39
  %v118 = vunpack.c.l.b16 %v40
  %v119 = vunpack.c.h.b16 %v40
  %v120 = vunpack.c.l.b16 %v41
  %v121 = vunpack.c.h.b16 %v41
  %v122 = vunpack.c.l.b16 %v42
  %v123 = vunpack.c.h.b16 %v42
  %v124 = vunpack.c.l.b16 %v43
  %v125 = vunpack.c.h.b16 %v43
  %v126 = vunpack.c.l.b16 %v44
  %v127 = vunpack.c.h.b16 %v44
  %v128 = vunpack.c.l.b16 %v45
  %v129 = vunpack.c.h.b16 %v45
  %v130 = vunpack.c.l.b16 %v46
  %v131 = vunpack.c.h.b16 %v46
  %v132 = vunpack.c.l.b16 %v47
  %v133 = vunpack.c.h.b16 %v47
  %v134 = vunpack.c.l.b16 %v48
  %v135 = vunpack.c.h.b16 %v48
  %v136 = vunpack.c.l.b16 %v49
  %v137 = vunpack.c.h.b16 %v49
  %v138 = vunpack.c.l.b16 %v50
  %v139 = vunpack.c.h.b16 %v50
  %v140 = vunpack.c.l.b16 %v51
  %v141 = vunpack.c.h.b16 %v51
  %v142 = vunpack.c.l.b16 %v52
  %v143 = vunpack.c.h.b16 %v52
  %v144 = vunpack.c.l.b16 %v53
  %v145 = vunpack.c.h.b16 %v53
  %v146 = vunpack.c.l.b16 %v54
  %v147 = vunpack.c.h.b16 %v54
  %v148 = vunpack.c.l.b16 %v55
  %v149 = vunpack.c.h.b16 %v55
  %v150 = vunpack.c.l.b16 %v56
  %v151 = vunpack.c.h.b16 %v56
  %v152 = vunpack.c.l.b16 %v57
  %v153 = vunpack.c.h.b16 %v57
  %v154 = vunpack.c.l.b16 %v58
  %v155 = vunpack.c.h.b16 %v58
  %v156 = vunpack.c.l.b16 %v59
  %v157 = vunpack.c.h.b16 %v59
  %v158 = vunpack.c.l.b16 %v60
  %v159 = vunpack.c.h.b16 %v60
  %v160 = vunpack.c.l.b16 %v61
  %v161 = vunpack.c.h.b16 %v61
  %v162 = vunpack.c.l.b16 %v62
  %v163 = vunpack.c.h.b16 %v62
  %v164 = vunpack.c.l.b16 %v63
  %v165 = vunpack.c.h.b16 %v63
  %v166 = vunpack.c.l.b16 %v64
  %v167 = vunpack.c.h.b16 %v64
  %v168 = vunpack.c.l.b16 %v65
  %v169 = vunpack.c.h.b16 %v65
  %v170 = vunpack.c.l.b16 %v66
  %v171 = vunpack.c.h.b16 %v66
  %v172 = vunpack.c.l.b16 %v67
  %v173 = vunpack.c.h.b16 %v67
  %v174 = vunpack.c.l.b16 %v68
  %v175 = vunpack.c.h.b16 %v68
  %v176 = vunpack.c.l.b16 %v69
  %v177 = vunpack.c.h.b16 %v69
  %v178 = vpack.c.b16 %v116, %v114
  %v179 = vpack.c.b16 %v117, %v115
  %v180 = vpack.c.b16 %v120, %v118
  %v181 = vpack.c.b16 %v121, %v119
  %v182 = vpack.c.b16 %v124, %v122
  %v183 = vpack.c.b16 %v125, %v123
  %v184 = vpack.c.b16 %v128, %v126
  %v185 = vpack.c.b16 %v129, %v127
  %v186 = vpack.c.b16 %v132, %v130
  %v187 = vpack.c.b16 %v133, %v131
  %v188 = vpack.c.b16 %v136, %v134
  %v189 = vpack.c.b16 %v137, %v135
  %v190 = vpack.c.b16 %v140, %v138
  %v191 = vpack.c.b16 %v141, %v139
  %v192 = vpack.c.b16 %v144, %v142
  %v193 = vpack.c.b16 %v145, %v143
  %v194 = vpack.c.b16 %v148, %v146
  %v195 = vpack.c.b16 %v149, %v147
  %v196 = vpack.c.b16 %v152, %v150
  %v197 = vpack.c.b16 %v153, %v151
  %v198 = vpack.c.b16 %v156, %v154
  %v199 = vpack.c.b16 %v157, %v155
  %v200 = vpack.c.b16 %v160, %v158
  %v201 = vpack.c.b16 %v161, %v159
  %v202 = vpack.c.b16 %v164, %v162
  %v203 = vpack.c.b16 %v165, %v163
  %v204 = vpack.c.b16 %v168, %v166
  %v205 = vpack.c.b16 %v169, %v167
  %v206 = vpack.c.b16 %v172, %v170
  %v207 = vpack.c.b16 %v173, %v171
  %v208 = vpack.c.b16 %v176, %v174
  %v209 = vpack.c.b16 %v177, %v175
  %242 = vmatprep.subr.bf16.mxu0 %v179
  %243 = vmatpush1.bf16.msra.mxu0 %v178
  %244 = vmatprep.subr.bf16.mxu0 %v181
  %245 = vmatpush1.bf16.msra.mxu0 %v180
  %246 = vmatprep.subr.bf16.mxu0 %v183
  %247 = vmatpush1.bf16.msra.mxu0 %v182
  %248 = vmatprep.subr.bf16.mxu0 %v185
  %249 = vmatpush1.bf16.msra.mxu0 %v184
  %250 = vmatprep.subr.bf16.mxu0 %v187
  %251 = vmatpush1.bf16.msra.mxu0 %v186
  %252 = vmatprep.subr.bf16.mxu0 %v189
  %253 = vmatpush1.bf16.msra.mxu0 %v188
  %254 = vmatprep.subr.bf16.mxu0 %v191
  %255 = vmatpush1.bf16.msra.mxu0 %v190
  %256 = vmatprep.subr.bf16.mxu0 %v193
  %257 = vmatpush1.bf16.msra.mxu0 %v192
  %258 = vmatprep.subr.bf16.mxu0 %v195
  %259 = vmatpush1.bf16.msra.mxu0 %v194
  %260 = vmatprep.subr.bf16.mxu0 %v197
  %261 = vmatpush1.bf16.msra.mxu0 %v196
  %262 = vmatprep.subr.bf16.mxu0 %v199
  %263 = vmatpush1.bf16.msra.mxu0 %v198
  %264 = vmatprep.subr.bf16.mxu0 %v201
  %265 = vmatpush1.bf16.msra.mxu0 %v200
  %266 = vmatprep.subr.bf16.mxu0 %v203
  %267 = vmatpush1.bf16.msra.mxu0 %v202
  %268 = vmatprep.subr.bf16.mxu0 %v205
  %269 = vmatpush1.bf16.msra.mxu0 %v204
  %270 = vmatprep.subr.bf16.mxu0 %v207
  %271 = vmatpush1.bf16.msra.mxu0 %v206
  %272 = vmatprep.subr.bf16.mxu0 %v209
  %273 = vmatpush1.bf16.msra.mxu0 %v208
  %274 = vmatprep.mubr.bf16.mxu0 %v35
  %275 = vmatmul.mubr.bf16.gmra.mrb[0].mxu0 %v34
  %v276 = vpop.f32.mrb[0].mxu0
  %v277 = vadd.f32 %v75, %v276
  %v278 = vpop.f32.mrb[0].mxu0
  %v279 = vadd.f32 %v79, %v278
  %v280 = vpop.f32.mrb[0].mxu0
  %v281 = vadd.f32 %v75, %v280
  %v282 = vpop.f32.mrb[0].mxu0
  %v283 = vadd.f32 %v79, %v282
  %284 = vmatprep.mubr.bf16.mxu0 %v37
  %285 = vmatmul.mubr.bf16.gmra.mrb[0].mxu0 %v36
  %v286 = vpop.f32.mrb[0].mxu0
  %v287 = vadd.f32 %v75, %v286
  %v288 = vpop.f32.mrb[0].mxu0
  %v289 = vadd.f32 %v79, %v288
  %v290 = vpop.f32.mrb[0].mxu0
  %v291 = vadd.f32 %v75, %v290
  %v292 = vpop.f32.mrb[0].mxu0
  %v293 = vadd.f32 %v79, %v292
  %294 = vdwg.mxu0
  %v295 = vmax.f32 %v277, 0.0
  %v296 = vmax.f32 %v279, 0.0
  %v297 = vmax.f32 %v281, 0.0
  %v298 = vmax.f32 %v283, 0.0
  %v299 = vmax.f32 %v287, 0.0
  %v300 = vmax.f32 %v289, 0.0
  %v301 = vmax.f32 %v291, 0.0
  %v302 = vmax.f32 %v293, 0.0
  %v303 = vpack.c.bf16 %v297, %v295
  %v304 = vpack.c.bf16 %v298, %v296
  %v305 = vpack.c.bf16 %v301, %v299
  %v306 = vpack.c.bf16 %v302, %v300
  %v307 = vld [vmem:[%s3] sm:$0xff]
  %v308 = vld [vmem:[%s3 + $0x8] sm:$0xff]
  %v309 = vld [vmem:[%s3 + $0x10] sm:$0xff]
  %v310 = vld [vmem:[%s3 + $0x18] sm:$0xff]
  %v311 = vld [vmem:[%s3 + $0x20] sm:$0xff]
  %v312 = vld [vmem:[%s3 + $0x28] sm:$0xff]
  %v313 = vld [vmem:[%s3 + $0x30] sm:$0xff]
  %v314 = vld [vmem:[%s3 + $0x38] sm:$0xff]
  %v315 = vld [vmem:[%s3 + $0x40] sm:$0xff]
  %v316 = vld [vmem:[%s3 + $0x48] sm:$0xff]
  %v317 = vld [vmem:[%s3 + $0x50] sm:$0xff]
  %v318 = vld [vmem:[%s3 + $0x58] sm:$0xff]
  %v319 = vld [vmem:[%s3 + $0x60] sm:$0xff]
  %v320 = vld [vmem:[%s3 + $0x68] sm:$0xff]
  %v321 = vld [vmem:[%s3 + $0x70] sm:$0xff]
  %v322 = vld [vmem:[%s3 + $0x78] sm:$0xff]
  %v323 = vld [vmem:[%s3 + $0x80] sm:$0xff]
  %v324 = vld [vmem:[%s3 + $0x88] sm:$0xff]
  %v325 = vld [vmem:[%s3 + $0x90] sm:$0xff]
  %v326 = vld [vmem:[%s3 + $0x98] sm:$0xff]
  %v327 = vld [vmem:[%s3 + $0xa0] sm:$0xff]
  %v328 = vld [vmem:[%s3 + $0xa8] sm:$0xff]
  %v329 = vld [vmem:[%s3 + $0xb0] sm:$0xff]
  %v330 = vld [vmem:[%s3 + $0xb8] sm:$0xff]
  %v331 = vld [vmem:[%s3 + $0xc0] sm:$0xff]
  %v332 = vld [vmem:[%s3 + $0xc8] sm:$0xff]
  %v333 = vld [vmem:[%s3 + $0xd0] sm:$0xff]
  %v334 = vld [vmem:[%s3 + $0xd8] sm:$0xff]
  %v335 = vld [vmem:[%s3 + $0xe0] sm:$0xff]
  %v336 = vld [vmem:[%s3 + $0xe8] sm:$0xff]
  %v337 = vld [vmem:[%s3 + $0xf0] sm:$0xff]
  %v338 = vld [vmem:[%s3 + $0xf8] sm:$0xff]
  %v339 = vld [vmem:[%s4] sm:$0x3]
  %v341 = vlaneseq
  %v342 = vshrl.u32 %v341, 7
  %v343 = vsub.s32 0, %v342
  %v344 = vrot.slane %v339, %v343
  %v345 = vlaneseq
  %v346 = vshrl.u32 %v345, 7
  %v347 = vsub.s32 1, %v346
  %v348 = vrot.slane %v339, %v347
  %v383 = vunpack.c.l.b16 %v307
  %v384 = vunpack.c.h.b16 %v307
  %v385 = vunpack.c.l.b16 %v308
  %v386 = vunpack.c.h.b16 %v308
  %v387 = vunpack.c.l.b16 %v309
  %v388 = vunpack.c.h.b16 %v309
  %v389 = vunpack.c.l.b16 %v310
  %v390 = vunpack.c.h.b16 %v310
  %v391 = vunpack.c.l.b16 %v311
  %v392 = vunpack.c.h.b16 %v311
  %v393 = vunpack.c.l.b16 %v312
  %v394 = vunpack.c.h.b16 %v312
  %v395 = vunpack.c.l.b16 %v313
  %v396 = vunpack.c.h.b16 %v313
  %v397 = vunpack.c.l.b16 %v314
  %v398 = vunpack.c.h.b16 %v314
  %v399 = vunpack.c.l.b16 %v315
  %v400 = vunpack.c.h.b16 %v315
  %v401 = vunpack.c.l.b16 %v316
  %v402 = vunpack.c.h.b16 %v316
  %v403 = vunpack.c.l.b16 %v317
  %v404 = vunpack.c.h.b16 %v317
  %v405 = vunpack.c.l.b16 %v318
  %v406 = vunpack.c.h.b16 %v318
  %v407 = vunpack.c.l.b16 %v319
  %v408 = vunpack.c.h.b16 %v319
  %v409 = vunpack.c.l.b16 %v320
  %v410 = vunpack.c.h.b16 %v320
  %v411 = vunpack.c.l.b16 %v321
  %v412 = vunpack.c.h.b16 %v321
  %v413 = vunpack.c.l.b16 %v322
  %v414 = vunpack.c.h.b16 %v322
  %v415 = vunpack.c.l.b16 %v323
  %v416 = vunpack.c.h.b16 %v323
  %v417 = vunpack.c.l.b16 %v324
  %v418 = vunpack.c.h.b16 %v324
  %v419 = vunpack.c.l.b16 %v325
  %v420 = vunpack.c.h.b16 %v325
  %v421 = vunpack.c.l.b16 %v326
  %v422 = vunpack.c.h.b16 %v326
  %v423 = vunpack.c.l.b16 %v327
  %v424 = vunpack.c.h.b16 %v327
  %v425 = vunpack.c.l.b16 %v328
  %v426 = vunpack.c.h.b16 %v328
  %v427 = vunpack.c.l.b16 %v329
  %v428 = vunpack.c.h.b16 %v329
  %v429 = vunpack.c.l.b16 %v330
  %v430 = vunpack.c.h.b16 %v330
  %v431 = vunpack.c.l.b16 %v331
  %v432 = vunpack.c.h.b16 %v331
  %v433 = vunpack.c.l.b16 %v332
  %v434 = vunpack.c.h.b16 %v332
  %v435 = vunpack.c.l.b16 %v333
  %v436 = vunpack.c.h.b16 %v333
  %v437 = vunpack.c.l.b16 %v334
  %v438 = vunpack.c.h.b16 %v334
  %v439 = vunpack.c.l.b16 %v335
  %v440 = vunpack.c.h.b16 %v335
  %v441 = vunpack.c.l.b16 %v336
  %v442 = vunpack.c.h.b16 %v336
  %v443 = vunpack.c.l.b16 %v337
  %v444 = vunpack.c.h.b16 %v337
  %v445 = vunpack.c.l.b16 %v338
  %v446 = vunpack.c.h.b16 %v338
  %v447 = vpack.c.b16 %v385, %v383
  %v448 = vpack.c.b16 %v386, %v384
  %v449 = vpack.c.b16 %v389, %v387
  %v450 = vpack.c.b16 %v390, %v388
  %v451 = vpack.c.b16 %v393, %v391
  %v452 = vpack.c.b16 %v394, %v392
  %v453 = vpack.c.b16 %v397, %v395
  %v454 = vpack.c.b16 %v398, %v396
  %v455 = vpack.c.b16 %v401, %v399
  %v456 = vpack.c.b16 %v402, %v400
  %v457 = vpack.c.b16 %v405, %v403
  %v458 = vpack.c.b16 %v406, %v404
  %v459 = vpack.c.b16 %v409, %v407
  %v460 = vpack.c.b16 %v410, %v408
  %v461 = vpack.c.b16 %v413, %v411
  %v462 = vpack.c.b16 %v414, %v412
  %v463 = vpack.c.b16 %v417, %v415
  %v464 = vpack.c.b16 %v418, %v416
  %v465 = vpack.c.b16 %v421, %v419
  %v466 = vpack.c.b16 %v422, %v420
  %v467 = vpack.c.b16 %v425, %v423
  %v468 = vpack.c.b16 %v426, %v424
  %v469 = vpack.c.b16 %v429, %v427
  %v470 = vpack.c.b16 %v430, %v428
  %v471 = vpack.c.b16 %v433, %v431
  %v472 = vpack.c.b16 %v434, %v432
  %v473 = vpack.c.b16 %v437, %v435
  %v474 = vpack.c.b16 %v438, %v436
  %v475 = vpack.c.b16 %v441, %v439
  %v476 = vpack.c.b16 %v442, %v440
  %v477 = vpack.c.b16 %v445, %v443
  %v478 = vpack.c.b16 %v446, %v444
  %511 = vmatprep.subr.bf16.mxu0 %v448
  %512 = vmatpush1.bf16.msra.mxu0 %v447
  %513 = vmatprep.subr.bf16.mxu0 %v450
  %514 = vmatpush1.bf16.msra.mxu0 %v449
  %515 = vmatprep.subr.bf16.mxu0 %v452
  %516 = vmatpush1.bf16.msra.mxu0 %v451
  %517 = vmatprep.subr.bf16.mxu0 %v454
  %518 = vmatpush1.bf16.msra.mxu0 %v453
  %519 = vmatprep.subr.bf16.mxu0 %v456
  %520 = vmatpush1.bf16.msra.mxu0 %v455
  %521 = vmatprep.subr.bf16.mxu0 %v458
  %522 = vmatpush1.bf16.msra.mxu0 %v457
  %523 = vmatprep.subr.bf16.mxu0 %v460
  %524 = vmatpush1.bf16.msra.mxu0 %v459
  %525 = vmatprep.subr.bf16.mxu0 %v462
  %526 = vmatpush1.bf16.msra.mxu0 %v461
  %527 = vmatprep.subr.bf16.mxu0 %v464
  %528 = vmatpush1.bf16.msra.mxu0 %v463
  %529 = vmatprep.subr.bf16.mxu0 %v466
  %530 = vmatpush1.bf16.msra.mxu0 %v465
  %531 = vmatprep.subr.bf16.mxu0 %v468
  %532 = vmatpush1.bf16.msra.mxu0 %v467
  %533 = vmatprep.subr.bf16.mxu0 %v470
  %534 = vmatpush1.bf16.msra.mxu0 %v469
  %535 = vmatprep.subr.bf16.mxu0 %v472
  %536 = vmatpush1.bf16.msra.mxu0 %v471
  %537 = vmatprep.subr.bf16.mxu0 %v474
  %538 = vmatpush1.bf16.msra.mxu0 %v473
  %539 = vmatprep.subr.bf16.mxu0 %v476
  %540 = vmatpush1.bf16.msra.mxu0 %v475
  %541 = vmatprep.subr.bf16.mxu0 %v478
  %542 = vmatpush1.bf16.msra.mxu0 %v477
  %543 = vmatprep.mubr.bf16.mxu0 %v304
  %544 = vmatmul.mubr.bf16.gmra.mrb[0].mxu0 %v303
  %v545 = vpop.f32.mrb[0].mxu0
  %v546 = vadd.f32 %v344, %v545
  %v547 = vpop.f32.mrb[0].mxu0
  %v548 = vadd.f32 %v348, %v547
  %v549 = vpop.f32.mrb[0].mxu0
  %v550 = vadd.f32 %v344, %v549
  %v551 = vpop.f32.mrb[0].mxu0
  %v552 = vadd.f32 %v348, %v551
  %553 = vmatprep.mubr.bf16.mxu0 %v306
  %554 = vmatmul.mubr.bf16.gmra.mrb[0].mxu0 %v305
  %v555 = vpop.f32.mrb[0].mxu0
  %v556 = vadd.f32 %v344, %v555
  %v557 = vpop.f32.mrb[0].mxu0
  %v558 = vadd.f32 %v348, %v557
  %v559 = vpop.f32.mrb[0].mxu0
  %v560 = vadd.f32 %v344, %v559
  %v561 = vpop.f32.mrb[0].mxu0
  %v562 = vadd.f32 %v348, %v561
  %563 = vdwg.mxu0
  %v564 = vadd.f32 %v26, %v546
  %v565 = vadd.f32 %v27, %v548
  %v566 = vadd.f32 %v28, %v550
  %v567 = vadd.f32 %v29, %v552
  %v568 = vadd.f32 %v30, %v556
  %v569 = vadd.f32 %v31, %v558
  %v570 = vadd.f32 %v32, %v560
  %v571 = vadd.f32 %v33, %v562
  %v572 = vadd.f32 %v564, %v565
  %573 = vadd.xlane.f32.xlu0 %v572
  %v574 = vpop.xlane.xlu0 %573
  %v575 = vadd.f32 %v566, %v567
  %576 = vadd.xlane.f32.xlu0 %v575
  %v577 = vpop.xlane.xlu0 %576
  %v578 = vadd.f32 %v568, %v569
  %579 = vadd.xlane.f32.xlu0 %v578
  %v580 = vpop.xlane.xlu0 %579
  %v581 = vadd.f32 %v570, %v571
  %582 = vadd.xlane.f32.xlu0 %v581
  %v583 = vpop.xlane.xlu0 %582
  %v584 = vrcp.pop 256.0
  %v585 = vmul.f32 %v574, %v584
  %v586 = vmul.f32 %v577, %v584
  %v587 = vmul.f32 %v580, %v584
  %v588 = vmul.f32 %v583, %v584
  %v589 = vsub.f32 %v564, %v585
  %v590 = vsub.f32 %v565, %v585
  %v591 = vsub.f32 %v566, %v586
  %v592 = vsub.f32 %v567, %v586
  %v593 = vsub.f32 %v568, %v587
  %v594 = vsub.f32 %v569, %v587
  %v595 = vsub.f32 %v570, %v588
  %v596 = vsub.f32 %v571, %v588
  %v597 = vmul.f32 %v589, %v589
  %v598 = vmul.f32 %v590, %v590
  %v599 = vmul.f32 %v591, %v591
  %v600 = vmul.f32 %v592, %v592
  %v601 = vmul.f32 %v593, %v593
  %v602 = vmul.f32 %v594, %v594
  %v603 = vmul.f32 %v595, %v595
  %v604 = vmul.f32 %v596, %v596
  %v605 = vadd.f32 %v597, %v598
  %606 = vadd.xlane.f32.xlu0 %v605
  %v607 = vpop.xlane.xlu0 %606
  %v608 = vadd.f32 %v599, %v600
  %609 = vadd.xlane.f32.xlu0 %v608
  %v610 = vpop.xlane.xlu0 %609
  %v611 = vadd.f32 %v601, %v602
  %612 = vadd.xlane.f32.xlu0 %v611
  %v613 = vpop.xlane.xlu0 %612
  %v614 = vadd.f32 %v603, %v604
  %615 = vadd.xlane.f32.xlu0 %v614
  %v616 = vpop.xlane.xlu0 %615
  %v617 = vmul.f32 %v607, %v584
  %v618 = vmul.f32 %v610, %v584
  %v619 = vmul.f32 %v613, %v584
  %v620 = vmul.f32 %v616, %v584
  %v621 = vadd.f32 %v617, 1e-05
  %v622 = vadd.f32 %v618, 1e-05
  %v623 = vadd.f32 %v619, 1e-05
  %v624 = vadd.f32 %v620, 1e-05
  %v625 = vrsqrt.pop %v621
  %v626 = vrsqrt.pop %v622
  %v627 = vrsqrt.pop %v623
  %v628 = vrsqrt.pop %v624
  %v629 = vmul.f32 %v589, %v625
  %v630 = vmul.f32 %v590, %v625
  %v631 = vmul.f32 %v591, %v626
  %v632 = vmul.f32 %v592, %v626
  %v633 = vmul.f32 %v593, %v627
  %v634 = vmul.f32 %v594, %v627
  %v635 = vmul.f32 %v595, %v628
  %v636 = vmul.f32 %v596, %v628
  %v637 = vld [vmem:[%s5] sm:$0x3]
  %v639 = vlaneseq
  %v640 = vshrl.u32 %v639, 7
  %v641 = vsub.s32 0, %v640
  %v642 = vrot.slane %v637, %v641
  %v643 = vlaneseq
  %v644 = vshrl.u32 %v643, 7
  %v645 = vsub.s32 1, %v644
  %v646 = vrot.slane %v637, %v645
  %v649 = vmul.f32 %v629, %v642
  %v650 = vmul.f32 %v630, %v646
  %v651 = vmul.f32 %v631, %v642
  %v652 = vmul.f32 %v632, %v646
  %v653 = vmul.f32 %v633, %v642
  %v654 = vmul.f32 %v634, %v646
  %v655 = vmul.f32 %v635, %v642
  %v656 = vmul.f32 %v636, %v646
  %v657 = vld [vmem:[%s6] sm:$0x3]
  %v659 = vlaneseq
  %v660 = vshrl.u32 %v659, 7
  %v661 = vsub.s32 0, %v660
  %v662 = vrot.slane %v657, %v661
  %v663 = vlaneseq
  %v664 = vshrl.u32 %v663, 7
  %v665 = vsub.s32 1, %v664
  %v666 = vrot.slane %v657, %v665
  %v669 = vadd.f32 %v649, %v662
  %v670 = vadd.f32 %v650, %v666
  %v671 = vadd.f32 %v651, %v662
  %v672 = vadd.f32 %v652, %v666
  %v673 = vadd.f32 %v653, %v662
  %v674 = vadd.f32 %v654, %v666
  %v675 = vadd.f32 %v655, %v662
  %v676 = vadd.f32 %v656, %v666
  %677 = vst [vmem:[%s7] sm:$0xff] %v669
  %678 = vst [vmem:[%s7 + $0x8] sm:$0xff] %v670
  %679 = vst [vmem:[%s7 + $0x10] sm:$0xff] %v671
  %680 = vst [vmem:[%s7 + $0x18] sm:$0xff] %v672
  %681 = vst [vmem:[%s7 + $0x20] sm:$0xff] %v673
  %682 = vst [vmem:[%s7 + $0x28] sm:$0xff] %v674
  %683 = vst [vmem:[%s7 + $0x30] sm:$0xff] %v675
  %684 = vst [vmem:[%s7 + $0x38] sm:$0xff] %v676
  // Predicated region
  $region30: #{depth_aware_transformer_forward.64} parent=0 // pred_check
    _
  $region31: #{depth_aware_transformer_forward.64} parent=0 // pred_check_branch
    %686 = sbr.rel (0) target = $region33
  $region32: #{depth_aware_transformer_forward.64} parent=0 // pred_region
    _
  $region33: #{depth_aware_transformer_forward.64} parent=0 // pred_fallthru
    _
  // Predicated region
  $region34: #{depth_aware_transformer_forward.64} parent=0 // pred_check
    _
  $region35: #{depth_aware_transformer_forward.64} parent=0 // pred_check_branch
    %688 = sbr.rel (0) target = $region37
  $region36: #{depth_aware_transformer_forward.64} parent=0 // pred_region
    _
  $region37: #{depth_aware_transformer_forward.64} parent=0 // pred_fallthru
    _

</llo_original>
